<compile_context>
chip_gen: v7x
topology: tpu7x:2x2x1
jax: 0.10.0
libtpu: 0.0.40
codegen_flags: <defaults>
</compile_context>

<pallas_src>
import functools
import math

import jax
import jax.numpy as jnp
from jax.experimental import pallas as pl
from jax.experimental.pallas import tpu as pltpu


# ----------------------------------------------------------------------------- kernel
def _gru_regressor_kernel(*refs, seq_len, batch, hidden, num_layers):
    """Entire GRURegressor forward in one kernel invocation.

    refs layout:
      [0]              x_ref   (S*B, input_dim)   seq-major rows
      [1+4l .. 4+4l]   wih (In_l, 3H), whh (3, H, H), bih (1, 3H), bhh (3, 1, H)
      [1+4L]           fc_w (H, Out)
      [2+4L]           fc_b (1, Out)
      [3+4L]           out_ref (B, Out)
      [4+4L]           seq_scr VMEM (S*B, H)  inter-layer activations
    """
    H = hidden
    B = batch
    x_ref = refs[0]
    fc_w_ref = refs[1 + 4 * num_layers]
    fc_b_ref = refs[2 + 4 * num_layers]
    out_ref = refs[3 + 4 * num_layers]
    seq_scr = refs[4 + 4 * num_layers]

    h_last = None
    for l in range(num_layers):
        wih_ref, whh_ref, bih_ref, bhh_ref = refs[1 + 4 * l: 5 + 4 * l]

        # Layer input: original x for layer 0, previous layer's outputs (VMEM) after.
        x2 = x_ref[...] if l == 0 else seq_scr[...]                # (S*B, In_l)

        # (1) One fused MXU pass: input->gates for every timestep of this layer.
        gx_all = (jnp.dot(x2, wih_ref[...], preferred_element_type=jnp.float32)
                  + bih_ref[...])                                  # (S*B, 3H)
        # Gate column split hoisted out of the timestep loop.
        gx_r = gx_all[:, :H]
        gx_z = gx_all[:, H:2 * H]
        gx_n = gx_all[:, 2 * H:]

        # Per-gate recurrent weights -> zero lane slicing inside the loop.
        w_hr = whh_ref[0]
        w_hz = whh_ref[1]
        w_hn = whh_ref[2]
        b_hr = bhh_ref[0]
        b_hz = bhh_ref[1]
        b_hn = bhh_ref[2]

        # (2) Sequential GRU recurrence (short, statically unrolled).
        # PyTorch gate order is [r, z, n]; b_hn stays inside the r-gated term.
        h = jnp.zeros((B, H), jnp.float32)
        for t in range(seq_len):
            lo = t * B
            gh_r = jnp.dot(h, w_hr, preferred_element_type=jnp.float32) + b_hr
            gh_z = jnp.dot(h, w_hz, preferred_element_type=jnp.float32) + b_hz
            gh_n = jnp.dot(h, w_hn, preferred_element_type=jnp.float32) + b_hn
            r = jax.nn.sigmoid(gx_r[lo:lo + B, :] + gh_r)
            z = jax.nn.sigmoid(gx_z[lo:lo + B, :] + gh_z)
            n = jnp.tanh(gx_n[lo:lo + B, :] + r * gh_n)
            h = (1.0 - z) * n + z * h
            if l < num_layers - 1:
                # Next layer's input stays resident in VMEM.
                seq_scr[lo:lo + B, :] = h
        h_last = h
        # TODO(synk): nn.GRU applies dropout(p=0.2) between layers in training
        # mode only; identity here (evaluation semantics).

    # (3) Final Linear on the last timestep's hidden state.
    y = (jnp.dot(h_last, fc_w_ref[...], preferred_element_type=jnp.float32)
         + fc_b_ref[...])
    out_ref[...] = y.astype(out_ref.dtype)


# ----------------------------------------------------------------------------- wrapper
def gru_regressor(x, params):
    """x: (B, S, input_dim) -> (B, output_dim). Matches PyTorch GRURegressor (eval)."""
    b, s, in_dim = x.shape
    layers = params["layers"]
    hidden = layers[0]["whh"].shape[-1]
    out_dim = params["fc_w"].shape[1]

    # Seq-major rows so timestep t occupies the contiguous row block [t*B, (t+1)*B).
    x_rows = jnp.transpose(x, (1, 0, 2)).reshape(s * b, in_dim)

    args = [x_rows]
    for lp in layers:
        args += [lp["wih"], lp["whh"], lp["bih"], lp["bhh"]]
    args += [params["fc_w"], params["fc_b"]]

    kern = functools.partial(_gru_regressor_kernel, seq_len=s, batch=b,
                             hidden=hidden, num_layers=len(layers))
    return pl.pallas_call(
        kern,
        out_shape=jax.ShapeDtypeStruct((b, out_dim), jnp.float32),
        in_specs=[pl.BlockSpec(memory_space=pltpu.MemorySpace.VMEM)] * len(args),
        out_specs=pl.BlockSpec(memory_space=pltpu.MemorySpace.VMEM),
        scratch_shapes=[pltpu.VMEM((s * b, hidden), jnp.float32)],
    )(*args)


# ----------------------------------------------------------------------------- init
def init_params(key, input_dim, hidden_dim, output_dim, num_layers=3):
    """PyTorch-style init; weights stored pre-transposed / per-gate for the MXU."""
    keys = iter(jax.random.split(key, 4 * num_layers + 2))
    bound = 1.0 / math.sqrt(hidden_dim)

    def uni(shape, bnd):
        return jax.random.uniform(next(keys), shape, jnp.float32, -bnd, bnd)

    H = hidden_dim
    layers = []
    for l in range(num_layers):
        in_l = input_dim if l == 0 else H
        w_ih = uni((3 * H, in_l), bound)          # torch layout (3H, In)
        w_hh = uni((3 * H, H), bound)             # torch layout (3H, H)
        b_ih = uni((3 * H,), bound)
        b_hh = uni((3 * H,), bound)
        layers.append({
            "wih": w_ih.T,                                        # (In_l, 3H)
            "whh": jnp.transpose(w_hh.reshape(3, H, H), (0, 2, 1)),  # (3, H, H), w[g] = W_g.T
            "bih": b_ih[None, :],                                 # (1, 3H)
            "bhh": b_hh.reshape(3, 1, H),                         # (3, 1, H)
        })

    fc_bound = 1.0 / math.sqrt(H)
    fc_w = uni((output_dim, H), fc_bound).T                       # (H, Out)
    fc_b = uni((output_dim,), fc_bound)[None, :]                  # (1, Out)
    return {"layers": layers, "fc_w": fc_w, "fc_b": fc_b}


# ----------------------------------------------------------------------------- reference
def gru_regressor_reference(x, params):
    """Pure-JAX reference with identical semantics (for correctness check)."""
    b, s, _ = x.shape
    layers = params["layers"]
    H = layers[0]["whh"].shape[-1]
    layer_in = x                                                  # (B, S, In)
    for lp in layers:
        h = jnp.zeros((b, H), jnp.float32)
        outs = []
        for t in range(s):
            gx = layer_in[:, t, :] @ lp["wih"] + lp["bih"]        # (B, 3H)
            r = jax.nn.sigmoid(gx[:, :H] + h @ lp["whh"][0] + lp["bhh"][0])
            z = jax.nn.sigmoid(gx[:, H:2 * H] + h @ lp["whh"][1] + lp["bhh"][1])
            n = jnp.tanh(gx[:, 2 * H:] + r * (h @ lp["whh"][2] + lp["bhh"][2]))
            h = (1.0 - z) * n + z * h
            outs.append(h)
        layer_in = jnp.stack(outs, axis=1)                        # (B, S, H)
    return layer_in[:, -1, :] @ params["fc_w"] + params["fc_b"]


if __name__ == "__main__":
    B, S, INPUT_DIM, HIDDEN_DIM, OUTPUT_DIM, NUM_LAYERS = 2, 8, 16, 32, 4, 3
    key = jax.random.PRNGKey(0)
    pkey, xkey = jax.random.split(key)

    params = init_params(pkey, INPUT_DIM, HIDDEN_DIM, OUTPUT_DIM, NUM_LAYERS)
    x = jax.random.normal(xkey, (B, S, INPUT_DIM), jnp.float32)

    y = gru_regressor(x, params)
    jax.block_until_ready(y)
    assert y.shape == (B, OUTPUT_DIM) and y.dtype == jnp.float32

    y_ref = gru_regressor_reference(x, params)
    err = float(jnp.max(jnp.abs(y - y_ref)))
    assert jnp.allclose(y, y_ref, rtol=1e-3, atol=1e-3), f"max |err| = {err}"

    print("KERNEL_OK")
</pallas_src>

<mosaic_0001>
module attributes {stable_mosaic.version = 11 : i64} {
  func.func @_gru_regressor_kernel(%arg0: memref<16x16xf32, #tpu.memory_space<vmem>>, %arg1: memref<16x96xf32, #tpu.memory_space<vmem>>, %arg2: memref<3x32x32xf32, #tpu.memory_space<vmem>>, %arg3: memref<1x96xf32, #tpu.memory_space<vmem>>, %arg4: memref<3x1x32xf32, #tpu.memory_space<vmem>>, %arg5: memref<32x96xf32, #tpu.memory_space<vmem>>, %arg6: memref<3x32x32xf32, #tpu.memory_space<vmem>>, %arg7: memref<1x96xf32, #tpu.memory_space<vmem>>, %arg8: memref<3x1x32xf32, #tpu.memory_space<vmem>>, %arg9: memref<32x96xf32, #tpu.memory_space<vmem>>, %arg10: memref<3x32x32xf32, #tpu.memory_space<vmem>>, %arg11: memref<1x96xf32, #tpu.memory_space<vmem>>, %arg12: memref<3x1x32xf32, #tpu.memory_space<vmem>>, %arg13: memref<32x4xf32, #tpu.memory_space<vmem>>, %arg14: memref<1x4xf32, #tpu.memory_space<vmem>>, %arg15: memref<2x4xf32, #tpu.memory_space<vmem>>, %arg16: memref<16x32xf32, #tpu.memory_space<vmem>>) attributes {dimension_semantics = [], scalar_prefetch = 0 : i64, scratch_operands = 1 : i64, tpu.core_type = #tpu.core_type<tc>} {
    %c0 = arith.constant 0 : index
    %c0_0 = arith.constant 0 : index
    %0 = vector.load %arg0[%c0, %c0_0] : memref<16x16xf32, #tpu.memory_space<vmem>>, vector<16x16xf32>
    %c0_1 = arith.constant 0 : index
    %c0_2 = arith.constant 0 : index
    %1 = vector.load %arg1[%c0_1, %c0_2] : memref<16x96xf32, #tpu.memory_space<vmem>>, vector<16x96xf32>
    %cst = arith.constant dense<0.000000e+00> : vector<16x96xf32>
    %2 = tpu.matmul %0, %1, %cst {dimension_numbers = #tpu.dot_dimension_numbers<[1], [0], [0], [1], [0, 0, 1, 1], [], []>} : vector<16x16xf32>, vector<16x96xf32>, vector<16x96xf32> -> vector<16x96xf32>
    %c0_3 = arith.constant 0 : index
    %c0_4 = arith.constant 0 : index
    %3 = vector.load %arg3[%c0_3, %c0_4] : memref<1x96xf32, #tpu.memory_space<vmem>>, vector<1x96xf32>
    %4 = vector.broadcast %3 : vector<1x96xf32> to vector<16x96xf32>
    %5 = arith.addf %2, %4 : vector<16x96xf32>
    %6 = vector.extract_strided_slice %5 {offsets = [0, 0], sizes = [16, 32], strides = [1, 1]} : vector<16x96xf32> to vector<16x32xf32>
    %7 = vector.extract_strided_slice %5 {offsets = [0, 32], sizes = [16, 32], strides = [1, 1]} : vector<16x96xf32> to vector<16x32xf32>
    %8 = vector.extract_strided_slice %5 {offsets = [0, 64], sizes = [16, 32], strides = [1, 1]} : vector<16x96xf32> to vector<16x32xf32>
    %c0_5 = arith.constant 0 : index
    %c0_6 = arith.constant 0 : index
    %c0_7 = arith.constant 0 : index
    %9 = vector.load %arg2[%c0_5, %c0_6, %c0_7] : memref<3x32x32xf32, #tpu.memory_space<vmem>>, vector<1x32x32xf32>
    %10 = vector.shape_cast %9 : vector<1x32x32xf32> to vector<32x32xf32>
    %c1 = arith.constant 1 : index
    %c0_8 = arith.constant 0 : index
    %c0_9 = arith.constant 0 : index
    %11 = vector.load %arg2[%c1, %c0_8, %c0_9] : memref<3x32x32xf32, #tpu.memory_space<vmem>>, vector<1x32x32xf32>
    %12 = vector.shape_cast %11 : vector<1x32x32xf32> to vector<32x32xf32>
    %c2 = arith.constant 2 : index
    %c0_10 = arith.constant 0 : index
    %c0_11 = arith.constant 0 : index
    %13 = vector.load %arg2[%c2, %c0_10, %c0_11] : memref<3x32x32xf32, #tpu.memory_space<vmem>>, vector<1x32x32xf32>
    %14 = vector.shape_cast %13 : vector<1x32x32xf32> to vector<32x32xf32>
    %c0_12 = arith.constant 0 : index
    %c0_13 = arith.constant 0 : index
    %c0_14 = arith.constant 0 : index
    %15 = vector.load %arg4[%c0_12, %c0_13, %c0_14] : memref<3x1x32xf32, #tpu.memory_space<vmem>>, vector<1x1x32xf32>
    %16 = vector.shape_cast %15 : vector<1x1x32xf32> to vector<1x32xf32>
    %c1_15 = arith.constant 1 : index
    %c0_16 = arith.constant 0 : index
    %c0_17 = arith.constant 0 : index
    %17 = vector.load %arg4[%c1_15, %c0_16, %c0_17] : memref<3x1x32xf32, #tpu.memory_space<vmem>>, vector<1x1x32xf32>
    %18 = vector.shape_cast %17 : vector<1x1x32xf32> to vector<1x32xf32>
    %c2_18 = arith.constant 2 : index
    %c0_19 = arith.constant 0 : index
    %c0_20 = arith.constant 0 : index
    %19 = vector.load %arg4[%c2_18, %c0_19, %c0_20] : memref<3x1x32xf32, #tpu.memory_space<vmem>>, vector<1x1x32xf32>
    %20 = vector.shape_cast %19 : vector<1x1x32xf32> to vector<1x32xf32>
    %cst_21 = arith.constant 0.000000e+00 : f32
    %21 = vector.broadcast %cst_21 : f32 to vector<2x32xf32>
    %cst_22 = arith.constant dense<0.000000e+00> : vector<2x32xf32>
    %22 = tpu.matmul %21, %10, %cst_22 {dimension_numbers = #tpu.dot_dimension_numbers<[1], [0], [0], [1], [0, 0, 1, 1], [], []>} : vector<2x32xf32>, vector<32x32xf32>, vector<2x32xf32> -> vector<2x32xf32>
    %23 = vector.broadcast %16 : vector<1x32xf32> to vector<2x32xf32>
    %24 = arith.addf %22, %23 : vector<2x32xf32>
    %cst_23 = arith.constant dense<0.000000e+00> : vector<2x32xf32>
    %25 = tpu.matmul %21, %12, %cst_23 {dimension_numbers = #tpu.dot_dimension_numbers<[1], [0], [0], [1], [0, 0, 1, 1], [], []>} : vector<2x32xf32>, vector<32x32xf32>, vector<2x32xf32> -> vector<2x32xf32>
    %26 = vector.broadcast %18 : vector<1x32xf32> to vector<2x32xf32>
    %27 = arith.addf %25, %26 : vector<2x32xf32>
    %cst_24 = arith.constant dense<0.000000e+00> : vector<2x32xf32>
    %28 = tpu.matmul %21, %14, %cst_24 {dimension_numbers = #tpu.dot_dimension_numbers<[1], [0], [0], [1], [0, 0, 1, 1], [], []>} : vector<2x32xf32>, vector<32x32xf32>, vector<2x32xf32> -> vector<2x32xf32>
    %29 = vector.broadcast %20 : vector<1x32xf32> to vector<2x32xf32>
    %30 = arith.addf %28, %29 : vector<2x32xf32>
    %31 = vector.extract_strided_slice %6 {offsets = [0, 0], sizes = [2, 32], strides = [1, 1]} : vector<16x32xf32> to vector<2x32xf32>
    %32 = arith.addf %31, %24 : vector<2x32xf32>
    %33 = arith.negf %32 : vector<2x32xf32>
    %34 = math.exp %33 : vector<2x32xf32>
    %cst_25 = arith.constant 1.000000e+00 : f32
    %35 = vector.broadcast %cst_25 : f32 to vector<2x32xf32>
    %36 = arith.addf %35, %34 : vector<2x32xf32>
    %37 = arith.divf %35, %36 : vector<2x32xf32>
    %38 = vector.extract_strided_slice %7 {offsets = [0, 0], sizes = [2, 32], strides = [1, 1]} : vector<16x32xf32> to vector<2x32xf32>
    %39 = arith.addf %38, %27 : vector<2x32xf32>
    %40 = arith.negf %39 : vector<2x32xf32>
    %41 = math.exp %40 : vector<2x32xf32>
    %cst_26 = arith.constant 1.000000e+00 : f32
    %42 = vector.broadcast %cst_26 : f32 to vector<2x32xf32>
    %43 = arith.addf %42, %41 : vector<2x32xf32>
    %44 = arith.divf %42, %43 : vector<2x32xf32>
    %45 = vector.extract_strided_slice %8 {offsets = [0, 0], sizes = [2, 32], strides = [1, 1]} : vector<16x32xf32> to vector<2x32xf32>
    %46 = arith.mulf %37, %30 : vector<2x32xf32>
    %47 = arith.addf %45, %46 : vector<2x32xf32>
    %48 = math.tanh %47 : vector<2x32xf32>
    %cst_27 = arith.constant 1.000000e+00 : f32
    %49 = vector.broadcast %cst_27 : f32 to vector<2x32xf32>
    %50 = arith.subf %49, %44 : vector<2x32xf32>
    %51 = arith.mulf %50, %48 : vector<2x32xf32>
    %52 = arith.mulf %44, %21 : vector<2x32xf32>
    %53 = arith.addf %51, %52 : vector<2x32xf32>
    %c0_28 = arith.constant 0 : index
    %c0_29 = arith.constant 0 : index
    %54 = vector.load %arg16[%c0_28, %c0_29] : memref<16x32xf32, #tpu.memory_space<vmem>>, vector<2x32xf32>
    tpu.vector_store %arg16[%c0_28, %c0_29], %53 {strides = array<i32>} : memref<16x32xf32, #tpu.memory_space<vmem>>, vector<2x32xf32>,
    %cst_30 = arith.constant dense<0.000000e+00> : vector<2x32xf32>
    %55 = tpu.matmul %53, %10, %cst_30 {dimension_numbers = #tpu.dot_dimension_numbers<[1], [0], [0], [1], [0, 0, 1, 1], [], []>} : vector<2x32xf32>, vector<32x32xf32>, vector<2x32xf32> -> vector<2x32xf32>
    %56 = vector.broadcast %16 : vector<1x32xf32> to vector<2x32xf32>
    %57 = arith.addf %55, %56 : vector<2x32xf32>
    %cst_31 = arith.constant dense<0.000000e+00> : vector<2x32xf32>
    %58 = tpu.matmul %53, %12, %cst_31 {dimension_numbers = #tpu.dot_dimension_numbers<[1], [0], [0], [1], [0, 0, 1, 1], [], []>} : vector<2x32xf32>, vector<32x32xf32>, vector<2x32xf32> -> vector<2x32xf32>
    %59 = vector.broadcast %18 : vector<1x32xf32> to vector<2x32xf32>
    %60 = arith.addf %58, %59 : vector<2x32xf32>
    %cst_32 = arith.constant dense<0.000000e+00> : vector<2x32xf32>
    %61 = tpu.matmul %53, %14, %cst_32 {dimension_numbers = #tpu.dot_dimension_numbers<[1], [0], [0], [1], [0, 0, 1, 1], [], []>} : vector<2x32xf32>, vector<32x32xf32>, vector<2x32xf32> -> vector<2x32xf32>
    %62 = vector.broadcast %20 : vector<1x32xf32> to vector<2x32xf32>
    %63 = arith.addf %61, %62 : vector<2x32xf32>
    %64 = vector.extract_strided_slice %6 {offsets = [2, 0], sizes = [2, 32], strides = [1, 1]} : vector<16x32xf32> to vector<2x32xf32>
    %65 = arith.addf %64, %57 : vector<2x32xf32>
    %66 = arith.negf %65 : vector<2x32xf32>
    %67 = math.exp %66 : vector<2x32xf32>
    %cst_33 = arith.constant 1.000000e+00 : f32
    %68 = vector.broadcast %cst_33 : f32 to vector<2x32xf32>
    %69 = arith.addf %68, %67 : vector<2x32xf32>
    %70 = arith.divf %68, %69 : vector<2x32xf32>
    %71 = vector.extract_strided_slice %7 {offsets = [2, 0], sizes = [2, 32], strides = [1, 1]} : vector<16x32xf32> to vector<2x32xf32>
    %72 = arith.addf %71, %60 : vector<2x32xf32>
    %73 = arith.negf %72 : vector<2x32xf32>
    %74 = math.exp %73 : vector<2x32xf32>
    %cst_34 = arith.constant 1.000000e+00 : f32
    %75 = vector.broadcast %cst_34 : f32 to vector<2x32xf32>
    %76 = arith.addf %75, %74 : vector<2x32xf32>
    %77 = arith.divf %75, %76 : vector<2x32xf32>
    %78 = vector.extract_strided_slice %8 {offsets = [2, 0], sizes = [2, 32], strides = [1, 1]} : vector<16x32xf32> to vector<2x32xf32>
    %79 = arith.mulf %70, %63 : vector<2x32xf32>
    %80 = arith.addf %78, %79 : vector<2x32xf32>
    %81 = math.tanh %80 : vector<2x32xf32>
    %cst_35 = arith.constant 1.000000e+00 : f32
    %82 = vector.broadcast %cst_35 : f32 to vector<2x32xf32>
    %83 = arith.subf %82, %77 : vector<2x32xf32>
    %84 = arith.mulf %83, %81 : vector<2x32xf32>
    %85 = arith.mulf %77, %53 : vector<2x32xf32>
    %86 = arith.addf %84, %85 : vector<2x32xf32>
    %c2_36 = arith.constant 2 : index
    %c0_37 = arith.constant 0 : index
    %87 = vector.load %arg16[%c2_36, %c0_37] : memref<16x32xf32, #tpu.memory_space<vmem>>, vector<2x32xf32>
    tpu.vector_store %arg16[%c2_36, %c0_37], %86 {strides = array<i32>} : memref<16x32xf32, #tpu.memory_space<vmem>>, vector<2x32xf32>,
    %cst_38 = arith.constant dense<0.000000e+00> : vector<2x32xf32>
    %88 = tpu.matmul %86, %10, %cst_38 {dimension_numbers = #tpu.dot_dimension_numbers<[1], [0], [0], [1], [0, 0, 1, 1], [], []>} : vector<2x32xf32>, vector<32x32xf32>, vector<2x32xf32> -> vector<2x32xf32>
    %89 = vector.broadcast %16 : vector<1x32xf32> to vector<2x32xf32>
    %90 = arith.addf %88, %89 : vector<2x32xf32>
    %cst_39 = arith.constant dense<0.000000e+00> : vector<2x32xf32>
    %91 = tpu.matmul %86, %12, %cst_39 {dimension_numbers = #tpu.dot_dimension_numbers<[1], [0], [0], [1], [0, 0, 1, 1], [], []>} : vector<2x32xf32>, vector<32x32xf32>, vector<2x32xf32> -> vector<2x32xf32>
    %92 = vector.broadcast %18 : vector<1x32xf32> to vector<2x32xf32>
    %93 = arith.addf %91, %92 : vector<2x32xf32>
    %cst_40 = arith.constant dense<0.000000e+00> : vector<2x32xf32>
    %94 = tpu.matmul %86, %14, %cst_40 {dimension_numbers = #tpu.dot_dimension_numbers<[1], [0], [0], [1], [0, 0, 1, 1], [], []>} : vector<2x32xf32>, vector<32x32xf32>, vector<2x32xf32> -> vector<2x32xf32>
    %95 = vector.broadcast %20 : vector<1x32xf32> to vector<2x32xf32>
    %96 = arith.addf %94, %95 : vector<2x32xf32>
    %97 = vector.extract_strided_slice %6 {offsets = [4, 0], sizes = [2, 32], strides = [1, 1]} : vector<16x32xf32> to vector<2x32xf32>
    %98 = arith.addf %97, %90 : vector<2x32xf32>
    %99 = arith.negf %98 : vector<2x32xf32>
    %100 = math.exp %99 : vector<2x32xf32>
    %cst_41 = arith.constant 1.000000e+00 : f32
    %101 = vector.broadcast %cst_41 : f32 to vector<2x32xf32>
    %102 = arith.addf %101, %100 : vector<2x32xf32>
    %103 = arith.divf %101, %102 : vector<2x32xf32>
    %104 = vector.extract_strided_slice %7 {offsets = [4, 0], sizes = [2, 32], strides = [1, 1]} : vector<16x32xf32> to vector<2x32xf32>
    %105 = arith.addf %104, %93 : vector<2x32xf32>
    %106 = arith.negf %105 : vector<2x32xf32>
    %107 = math.exp %106 : vector<2x32xf32>
    %cst_42 = arith.constant 1.000000e+00 : f32
    %108 = vector.broadcast %cst_42 : f32 to vector<2x32xf32>
    %109 = arith.addf %108, %107 : vector<2x32xf32>
    %110 = arith.divf %108, %109 : vector<2x32xf32>
    %111 = vector.extract_strided_slice %8 {offsets = [4, 0], sizes = [2, 32], strides = [1, 1]} : vector<16x32xf32> to vector<2x32xf32>
    %112 = arith.mulf %103, %96 : vector<2x32xf32>
    %113 = arith.addf %111, %112 : vector<2x32xf32>
    %114 = math.tanh %113 : vector<2x32xf32>
    %cst_43 = arith.constant 1.000000e+00 : f32
    %115 = vector.broadcast %cst_43 : f32 to vector<2x32xf32>
    %116 = arith.subf %115, %110 : vector<2x32xf32>
    %117 = arith.mulf %116, %114 : vector<2x32xf32>
    %118 = arith.mulf %110, %86 : vector<2x32xf32>
    %119 = arith.addf %117, %118 : vector<2x32xf32>
    %c4 = arith.constant 4 : index
    %c0_44 = arith.constant 0 : index
    %120 = vector.load %arg16[%c4, %c0_44] : memref<16x32xf32, #tpu.memory_space<vmem>>, vector<2x32xf32>
    tpu.vector_store %arg16[%c4, %c0_44], %119 {strides = array<i32>} : memref<16x32xf32, #tpu.memory_space<vmem>>, vector<2x32xf32>,
    %cst_45 = arith.constant dense<0.000000e+00> : vector<2x32xf32>
    %121 = tpu.matmul %119, %10, %cst_45 {dimension_numbers = #tpu.dot_dimension_numbers<[1], [0], [0], [1], [0, 0, 1, 1], [], []>} : vector<2x32xf32>, vector<32x32xf32>, vector<2x32xf32> -> vector<2x32xf32>
    %122 = vector.broadcast %16 : vector<1x32xf32> to vector<2x32xf32>
    %123 = arith.addf %121, %122 : vector<2x32xf32>
    %cst_46 = arith.constant dense<0.000000e+00> : vector<2x32xf32>
    %124 = tpu.matmul %119, %12, %cst_46 {dimension_numbers = #tpu.dot_dimension_numbers<[1], [0], [0], [1], [0, 0, 1, 1], [], []>} : vector<2x32xf32>, vector<32x32xf32>, vector<2x32xf32> -> vector<2x32xf32>
    %125 = vector.broadcast %18 : vector<1x32xf32> to vector<2x32xf32>
    %126 = arith.addf %124, %125 : vector<2x32xf32>
    %cst_47 = arith.constant dense<0.000000e+00> : vector<2x32xf32>
    %127 = tpu.matmul %119, %14, %cst_47 {dimension_numbers = #tpu.dot_dimension_numbers<[1], [0], [0], [1], [0, 0, 1, 1], [], []>} : vector<2x32xf32>, vector<32x32xf32>, vector<2x32xf32> -> vector<2x32xf32>
    %128 = vector.broadcast %20 : vector<1x32xf32> to vector<2x32xf32>
    %129 = arith.addf %127, %128 : vector<2x32xf32>
    %130 = vector.extract_strided_slice %6 {offsets = [6, 0], sizes = [2, 32], strides = [1, 1]} : vector<16x32xf32> to vector<2x32xf32>
    %131 = arith.addf %130, %123 : vector<2x32xf32>
    %132 = arith.negf %131 : vector<2x32xf32>
    %133 = math.exp %132 : vector<2x32xf32>
    %cst_48 = arith.constant 1.000000e+00 : f32
    %134 = vector.broadcast %cst_48 : f32 to vector<2x32xf32>
    %135 = arith.addf %134, %133 : vector<2x32xf32>
    %136 = arith.divf %134, %135 : vector<2x32xf32>
    %137 = vector.extract_strided_slice %7 {offsets = [6, 0], sizes = [2, 32], strides = [1, 1]} : vector<16x32xf32> to vector<2x32xf32>
    %138 = arith.addf %137, %126 : vector<2x32xf32>
    %139 = arith.negf %138 : vector<2x32xf32>
    %140 = math.exp %139 : vector<2x32xf32>
    %cst_49 = arith.constant 1.000000e+00 : f32
    %141 = vector.broadcast %cst_49 : f32 to vector<2x32xf32>
    %142 = arith.addf %141, %140 : vector<2x32xf32>
    %143 = arith.divf %141, %142 : vector<2x32xf32>
    %144 = vector.extract_strided_slice %8 {offsets = [6, 0], sizes = [2, 32], strides = [1, 1]} : vector<16x32xf32> to vector<2x32xf32>
    %145 = arith.mulf %136, %129 : vector<2x32xf32>
    %146 = arith.addf %144, %145 : vector<2x32xf32>
    %147 = math.tanh %146 : vector<2x32xf32>
    %cst_50 = arith.constant 1.000000e+00 : f32
    %148 = vector.broadcast %cst_50 : f32 to vector<2x32xf32>
    %149 = arith.subf %148, %143 : vector<2x32xf32>
    %150 = arith.mulf %149, %147 : vector<2x32xf32>
    %151 = arith.mulf %143, %119 : vector<2x32xf32>
    %152 = arith.addf %150, %151 : vector<2x32xf32>
    %c6 = arith.constant 6 : index
    %c0_51 = arith.constant 0 : index
    %153 = vector.load %arg16[%c6, %c0_51] : memref<16x32xf32, #tpu.memory_space<vmem>>, vector<2x32xf32>
    tpu.vector_store %arg16[%c6, %c0_51], %152 {strides = array<i32>} : memref<16x32xf32, #tpu.memory_space<vmem>>, vector<2x32xf32>,
    %cst_52 = arith.constant dense<0.000000e+00> : vector<2x32xf32>
    %154 = tpu.matmul %152, %10, %cst_52 {dimension_numbers = #tpu.dot_dimension_numbers<[1], [0], [0], [1], [0, 0, 1, 1], [], []>} : vector<2x32xf32>, vector<32x32xf32>, vector<2x32xf32> -> vector<2x32xf32>
    %155 = vector.broadcast %16 : vector<1x32xf32> to vector<2x32xf32>
    %156 = arith.addf %154, %155 : vector<2x32xf32>
    %cst_53 = arith.constant dense<0.000000e+00> : vector<2x32xf32>
    %157 = tpu.matmul %152, %12, %cst_53 {dimension_numbers = #tpu.dot_dimension_numbers<[1], [0], [0], [1], [0, 0, 1, 1], [], []>} : vector<2x32xf32>, vector<32x32xf32>, vector<2x32xf32> -> vector<2x32xf32>
    %158 = vector.broadcast %18 : vector<1x32xf32> to vector<2x32xf32>
    %159 = arith.addf %157, %158 : vector<2x32xf32>
    %cst_54 = arith.constant dense<0.000000e+00> : vector<2x32xf32>
    %160 = tpu.matmul %152, %14, %cst_54 {dimension_numbers = #tpu.dot_dimension_numbers<[1], [0], [0], [1], [0, 0, 1, 1], [], []>} : vector<2x32xf32>, vector<32x32xf32>, vector<2x32xf32> -> vector<2x32xf32>
    %161 = vector.broadcast %20 : vector<1x32xf32> to vector<2x32xf32>
    %162 = arith.addf %160, %161 : vector<2x32xf32>
    %163 = vector.extract_strided_slice %6 {offsets = [8, 0], sizes = [2, 32], strides = [1, 1]} : vector<16x32xf32> to vector<2x32xf32>
    %164 = arith.addf %163, %156 : vector<2x32xf32>
    %165 = arith.negf %164 : vector<2x32xf32>
    %166 = math.exp %165 : vector<2x32xf32>
    %cst_55 = arith.constant 1.000000e+00 : f32
    %167 = vector.broadcast %cst_55 : f32 to vector<2x32xf32>
    %168 = arith.addf %167, %166 : vector<2x32xf32>
    %169 = arith.divf %167, %168 : vector<2x32xf32>
    %170 = vector.extract_strided_slice %7 {offsets = [8, 0], sizes = [2, 32], strides = [1, 1]} : vector<16x32xf32> to vector<2x32xf32>
    %171 = arith.addf %170, %159 : vector<2x32xf32>
    %172 = arith.negf %171 : vector<2x32xf32>
    %173 = math.exp %172 : vector<2x32xf32>
    %cst_56 = arith.constant 1.000000e+00 : f32
    %174 = vector.broadcast %cst_56 : f32 to vector<2x32xf32>
    %175 = arith.addf %174, %173 : vector<2x32xf32>
    %176 = arith.divf %174, %175 : vector<2x32xf32>
    %177 = vector.extract_strided_slice %8 {offsets = [8, 0], sizes = [2, 32], strides = [1, 1]} : vector<16x32xf32> to vector<2x32xf32>
    %178 = arith.mulf %169, %162 : vector<2x32xf32>
    %179 = arith.addf %177, %178 : vector<2x32xf32>
    %180 = math.tanh %179 : vector<2x32xf32>
    %cst_57 = arith.constant 1.000000e+00 : f32
    %181 = vector.broadcast %cst_57 : f32 to vector<2x32xf32>
    %182 = arith.subf %181, %176 : vector<2x32xf32>
    %183 = arith.mulf %182, %180 : vector<2x32xf32>
    %184 = arith.mulf %176, %152 : vector<2x32xf32>
    %185 = arith.addf %183, %184 : vector<2x32xf32>
    %c8 = arith.constant 8 : index
    %c0_58 = arith.constant 0 : index
    %186 = vector.load %arg16[%c8, %c0_58] : memref<16x32xf32, #tpu.memory_space<vmem>>, vector<2x32xf32>
    tpu.vector_store %arg16[%c8, %c0_58], %185 {strides = array<i32>} : memref<16x32xf32, #tpu.memory_space<vmem>>, vector<2x32xf32>,
    %cst_59 = arith.constant dense<0.000000e+00> : vector<2x32xf32>
    %187 = tpu.matmul %185, %10, %cst_59 {dimension_numbers = #tpu.dot_dimension_numbers<[1], [0], [0], [1], [0, 0, 1, 1], [], []>} : vector<2x32xf32>, vector<32x32xf32>, vector<2x32xf32> -> vector<2x32xf32>
    %188 = vector.broadcast %16 : vector<1x32xf32> to vector<2x32xf32>
    %189 = arith.addf %187, %188 : vector<2x32xf32>
    %cst_60 = arith.constant dense<0.000000e+00> : vector<2x32xf32>
    %190 = tpu.matmul %185, %12, %cst_60 {dimension_numbers = #tpu.dot_dimension_numbers<[1], [0], [0], [1], [0, 0, 1, 1], [], []>} : vector<2x32xf32>, vector<32x32xf32>, vector<2x32xf32> -> vector<2x32xf32>
    %191 = vector.broadcast %18 : vector<1x32xf32> to vector<2x32xf32>
    %192 = arith.addf %190, %191 : vector<2x32xf32>
    %cst_61 = arith.constant dense<0.000000e+00> : vector<2x32xf32>
    %193 = tpu.matmul %185, %14, %cst_61 {dimension_numbers = #tpu.dot_dimension_numbers<[1], [0], [0], [1], [0, 0, 1, 1], [], []>} : vector<2x32xf32>, vector<32x32xf32>, vector<2x32xf32> -> vector<2x32xf32>
    %194 = vector.broadcast %20 : vector<1x32xf32> to vector<2x32xf32>
    %195 = arith.addf %193, %194 : vector<2x32xf32>
    %196 = vector.extract_strided_slice %6 {offsets = [10, 0], sizes = [2, 32], strides = [1, 1]} : vector<16x32xf32> to vector<2x32xf32>
    %197 = arith.addf %196, %189 : vector<2x32xf32>
    %198 = arith.negf %197 : vector<2x32xf32>
    %199 = math.exp %198 : vector<2x32xf32>
    %cst_62 = arith.constant 1.000000e+00 : f32
    %200 = vector.broadcast %cst_62 : f32 to vector<2x32xf32>
    %201 = arith.addf %200, %199 : vector<2x32xf32>
    %202 = arith.divf %200, %201 : vector<2x32xf32>
    %203 = vector.extract_strided_slice %7 {offsets = [10, 0], sizes = [2, 32], strides = [1, 1]} : vector<16x32xf32> to vector<2x32xf32>
    %204 = arith.addf %203, %192 : vector<2x32xf32>
    %205 = arith.negf %204 : vector<2x32xf32>
    %206 = math.exp %205 : vector<2x32xf32>
    %cst_63 = arith.constant 1.000000e+00 : f32
    %207 = vector.broadcast %cst_63 : f32 to vector<2x32xf32>
    %208 = arith.addf %207, %206 : vector<2x32xf32>
    %209 = arith.divf %207, %208 : vector<2x32xf32>
    %210 = vector.extract_strided_slice %8 {offsets = [10, 0], sizes = [2, 32], strides = [1, 1]} : vector<16x32xf32> to vector<2x32xf32>
    %211 = arith.mulf %202, %195 : vector<2x32xf32>
    %212 = arith.addf %210, %211 : vector<2x32xf32>
    %213 = math.tanh %212 : vector<2x32xf32>
    %cst_64 = arith.constant 1.000000e+00 : f32
    %214 = vector.broadcast %cst_64 : f32 to vector<2x32xf32>
    %215 = arith.subf %214, %209 : vector<2x32xf32>
    %216 = arith.mulf %215, %213 : vector<2x32xf32>
    %217 = arith.mulf %209, %185 : vector<2x32xf32>
    %218 = arith.addf %216, %217 : vector<2x32xf32>
    %c10 = arith.constant 10 : index
    %c0_65 = arith.constant 0 : index
    %219 = vector.load %arg16[%c10, %c0_65] : memref<16x32xf32, #tpu.memory_space<vmem>>, vector<2x32xf32>
    tpu.vector_store %arg16[%c10, %c0_65], %218 {strides = array<i32>} : memref<16x32xf32, #tpu.memory_space<vmem>>, vector<2x32xf32>,
    %cst_66 = arith.constant dense<0.000000e+00> : vector<2x32xf32>
    %220 = tpu.matmul %218, %10, %cst_66 {dimension_numbers = #tpu.dot_dimension_numbers<[1], [0], [0], [1], [0, 0, 1, 1], [], []>} : vector<2x32xf32>, vector<32x32xf32>, vector<2x32xf32> -> vector<2x32xf32>
    %221 = vector.broadcast %16 : vector<1x32xf32> to vector<2x32xf32>
    %222 = arith.addf %220, %221 : vector<2x32xf32>
    %cst_67 = arith.constant dense<0.000000e+00> : vector<2x32xf32>
    %223 = tpu.matmul %218, %12, %cst_67 {dimension_numbers = #tpu.dot_dimension_numbers<[1], [0], [0], [1], [0, 0, 1, 1], [], []>} : vector<2x32xf32>, vector<32x32xf32>, vector<2x32xf32> -> vector<2x32xf32>
    %224 = vector.broadcast %18 : vector<1x32xf32> to vector<2x32xf32>
    %225 = arith.addf %223, %224 : vector<2x32xf32>
    %cst_68 = arith.constant dense<0.000000e+00> : vector<2x32xf32>
    %226 = tpu.matmul %218, %14, %cst_68 {dimension_numbers = #tpu.dot_dimension_numbers<[1], [0], [0], [1], [0, 0, 1, 1], [], []>} : vector<2x32xf32>, vector<32x32xf32>, vector<2x32xf32> -> vector<2x32xf32>
    %227 = vector.broadcast %20 : vector<1x32xf32> to vector<2x32xf32>
    %228 = arith.addf %226, %227 : vector<2x32xf32>
    %229 = vector.extract_strided_slice %6 {offsets = [12, 0], sizes = [2, 32], strides = [1, 1]} : vector<16x32xf32> to vector<2x32xf32>
    %230 = arith.addf %229, %222 : vector<2x32xf32>
    %231 = arith.negf %230 : vector<2x32xf32>
    %232 = math.exp %231 : vector<2x32xf32>
    %cst_69 = arith.constant 1.000000e+00 : f32
    %233 = vector.broadcast %cst_69 : f32 to vector<2x32xf32>
    %234 = arith.addf %233, %232 : vector<2x32xf32>
    %235 = arith.divf %233, %234 : vector<2x32xf32>
    %236 = vector.extract_strided_slice %7 {offsets = [12, 0], sizes = [2, 32], strides = [1, 1]} : vector<16x32xf32> to vector<2x32xf32>
    %237 = arith.addf %236, %225 : vector<2x32xf32>
    %238 = arith.negf %237 : vector<2x32xf32>
    %239 = math.exp %238 : vector<2x32xf32>
    %cst_70 = arith.constant 1.000000e+00 : f32
    %240 = vector.broadcast %cst_70 : f32 to vector<2x32xf32>
    %241 = arith.addf %240, %239 : vector<2x32xf32>
    %242 = arith.divf %240, %241 : vector<2x32xf32>
    %243 = vector.extract_strided_slice %8 {offsets = [12, 0], sizes = [2, 32], strides = [1, 1]} : vector<16x32xf32> to vector<2x32xf32>
    %244 = arith.mulf %235, %228 : vector<2x32xf32>
    %245 = arith.addf %243, %244 : vector<2x32xf32>
    %246 = math.tanh %245 : vector<2x32xf32>
    %cst_71 = arith.constant 1.000000e+00 : f32
    %247 = vector.broadcast %cst_71 : f32 to vector<2x32xf32>
    %248 = arith.subf %247, %242 : vector<2x32xf32>
    %249 = arith.mulf %248, %246 : vector<2x32xf32>
    %250 = arith.mulf %242, %218 : vector<2x32xf32>
    %251 = arith.addf %249, %250 : vector<2x32xf32>
    %c12 = arith.constant 12 : index
    %c0_72 = arith.constant 0 : index
    %252 = vector.load %arg16[%c12, %c0_72] : memref<16x32xf32, #tpu.memory_space<vmem>>, vector<2x32xf32>
    tpu.vector_store %arg16[%c12, %c0_72], %251 {strides = array<i32>} : memref<16x32xf32, #tpu.memory_space<vmem>>, vector<2x32xf32>,
    %cst_73 = arith.constant dense<0.000000e+00> : vector<2x32xf32>
    %253 = tpu.matmul %251, %10, %cst_73 {dimension_numbers = #tpu.dot_dimension_numbers<[1], [0], [0], [1], [0, 0, 1, 1], [], []>} : vector<2x32xf32>, vector<32x32xf32>, vector<2x32xf32> -> vector<2x32xf32>
    %254 = vector.broadcast %16 : vector<1x32xf32> to vector<2x32xf32>
    %255 = arith.addf %253, %254 : vector<2x32xf32>
    %cst_74 = arith.constant dense<0.000000e+00> : vector<2x32xf32>
    %256 = tpu.matmul %251, %12, %cst_74 {dimension_numbers = #tpu.dot_dimension_numbers<[1], [0], [0], [1], [0, 0, 1, 1], [], []>} : vector<2x32xf32>, vector<32x32xf32>, vector<2x32xf32> -> vector<2x32xf32>
    %257 = vector.broadcast %18 : vector<1x32xf32> to vector<2x32xf32>
    %258 = arith.addf %256, %257 : vector<2x32xf32>
    %cst_75 = arith.constant dense<0.000000e+00> : vector<2x32xf32>
    %259 = tpu.matmul %251, %14, %cst_75 {dimension_numbers = #tpu.dot_dimension_numbers<[1], [0], [0], [1], [0, 0, 1, 1], [], []>} : vector<2x32xf32>, vector<32x32xf32>, vector<2x32xf32> -> vector<2x32xf32>
    %260 = vector.broadcast %20 : vector<1x32xf32> to vector<2x32xf32>
    %261 = arith.addf %259, %260 : vector<2x32xf32>
    %262 = vector.extract_strided_slice %6 {offsets = [14, 0], sizes = [2, 32], strides = [1, 1]} : vector<16x32xf32> to vector<2x32xf32>
    %263 = arith.addf %262, %255 : vector<2x32xf32>
    %264 = arith.negf %263 : vector<2x32xf32>
    %265 = math.exp %264 : vector<2x32xf32>
    %cst_76 = arith.constant 1.000000e+00 : f32
    %266 = vector.broadcast %cst_76 : f32 to vector<2x32xf32>
    %267 = arith.addf %266, %265 : vector<2x32xf32>
    %268 = arith.divf %266, %267 : vector<2x32xf32>
    %269 = vector.extract_strided_slice %7 {offsets = [14, 0], sizes = [2, 32], strides = [1, 1]} : vector<16x32xf32> to vector<2x32xf32>
    %270 = arith.addf %269, %258 : vector<2x32xf32>
    %271 = arith.negf %270 : vector<2x32xf32>
    %272 = math.exp %271 : vector<2x32xf32>
    %cst_77 = arith.constant 1.000000e+00 : f32
    %273 = vector.broadcast %cst_77 : f32 to vector<2x32xf32>
    %274 = arith.addf %273, %272 : vector<2x32xf32>
    %275 = arith.divf %273, %274 : vector<2x32xf32>
    %276 = vector.extract_strided_slice %8 {offsets = [14, 0], sizes = [2, 32], strides = [1, 1]} : vector<16x32xf32> to vector<2x32xf32>
    %277 = arith.mulf %268, %261 : vector<2x32xf32>
    %278 = arith.addf %276, %277 : vector<2x32xf32>
    %279 = math.tanh %278 : vector<2x32xf32>
    %cst_78 = arith.constant 1.000000e+00 : f32
    %280 = vector.broadcast %cst_78 : f32 to vector<2x32xf32>
    %281 = arith.subf %280, %275 : vector<2x32xf32>
    %282 = arith.mulf %281, %279 : vector<2x32xf32>
    %283 = arith.mulf %275, %251 : vector<2x32xf32>
    %284 = arith.addf %282, %283 : vector<2x32xf32>
    %c14 = arith.constant 14 : index
    %c0_79 = arith.constant 0 : index
    %285 = vector.load %arg16[%c14, %c0_79] : memref<16x32xf32, #tpu.memory_space<vmem>>, vector<2x32xf32>
    tpu.vector_store %arg16[%c14, %c0_79], %284 {strides = array<i32>} : memref<16x32xf32, #tpu.memory_space<vmem>>, vector<2x32xf32>,
    %c0_80 = arith.constant 0 : index
    %c0_81 = arith.constant 0 : index
    %286 = vector.load %arg16[%c0_80, %c0_81] : memref<16x32xf32, #tpu.memory_space<vmem>>, vector<16x32xf32>
    %c0_82 = arith.constant 0 : index
    %c0_83 = arith.constant 0 : index
    %287 = vector.load %arg5[%c0_82, %c0_83] : memref<32x96xf32, #tpu.memory_space<vmem>>, vector<32x96xf32>
    %cst_84 = arith.constant dense<0.000000e+00> : vector<16x96xf32>
    %288 = tpu.matmul %286, %287, %cst_84 {dimension_numbers = #tpu.dot_dimension_numbers<[1], [0], [0], [1], [0, 0, 1, 1], [], []>} : vector<16x32xf32>, vector<32x96xf32>, vector<16x96xf32> -> vector<16x96xf32>
    %c0_85 = arith.constant 0 : index
    %c0_86 = arith.constant 0 : index
    %289 = vector.load %arg7[%c0_85, %c0_86] : memref<1x96xf32, #tpu.memory_space<vmem>>, vector<1x96xf32>
    %290 = vector.broadcast %289 : vector<1x96xf32> to vector<16x96xf32>
    %291 = arith.addf %288, %290 : vector<16x96xf32>
    %292 = vector.extract_strided_slice %291 {offsets = [0, 0], sizes = [16, 32], strides = [1, 1]} : vector<16x96xf32> to vector<16x32xf32>
    %293 = vector.extract_strided_slice %291 {offsets = [0, 32], sizes = [16, 32], strides = [1, 1]} : vector<16x96xf32> to vector<16x32xf32>
    %294 = vector.extract_strided_slice %291 {offsets = [0, 64], sizes = [16, 32], strides = [1, 1]} : vector<16x96xf32> to vector<16x32xf32>
    %c0_87 = arith.constant 0 : index
    %c0_88 = arith.constant 0 : index
    %c0_89 = arith.constant 0 : index
    %295 = vector.load %arg6[%c0_87, %c0_88, %c0_89] : memref<3x32x32xf32, #tpu.memory_space<vmem>>, vector<1x32x32xf32>
    %296 = vector.shape_cast %295 : vector<1x32x32xf32> to vector<32x32xf32>
    %c1_90 = arith.constant 1 : index
    %c0_91 = arith.constant 0 : index
    %c0_92 = arith.constant 0 : index
    %297 = vector.load %arg6[%c1_90, %c0_91, %c0_92] : memref<3x32x32xf32, #tpu.memory_space<vmem>>, vector<1x32x32xf32>
    %298 = vector.shape_cast %297 : vector<1x32x32xf32> to vector<32x32xf32>
    %c2_93 = arith.constant 2 : index
    %c0_94 = arith.constant 0 : index
    %c0_95 = arith.constant 0 : index
    %299 = vector.load %arg6[%c2_93, %c0_94, %c0_95] : memref<3x32x32xf32, #tpu.memory_space<vmem>>, vector<1x32x32xf32>
    %300 = vector.shape_cast %299 : vector<1x32x32xf32> to vector<32x32xf32>
    %c0_96 = arith.constant 0 : index
    %c0_97 = arith.constant 0 : index
    %c0_98 = arith.constant 0 : index
    %301 = vector.load %arg8[%c0_96, %c0_97, %c0_98] : memref<3x1x32xf32, #tpu.memory_space<vmem>>, vector<1x1x32xf32>
    %302 = vector.shape_cast %301 : vector<1x1x32xf32> to vector<1x32xf32>
    %c1_99 = arith.constant 1 : index
    %c0_100 = arith.constant 0 : index
    %c0_101 = arith.constant 0 : index
    %303 = vector.load %arg8[%c1_99, %c0_100, %c0_101] : memref<3x1x32xf32, #tpu.memory_space<vmem>>, vector<1x1x32xf32>
    %304 = vector.shape_cast %303 : vector<1x1x32xf32> to vector<1x32xf32>
    %c2_102 = arith.constant 2 : index
    %c0_103 = arith.constant 0 : index
    %c0_104 = arith.constant 0 : index
    %305 = vector.load %arg8[%c2_102, %c0_103, %c0_104] : memref<3x1x32xf32, #tpu.memory_space<vmem>>, vector<1x1x32xf32>
    %306 = vector.shape_cast %305 : vector<1x1x32xf32> to vector<1x32xf32>
    %cst_105 = arith.constant 0.000000e+00 : f32
    %307 = vector.broadcast %cst_105 : f32 to vector<2x32xf32>
    %cst_106 = arith.constant dense<0.000000e+00> : vector<2x32xf32>
    %308 = tpu.matmul %307, %296, %cst_106 {dimension_numbers = #tpu.dot_dimension_numbers<[1], [0], [0], [1], [0, 0, 1, 1], [], []>} : vector<2x32xf32>, vector<32x32xf32>, vector<2x32xf32> -> vector<2x32xf32>
    %309 = vector.broadcast %302 : vector<1x32xf32> to vector<2x32xf32>
    %310 = arith.addf %308, %309 : vector<2x32xf32>
    %cst_107 = arith.constant dense<0.000000e+00> : vector<2x32xf32>
    %311 = tpu.matmul %307, %298, %cst_107 {dimension_numbers = #tpu.dot_dimension_numbers<[1], [0], [0], [1], [0, 0, 1, 1], [], []>} : vector<2x32xf32>, vector<32x32xf32>, vector<2x32xf32> -> vector<2x32xf32>
    %312 = vector.broadcast %304 : vector<1x32xf32> to vector<2x32xf32>
    %313 = arith.addf %311, %312 : vector<2x32xf32>
    %cst_108 = arith.constant dense<0.000000e+00> : vector<2x32xf32>
    %314 = tpu.matmul %307, %300, %cst_108 {dimension_numbers = #tpu.dot_dimension_numbers<[1], [0], [0], [1], [0, 0, 1, 1], [], []>} : vector<2x32xf32>, vector<32x32xf32>, vector<2x32xf32> -> vector<2x32xf32>
    %315 = vector.broadcast %306 : vector<1x32xf32> to vector<2x32xf32>
    %316 = arith.addf %314, %315 : vector<2x32xf32>
    %317 = vector.extract_strided_slice %292 {offsets = [0, 0], sizes = [2, 32], strides = [1, 1]} : vector<16x32xf32> to vector<2x32xf32>
    %318 = arith.addf %317, %310 : vector<2x32xf32>
    %319 = arith.negf %318 : vector<2x32xf32>
    %320 = math.exp %319 : vector<2x32xf32>
    %cst_109 = arith.constant 1.000000e+00 : f32
    %321 = vector.broadcast %cst_109 : f32 to vector<2x32xf32>
    %322 = arith.addf %321, %320 : vector<2x32xf32>
    %323 = arith.divf %321, %322 : vector<2x32xf32>
    %324 = vector.extract_strided_slice %293 {offsets = [0, 0], sizes = [2, 32], strides = [1, 1]} : vector<16x32xf32> to vector<2x32xf32>
    %325 = arith.addf %324, %313 : vector<2x32xf32>
    %326 = arith.negf %325 : vector<2x32xf32>
    %327 = math.exp %326 : vector<2x32xf32>
    %cst_110 = arith.constant 1.000000e+00 : f32
    %328 = vector.broadcast %cst_110 : f32 to vector<2x32xf32>
    %329 = arith.addf %328, %327 : vector<2x32xf32>
    %330 = arith.divf %328, %329 : vector<2x32xf32>
    %331 = vector.extract_strided_slice %294 {offsets = [0, 0], sizes = [2, 32], strides = [1, 1]} : vector<16x32xf32> to vector<2x32xf32>
    %332 = arith.mulf %323, %316 : vector<2x32xf32>
    %333 = arith.addf %331, %332 : vector<2x32xf32>
    %334 = math.tanh %333 : vector<2x32xf32>
    %cst_111 = arith.constant 1.000000e+00 : f32
    %335 = vector.broadcast %cst_111 : f32 to vector<2x32xf32>
    %336 = arith.subf %335, %330 : vector<2x32xf32>
    %337 = arith.mulf %336, %334 : vector<2x32xf32>
    %338 = arith.mulf %330, %307 : vector<2x32xf32>
    %339 = arith.addf %337, %338 : vector<2x32xf32>
    %c0_112 = arith.constant 0 : index
    %c0_113 = arith.constant 0 : index
    %340 = vector.load %arg16[%c0_112, %c0_113] : memref<16x32xf32, #tpu.memory_space<vmem>>, vector<2x32xf32>
    tpu.vector_store %arg16[%c0_112, %c0_113], %339 {strides = array<i32>} : memref<16x32xf32, #tpu.memory_space<vmem>>, vector<2x32xf32>,
    %cst_114 = arith.constant dense<0.000000e+00> : vector<2x32xf32>
    %341 = tpu.matmul %339, %296, %cst_114 {dimension_numbers = #tpu.dot_dimension_numbers<[1], [0], [0], [1], [0, 0, 1, 1], [], []>} : vector<2x32xf32>, vector<32x32xf32>, vector<2x32xf32> -> vector<2x32xf32>
    %342 = vector.broadcast %302 : vector<1x32xf32> to vector<2x32xf32>
    %343 = arith.addf %341, %342 : vector<2x32xf32>
    %cst_115 = arith.constant dense<0.000000e+00> : vector<2x32xf32>
    %344 = tpu.matmul %339, %298, %cst_115 {dimension_numbers = #tpu.dot_dimension_numbers<[1], [0], [0], [1], [0, 0, 1, 1], [], []>} : vector<2x32xf32>, vector<32x32xf32>, vector<2x32xf32> -> vector<2x32xf32>
    %345 = vector.broadcast %304 : vector<1x32xf32> to vector<2x32xf32>
    %346 = arith.addf %344, %345 : vector<2x32xf32>
    %cst_116 = arith.constant dense<0.000000e+00> : vector<2x32xf32>
    %347 = tpu.matmul %339, %300, %cst_116 {dimension_numbers = #tpu.dot_dimension_numbers<[1], [0], [0], [1], [0, 0, 1, 1], [], []>} : vector<2x32xf32>, vector<32x32xf32>, vector<2x32xf32> -> vector<2x32xf32>
    %348 = vector.broadcast %306 : vector<1x32xf32> to vector<2x32xf32>
    %349 = arith.addf %347, %348 : vector<2x32xf32>
    %350 = vector.extract_strided_slice %292 {offsets = [2, 0], sizes = [2, 32], strides = [1, 1]} : vector<16x32xf32> to vector<2x32xf32>
    %351 = arith.addf %350, %343 : vector<2x32xf32>
    %352 = arith.negf %351 : vector<2x32xf32>
    %353 = math.exp %352 : vector<2x32xf32>
    %cst_117 = arith.constant 1.000000e+00 : f32
    %354 = vector.broadcast %cst_117 : f32 to vector<2x32xf32>
    %355 = arith.addf %354, %353 : vector<2x32xf32>
    %356 = arith.divf %354, %355 : vector<2x32xf32>
    %357 = vector.extract_strided_slice %293 {offsets = [2, 0], sizes = [2, 32], strides = [1, 1]} : vector<16x32xf32> to vector<2x32xf32>
    %358 = arith.addf %357, %346 : vector<2x32xf32>
    %359 = arith.negf %358 : vector<2x32xf32>
    %360 = math.exp %359 : vector<2x32xf32>
    %cst_118 = arith.constant 1.000000e+00 : f32
    %361 = vector.broadcast %cst_118 : f32 to vector<2x32xf32>
    %362 = arith.addf %361, %360 : vector<2x32xf32>
    %363 = arith.divf %361, %362 : vector<2x32xf32>
    %364 = vector.extract_strided_slice %294 {offsets = [2, 0], sizes = [2, 32], strides = [1, 1]} : vector<16x32xf32> to vector<2x32xf32>
    %365 = arith.mulf %356, %349 : vector<2x32xf32>
    %366 = arith.addf %364, %365 : vector<2x32xf32>
    %367 = math.tanh %366 : vector<2x32xf32>
    %cst_119 = arith.constant 1.000000e+00 : f32
    %368 = vector.broadcast %cst_119 : f32 to vector<2x32xf32>
    %369 = arith.subf %368, %363 : vector<2x32xf32>
    %370 = arith.mulf %369, %367 : vector<2x32xf32>
    %371 = arith.mulf %363, %339 : vector<2x32xf32>
    %372 = arith.addf %370, %371 : vector<2x32xf32>
    %c2_120 = arith.constant 2 : index
    %c0_121 = arith.constant 0 : index
    %373 = vector.load %arg16[%c2_120, %c0_121] : memref<16x32xf32, #tpu.memory_space<vmem>>, vector<2x32xf32>
    tpu.vector_store %arg16[%c2_120, %c0_121], %372 {strides = array<i32>} : memref<16x32xf32, #tpu.memory_space<vmem>>, vector<2x32xf32>,
    %cst_122 = arith.constant dense<0.000000e+00> : vector<2x32xf32>
    %374 = tpu.matmul %372, %296, %cst_122 {dimension_numbers = #tpu.dot_dimension_numbers<[1], [0], [0], [1], [0, 0, 1, 1], [], []>} : vector<2x32xf32>, vector<32x32xf32>, vector<2x32xf32> -> vector<2x32xf32>
    %375 = vector.broadcast %302 : vector<1x32xf32> to vector<2x32xf32>
    %376 = arith.addf %374, %375 : vector<2x32xf32>
    %cst_123 = arith.constant dense<0.000000e+00> : vector<2x32xf32>
    %377 = tpu.matmul %372, %298, %cst_123 {dimension_numbers = #tpu.dot_dimension_numbers<[1], [0], [0], [1], [0, 0, 1, 1], [], []>} : vector<2x32xf32>, vector<32x32xf32>, vector<2x32xf32> -> vector<2x32xf32>
    %378 = vector.broadcast %304 : vector<1x32xf32> to vector<2x32xf32>
    %379 = arith.addf %377, %378 : vector<2x32xf32>
    %cst_124 = arith.constant dense<0.000000e+00> : vector<2x32xf32>
    %380 = tpu.matmul %372, %300, %cst_124 {dimension_numbers = #tpu.dot_dimension_numbers<[1], [0], [0], [1], [0, 0, 1, 1], [], []>} : vector<2x32xf32>, vector<32x32xf32>, vector<2x32xf32> -> vector<2x32xf32>
    %381 = vector.broadcast %306 : vector<1x32xf32> to vector<2x32xf32>
    %382 = arith.addf %380, %381 : vector<2x32xf32>
    %383 = vector.extract_strided_slice %292 {offsets = [4, 0], sizes = [2, 32], strides = [1, 1]} : vector<16x32xf32> to vector<2x32xf32>
    %384 = arith.addf %383, %376 : vector<2x32xf32>
    %385 = arith.negf %384 : vector<2x32xf32>
    %386 = math.exp %385 : vector<2x32xf32>
    %cst_125 = arith.constant 1.000000e+00 : f32
    %387 = vector.broadcast %cst_125 : f32 to vector<2x32xf32>
    %388 = arith.addf %387, %386 : vector<2x32xf32>
    %389 = arith.divf %387, %388 : vector<2x32xf32>
    %390 = vector.extract_strided_slice %293 {offsets = [4, 0], sizes = [2, 32], strides = [1, 1]} : vector<16x32xf32> to vector<2x32xf32>
    %391 = arith.addf %390, %379 : vector<2x32xf32>
    %392 = arith.negf %391 : vector<2x32xf32>
    %393 = math.exp %392 : vector<2x32xf32>
    %cst_126 = arith.constant 1.000000e+00 : f32
    %394 = vector.broadcast %cst_126 : f32 to vector<2x32xf32>
    %395 = arith.addf %394, %393 : vector<2x32xf32>
    %396 = arith.divf %394, %395 : vector<2x32xf32>
    %397 = vector.extract_strided_slice %294 {offsets = [4, 0], sizes = [2, 32], strides = [1, 1]} : vector<16x32xf32> to vector<2x32xf32>
    %398 = arith.mulf %389, %382 : vector<2x32xf32>
    %399 = arith.addf %397, %398 : vector<2x32xf32>
    %400 = math.tanh %399 : vector<2x32xf32>
    %cst_127 = arith.constant 1.000000e+00 : f32
    %401 = vector.broadcast %cst_127 : f32 to vector<2x32xf32>
    %402 = arith.subf %401, %396 : vector<2x32xf32>
    %403 = arith.mulf %402, %400 : vector<2x32xf32>
    %404 = arith.mulf %396, %372 : vector<2x32xf32>
    %405 = arith.addf %403, %404 : vector<2x32xf32>
    %c4_128 = arith.constant 4 : index
    %c0_129 = arith.constant 0 : index
    %406 = vector.load %arg16[%c4_128, %c0_129] : memref<16x32xf32, #tpu.memory_space<vmem>>, vector<2x32xf32>
    tpu.vector_store %arg16[%c4_128, %c0_129], %405 {strides = array<i32>} : memref<16x32xf32, #tpu.memory_space<vmem>>, vector<2x32xf32>,
    %cst_130 = arith.constant dense<0.000000e+00> : vector<2x32xf32>
    %407 = tpu.matmul %405, %296, %cst_130 {dimension_numbers = #tpu.dot_dimension_numbers<[1], [0], [0], [1], [0, 0, 1, 1], [], []>} : vector<2x32xf32>, vector<32x32xf32>, vector<2x32xf32> -> vector<2x32xf32>
    %408 = vector.broadcast %302 : vector<1x32xf32> to vector<2x32xf32>
    %409 = arith.addf %407, %408 : vector<2x32xf32>
    %cst_131 = arith.constant dense<0.000000e+00> : vector<2x32xf32>
    %410 = tpu.matmul %405, %298, %cst_131 {dimension_numbers = #tpu.dot_dimension_numbers<[1], [0], [0], [1], [0, 0, 1, 1], [], []>} : vector<2x32xf32>, vector<32x32xf32>, vector<2x32xf32> -> vector<2x32xf32>
    %411 = vector.broadcast %304 : vector<1x32xf32> to vector<2x32xf32>
    %412 = arith.addf %410, %411 : vector<2x32xf32>
    %cst_132 = arith.constant dense<0.000000e+00> : vector<2x32xf32>
    %413 = tpu.matmul %405, %300, %cst_132 {dimension_numbers = #tpu.dot_dimension_numbers<[1], [0], [0], [1], [0, 0, 1, 1], [], []>} : vector<2x32xf32>, vector<32x32xf32>, vector<2x32xf32> -> vector<2x32xf32>
    %414 = vector.broadcast %306 : vector<1x32xf32> to vector<2x32xf32>
    %415 = arith.addf %413, %414 : vector<2x32xf32>
    %416 = vector.extract_strided_slice %292 {offsets = [6, 0], sizes = [2, 32], strides = [1, 1]} : vector<16x32xf32> to vector<2x32xf32>
    %417 = arith.addf %416, %409 : vector<2x32xf32>
    %418 = arith.negf %417 : vector<2x32xf32>
    %419 = math.exp %418 : vector<2x32xf32>
    %cst_133 = arith.constant 1.000000e+00 : f32
    %420 = vector.broadcast %cst_133 : f32 to vector<2x32xf32>
    %421 = arith.addf %420, %419 : vector<2x32xf32>
    %422 = arith.divf %420, %421 : vector<2x32xf32>
    %423 = vector.extract_strided_slice %293 {offsets = [6, 0], sizes = [2, 32], strides = [1, 1]} : vector<16x32xf32> to vector<2x32xf32>
    %424 = arith.addf %423, %412 : vector<2x32xf32>
    %425 = arith.negf %424 : vector<2x32xf32>
    %426 = math.exp %425 : vector<2x32xf32>
    %cst_134 = arith.constant 1.000000e+00 : f32
    %427 = vector.broadcast %cst_134 : f32 to vector<2x32xf32>
    %428 = arith.addf %427, %426 : vector<2x32xf32>
    %429 = arith.divf %427, %428 : vector<2x32xf32>
    %430 = vector.extract_strided_slice %294 {offsets = [6, 0], sizes = [2, 32], strides = [1, 1]} : vector<16x32xf32> to vector<2x32xf32>
    %431 = arith.mulf %422, %415 : vector<2x32xf32>
    %432 = arith.addf %430, %431 : vector<2x32xf32>
    %433 = math.tanh %432 : vector<2x32xf32>
    %cst_135 = arith.constant 1.000000e+00 : f32
    %434 = vector.broadcast %cst_135 : f32 to vector<2x32xf32>
    %435 = arith.subf %434, %429 : vector<2x32xf32>
    %436 = arith.mulf %435, %433 : vector<2x32xf32>
    %437 = arith.mulf %429, %405 : vector<2x32xf32>
    %438 = arith.addf %436, %437 : vector<2x32xf32>
    %c6_136 = arith.constant 6 : index
    %c0_137 = arith.constant 0 : index
    %439 = vector.load %arg16[%c6_136, %c0_137] : memref<16x32xf32, #tpu.memory_space<vmem>>, vector<2x32xf32>
    tpu.vector_store %arg16[%c6_136, %c0_137], %438 {strides = array<i32>} : memref<16x32xf32, #tpu.memory_space<vmem>>, vector<2x32xf32>,
    %cst_138 = arith.constant dense<0.000000e+00> : vector<2x32xf32>
    %440 = tpu.matmul %438, %296, %cst_138 {dimension_numbers = #tpu.dot_dimension_numbers<[1], [0], [0], [1], [0, 0, 1, 1], [], []>} : vector<2x32xf32>, vector<32x32xf32>, vector<2x32xf32> -> vector<2x32xf32>
    %441 = vector.broadcast %302 : vector<1x32xf32> to vector<2x32xf32>
    %442 = arith.addf %440, %441 : vector<2x32xf32>
    %cst_139 = arith.constant dense<0.000000e+00> : vector<2x32xf32>
    %443 = tpu.matmul %438, %298, %cst_139 {dimension_numbers = #tpu.dot_dimension_numbers<[1], [0], [0], [1], [0, 0, 1, 1], [], []>} : vector<2x32xf32>, vector<32x32xf32>, vector<2x32xf32> -> vector<2x32xf32>
    %444 = vector.broadcast %304 : vector<1x32xf32> to vector<2x32xf32>
    %445 = arith.addf %443, %444 : vector<2x32xf32>
    %cst_140 = arith.constant dense<0.000000e+00> : vector<2x32xf32>
    %446 = tpu.matmul %438, %300, %cst_140 {dimension_numbers = #tpu.dot_dimension_numbers<[1], [0], [0], [1], [0, 0, 1, 1], [], []>} : vector<2x32xf32>, vector<32x32xf32>, vector<2x32xf32> -> vector<2x32xf32>
    %447 = vector.broadcast %306 : vector<1x32xf32> to vector<2x32xf32>
    %448 = arith.addf %446, %447 : vector<2x32xf32>
    %449 = vector.extract_strided_slice %292 {offsets = [8, 0], sizes = [2, 32], strides = [1, 1]} : vector<16x32xf32> to vector<2x32xf32>
    %450 = arith.addf %449, %442 : vector<2x32xf32>
    %451 = arith.negf %450 : vector<2x32xf32>
    %452 = math.exp %451 : vector<2x32xf32>
    %cst_141 = arith.constant 1.000000e+00 : f32
    %453 = vector.broadcast %cst_141 : f32 to vector<2x32xf32>
    %454 = arith.addf %453, %452 : vector<2x32xf32>
    %455 = arith.divf %453, %454 : vector<2x32xf32>
    %456 = vector.extract_strided_slice %293 {offsets = [8, 0], sizes = [2, 32], strides = [1, 1]} : vector<16x32xf32> to vector<2x32xf32>
    %457 = arith.addf %456, %445 : vector<2x32xf32>
    %458 = arith.negf %457 : vector<2x32xf32>
    %459 = math.exp %458 : vector<2x32xf32>
    %cst_142 = arith.constant 1.000000e+00 : f32
    %460 = vector.broadcast %cst_142 : f32 to vector<2x32xf32>
    %461 = arith.addf %460, %459 : vector<2x32xf32>
    %462 = arith.divf %460, %461 : vector<2x32xf32>
    %463 = vector.extract_strided_slice %294 {offsets = [8, 0], sizes = [2, 32], strides = [1, 1]} : vector<16x32xf32> to vector<2x32xf32>
    %464 = arith.mulf %455, %448 : vector<2x32xf32>
    %465 = arith.addf %463, %464 : vector<2x32xf32>
    %466 = math.tanh %465 : vector<2x32xf32>
    %cst_143 = arith.constant 1.000000e+00 : f32
    %467 = vector.broadcast %cst_143 : f32 to vector<2x32xf32>
    %468 = arith.subf %467, %462 : vector<2x32xf32>
    %469 = arith.mulf %468, %466 : vector<2x32xf32>
    %470 = arith.mulf %462, %438 : vector<2x32xf32>
    %471 = arith.addf %469, %470 : vector<2x32xf32>
    %c8_144 = arith.constant 8 : index
    %c0_145 = arith.constant 0 : index
    %472 = vector.load %arg16[%c8_144, %c0_145] : memref<16x32xf32, #tpu.memory_space<vmem>>, vector<2x32xf32>
    tpu.vector_store %arg16[%c8_144, %c0_145], %471 {strides = array<i32>} : memref<16x32xf32, #tpu.memory_space<vmem>>, vector<2x32xf32>,
    %cst_146 = arith.constant dense<0.000000e+00> : vector<2x32xf32>
    %473 = tpu.matmul %471, %296, %cst_146 {dimension_numbers = #tpu.dot_dimension_numbers<[1], [0], [0], [1], [0, 0, 1, 1], [], []>} : vector<2x32xf32>, vector<32x32xf32>, vector<2x32xf32> -> vector<2x32xf32>
    %474 = vector.broadcast %302 : vector<1x32xf32> to vector<2x32xf32>
    %475 = arith.addf %473, %474 : vector<2x32xf32>
    %cst_147 = arith.constant dense<0.000000e+00> : vector<2x32xf32>
    %476 = tpu.matmul %471, %298, %cst_147 {dimension_numbers = #tpu.dot_dimension_numbers<[1], [0], [0], [1], [0, 0, 1, 1], [], []>} : vector<2x32xf32>, vector<32x32xf32>, vector<2x32xf32> -> vector<2x32xf32>
    %477 = vector.broadcast %304 : vector<1x32xf32> to vector<2x32xf32>
    %478 = arith.addf %476, %477 : vector<2x32xf32>
    %cst_148 = arith.constant dense<0.000000e+00> : vector<2x32xf32>
    %479 = tpu.matmul %471, %300, %cst_148 {dimension_numbers = #tpu.dot_dimension_numbers<[1], [0], [0], [1], [0, 0, 1, 1], [], []>} : vector<2x32xf32>, vector<32x32xf32>, vector<2x32xf32> -> vector<2x32xf32>
    %480 = vector.broadcast %306 : vector<1x32xf32> to vector<2x32xf32>
    %481 = arith.addf %479, %480 : vector<2x32xf32>
    %482 = vector.extract_strided_slice %292 {offsets = [10, 0], sizes = [2, 32], strides = [1, 1]} : vector<16x32xf32> to vector<2x32xf32>
    %483 = arith.addf %482, %475 : vector<2x32xf32>
    %484 = arith.negf %483 : vector<2x32xf32>
    %485 = math.exp %484 : vector<2x32xf32>
    %cst_149 = arith.constant 1.000000e+00 : f32
    %486 = vector.broadcast %cst_149 : f32 to vector<2x32xf32>
    %487 = arith.addf %486, %485 : vector<2x32xf32>
    %488 = arith.divf %486, %487 : vector<2x32xf32>
    %489 = vector.extract_strided_slice %293 {offsets = [10, 0], sizes = [2, 32], strides = [1, 1]} : vector<16x32xf32> to vector<2x32xf32>
    %490 = arith.addf %489, %478 : vector<2x32xf32>
    %491 = arith.negf %490 : vector<2x32xf32>
    %492 = math.exp %491 : vector<2x32xf32>
    %cst_150 = arith.constant 1.000000e+00 : f32
    %493 = vector.broadcast %cst_150 : f32 to vector<2x32xf32>
    %494 = arith.addf %493, %492 : vector<2x32xf32>
    %495 = arith.divf %493, %494 : vector<2x32xf32>
    %496 = vector.extract_strided_slice %294 {offsets = [10, 0], sizes = [2, 32], strides = [1, 1]} : vector<16x32xf32> to vector<2x32xf32>
    %497 = arith.mulf %488, %481 : vector<2x32xf32>
    %498 = arith.addf %496, %497 : vector<2x32xf32>
    %499 = math.tanh %498 : vector<2x32xf32>
    %cst_151 = arith.constant 1.000000e+00 : f32
    %500 = vector.broadcast %cst_151 : f32 to vector<2x32xf32>
    %501 = arith.subf %500, %495 : vector<2x32xf32>
    %502 = arith.mulf %501, %499 : vector<2x32xf32>
    %503 = arith.mulf %495, %471 : vector<2x32xf32>
    %504 = arith.addf %502, %503 : vector<2x32xf32>
    %c10_152 = arith.constant 10 : index
    %c0_153 = arith.constant 0 : index
    %505 = vector.load %arg16[%c10_152, %c0_153] : memref<16x32xf32, #tpu.memory_space<vmem>>, vector<2x32xf32>
    tpu.vector_store %arg16[%c10_152, %c0_153], %504 {strides = array<i32>} : memref<16x32xf32, #tpu.memory_space<vmem>>, vector<2x32xf32>,
    %cst_154 = arith.constant dense<0.000000e+00> : vector<2x32xf32>
    %506 = tpu.matmul %504, %296, %cst_154 {dimension_numbers = #tpu.dot_dimension_numbers<[1], [0], [0], [1], [0, 0, 1, 1], [], []>} : vector<2x32xf32>, vector<32x32xf32>, vector<2x32xf32> -> vector<2x32xf32>
    %507 = vector.broadcast %302 : vector<1x32xf32> to vector<2x32xf32>
    %508 = arith.addf %506, %507 : vector<2x32xf32>
    %cst_155 = arith.constant dense<0.000000e+00> : vector<2x32xf32>
    %509 = tpu.matmul %504, %298, %cst_155 {dimension_numbers = #tpu.dot_dimension_numbers<[1], [0], [0], [1], [0, 0, 1, 1], [], []>} : vector<2x32xf32>, vector<32x32xf32>, vector<2x32xf32> -> vector<2x32xf32>
    %510 = vector.broadcast %304 : vector<1x32xf32> to vector<2x32xf32>
    %511 = arith.addf %509, %510 : vector<2x32xf32>
    %cst_156 = arith.constant dense<0.000000e+00> : vector<2x32xf32>
    %512 = tpu.matmul %504, %300, %cst_156 {dimension_numbers = #tpu.dot_dimension_numbers<[1], [0], [0], [1], [0, 0, 1, 1], [], []>} : vector<2x32xf32>, vector<32x32xf32>, vector<2x32xf32> -> vector<2x32xf32>
    %513 = vector.broadcast %306 : vector<1x32xf32> to vector<2x32xf32>
    %514 = arith.addf %512, %513 : vector<2x32xf32>
    %515 = vector.extract_strided_slice %292 {offsets = [12, 0], sizes = [2, 32], strides = [1, 1]} : vector<16x32xf32> to vector<2x32xf32>
    %516 = arith.addf %515, %508 : vector<2x32xf32>
    %517 = arith.negf %516 : vector<2x32xf32>
    %518 = math.exp %517 : vector<2x32xf32>
    %cst_157 = arith.constant 1.000000e+00 : f32
    %519 = vector.broadcast %cst_157 : f32 to vector<2x32xf32>
    %520 = arith.addf %519, %518 : vector<2x32xf32>
    %521 = arith.divf %519, %520 : vector<2x32xf32>
    %522 = vector.extract_strided_slice %293 {offsets = [12, 0], sizes = [2, 32], strides = [1, 1]} : vector<16x32xf32> to vector<2x32xf32>
    %523 = arith.addf %522, %511 : vector<2x32xf32>
    %524 = arith.negf %523 : vector<2x32xf32>
    %525 = math.exp %524 : vector<2x32xf32>
    %cst_158 = arith.constant 1.000000e+00 : f32
    %526 = vector.broadcast %cst_158 : f32 to vector<2x32xf32>
    %527 = arith.addf %526, %525 : vector<2x32xf32>
    %528 = arith.divf %526, %527 : vector<2x32xf32>
    %529 = vector.extract_strided_slice %294 {offsets = [12, 0], sizes = [2, 32], strides = [1, 1]} : vector<16x32xf32> to vector<2x32xf32>
    %530 = arith.mulf %521, %514 : vector<2x32xf32>
    %531 = arith.addf %529, %530 : vector<2x32xf32>
    %532 = math.tanh %531 : vector<2x32xf32>
    %cst_159 = arith.constant 1.000000e+00 : f32
    %533 = vector.broadcast %cst_159 : f32 to vector<2x32xf32>
    %534 = arith.subf %533, %528 : vector<2x32xf32>
    %535 = arith.mulf %534, %532 : vector<2x32xf32>
    %536 = arith.mulf %528, %504 : vector<2x32xf32>
    %537 = arith.addf %535, %536 : vector<2x32xf32>
    %c12_160 = arith.constant 12 : index
    %c0_161 = arith.constant 0 : index
    %538 = vector.load %arg16[%c12_160, %c0_161] : memref<16x32xf32, #tpu.memory_space<vmem>>, vector<2x32xf32>
    tpu.vector_store %arg16[%c12_160, %c0_161], %537 {strides = array<i32>} : memref<16x32xf32, #tpu.memory_space<vmem>>, vector<2x32xf32>,
    %cst_162 = arith.constant dense<0.000000e+00> : vector<2x32xf32>
    %539 = tpu.matmul %537, %296, %cst_162 {dimension_numbers = #tpu.dot_dimension_numbers<[1], [0], [0], [1], [0, 0, 1, 1], [], []>} : vector<2x32xf32>, vector<32x32xf32>, vector<2x32xf32> -> vector<2x32xf32>
    %540 = vector.broadcast %302 : vector<1x32xf32> to vector<2x32xf32>
    %541 = arith.addf %539, %540 : vector<2x32xf32>
    %cst_163 = arith.constant dense<0.000000e+00> : vector<2x32xf32>
    %542 = tpu.matmul %537, %298, %cst_163 {dimension_numbers = #tpu.dot_dimension_numbers<[1], [0], [0], [1], [0, 0, 1, 1], [], []>} : vector<2x32xf32>, vector<32x32xf32>, vector<2x32xf32> -> vector<2x32xf32>
    %543 = vector.broadcast %304 : vector<1x32xf32> to vector<2x32xf32>
    %544 = arith.addf %542, %543 : vector<2x32xf32>
    %cst_164 = arith.constant dense<0.000000e+00> : vector<2x32xf32>
    %545 = tpu.matmul %537, %300, %cst_164 {dimension_numbers = #tpu.dot_dimension_numbers<[1], [0], [0], [1], [0, 0, 1, 1], [], []>} : vector<2x32xf32>, vector<32x32xf32>, vector<2x32xf32> -> vector<2x32xf32>
    %546 = vector.broadcast %306 : vector<1x32xf32> to vector<2x32xf32>
    %547 = arith.addf %545, %546 : vector<2x32xf32>
    %548 = vector.extract_strided_slice %292 {offsets = [14, 0], sizes = [2, 32], strides = [1, 1]} : vector<16x32xf32> to vector<2x32xf32>
    %549 = arith.addf %548, %541 : vector<2x32xf32>
    %550 = arith.negf %549 : vector<2x32xf32>
    %551 = math.exp %550 : vector<2x32xf32>
    %cst_165 = arith.constant 1.000000e+00 : f32
    %552 = vector.broadcast %cst_165 : f32 to vector<2x32xf32>
    %553 = arith.addf %552, %551 : vector<2x32xf32>
    %554 = arith.divf %552, %553 : vector<2x32xf32>
    %555 = vector.extract_strided_slice %293 {offsets = [14, 0], sizes = [2, 32], strides = [1, 1]} : vector<16x32xf32> to vector<2x32xf32>
    %556 = arith.addf %555, %544 : vector<2x32xf32>
    %557 = arith.negf %556 : vector<2x32xf32>
    %558 = math.exp %557 : vector<2x32xf32>
    %cst_166 = arith.constant 1.000000e+00 : f32
    %559 = vector.broadcast %cst_166 : f32 to vector<2x32xf32>
    %560 = arith.addf %559, %558 : vector<2x32xf32>
    %561 = arith.divf %559, %560 : vector<2x32xf32>
    %562 = vector.extract_strided_slice %294 {offsets = [14, 0], sizes = [2, 32], strides = [1, 1]} : vector<16x32xf32> to vector<2x32xf32>
    %563 = arith.mulf %554, %547 : vector<2x32xf32>
    %564 = arith.addf %562, %563 : vector<2x32xf32>
    %565 = math.tanh %564 : vector<2x32xf32>
    %cst_167 = arith.constant 1.000000e+00 : f32
    %566 = vector.broadcast %cst_167 : f32 to vector<2x32xf32>
    %567 = arith.subf %566, %561 : vector<2x32xf32>
    %568 = arith.mulf %567, %565 : vector<2x32xf32>
    %569 = arith.mulf %561, %537 : vector<2x32xf32>
    %570 = arith.addf %568, %569 : vector<2x32xf32>
    %c14_168 = arith.constant 14 : index
    %c0_169 = arith.constant 0 : index
    %571 = vector.load %arg16[%c14_168, %c0_169] : memref<16x32xf32, #tpu.memory_space<vmem>>, vector<2x32xf32>
    tpu.vector_store %arg16[%c14_168, %c0_169], %570 {strides = array<i32>} : memref<16x32xf32, #tpu.memory_space<vmem>>, vector<2x32xf32>,
    %c0_170 = arith.constant 0 : index
    %c0_171 = arith.constant 0 : index
    %572 = vector.load %arg16[%c0_170, %c0_171] : memref<16x32xf32, #tpu.memory_space<vmem>>, vector<16x32xf32>
    %c0_172 = arith.constant 0 : index
    %c0_173 = arith.constant 0 : index
    %573 = vector.load %arg9[%c0_172, %c0_173] : memref<32x96xf32, #tpu.memory_space<vmem>>, vector<32x96xf32>
    %cst_174 = arith.constant dense<0.000000e+00> : vector<16x96xf32>
    %574 = tpu.matmul %572, %573, %cst_174 {dimension_numbers = #tpu.dot_dimension_numbers<[1], [0], [0], [1], [0, 0, 1, 1], [], []>} : vector<16x32xf32>, vector<32x96xf32>, vector<16x96xf32> -> vector<16x96xf32>
    %c0_175 = arith.constant 0 : index
    %c0_176 = arith.constant 0 : index
    %575 = vector.load %arg11[%c0_175, %c0_176] : memref<1x96xf32, #tpu.memory_space<vmem>>, vector<1x96xf32>
    %576 = vector.broadcast %575 : vector<1x96xf32> to vector<16x96xf32>
    %577 = arith.addf %574, %576 : vector<16x96xf32>
    %578 = vector.extract_strided_slice %577 {offsets = [0, 0], sizes = [16, 32], strides = [1, 1]} : vector<16x96xf32> to vector<16x32xf32>
    %579 = vector.extract_strided_slice %577 {offsets = [0, 32], sizes = [16, 32], strides = [1, 1]} : vector<16x96xf32> to vector<16x32xf32>
    %580 = vector.extract_strided_slice %577 {offsets = [0, 64], sizes = [16, 32], strides = [1, 1]} : vector<16x96xf32> to vector<16x32xf32>
    %c0_177 = arith.constant 0 : index
    %c0_178 = arith.constant 0 : index
    %c0_179 = arith.constant 0 : index
    %581 = vector.load %arg10[%c0_177, %c0_178, %c0_179] : memref<3x32x32xf32, #tpu.memory_space<vmem>>, vector<1x32x32xf32>
    %582 = vector.shape_cast %581 : vector<1x32x32xf32> to vector<32x32xf32>
    %c1_180 = arith.constant 1 : index
    %c0_181 = arith.constant 0 : index
    %c0_182 = arith.constant 0 : index
    %583 = vector.load %arg10[%c1_180, %c0_181, %c0_182] : memref<3x32x32xf32, #tpu.memory_space<vmem>>, vector<1x32x32xf32>
    %584 = vector.shape_cast %583 : vector<1x32x32xf32> to vector<32x32xf32>
    %c2_183 = arith.constant 2 : index
    %c0_184 = arith.constant 0 : index
    %c0_185 = arith.constant 0 : index
    %585 = vector.load %arg10[%c2_183, %c0_184, %c0_185] : memref<3x32x32xf32, #tpu.memory_space<vmem>>, vector<1x32x32xf32>
    %586 = vector.shape_cast %585 : vector<1x32x32xf32> to vector<32x32xf32>
    %c0_186 = arith.constant 0 : index
    %c0_187 = arith.constant 0 : index
    %c0_188 = arith.constant 0 : index
    %587 = vector.load %arg12[%c0_186, %c0_187, %c0_188] : memref<3x1x32xf32, #tpu.memory_space<vmem>>, vector<1x1x32xf32>
    %588 = vector.shape_cast %587 : vector<1x1x32xf32> to vector<1x32xf32>
    %c1_189 = arith.constant 1 : index
    %c0_190 = arith.constant 0 : index
    %c0_191 = arith.constant 0 : index
    %589 = vector.load %arg12[%c1_189, %c0_190, %c0_191] : memref<3x1x32xf32, #tpu.memory_space<vmem>>, vector<1x1x32xf32>
    %590 = vector.shape_cast %589 : vector<1x1x32xf32> to vector<1x32xf32>
    %c2_192 = arith.constant 2 : index
    %c0_193 = arith.constant 0 : index
    %c0_194 = arith.constant 0 : index
    %591 = vector.load %arg12[%c2_192, %c0_193, %c0_194] : memref<3x1x32xf32, #tpu.memory_space<vmem>>, vector<1x1x32xf32>
    %592 = vector.shape_cast %591 : vector<1x1x32xf32> to vector<1x32xf32>
    %cst_195 = arith.constant 0.000000e+00 : f32
    %593 = vector.broadcast %cst_195 : f32 to vector<2x32xf32>
    %cst_196 = arith.constant dense<0.000000e+00> : vector<2x32xf32>
    %594 = tpu.matmul %593, %582, %cst_196 {dimension_numbers = #tpu.dot_dimension_numbers<[1], [0], [0], [1], [0, 0, 1, 1], [], []>} : vector<2x32xf32>, vector<32x32xf32>, vector<2x32xf32> -> vector<2x32xf32>
    %595 = vector.broadcast %588 : vector<1x32xf32> to vector<2x32xf32>
    %596 = arith.addf %594, %595 : vector<2x32xf32>
    %cst_197 = arith.constant dense<0.000000e+00> : vector<2x32xf32>
    %597 = tpu.matmul %593, %584, %cst_197 {dimension_numbers = #tpu.dot_dimension_numbers<[1], [0], [0], [1], [0, 0, 1, 1], [], []>} : vector<2x32xf32>, vector<32x32xf32>, vector<2x32xf32> -> vector<2x32xf32>
    %598 = vector.broadcast %590 : vector<1x32xf32> to vector<2x32xf32>
    %599 = arith.addf %597, %598 : vector<2x32xf32>
    %cst_198 = arith.constant dense<0.000000e+00> : vector<2x32xf32>
    %600 = tpu.matmul %593, %586, %cst_198 {dimension_numbers = #tpu.dot_dimension_numbers<[1], [0], [0], [1], [0, 0, 1, 1], [], []>} : vector<2x32xf32>, vector<32x32xf32>, vector<2x32xf32> -> vector<2x32xf32>
    %601 = vector.broadcast %592 : vector<1x32xf32> to vector<2x32xf32>
    %602 = arith.addf %600, %601 : vector<2x32xf32>
    %603 = vector.extract_strided_slice %578 {offsets = [0, 0], sizes = [2, 32], strides = [1, 1]} : vector<16x32xf32> to vector<2x32xf32>
    %604 = arith.addf %603, %596 : vector<2x32xf32>
    %605 = arith.negf %604 : vector<2x32xf32>
    %606 = math.exp %605 : vector<2x32xf32>
    %cst_199 = arith.constant 1.000000e+00 : f32
    %607 = vector.broadcast %cst_199 : f32 to vector<2x32xf32>
    %608 = arith.addf %607, %606 : vector<2x32xf32>
    %609 = arith.divf %607, %608 : vector<2x32xf32>
    %610 = vector.extract_strided_slice %579 {offsets = [0, 0], sizes = [2, 32], strides = [1, 1]} : vector<16x32xf32> to vector<2x32xf32>
    %611 = arith.addf %610, %599 : vector<2x32xf32>
    %612 = arith.negf %611 : vector<2x32xf32>
    %613 = math.exp %612 : vector<2x32xf32>
    %cst_200 = arith.constant 1.000000e+00 : f32
    %614 = vector.broadcast %cst_200 : f32 to vector<2x32xf32>
    %615 = arith.addf %614, %613 : vector<2x32xf32>
    %616 = arith.divf %614, %615 : vector<2x32xf32>
    %617 = vector.extract_strided_slice %580 {offsets = [0, 0], sizes = [2, 32], strides = [1, 1]} : vector<16x32xf32> to vector<2x32xf32>
    %618 = arith.mulf %609, %602 : vector<2x32xf32>
    %619 = arith.addf %617, %618 : vector<2x32xf32>
    %620 = math.tanh %619 : vector<2x32xf32>
    %cst_201 = arith.constant 1.000000e+00 : f32
    %621 = vector.broadcast %cst_201 : f32 to vector<2x32xf32>
    %622 = arith.subf %621, %616 : vector<2x32xf32>
    %623 = arith.mulf %622, %620 : vector<2x32xf32>
    %624 = arith.mulf %616, %593 : vector<2x32xf32>
    %625 = arith.addf %623, %624 : vector<2x32xf32>
    %cst_202 = arith.constant dense<0.000000e+00> : vector<2x32xf32>
    %626 = tpu.matmul %625, %582, %cst_202 {dimension_numbers = #tpu.dot_dimension_numbers<[1], [0], [0], [1], [0, 0, 1, 1], [], []>} : vector<2x32xf32>, vector<32x32xf32>, vector<2x32xf32> -> vector<2x32xf32>
    %627 = vector.broadcast %588 : vector<1x32xf32> to vector<2x32xf32>
    %628 = arith.addf %626, %627 : vector<2x32xf32>
    %cst_203 = arith.constant dense<0.000000e+00> : vector<2x32xf32>
    %629 = tpu.matmul %625, %584, %cst_203 {dimension_numbers = #tpu.dot_dimension_numbers<[1], [0], [0], [1], [0, 0, 1, 1], [], []>} : vector<2x32xf32>, vector<32x32xf32>, vector<2x32xf32> -> vector<2x32xf32>
    %630 = vector.broadcast %590 : vector<1x32xf32> to vector<2x32xf32>
    %631 = arith.addf %629, %630 : vector<2x32xf32>
    %cst_204 = arith.constant dense<0.000000e+00> : vector<2x32xf32>
    %632 = tpu.matmul %625, %586, %cst_204 {dimension_numbers = #tpu.dot_dimension_numbers<[1], [0], [0], [1], [0, 0, 1, 1], [], []>} : vector<2x32xf32>, vector<32x32xf32>, vector<2x32xf32> -> vector<2x32xf32>
    %633 = vector.broadcast %592 : vector<1x32xf32> to vector<2x32xf32>
    %634 = arith.addf %632, %633 : vector<2x32xf32>
    %635 = vector.extract_strided_slice %578 {offsets = [2, 0], sizes = [2, 32], strides = [1, 1]} : vector<16x32xf32> to vector<2x32xf32>
    %636 = arith.addf %635, %628 : vector<2x32xf32>
    %637 = arith.negf %636 : vector<2x32xf32>
    %638 = math.exp %637 : vector<2x32xf32>
    %cst_205 = arith.constant 1.000000e+00 : f32
    %639 = vector.broadcast %cst_205 : f32 to vector<2x32xf32>
    %640 = arith.addf %639, %638 : vector<2x32xf32>
    %641 = arith.divf %639, %640 : vector<2x32xf32>
    %642 = vector.extract_strided_slice %579 {offsets = [2, 0], sizes = [2, 32], strides = [1, 1]} : vector<16x32xf32> to vector<2x32xf32>
    %643 = arith.addf %642, %631 : vector<2x32xf32>
    %644 = arith.negf %643 : vector<2x32xf32>
    %645 = math.exp %644 : vector<2x32xf32>
    %cst_206 = arith.constant 1.000000e+00 : f32
    %646 = vector.broadcast %cst_206 : f32 to vector<2x32xf32>
    %647 = arith.addf %646, %645 : vector<2x32xf32>
    %648 = arith.divf %646, %647 : vector<2x32xf32>
    %649 = vector.extract_strided_slice %580 {offsets = [2, 0], sizes = [2, 32], strides = [1, 1]} : vector<16x32xf32> to vector<2x32xf32>
    %650 = arith.mulf %641, %634 : vector<2x32xf32>
    %651 = arith.addf %649, %650 : vector<2x32xf32>
    %652 = math.tanh %651 : vector<2x32xf32>
    %cst_207 = arith.constant 1.000000e+00 : f32
    %653 = vector.broadcast %cst_207 : f32 to vector<2x32xf32>
    %654 = arith.subf %653, %648 : vector<2x32xf32>
    %655 = arith.mulf %654, %652 : vector<2x32xf32>
    %656 = arith.mulf %648, %625 : vector<2x32xf32>
    %657 = arith.addf %655, %656 : vector<2x32xf32>
    %cst_208 = arith.constant dense<0.000000e+00> : vector<2x32xf32>
    %658 = tpu.matmul %657, %582, %cst_208 {dimension_numbers = #tpu.dot_dimension_numbers<[1], [0], [0], [1], [0, 0, 1, 1], [], []>} : vector<2x32xf32>, vector<32x32xf32>, vector<2x32xf32> -> vector<2x32xf32>
    %659 = vector.broadcast %588 : vector<1x32xf32> to vector<2x32xf32>
    %660 = arith.addf %658, %659 : vector<2x32xf32>
    %cst_209 = arith.constant dense<0.000000e+00> : vector<2x32xf32>
    %661 = tpu.matmul %657, %584, %cst_209 {dimension_numbers = #tpu.dot_dimension_numbers<[1], [0], [0], [1], [0, 0, 1, 1], [], []>} : vector<2x32xf32>, vector<32x32xf32>, vector<2x32xf32> -> vector<2x32xf32>
    %662 = vector.broadcast %590 : vector<1x32xf32> to vector<2x32xf32>
    %663 = arith.addf %661, %662 : vector<2x32xf32>
    %cst_210 = arith.constant dense<0.000000e+00> : vector<2x32xf32>
    %664 = tpu.matmul %657, %586, %cst_210 {dimension_numbers = #tpu.dot_dimension_numbers<[1], [0], [0], [1], [0, 0, 1, 1], [], []>} : vector<2x32xf32>, vector<32x32xf32>, vector<2x32xf32> -> vector<2x32xf32>
    %665 = vector.broadcast %592 : vector<1x32xf32> to vector<2x32xf32>
    %666 = arith.addf %664, %665 : vector<2x32xf32>
    %667 = vector.extract_strided_slice %578 {offsets = [4, 0], sizes = [2, 32], strides = [1, 1]} : vector<16x32xf32> to vector<2x32xf32>
    %668 = arith.addf %667, %660 : vector<2x32xf32>
    %669 = arith.negf %668 : vector<2x32xf32>
    %670 = math.exp %669 : vector<2x32xf32>
    %cst_211 = arith.constant 1.000000e+00 : f32
    %671 = vector.broadcast %cst_211 : f32 to vector<2x32xf32>
    %672 = arith.addf %671, %670 : vector<2x32xf32>
    %673 = arith.divf %671, %672 : vector<2x32xf32>
    %674 = vector.extract_strided_slice %579 {offsets = [4, 0], sizes = [2, 32], strides = [1, 1]} : vector<16x32xf32> to vector<2x32xf32>
    %675 = arith.addf %674, %663 : vector<2x32xf32>
    %676 = arith.negf %675 : vector<2x32xf32>
    %677 = math.exp %676 : vector<2x32xf32>
    %cst_212 = arith.constant 1.000000e+00 : f32
    %678 = vector.broadcast %cst_212 : f32 to vector<2x32xf32>
    %679 = arith.addf %678, %677 : vector<2x32xf32>
    %680 = arith.divf %678, %679 : vector<2x32xf32>
    %681 = vector.extract_strided_slice %580 {offsets = [4, 0], sizes = [2, 32], strides = [1, 1]} : vector<16x32xf32> to vector<2x32xf32>
    %682 = arith.mulf %673, %666 : vector<2x32xf32>
    %683 = arith.addf %681, %682 : vector<2x32xf32>
    %684 = math.tanh %683 : vector<2x32xf32>
    %cst_213 = arith.constant 1.000000e+00 : f32
    %685 = vector.broadcast %cst_213 : f32 to vector<2x32xf32>
    %686 = arith.subf %685, %680 : vector<2x32xf32>
    %687 = arith.mulf %686, %684 : vector<2x32xf32>
    %688 = arith.mulf %680, %657 : vector<2x32xf32>
    %689 = arith.addf %687, %688 : vector<2x32xf32>
    %cst_214 = arith.constant dense<0.000000e+00> : vector<2x32xf32>
    %690 = tpu.matmul %689, %582, %cst_214 {dimension_numbers = #tpu.dot_dimension_numbers<[1], [0], [0], [1], [0, 0, 1, 1], [], []>} : vector<2x32xf32>, vector<32x32xf32>, vector<2x32xf32> -> vector<2x32xf32>
    %691 = vector.broadcast %588 : vector<1x32xf32> to vector<2x32xf32>
    %692 = arith.addf %690, %691 : vector<2x32xf32>
    %cst_215 = arith.constant dense<0.000000e+00> : vector<2x32xf32>
    %693 = tpu.matmul %689, %584, %cst_215 {dimension_numbers = #tpu.dot_dimension_numbers<[1], [0], [0], [1], [0, 0, 1, 1], [], []>} : vector<2x32xf32>, vector<32x32xf32>, vector<2x32xf32> -> vector<2x32xf32>
    %694 = vector.broadcast %590 : vector<1x32xf32> to vector<2x32xf32>
    %695 = arith.addf %693, %694 : vector<2x32xf32>
    %cst_216 = arith.constant dense<0.000000e+00> : vector<2x32xf32>
    %696 = tpu.matmul %689, %586, %cst_216 {dimension_numbers = #tpu.dot_dimension_numbers<[1], [0], [0], [1], [0, 0, 1, 1], [], []>} : vector<2x32xf32>, vector<32x32xf32>, vector<2x32xf32> -> vector<2x32xf32>
    %697 = vector.broadcast %592 : vector<1x32xf32> to vector<2x32xf32>
    %698 = arith.addf %696, %697 : vector<2x32xf32>
    %699 = vector.extract_strided_slice %578 {offsets = [6, 0], sizes = [2, 32], strides = [1, 1]} : vector<16x32xf32> to vector<2x32xf32>
    %700 = arith.addf %699, %692 : vector<2x32xf32>
    %701 = arith.negf %700 : vector<2x32xf32>
    %702 = math.exp %701 : vector<2x32xf32>
    %cst_217 = arith.constant 1.000000e+00 : f32
    %703 = vector.broadcast %cst_217 : f32 to vector<2x32xf32>
    %704 = arith.addf %703, %702 : vector<2x32xf32>
    %705 = arith.divf %703, %704 : vector<2x32xf32>
    %706 = vector.extract_strided_slice %579 {offsets = [6, 0], sizes = [2, 32], strides = [1, 1]} : vector<16x32xf32> to vector<2x32xf32>
    %707 = arith.addf %706, %695 : vector<2x32xf32>
    %708 = arith.negf %707 : vector<2x32xf32>
    %709 = math.exp %708 : vector<2x32xf32>
    %cst_218 = arith.constant 1.000000e+00 : f32
    %710 = vector.broadcast %cst_218 : f32 to vector<2x32xf32>
    %711 = arith.addf %710, %709 : vector<2x32xf32>
    %712 = arith.divf %710, %711 : vector<2x32xf32>
    %713 = vector.extract_strided_slice %580 {offsets = [6, 0], sizes = [2, 32], strides = [1, 1]} : vector<16x32xf32> to vector<2x32xf32>
    %714 = arith.mulf %705, %698 : vector<2x32xf32>
    %715 = arith.addf %713, %714 : vector<2x32xf32>
    %716 = math.tanh %715 : vector<2x32xf32>
    %cst_219 = arith.constant 1.000000e+00 : f32
    %717 = vector.broadcast %cst_219 : f32 to vector<2x32xf32>
    %718 = arith.subf %717, %712 : vector<2x32xf32>
    %719 = arith.mulf %718, %716 : vector<2x32xf32>
    %720 = arith.mulf %712, %689 : vector<2x32xf32>
    %721 = arith.addf %719, %720 : vector<2x32xf32>
    %cst_220 = arith.constant dense<0.000000e+00> : vector<2x32xf32>
    %722 = tpu.matmul %721, %582, %cst_220 {dimension_numbers = #tpu.dot_dimension_numbers<[1], [0], [0], [1], [0, 0, 1, 1], [], []>} : vector<2x32xf32>, vector<32x32xf32>, vector<2x32xf32> -> vector<2x32xf32>
    %723 = vector.broadcast %588 : vector<1x32xf32> to vector<2x32xf32>
    %724 = arith.addf %722, %723 : vector<2x32xf32>
    %cst_221 = arith.constant dense<0.000000e+00> : vector<2x32xf32>
    %725 = tpu.matmul %721, %584, %cst_221 {dimension_numbers = #tpu.dot_dimension_numbers<[1], [0], [0], [1], [0, 0, 1, 1], [], []>} : vector<2x32xf32>, vector<32x32xf32>, vector<2x32xf32> -> vector<2x32xf32>
    %726 = vector.broadcast %590 : vector<1x32xf32> to vector<2x32xf32>
    %727 = arith.addf %725, %726 : vector<2x32xf32>
    %cst_222 = arith.constant dense<0.000000e+00> : vector<2x32xf32>
    %728 = tpu.matmul %721, %586, %cst_222 {dimension_numbers = #tpu.dot_dimension_numbers<[1], [0], [0], [1], [0, 0, 1, 1], [], []>} : vector<2x32xf32>, vector<32x32xf32>, vector<2x32xf32> -> vector<2x32xf32>
    %729 = vector.broadcast %592 : vector<1x32xf32> to vector<2x32xf32>
    %730 = arith.addf %728, %729 : vector<2x32xf32>
    %731 = vector.extract_strided_slice %578 {offsets = [8, 0], sizes = [2, 32], strides = [1, 1]} : vector<16x32xf32> to vector<2x32xf32>
    %732 = arith.addf %731, %724 : vector<2x32xf32>
    %733 = arith.negf %732 : vector<2x32xf32>
    %734 = math.exp %733 : vector<2x32xf32>
    %cst_223 = arith.constant 1.000000e+00 : f32
    %735 = vector.broadcast %cst_223 : f32 to vector<2x32xf32>
    %736 = arith.addf %735, %734 : vector<2x32xf32>
    %737 = arith.divf %735, %736 : vector<2x32xf32>
    %738 = vector.extract_strided_slice %579 {offsets = [8, 0], sizes = [2, 32], strides = [1, 1]} : vector<16x32xf32> to vector<2x32xf32>
    %739 = arith.addf %738, %727 : vector<2x32xf32>
    %740 = arith.negf %739 : vector<2x32xf32>
    %741 = math.exp %740 : vector<2x32xf32>
    %cst_224 = arith.constant 1.000000e+00 : f32
    %742 = vector.broadcast %cst_224 : f32 to vector<2x32xf32>
    %743 = arith.addf %742, %741 : vector<2x32xf32>
    %744 = arith.divf %742, %743 : vector<2x32xf32>
    %745 = vector.extract_strided_slice %580 {offsets = [8, 0], sizes = [2, 32], strides = [1, 1]} : vector<16x32xf32> to vector<2x32xf32>
    %746 = arith.mulf %737, %730 : vector<2x32xf32>
    %747 = arith.addf %745, %746 : vector<2x32xf32>
    %748 = math.tanh %747 : vector<2x32xf32>
    %cst_225 = arith.constant 1.000000e+00 : f32
    %749 = vector.broadcast %cst_225 : f32 to vector<2x32xf32>
    %750 = arith.subf %749, %744 : vector<2x32xf32>
    %751 = arith.mulf %750, %748 : vector<2x32xf32>
    %752 = arith.mulf %744, %721 : vector<2x32xf32>
    %753 = arith.addf %751, %752 : vector<2x32xf32>
    %cst_226 = arith.constant dense<0.000000e+00> : vector<2x32xf32>
    %754 = tpu.matmul %753, %582, %cst_226 {dimension_numbers = #tpu.dot_dimension_numbers<[1], [0], [0], [1], [0, 0, 1, 1], [], []>} : vector<2x32xf32>, vector<32x32xf32>, vector<2x32xf32> -> vector<2x32xf32>
    %755 = vector.broadcast %588 : vector<1x32xf32> to vector<2x32xf32>
    %756 = arith.addf %754, %755 : vector<2x32xf32>
    %cst_227 = arith.constant dense<0.000000e+00> : vector<2x32xf32>
    %757 = tpu.matmul %753, %584, %cst_227 {dimension_numbers = #tpu.dot_dimension_numbers<[1], [0], [0], [1], [0, 0, 1, 1], [], []>} : vector<2x32xf32>, vector<32x32xf32>, vector<2x32xf32> -> vector<2x32xf32>
    %758 = vector.broadcast %590 : vector<1x32xf32> to vector<2x32xf32>
    %759 = arith.addf %757, %758 : vector<2x32xf32>
    %cst_228 = arith.constant dense<0.000000e+00> : vector<2x32xf32>
    %760 = tpu.matmul %753, %586, %cst_228 {dimension_numbers = #tpu.dot_dimension_numbers<[1], [0], [0], [1], [0, 0, 1, 1], [], []>} : vector<2x32xf32>, vector<32x32xf32>, vector<2x32xf32> -> vector<2x32xf32>
    %761 = vector.broadcast %592 : vector<1x32xf32> to vector<2x32xf32>
    %762 = arith.addf %760, %761 : vector<2x32xf32>
    %763 = vector.extract_strided_slice %578 {offsets = [10, 0], sizes = [2, 32], strides = [1, 1]} : vector<16x32xf32> to vector<2x32xf32>
    %764 = arith.addf %763, %756 : vector<2x32xf32>
    %765 = arith.negf %764 : vector<2x32xf32>
    %766 = math.exp %765 : vector<2x32xf32>
    %cst_229 = arith.constant 1.000000e+00 : f32
    %767 = vector.broadcast %cst_229 : f32 to vector<2x32xf32>
    %768 = arith.addf %767, %766 : vector<2x32xf32>
    %769 = arith.divf %767, %768 : vector<2x32xf32>
    %770 = vector.extract_strided_slice %579 {offsets = [10, 0], sizes = [2, 32], strides = [1, 1]} : vector<16x32xf32> to vector<2x32xf32>
    %771 = arith.addf %770, %759 : vector<2x32xf32>
    %772 = arith.negf %771 : vector<2x32xf32>
    %773 = math.exp %772 : vector<2x32xf32>
    %cst_230 = arith.constant 1.000000e+00 : f32
    %774 = vector.broadcast %cst_230 : f32 to vector<2x32xf32>
    %775 = arith.addf %774, %773 : vector<2x32xf32>
    %776 = arith.divf %774, %775 : vector<2x32xf32>
    %777 = vector.extract_strided_slice %580 {offsets = [10, 0], sizes = [2, 32], strides = [1, 1]} : vector<16x32xf32> to vector<2x32xf32>
    %778 = arith.mulf %769, %762 : vector<2x32xf32>
    %779 = arith.addf %777, %778 : vector<2x32xf32>
    %780 = math.tanh %779 : vector<2x32xf32>
    %cst_231 = arith.constant 1.000000e+00 : f32
    %781 = vector.broadcast %cst_231 : f32 to vector<2x32xf32>
    %782 = arith.subf %781, %776 : vector<2x32xf32>
    %783 = arith.mulf %782, %780 : vector<2x32xf32>
    %784 = arith.mulf %776, %753 : vector<2x32xf32>
    %785 = arith.addf %783, %784 : vector<2x32xf32>
    %cst_232 = arith.constant dense<0.000000e+00> : vector<2x32xf32>
    %786 = tpu.matmul %785, %582, %cst_232 {dimension_numbers = #tpu.dot_dimension_numbers<[1], [0], [0], [1], [0, 0, 1, 1], [], []>} : vector<2x32xf32>, vector<32x32xf32>, vector<2x32xf32> -> vector<2x32xf32>
    %787 = vector.broadcast %588 : vector<1x32xf32> to vector<2x32xf32>
    %788 = arith.addf %786, %787 : vector<2x32xf32>
    %cst_233 = arith.constant dense<0.000000e+00> : vector<2x32xf32>
    %789 = tpu.matmul %785, %584, %cst_233 {dimension_numbers = #tpu.dot_dimension_numbers<[1], [0], [0], [1], [0, 0, 1, 1], [], []>} : vector<2x32xf32>, vector<32x32xf32>, vector<2x32xf32> -> vector<2x32xf32>
    %790 = vector.broadcast %590 : vector<1x32xf32> to vector<2x32xf32>
    %791 = arith.addf %789, %790 : vector<2x32xf32>
    %cst_234 = arith.constant dense<0.000000e+00> : vector<2x32xf32>
    %792 = tpu.matmul %785, %586, %cst_234 {dimension_numbers = #tpu.dot_dimension_numbers<[1], [0], [0], [1], [0, 0, 1, 1], [], []>} : vector<2x32xf32>, vector<32x32xf32>, vector<2x32xf32> -> vector<2x32xf32>
    %793 = vector.broadcast %592 : vector<1x32xf32> to vector<2x32xf32>
    %794 = arith.addf %792, %793 : vector<2x32xf32>
    %795 = vector.extract_strided_slice %578 {offsets = [12, 0], sizes = [2, 32], strides = [1, 1]} : vector<16x32xf32> to vector<2x32xf32>
    %796 = arith.addf %795, %788 : vector<2x32xf32>
    %797 = arith.negf %796 : vector<2x32xf32>
    %798 = math.exp %797 : vector<2x32xf32>
    %cst_235 = arith.constant 1.000000e+00 : f32
    %799 = vector.broadcast %cst_235 : f32 to vector<2x32xf32>
    %800 = arith.addf %799, %798 : vector<2x32xf32>
    %801 = arith.divf %799, %800 : vector<2x32xf32>
    %802 = vector.extract_strided_slice %579 {offsets = [12, 0], sizes = [2, 32], strides = [1, 1]} : vector<16x32xf32> to vector<2x32xf32>
    %803 = arith.addf %802, %791 : vector<2x32xf32>
    %804 = arith.negf %803 : vector<2x32xf32>
    %805 = math.exp %804 : vector<2x32xf32>
    %cst_236 = arith.constant 1.000000e+00 : f32
    %806 = vector.broadcast %cst_236 : f32 to vector<2x32xf32>
    %807 = arith.addf %806, %805 : vector<2x32xf32>
    %808 = arith.divf %806, %807 : vector<2x32xf32>
    %809 = vector.extract_strided_slice %580 {offsets = [12, 0], sizes = [2, 32], strides = [1, 1]} : vector<16x32xf32> to vector<2x32xf32>
    %810 = arith.mulf %801, %794 : vector<2x32xf32>
    %811 = arith.addf %809, %810 : vector<2x32xf32>
    %812 = math.tanh %811 : vector<2x32xf32>
    %cst_237 = arith.constant 1.000000e+00 : f32
    %813 = vector.broadcast %cst_237 : f32 to vector<2x32xf32>
    %814 = arith.subf %813, %808 : vector<2x32xf32>
    %815 = arith.mulf %814, %812 : vector<2x32xf32>
    %816 = arith.mulf %808, %785 : vector<2x32xf32>
    %817 = arith.addf %815, %816 : vector<2x32xf32>
    %cst_238 = arith.constant dense<0.000000e+00> : vector<2x32xf32>
    %818 = tpu.matmul %817, %582, %cst_238 {dimension_numbers = #tpu.dot_dimension_numbers<[1], [0], [0], [1], [0, 0, 1, 1], [], []>} : vector<2x32xf32>, vector<32x32xf32>, vector<2x32xf32> -> vector<2x32xf32>
    %819 = vector.broadcast %588 : vector<1x32xf32> to vector<2x32xf32>
    %820 = arith.addf %818, %819 : vector<2x32xf32>
    %cst_239 = arith.constant dense<0.000000e+00> : vector<2x32xf32>
    %821 = tpu.matmul %817, %584, %cst_239 {dimension_numbers = #tpu.dot_dimension_numbers<[1], [0], [0], [1], [0, 0, 1, 1], [], []>} : vector<2x32xf32>, vector<32x32xf32>, vector<2x32xf32> -> vector<2x32xf32>
    %822 = vector.broadcast %590 : vector<1x32xf32> to vector<2x32xf32>
    %823 = arith.addf %821, %822 : vector<2x32xf32>
    %cst_240 = arith.constant dense<0.000000e+00> : vector<2x32xf32>
    %824 = tpu.matmul %817, %586, %cst_240 {dimension_numbers = #tpu.dot_dimension_numbers<[1], [0], [0], [1], [0, 0, 1, 1], [], []>} : vector<2x32xf32>, vector<32x32xf32>, vector<2x32xf32> -> vector<2x32xf32>
    %825 = vector.broadcast %592 : vector<1x32xf32> to vector<2x32xf32>
    %826 = arith.addf %824, %825 : vector<2x32xf32>
    %827 = vector.extract_strided_slice %578 {offsets = [14, 0], sizes = [2, 32], strides = [1, 1]} : vector<16x32xf32> to vector<2x32xf32>
    %828 = arith.addf %827, %820 : vector<2x32xf32>
    %829 = arith.negf %828 : vector<2x32xf32>
    %830 = math.exp %829 : vector<2x32xf32>
    %cst_241 = arith.constant 1.000000e+00 : f32
    %831 = vector.broadcast %cst_241 : f32 to vector<2x32xf32>
    %832 = arith.addf %831, %830 : vector<2x32xf32>
    %833 = arith.divf %831, %832 : vector<2x32xf32>
    %834 = vector.extract_strided_slice %579 {offsets = [14, 0], sizes = [2, 32], strides = [1, 1]} : vector<16x32xf32> to vector<2x32xf32>
    %835 = arith.addf %834, %823 : vector<2x32xf32>
    %836 = arith.negf %835 : vector<2x32xf32>
    %837 = math.exp %836 : vector<2x32xf32>
    %cst_242 = arith.constant 1.000000e+00 : f32
    %838 = vector.broadcast %cst_242 : f32 to vector<2x32xf32>
    %839 = arith.addf %838, %837 : vector<2x32xf32>
    %840 = arith.divf %838, %839 : vector<2x32xf32>
    %841 = vector.extract_strided_slice %580 {offsets = [14, 0], sizes = [2, 32], strides = [1, 1]} : vector<16x32xf32> to vector<2x32xf32>
    %842 = arith.mulf %833, %826 : vector<2x32xf32>
    %843 = arith.addf %841, %842 : vector<2x32xf32>
    %844 = math.tanh %843 : vector<2x32xf32>
    %cst_243 = arith.constant 1.000000e+00 : f32
    %845 = vector.broadcast %cst_243 : f32 to vector<2x32xf32>
    %846 = arith.subf %845, %840 : vector<2x32xf32>
    %847 = arith.mulf %846, %844 : vector<2x32xf32>
    %848 = arith.mulf %840, %817 : vector<2x32xf32>
    %849 = arith.addf %847, %848 : vector<2x32xf32>
    %c0_244 = arith.constant 0 : index
    %c0_245 = arith.constant 0 : index
    %850 = vector.load %arg13[%c0_244, %c0_245] : memref<32x4xf32, #tpu.memory_space<vmem>>, vector<32x4xf32>
    %cst_246 = arith.constant dense<0.000000e+00> : vector<2x4xf32>
    %851 = tpu.matmul %849, %850, %cst_246 {dimension_numbers = #tpu.dot_dimension_numbers<[1], [0], [0], [1], [0, 0, 1, 1], [], []>} : vector<2x32xf32>, vector<32x4xf32>, vector<2x4xf32> -> vector<2x4xf32>
    %c0_247 = arith.constant 0 : index
    %c0_248 = arith.constant 0 : index
    %852 = vector.load %arg14[%c0_247, %c0_248] : memref<1x4xf32, #tpu.memory_space<vmem>>, vector<1x4xf32>
    %853 = vector.broadcast %852 : vector<1x4xf32> to vector<2x4xf32>
    %854 = arith.addf %851, %853 : vector<2x4xf32>
    %c0_249 = arith.constant 0 : index
    %c0_250 = arith.constant 0 : index
    %855 = vector.load %arg15[%c0_249, %c0_250] : memref<2x4xf32, #tpu.memory_space<vmem>>, vector<2x4xf32>
    tpu.vector_store %arg15[%c0_249, %c0_250], %854 {strides = array<i32>} : memref<2x4xf32, #tpu.memory_space<vmem>>, vector<2x4xf32>,
    return
  }
}

</mosaic_0001>

<llo_original>
// kernel: tpu_custom_call.1
$region0: #{tpu_custom_call.1}
  #allocation0 [shape = 'u32[]', space=smem, size = 0x4, offset = 0x4, fixed_abs, tag = 'smem constant byte address 0x4 - core index']
  #allocation1 [shape = 'u32[144,128]{1,0:T(1,128)}', space=vmem, size = 0x12000, scoped, tag = 'internal scratch']
  #allocation2 [shape = 'f32[16,32]{1,0:T(8,128)}', space=vmem, size = 0x2000, scoped, tag = 'scratch operand']
  %s0 = inlined_call_operand.hbm [shape: f32[16,16], index: 0, kind: input, shape index: {}]
  %s1 = inlined_call_operand.hbm [shape: f32[16,96], index: 1, kind: input, shape index: {}]
  %s2 = inlined_call_operand.hbm [shape: f32[3,32,32], index: 2, kind: input, shape index: {}]
  %s3 = inlined_call_operand.vmem [shape: f32[1,96], index: 3, kind: input, shape index: {}]
  %s4 = inlined_call_operand.hbm [shape: f32[3,1,32], index: 4, kind: input, shape index: {}]
  %s5 = inlined_call_operand.vmem [shape: f32[32,96], index: 5, kind: input, shape index: {}]
  %s6 = inlined_call_operand.hbm [shape: f32[3,32,32], index: 6, kind: input, shape index: {}]
  %s7 = inlined_call_operand.vmem [shape: f32[1,96], index: 7, kind: input, shape index: {}]
  %s8 = inlined_call_operand.hbm [shape: f32[3,1,32], index: 8, kind: input, shape index: {}]
  %s9 = inlined_call_operand.vmem [shape: f32[32,96], index: 9, kind: input, shape index: {}]
  %s10 = inlined_call_operand.hbm [shape: f32[3,32,32], index: 10, kind: input, shape index: {}]
  %s11 = inlined_call_operand.vmem [shape: f32[1,96], index: 11, kind: input, shape index: {}]
  %s12 = inlined_call_operand.vmem [shape: f32[3,1,32], index: 12, kind: input, shape index: {}]
  %s13 = inlined_call_operand.vmem [shape: f32[32,4], index: 13, kind: input, shape index: {}]
  %s14 = inlined_call_operand.vmem [shape: f32[1,4], index: 14, kind: input, shape index: {}]
  %s15 = inlined_call_operand.hbm [shape: f32[2,4], index: 15, kind: output, shape index: {}]
  %s16 = sld [smem:[#allocation0]]
  $region98: #{tpu_custom_call.1} parent=0
    _
  %s18 = ssub.s32 1, %s16
  %s19 = scalar_select 0, %s18, %s16
  $region1: #{tpu_custom_call.1} parent=0
    #allocation3 [shape = 'u8[8192]{0}', space=vmem, size = 0x2000, scoped, tag = 'input window, operand 0, single buffered']
    #allocation4 [shape = 's32[1]{0}', space=sflag, size = 0x4, scoped, tag = 'scoped memory for tpu_custom_call.1']
    #allocation5 [shape = 's32[1]{0}', space=sflag, size = 0x4, scoped, tag = 'scoped memory for tpu_custom_call.1']
    #allocation6 [shape = 'u8[8192]{0}', space=vmem, size = 0x2000, scoped, tag = 'input window, operand 1, single buffered']
    #allocation7 [shape = 's32[1]{0}', space=sflag, size = 0x4, scoped, tag = 'scoped memory for tpu_custom_call.1']
    #allocation8 [shape = 'u8[49152]{0}', space=vmem, size = 0xc000, scoped, tag = 'input window, operand 2, single buffered']
    #allocation9 [shape = 'u8[1536]{0}', space=vmem, size = 0x800, scoped, tag = 'input window, operand 4, single buffered']
    #allocation10 [shape = 's32[1]{0}', space=sflag, size = 0x4, scoped, tag = 'scoped memory for tpu_custom_call.1']
    #allocation11 [shape = 'u8[49152]{0}', space=vmem, size = 0xc000, scoped, tag = 'input window, operand 6, single buffered']
    #allocation12 [shape = 'u8[1536]{0}', space=vmem, size = 0x800, scoped, tag = 'input window, operand 8, single buffered']
    #allocation13 [shape = 's32[1]{0}', space=sflag, size = 0x4, scoped, tag = 'scoped memory for tpu_custom_call.1']
    #allocation14 [shape = 'u8[49152]{0}', space=vmem, size = 0xc000, scoped, tag = 'input window, operand 10, single buffered']
    #allocation15 [shape = 'u8[1024]{0}', space=vmem, size = 0x400, scoped, tag = 'output window, operand 0, single buffered']
    %20 = vsyncpa [#allocation4], 0
    %21 = vsyncpa [#allocation7], 0
    %22 = vsyncpa [#allocation10], 0
    %23 = vsyncpa [#allocation13], 0
    %24 = vsyncpa [#allocation5], 0
    // Predicated region
    $region2: #{tpu_custom_call.1} parent=1 // pred_check
      _
    $region3: #{tpu_custom_call.1} parent=1 // pred_check_branch
      %26 = sbr.rel (0) target = $region5
    $region4: #{tpu_custom_call.1} parent=1 // pred_region
      %s28 = ssub.s32 256, 256
      %29 = vsyncadd [#allocation4], %s28
      %s30 = sshll.u32 [#allocation3], 4
      %s31 = int_to_ptr.vmem [resolvable:$true] %s30
      %36 = dma.hbm_to_vmem [thread:$0]  %s0, 256, %s31, [#allocation4], 128, 128, 8
    $region5: #{tpu_custom_call.1} parent=1 // pred_fallthru
      _
    // Predicated region
    $region6: #{tpu_custom_call.1} parent=1 // pred_check
      _
    $region7: #{tpu_custom_call.1} parent=1 // pred_check_branch
      %38 = sbr.rel (0) target = $region9
    $region8: #{tpu_custom_call.1} parent=1 // pred_region
      %s40 = ssub.s32 256, 256
      %41 = vsyncadd [#allocation7], %s40
      %s42 = sshll.u32 [#allocation6], 4
      %s43 = int_to_ptr.vmem [resolvable:$true] %s42
      %48 = dma.hbm_to_vmem [thread:$0]  %s1, 256, %s43, [#allocation7], 128, 128, 8
    $region9: #{tpu_custom_call.1} parent=1 // pred_fallthru
      _
    // Predicated region
    $region10: #{tpu_custom_call.1} parent=1 // pred_check
      _
    $region11: #{tpu_custom_call.1} parent=1 // pred_check_branch
      %50 = sbr.rel (0) target = $region13
    $region12: #{tpu_custom_call.1} parent=1 // pred_region
      %s52 = ssub.s32 1536, 1536
      %53 = vsyncadd [#allocation7], %s52
      %s54 = sshll.u32 [#allocation8], 4
      %s55 = int_to_ptr.vmem [resolvable:$true] %s54
      %60 = dma.hbm_to_vmem [thread:$0]  %s2, 1536, %s55, [#allocation7], 128, 128, 8
    $region13: #{tpu_custom_call.1} parent=1 // pred_fallthru
      _
    // Predicated region
    $region14: #{tpu_custom_call.1} parent=1 // pred_check
      _
    $region15: #{tpu_custom_call.1} parent=1 // pred_check_branch
      %62 = sbr.rel (0) target = $region17
    $region16: #{tpu_custom_call.1} parent=1 // pred_region
      _
    $region17: #{tpu_custom_call.1} parent=1 // pred_fallthru
      _
    // Predicated region
    $region18: #{tpu_custom_call.1} parent=1 // pred_check
      _
    $region19: #{tpu_custom_call.1} parent=1 // pred_check_branch
      %64 = sbr.rel (0) target = $region21
    $region20: #{tpu_custom_call.1} parent=1 // pred_region
      %s66 = ssub.s32 48, 48
      %67 = vsyncadd [#allocation10], %s66
      %s68 = sshll.u32 [#allocation9], 4
      %s69 = int_to_ptr.vmem [resolvable:$true] %s68
      %74 = dma.hbm_to_vmem [thread:$0]  %s4, 48, %s69, [#allocation10], 16, 16, 1
    $region21: #{tpu_custom_call.1} parent=1 // pred_fallthru
      _
    // Predicated region
    $region22: #{tpu_custom_call.1} parent=1 // pred_check
      _
    $region23: #{tpu_custom_call.1} parent=1 // pred_check_branch
      %76 = sbr.rel (0) target = $region25
    $region24: #{tpu_custom_call.1} parent=1 // pred_region
      _
    $region25: #{tpu_custom_call.1} parent=1 // pred_fallthru
      _
    // Predicated region
    $region26: #{tpu_custom_call.1} parent=1 // pred_check
      _
    $region27: #{tpu_custom_call.1} parent=1 // pred_check_branch
      %78 = sbr.rel (0) target = $region29
    $region28: #{tpu_custom_call.1} parent=1 // pred_region
      %s80 = ssub.s32 1536, 1536
      %81 = vsyncadd [#allocation10], %s80
      %s82 = sshll.u32 [#allocation11], 4
      %s83 = int_to_ptr.vmem [resolvable:$true] %s82
      %88 = dma.hbm_to_vmem [thread:$0]  %s6, 1536, %s83, [#allocation10], 128, 128, 8
    $region29: #{tpu_custom_call.1} parent=1 // pred_fallthru
      _
    // Predicated region
    $region30: #{tpu_custom_call.1} parent=1 // pred_check
      _
    $region31: #{tpu_custom_call.1} parent=1 // pred_check_branch
      %90 = sbr.rel (0) target = $region33
    $region32: #{tpu_custom_call.1} parent=1 // pred_region
      _
    $region33: #{tpu_custom_call.1} parent=1 // pred_fallthru
      _
    // Predicated region
    $region34: #{tpu_custom_call.1} parent=1 // pred_check
      _
    $region35: #{tpu_custom_call.1} parent=1 // pred_check_branch
      %92 = sbr.rel (0) target = $region37
    $region36: #{tpu_custom_call.1} parent=1 // pred_region
      %s94 = ssub.s32 48, 48
      %95 = vsyncadd [#allocation13], %s94
      %s96 = sshll.u32 [#allocation12], 4
      %s97 = int_to_ptr.vmem [resolvable:$true] %s96
      %102 = dma.hbm_to_vmem [thread:$0]  %s8, 48, %s97, [#allocation13], 16, 16, 1
    $region37: #{tpu_custom_call.1} parent=1 // pred_fallthru
      _
    // Predicated region
    $region38: #{tpu_custom_call.1} parent=1 // pred_check
      _
    $region39: #{tpu_custom_call.1} parent=1 // pred_check_branch
      %104 = sbr.rel (0) target = $region41
    $region40: #{tpu_custom_call.1} parent=1 // pred_region
      _
    $region41: #{tpu_custom_call.1} parent=1 // pred_fallthru
      _
    // Predicated region
    $region42: #{tpu_custom_call.1} parent=1 // pred_check
      _
    $region43: #{tpu_custom_call.1} parent=1 // pred_check_branch
      %106 = sbr.rel (0) target = $region45
    $region44: #{tpu_custom_call.1} parent=1 // pred_region
      %s108 = ssub.s32 1536, 1536
      %109 = vsyncadd [#allocation13], %s108
      %s110 = sshll.u32 [#allocation14], 4
      %s111 = int_to_ptr.vmem [resolvable:$true] %s110
      %116 = dma.hbm_to_vmem [thread:$0]  %s10, 1536, %s111, [#allocation13], 128, 128, 8
    $region45: #{tpu_custom_call.1} parent=1 // pred_fallthru
      _
    // Predicated region
    $region46: #{tpu_custom_call.1} parent=1 // pred_check
      _
    $region47: #{tpu_custom_call.1} parent=1 // pred_check_branch
      %118 = sbr.rel (0) target = $region49
    $region48: #{tpu_custom_call.1} parent=1 // pred_region
      _
    $region49: #{tpu_custom_call.1} parent=1 // pred_fallthru
      _
    // Predicated region
    $region50: #{tpu_custom_call.1} parent=1 // pred_check
      _
    $region51: #{tpu_custom_call.1} parent=1 // pred_check_branch
      %120 = sbr.rel (0) target = $region53
    $region52: #{tpu_custom_call.1} parent=1 // pred_region
      _
    $region53: #{tpu_custom_call.1} parent=1 // pred_fallthru
      _
    // Predicated region
    $region54: #{tpu_custom_call.1} parent=1 // pred_check
      _
    $region55: #{tpu_custom_call.1} parent=1 // pred_check_branch
      %122 = sbr.rel (0) target = $region57
    $region56: #{tpu_custom_call.1} parent=1 // pred_region
      _
    $region57: #{tpu_custom_call.1} parent=1 // pred_fallthru
      _
    // Predicated region
    $region58: #{tpu_custom_call.1} parent=1 // pred_check
      _
    $region59: #{tpu_custom_call.1} parent=1 // pred_check_branch
      %124 = sbr.rel (0) target = $region61
    $region60: #{tpu_custom_call.1} parent=1 // pred_region
      _
    $region61: #{tpu_custom_call.1} parent=1 // pred_fallthru
      _
    // Predicated region
    $region62: #{tpu_custom_call.1} parent=1 // pred_check
      _
    $region63: #{tpu_custom_call.1} parent=1 // pred_check_branch
      %126 = sbr.rel (0) target = $region65
    $region64: #{tpu_custom_call.1} parent=1 // pred_region
      %127 = dma.done [#allocation4], 256
    $region65: #{tpu_custom_call.1} parent=1 // pred_fallthru
      _
    // Predicated region
    $region66: #{tpu_custom_call.1} parent=1 // pred_check
      _
    $region67: #{tpu_custom_call.1} parent=1 // pred_check_branch
      %129 = sbr.rel (0) target = $region69
    $region68: #{tpu_custom_call.1} parent=1 // pred_region
      %130 = dma.done [#allocation7], 256
    $region69: #{tpu_custom_call.1} parent=1 // pred_fallthru
      _
    // Predicated region
    $region70: #{tpu_custom_call.1} parent=1 // pred_check
      _
    $region71: #{tpu_custom_call.1} parent=1 // pred_check_branch
      %132 = sbr.rel (0) target = $region73
    $region72: #{tpu_custom_call.1} parent=1 // pred_region
      %133 = dma.done [#allocation7], 1536
    $region73: #{tpu_custom_call.1} parent=1 // pred_fallthru
      _
    // Predicated region
    $region74: #{tpu_custom_call.1} parent=1 // pred_check
      _
    $region75: #{tpu_custom_call.1} parent=1 // pred_check_branch
      %135 = sbr.rel (0) target = $region77
    $region76: #{tpu_custom_call.1} parent=1 // pred_region
      %136 = dma.done [#allocation10], 48
    $region77: #{tpu_custom_call.1} parent=1 // pred_fallthru
      _
    // Predicated region
    $region78: #{tpu_custom_call.1} parent=1 // pred_check
      _
    $region79: #{tpu_custom_call.1} parent=1 // pred_check_branch
      %138 = sbr.rel (0) target = $region81
    $region80: #{tpu_custom_call.1} parent=1 // pred_region
      %139 = dma.done [#allocation10], 1536
    $region81: #{tpu_custom_call.1} parent=1 // pred_fallthru
      _
    // Predicated region
    $region82: #{tpu_custom_call.1} parent=1 // pred_check
      _
    $region83: #{tpu_custom_call.1} parent=1 // pred_check_branch
      %141 = sbr.rel (0) target = $region85
    $region84: #{tpu_custom_call.1} parent=1 // pred_region
      %142 = dma.done [#allocation13], 48
    $region85: #{tpu_custom_call.1} parent=1 // pred_fallthru
      _
    // Predicated region
    $region86: #{tpu_custom_call.1} parent=1 // pred_check
      _
    $region87: #{tpu_custom_call.1} parent=1 // pred_check_branch
      %144 = sbr.rel (0) target = $region89
    $region88: #{tpu_custom_call.1} parent=1 // pred_region
      %145 = dma.done [#allocation13], 1536
    $region89: #{tpu_custom_call.1} parent=1 // pred_fallthru
      _
    %v146 = vld [vmem:[#allocation3] sm:$0xff]
    %v147 = vld [vmem:[#allocation3 + $0x8] sm:$0xff]
    %v148 = vld [vmem:[#allocation6] sm:$0xff]
    %v149 = vld [vmem:[#allocation6 + $0x8] sm:$0xff]
    %v150 = vld [vmem:[%s3] sm:$0x1]
    %v152 = vlaneseq
    %v153 = vshrl.u32 %v152, 7
    %v154 = vsub.s32 0, %v153
    %v155 = vrot.slane %v150, %v154
    %vm157 = vcmask 130048
    %v159 = vsel %vm157, %v146, 0
    %v162 = vsel %vm157, %v147, 0
    %164 = vmatprep.subr.mxu0 0.0
    %165 = vmatpush1.msra.mxu0 %v148
    %166 = vmatprep.subr.mxu0 0.0
    %167 = vmatpush1.msra.mxu0 %v149
    %168 = vmatprep.subr.mxu0 0.0
    %169 = vmatpush1.msra.mxu0 0.0
    %170 = vmatprep.subr.mxu0 0.0
    %171 = vmatpush1.msra.mxu0 0.0
    %172 = vmatprep.subr.mxu0 0.0
    %173 = vmatpush1.msra.mxu0 0.0
    %174 = vmatprep.subr.mxu0 0.0
    %175 = vmatpush1.msra.mxu0 0.0
    %176 = vmatprep.subr.mxu0 0.0
    %177 = vmatpush1.msra.mxu0 0.0
    %178 = vmatprep.subr.mxu0 0.0
    %179 = vmatpush1.msra.mxu0 0.0
    %180 = vmatprep.subr.mxu0 0.0
    %181 = vmatpush1.msra.mxu0 0.0
    %182 = vmatprep.subr.mxu0 0.0
    %183 = vmatpush1.msra.mxu0 0.0
    %184 = vmatprep.subr.mxu0 0.0
    %185 = vmatpush1.msra.mxu0 0.0
    %186 = vmatprep.subr.mxu0 0.0
    %187 = vmatpush1.msra.mxu0 0.0
    %188 = vmatprep.subr.mxu0 0.0
    %189 = vmatpush1.msra.mxu0 0.0
    %190 = vmatprep.subr.mxu0 0.0
    %191 = vmatpush1.msra.mxu0 0.0
    %192 = vmatprep.subr.mxu0 0.0
    %193 = vmatpush1.msra.mxu0 0.0
    %194 = vmatprep.subr.mxu0 0.0
    %195 = vmatpush1.msra.mxu0 0.0
    %196 = vmatprep.subr.mxu0 0.0
    %197 = vmatpush1.msra.mxu0 0.0
    %198 = vmatprep.subr.mxu0 0.0
    %199 = vmatpush1.msra.mxu0 0.0
    %200 = vmatprep.subr.mxu0 0.0
    %201 = vmatpush1.msra.mxu0 0.0
    %202 = vmatprep.subr.mxu0 0.0
    %203 = vmatpush1.msra.mxu0 0.0
    %204 = vmatprep.subr.mxu0 0.0
    %205 = vmatpush1.msra.mxu0 0.0
    %206 = vmatprep.subr.mxu0 0.0
    %207 = vmatpush1.msra.mxu0 0.0
    %208 = vmatprep.subr.mxu0 0.0
    %209 = vmatpush1.msra.mxu0 0.0
    %210 = vmatprep.subr.mxu0 0.0
    %211 = vmatpush1.msra.mxu0 0.0
    %212 = vmatprep.subr.mxu0 0.0
    %213 = vmatpush1.msra.mxu0 0.0
    %214 = vmatprep.subr.mxu0 0.0
    %215 = vmatpush1.msra.mxu0 0.0
    %216 = vmatprep.subr.mxu0 0.0
    %217 = vmatpush1.msra.mxu0 0.0
    %218 = vmatprep.subr.mxu0 0.0
    %219 = vmatpush1.msra.mxu0 0.0
    %220 = vmatprep.subr.mxu0 0.0
    %221 = vmatpush1.msra.mxu0 0.0
    %222 = vmatprep.subr.mxu0 0.0
    %223 = vmatpush1.msra.mxu0 0.0
    %224 = vmatprep.subr.mxu0 0.0
    %225 = vmatpush1.msra.mxu0 0.0
    %226 = vmatprep.subr.mxu0 0.0
    %227 = vmatpush1.msra.mxu0 0.0
    %228 = vmatprep.mubr.f32.mxu0 0.0
    %229 = vmatmul.mubr.f32.gmra.mrb[0].mxu0 %v159
    %v230 = vpop.f32.mrb[0].mxu0
    %v231 = vadd.f32 %v155, %v230
    %v232 = vpop.f32.mrb[0].mxu0
    %233 = vmatprep.mubr.f32.mxu0 0.0
    %234 = vmatmul.mubr.f32.gmra.mrb[0].mxu0 %v162
    %v235 = vpop.f32.mrb[0].mxu0
    %v236 = vadd.f32 %v155, %v235
    %v237 = vpop.f32.mrb[0].mxu0
    %238 = vdwg.mxu0
    %v239 = vld [vmem:[#allocation8] sm:$0xff]
    %v240 = vld [vmem:[#allocation8 + $0x8] sm:$0xff]
    %v241 = vld [vmem:[#allocation8 + $0x10] sm:$0xff]
    %v242 = vld [vmem:[#allocation8 + $0x18] sm:$0xff]
    %s243 = scalar_lea.vmem [#allocation8], 32
    %v244 = vld [vmem:[%s243] sm:$0xff]
    %v245 = vld [vmem:[%s243 + $0x8] sm:$0xff]
    %v246 = vld [vmem:[%s243 + $0x10] sm:$0xff]
    %v247 = vld [vmem:[%s243 + $0x18] sm:$0xff]
    %s248 = scalar_lea.vmem [#allocation8], 64
    %v249 = vld [vmem:[%s248] sm:$0xff]
    %v250 = vld [vmem:[%s248 + $0x8] sm:$0xff]
    %v251 = vld [vmem:[%s248 + $0x10] sm:$0xff]
    %v252 = vld [vmem:[%s248 + $0x18] sm:$0xff]
    %v253 = vld [vmem:[#allocation9] sm:$0x1]
    %s254 = scalar_lea.vmem [#allocation9], 1
    %v255 = vld [vmem:[%s254] sm:$0x1]
    %s256 = scalar_lea.vmem [#allocation9], 2
    %v257 = vld [vmem:[%s256] sm:$0x1]
    %v259 = vlaneseq
    %v260 = vshrl.u32 %v259, 7
    %v261 = vsub.s32 0, %v260
    %v262 = vrot.slane %v253, %v261
    %vm264 = vcmask 261120
    %v266 = vsel %vm264, 0.0, 0
    %268 = vmatprep.subr.mxu0 0.0
    %269 = vmatpush1.msra.mxu0 %v239
    %270 = vmatprep.subr.mxu0 0.0
    %271 = vmatpush1.msra.mxu0 %v240
    %272 = vmatprep.subr.mxu0 0.0
    %273 = vmatpush1.msra.mxu0 %v241
    %274 = vmatprep.subr.mxu0 0.0
    %275 = vmatpush1.msra.mxu0 %v242
    %276 = vmatprep.subr.mxu0 0.0
    %277 = vmatpush1.msra.mxu0 0.0
    %278 = vmatprep.subr.mxu0 0.0
    %279 = vmatpush1.msra.mxu0 0.0
    %280 = vmatprep.subr.mxu0 0.0
    %281 = vmatpush1.msra.mxu0 0.0
    %282 = vmatprep.subr.mxu0 0.0
    %283 = vmatpush1.msra.mxu0 0.0
    %284 = vmatprep.subr.mxu0 0.0
    %285 = vmatpush1.msra.mxu0 0.0
    %286 = vmatprep.subr.mxu0 0.0
    %287 = vmatpush1.msra.mxu0 0.0
    %288 = vmatprep.subr.mxu0 0.0
    %289 = vmatpush1.msra.mxu0 0.0
    %290 = vmatprep.subr.mxu0 0.0
    %291 = vmatpush1.msra.mxu0 0.0
    %292 = vmatprep.subr.mxu0 0.0
    %293 = vmatpush1.msra.mxu0 0.0
    %294 = vmatprep.subr.mxu0 0.0
    %295 = vmatpush1.msra.mxu0 0.0
    %296 = vmatprep.subr.mxu0 0.0
    %297 = vmatpush1.msra.mxu0 0.0
    %298 = vmatprep.subr.mxu0 0.0
    %299 = vmatpush1.msra.mxu0 0.0
    %300 = vmatprep.subr.mxu0 0.0
    %301 = vmatpush1.msra.mxu0 0.0
    %302 = vmatprep.subr.mxu0 0.0
    %303 = vmatpush1.msra.mxu0 0.0
    %304 = vmatprep.subr.mxu0 0.0
    %305 = vmatpush1.msra.mxu0 0.0
    %306 = vmatprep.subr.mxu0 0.0
    %307 = vmatpush1.msra.mxu0 0.0
    %308 = vmatprep.subr.mxu0 0.0
    %309 = vmatpush1.msra.mxu0 0.0
    %310 = vmatprep.subr.mxu0 0.0
    %311 = vmatpush1.msra.mxu0 0.0
    %312 = vmatprep.subr.mxu0 0.0
    %313 = vmatpush1.msra.mxu0 0.0
    %314 = vmatprep.subr.mxu0 0.0
    %315 = vmatpush1.msra.mxu0 0.0
    %316 = vmatprep.subr.mxu0 0.0
    %317 = vmatpush1.msra.mxu0 0.0
    %318 = vmatprep.subr.mxu0 0.0
    %319 = vmatpush1.msra.mxu0 0.0
    %320 = vmatprep.subr.mxu0 0.0
    %321 = vmatpush1.msra.mxu0 0.0
    %322 = vmatprep.subr.mxu0 0.0
    %323 = vmatpush1.msra.mxu0 0.0
    %324 = vmatprep.subr.mxu0 0.0
    %325 = vmatpush1.msra.mxu0 0.0
    %326 = vmatprep.subr.mxu0 0.0
    %327 = vmatpush1.msra.mxu0 0.0
    %328 = vmatprep.subr.mxu0 0.0
    %329 = vmatpush1.msra.mxu0 0.0
    %330 = vmatprep.subr.mxu0 0.0
    %331 = vmatpush1.msra.mxu0 0.0
    %332 = vmatprep.mubr.f32.mxu0 0.0
    %333 = vmatmul.mubr.f32.gmra.mrb[0].mxu0 %v266
    %v334 = vpop.f32.mrb[0].mxu0
    %v335 = vadd.f32 %v262, %v334
    %v336 = vpop.f32.mrb[0].mxu0
    %337 = vdwg.mxu0
    %v339 = vlaneseq
    %v340 = vshrl.u32 %v339, 7
    %v341 = vsub.s32 0, %v340
    %v342 = vrot.slane %v255, %v341
    %344 = vmatprep.subr.mxu0 0.0
    %345 = vmatpush1.msra.mxu0 %v244
    %346 = vmatprep.subr.mxu0 0.0
    %347 = vmatpush1.msra.mxu0 %v245
    %348 = vmatprep.subr.mxu0 0.0
    %349 = vmatpush1.msra.mxu0 %v246
    %350 = vmatprep.subr.mxu0 0.0
    %351 = vmatpush1.msra.mxu0 %v247
    %352 = vmatprep.subr.mxu0 0.0
    %353 = vmatpush1.msra.mxu0 0.0
    %354 = vmatprep.subr.mxu0 0.0
    %355 = vmatpush1.msra.mxu0 0.0
    %356 = vmatprep.subr.mxu0 0.0
    %357 = vmatpush1.msra.mxu0 0.0
    %358 = vmatprep.subr.mxu0 0.0
    %359 = vmatpush1.msra.mxu0 0.0
    %360 = vmatprep.subr.mxu0 0.0
    %361 = vmatpush1.msra.mxu0 0.0
    %362 = vmatprep.subr.mxu0 0.0
    %363 = vmatpush1.msra.mxu0 0.0
    %364 = vmatprep.subr.mxu0 0.0
    %365 = vmatpush1.msra.mxu0 0.0
    %366 = vmatprep.subr.mxu0 0.0
    %367 = vmatpush1.msra.mxu0 0.0
    %368 = vmatprep.subr.mxu0 0.0
    %369 = vmatpush1.msra.mxu0 0.0
    %370 = vmatprep.subr.mxu0 0.0
    %371 = vmatpush1.msra.mxu0 0.0
    %372 = vmatprep.subr.mxu0 0.0
    %373 = vmatpush1.msra.mxu0 0.0
    %374 = vmatprep.subr.mxu0 0.0
    %375 = vmatpush1.msra.mxu0 0.0
    %376 = vmatprep.subr.mxu0 0.0
    %377 = vmatpush1.msra.mxu0 0.0
    %378 = vmatprep.subr.mxu0 0.0
    %379 = vmatpush1.msra.mxu0 0.0
    %380 = vmatprep.subr.mxu0 0.0
    %381 = vmatpush1.msra.mxu0 0.0
    %382 = vmatprep.subr.mxu0 0.0
    %383 = vmatpush1.msra.mxu0 0.0
    %384 = vmatprep.subr.mxu0 0.0
    %385 = vmatpush1.msra.mxu0 0.0
    %386 = vmatprep.subr.mxu0 0.0
    %387 = vmatpush1.msra.mxu0 0.0
    %388 = vmatprep.subr.mxu0 0.0
    %389 = vmatpush1.msra.mxu0 0.0
    %390 = vmatprep.subr.mxu0 0.0
    %391 = vmatpush1.msra.mxu0 0.0
    %392 = vmatprep.subr.mxu0 0.0
    %393 = vmatpush1.msra.mxu0 0.0
    %394 = vmatprep.subr.mxu0 0.0
    %395 = vmatpush1.msra.mxu0 0.0
    %396 = vmatprep.subr.mxu0 0.0
    %397 = vmatpush1.msra.mxu0 0.0
    %398 = vmatprep.subr.mxu0 0.0
    %399 = vmatpush1.msra.mxu0 0.0
    %400 = vmatprep.subr.mxu0 0.0
    %401 = vmatpush1.msra.mxu0 0.0
    %402 = vmatprep.subr.mxu0 0.0
    %403 = vmatpush1.msra.mxu0 0.0
    %404 = vmatprep.subr.mxu0 0.0
    %405 = vmatpush1.msra.mxu0 0.0
    %406 = vmatprep.subr.mxu0 0.0
    %407 = vmatpush1.msra.mxu0 0.0
    %408 = vmatprep.mubr.f32.mxu0 0.0
    %409 = vmatmul.mubr.f32.gmra.mrb[0].mxu0 %v266
    %v410 = vpop.f32.mrb[0].mxu0
    %v411 = vadd.f32 %v342, %v410
    %v412 = vpop.f32.mrb[0].mxu0
    %413 = vdwg.mxu0
    %v415 = vlaneseq
    %v416 = vshrl.u32 %v415, 7
    %v417 = vsub.s32 0, %v416
    %v418 = vrot.slane %v257, %v417
    %420 = vmatprep.subr.mxu0 0.0
    %421 = vmatpush1.msra.mxu0 %v249
    %422 = vmatprep.subr.mxu0 0.0
    %423 = vmatpush1.msra.mxu0 %v250
    %424 = vmatprep.subr.mxu0 0.0
    %425 = vmatpush1.msra.mxu0 %v251
    %426 = vmatprep.subr.mxu0 0.0
    %427 = vmatpush1.msra.mxu0 %v252
    %428 = vmatprep.subr.mxu0 0.0
    %429 = vmatpush1.msra.mxu0 0.0
    %430 = vmatprep.subr.mxu0 0.0
    %431 = vmatpush1.msra.mxu0 0.0
    %432 = vmatprep.subr.mxu0 0.0
    %433 = vmatpush1.msra.mxu0 0.0
    %434 = vmatprep.subr.mxu0 0.0
    %435 = vmatpush1.msra.mxu0 0.0
    %436 = vmatprep.subr.mxu0 0.0
    %437 = vmatpush1.msra.mxu0 0.0
    %438 = vmatprep.subr.mxu0 0.0
    %439 = vmatpush1.msra.mxu0 0.0
    %440 = vmatprep.subr.mxu0 0.0
    %441 = vmatpush1.msra.mxu0 0.0
    %442 = vmatprep.subr.mxu0 0.0
    %443 = vmatpush1.msra.mxu0 0.0
    %444 = vmatprep.subr.mxu0 0.0
    %445 = vmatpush1.msra.mxu0 0.0
    %446 = vmatprep.subr.mxu0 0.0
    %447 = vmatpush1.msra.mxu0 0.0
    %448 = vmatprep.subr.mxu0 0.0
    %449 = vmatpush1.msra.mxu0 0.0
    %450 = vmatprep.subr.mxu0 0.0
    %451 = vmatpush1.msra.mxu0 0.0
    %452 = vmatprep.subr.mxu0 0.0
    %453 = vmatpush1.msra.mxu0 0.0
    %454 = vmatprep.subr.mxu0 0.0
    %455 = vmatpush1.msra.mxu0 0.0
    %456 = vmatprep.subr.mxu0 0.0
    %457 = vmatpush1.msra.mxu0 0.0
    %458 = vmatprep.subr.mxu0 0.0
    %459 = vmatpush1.msra.mxu0 0.0
    %460 = vmatprep.subr.mxu0 0.0
    %461 = vmatpush1.msra.mxu0 0.0
    %462 = vmatprep.subr.mxu0 0.0
    %463 = vmatpush1.msra.mxu0 0.0
    %464 = vmatprep.subr.mxu0 0.0
    %465 = vmatpush1.msra.mxu0 0.0
    %466 = vmatprep.subr.mxu0 0.0
    %467 = vmatpush1.msra.mxu0 0.0
    %468 = vmatprep.subr.mxu0 0.0
    %469 = vmatpush1.msra.mxu0 0.0
    %470 = vmatprep.subr.mxu0 0.0
    %471 = vmatpush1.msra.mxu0 0.0
    %472 = vmatprep.subr.mxu0 0.0
    %473 = vmatpush1.msra.mxu0 0.0
    %474 = vmatprep.subr.mxu0 0.0
    %475 = vmatpush1.msra.mxu0 0.0
    %476 = vmatprep.subr.mxu0 0.0
    %477 = vmatpush1.msra.mxu0 0.0
    %478 = vmatprep.subr.mxu0 0.0
    %479 = vmatpush1.msra.mxu0 0.0
    %480 = vmatprep.subr.mxu0 0.0
    %481 = vmatpush1.msra.mxu0 0.0
    %482 = vmatprep.subr.mxu0 0.0
    %483 = vmatpush1.msra.mxu0 0.0
    %484 = vmatprep.mubr.f32.mxu0 0.0
    %485 = vmatmul.mubr.f32.gmra.mrb[0].mxu0 %v266
    %v486 = vpop.f32.mrb[0].mxu0
    %v487 = vadd.f32 %v418, %v486
    %v488 = vpop.f32.mrb[0].mxu0
    %489 = vdwg.mxu0
    %v490 = vadd.f32 %v231, %v335
    %v491 = vxor.u32 %v490, 2147483648
    %v492 = vmul.f32 %v491, 1.442695
    %v493 = vpow.pop %v492
    %v494 = vadd.f32 %v493, 1.0
    %v495 = vrcp.pop %v494
    %v496 = vmul.f32 1.0, %v495
    %498 = vrot.lane.b32.xlu0 %v411, 32
    %v499 = vpop.permute.xlu0 %498
    %v501 = vadd.f32 %v231, %v499
    %v502 = vxor.u32 %v501, 2147483648
    %v503 = vmul.f32 %v502, 1.442695
    %v504 = vpow.pop %v503
    %v505 = vadd.f32 %v504, 1.0
    %v506 = vrcp.pop %v505
    %v507 = vmul.f32 1.0, %v506
    %v508 = vmul.f32 %v496, %v487
    %510 = vrot.lane.b32.xlu0 %v508, 64
    %v511 = vpop.permute.xlu0 %510
    %v513 = vadd.f32 %v231, %v511
    %v514 = vtanh.pop %v513
    %v515 = vsub.f32 1.0, %v507
    %517 = vrot.lane.b32.xlu0 %v514, 96
    %v518 = vpop.permute.xlu0 %517
    %v520 = vmul.f32 %v515, %v518
    %v521 = vmul.f32 %v507, 0.0
    %v522 = vadd.f32 %v520, %v521
    %524 = vrot.lane.b32.xlu0 %v522, 96
    %v525 = vpop.permute.xlu0 %524
    %vm527 = vcmask 254976
    %528 = vst.msk [vmem:[#allocation2] sm:$0x3] %vm527, %v525
    %v529 = vsel %vm264, %v525, 0
    %531 = vmatprep.subr.mxu0 0.0
    %532 = vmatpush1.msra.mxu0 %v239
    %533 = vmatprep.subr.mxu0 0.0
    %534 = vmatpush1.msra.mxu0 %v240
    %535 = vmatprep.subr.mxu0 0.0
    %536 = vmatpush1.msra.mxu0 %v241
    %537 = vmatprep.subr.mxu0 0.0
    %538 = vmatpush1.msra.mxu0 %v242
    %539 = vmatprep.subr.mxu0 0.0
    %540 = vmatpush1.msra.mxu0 0.0
    %541 = vmatprep.subr.mxu0 0.0
    %542 = vmatpush1.msra.mxu0 0.0
    %543 = vmatprep.subr.mxu0 0.0
    %544 = vmatpush1.msra.mxu0 0.0
    %545 = vmatprep.subr.mxu0 0.0
    %546 = vmatpush1.msra.mxu0 0.0
    %547 = vmatprep.subr.mxu0 0.0
    %548 = vmatpush1.msra.mxu0 0.0
    %549 = vmatprep.subr.mxu0 0.0
    %550 = vmatpush1.msra.mxu0 0.0
    %551 = vmatprep.subr.mxu0 0.0
    %552 = vmatpush1.msra.mxu0 0.0
    %553 = vmatprep.subr.mxu0 0.0
    %554 = vmatpush1.msra.mxu0 0.0
    %555 = vmatprep.subr.mxu0 0.0
    %556 = vmatpush1.msra.mxu0 0.0
    %557 = vmatprep.subr.mxu0 0.0
    %558 = vmatpush1.msra.mxu0 0.0
    %559 = vmatprep.subr.mxu0 0.0
    %560 = vmatpush1.msra.mxu0 0.0
    %561 = vmatprep.subr.mxu0 0.0
    %562 = vmatpush1.msra.mxu0 0.0
    %563 = vmatprep.subr.mxu0 0.0
    %564 = vmatpush1.msra.mxu0 0.0
    %565 = vmatprep.subr.mxu0 0.0
    %566 = vmatpush1.msra.mxu0 0.0
    %567 = vmatprep.subr.mxu0 0.0
    %568 = vmatpush1.msra.mxu0 0.0
    %569 = vmatprep.subr.mxu0 0.0
    %570 = vmatpush1.msra.mxu0 0.0
    %571 = vmatprep.subr.mxu0 0.0
    %572 = vmatpush1.msra.mxu0 0.0
    %573 = vmatprep.subr.mxu0 0.0
    %574 = vmatpush1.msra.mxu0 0.0
    %575 = vmatprep.subr.mxu0 0.0
    %576 = vmatpush1.msra.mxu0 0.0
    %577 = vmatprep.subr.mxu0 0.0
    %578 = vmatpush1.msra.mxu0 0.0
    %579 = vmatprep.subr.mxu0 0.0
    %580 = vmatpush1.msra.mxu0 0.0
    %581 = vmatprep.subr.mxu0 0.0
    %582 = vmatpush1.msra.mxu0 0.0
    %583 = vmatprep.subr.mxu0 0.0
    %584 = vmatpush1.msra.mxu0 0.0
    %585 = vmatprep.subr.mxu0 0.0
    %586 = vmatpush1.msra.mxu0 0.0
    %587 = vmatprep.subr.mxu0 0.0
    %588 = vmatpush1.msra.mxu0 0.0
    %589 = vmatprep.subr.mxu0 0.0
    %590 = vmatpush1.msra.mxu0 0.0
    %591 = vmatprep.subr.mxu0 0.0
    %592 = vmatpush1.msra.mxu0 0.0
    %593 = vmatprep.subr.mxu0 0.0
    %594 = vmatpush1.msra.mxu0 0.0
    %595 = vmatprep.mubr.f32.mxu0 0.0
    %596 = vmatmul.mubr.f32.gmra.mrb[0].mxu0 %v529
    %v597 = vpop.f32.mrb[0].mxu0
    %v598 = vadd.f32 %v262, %v597
    %v599 = vpop.f32.mrb[0].mxu0
    %600 = vdwg.mxu0
    %601 = vmatprep.subr.mxu0 0.0
    %602 = vmatpush1.msra.mxu0 %v244
    %603 = vmatprep.subr.mxu0 0.0
    %604 = vmatpush1.msra.mxu0 %v245
    %605 = vmatprep.subr.mxu0 0.0
    %606 = vmatpush1.msra.mxu0 %v246
    %607 = vmatprep.subr.mxu0 0.0
    %608 = vmatpush1.msra.mxu0 %v247
    %609 = vmatprep.subr.mxu0 0.0
    %610 = vmatpush1.msra.mxu0 0.0
    %611 = vmatprep.subr.mxu0 0.0
    %612 = vmatpush1.msra.mxu0 0.0
    %613 = vmatprep.subr.mxu0 0.0
    %614 = vmatpush1.msra.mxu0 0.0
    %615 = vmatprep.subr.mxu0 0.0
    %616 = vmatpush1.msra.mxu0 0.0
    %617 = vmatprep.subr.mxu0 0.0
    %618 = vmatpush1.msra.mxu0 0.0
    %619 = vmatprep.subr.mxu0 0.0
    %620 = vmatpush1.msra.mxu0 0.0
    %621 = vmatprep.subr.mxu0 0.0
    %622 = vmatpush1.msra.mxu0 0.0
    %623 = vmatprep.subr.mxu0 0.0
    %624 = vmatpush1.msra.mxu0 0.0
    %625 = vmatprep.subr.mxu0 0.0
    %626 = vmatpush1.msra.mxu0 0.0
    %627 = vmatprep.subr.mxu0 0.0
    %628 = vmatpush1.msra.mxu0 0.0
    %629 = vmatprep.subr.mxu0 0.0
    %630 = vmatpush1.msra.mxu0 0.0
    %631 = vmatprep.subr.mxu0 0.0
    %632 = vmatpush1.msra.mxu0 0.0
    %633 = vmatprep.subr.mxu0 0.0
    %634 = vmatpush1.msra.mxu0 0.0
    %635 = vmatprep.subr.mxu0 0.0
    %636 = vmatpush1.msra.mxu0 0.0
    %637 = vmatprep.subr.mxu0 0.0
    %638 = vmatpush1.msra.mxu0 0.0
    %639 = vmatprep.subr.mxu0 0.0
    %640 = vmatpush1.msra.mxu0 0.0
    %641 = vmatprep.subr.mxu0 0.0
    %642 = vmatpush1.msra.mxu0 0.0
    %643 = vmatprep.subr.mxu0 0.0
    %644 = vmatpush1.msra.mxu0 0.0
    %645 = vmatprep.subr.mxu0 0.0
    %646 = vmatpush1.msra.mxu0 0.0
    %647 = vmatprep.subr.mxu0 0.0
    %648 = vmatpush1.msra.mxu0 0.0
    %649 = vmatprep.subr.mxu0 0.0
    %650 = vmatpush1.msra.mxu0 0.0
    %651 = vmatprep.subr.mxu0 0.0
    %652 = vmatpush1.msra.mxu0 0.0
    %653 = vmatprep.subr.mxu0 0.0
    %654 = vmatpush1.msra.mxu0 0.0
    %655 = vmatprep.subr.mxu0 0.0
    %656 = vmatpush1.msra.mxu0 0.0
    %657 = vmatprep.subr.mxu0 0.0
    %658 = vmatpush1.msra.mxu0 0.0
    %659 = vmatprep.subr.mxu0 0.0
    %660 = vmatpush1.msra.mxu0 0.0
    %661 = vmatprep.subr.mxu0 0.0
    %662 = vmatpush1.msra.mxu0 0.0
    %663 = vmatprep.subr.mxu0 0.0
    %664 = vmatpush1.msra.mxu0 0.0
    %665 = vmatprep.mubr.f32.mxu0 0.0
    %666 = vmatmul.mubr.f32.gmra.mrb[0].mxu0 %v529
    %v667 = vpop.f32.mrb[0].mxu0
    %v668 = vadd.f32 %v342, %v667
    %v669 = vpop.f32.mrb[0].mxu0
    %670 = vdwg.mxu0
    %671 = vmatprep.subr.mxu0 0.0
    %672 = vmatpush1.msra.mxu0 %v249
    %673 = vmatprep.subr.mxu0 0.0
    %674 = vmatpush1.msra.mxu0 %v250
    %675 = vmatprep.subr.mxu0 0.0
    %676 = vmatpush1.msra.mxu0 %v251
    %677 = vmatprep.subr.mxu0 0.0
    %678 = vmatpush1.msra.mxu0 %v252
    %679 = vmatprep.subr.mxu0 0.0
    %680 = vmatpush1.msra.mxu0 0.0
    %681 = vmatprep.subr.mxu0 0.0
    %682 = vmatpush1.msra.mxu0 0.0
    %683 = vmatprep.subr.mxu0 0.0
    %684 = vmatpush1.msra.mxu0 0.0
    %685 = vmatprep.subr.mxu0 0.0
    %686 = vmatpush1.msra.mxu0 0.0
    %687 = vmatprep.subr.mxu0 0.0
    %688 = vmatpush1.msra.mxu0 0.0
    %689 = vmatprep.subr.mxu0 0.0
    %690 = vmatpush1.msra.mxu0 0.0
    %691 = vmatprep.subr.mxu0 0.0
    %692 = vmatpush1.msra.mxu0 0.0
    %693 = vmatprep.subr.mxu0 0.0
    %694 = vmatpush1.msra.mxu0 0.0
    %695 = vmatprep.subr.mxu0 0.0
    %696 = vmatpush1.msra.mxu0 0.0
    %697 = vmatprep.subr.mxu0 0.0
    %698 = vmatpush1.msra.mxu0 0.0
    %699 = vmatprep.subr.mxu0 0.0
    %700 = vmatpush1.msra.mxu0 0.0
    %701 = vmatprep.subr.mxu0 0.0
    %702 = vmatpush1.msra.mxu0 0.0
    %703 = vmatprep.subr.mxu0 0.0
    %704 = vmatpush1.msra.mxu0 0.0
    %705 = vmatprep.subr.mxu0 0.0
    %706 = vmatpush1.msra.mxu0 0.0
    %707 = vmatprep.subr.mxu0 0.0
    %708 = vmatpush1.msra.mxu0 0.0
    %709 = vmatprep.subr.mxu0 0.0
    %710 = vmatpush1.msra.mxu0 0.0
    %711 = vmatprep.subr.mxu0 0.0
    %712 = vmatpush1.msra.mxu0 0.0
    %713 = vmatprep.subr.mxu0 0.0
    %714 = vmatpush1.msra.mxu0 0.0
    %715 = vmatprep.subr.mxu0 0.0
    %716 = vmatpush1.msra.mxu0 0.0
    %717 = vmatprep.subr.mxu0 0.0
    %718 = vmatpush1.msra.mxu0 0.0
    %719 = vmatprep.subr.mxu0 0.0
    %720 = vmatpush1.msra.mxu0 0.0
    %721 = vmatprep.subr.mxu0 0.0
    %722 = vmatpush1.msra.mxu0 0.0
    %723 = vmatprep.subr.mxu0 0.0
    %724 = vmatpush1.msra.mxu0 0.0
    %725 = vmatprep.subr.mxu0 0.0
    %726 = vmatpush1.msra.mxu0 0.0
    %727 = vmatprep.subr.mxu0 0.0
    %728 = vmatpush1.msra.mxu0 0.0
    %729 = vmatprep.subr.mxu0 0.0
    %730 = vmatpush1.msra.mxu0 0.0
    %731 = vmatprep.subr.mxu0 0.0
    %732 = vmatpush1.msra.mxu0 0.0
    %733 = vmatprep.subr.mxu0 0.0
    %734 = vmatpush1.msra.mxu0 0.0
    %735 = vmatprep.mubr.f32.mxu0 0.0
    %736 = vmatmul.mubr.f32.gmra.mrb[0].mxu0 %v529
    %v737 = vpop.f32.mrb[0].mxu0
    %v738 = vadd.f32 %v418, %v737
    %v739 = vpop.f32.mrb[0].mxu0
    %740 = vdwg.mxu0
    %v742 = vrot.slane %v598, 6
    %v744 = vadd.f32 %v231, %v742
    %v745 = vxor.u32 %v744, 2147483648
    %v746 = vmul.f32 %v745, 1.442695
    %v747 = vpow.pop %v746
    %v748 = vadd.f32 %v747, 1.0
    %v749 = vrcp.pop %v748
    %v750 = vmul.f32 1.0, %v749
    %v752 = vrot.slane %v668, 6
    %753 = vrot.lane.b32.xlu0 %v752, 32
    %v754 = vpop.permute.xlu0 %753
    %v756 = vadd.f32 %v231, %v754
    %v757 = vxor.u32 %v756, 2147483648
    %v758 = vmul.f32 %v757, 1.442695
    %v759 = vpow.pop %v758
    %v760 = vadd.f32 %v759, 1.0
    %v761 = vrcp.pop %v760
    %v762 = vmul.f32 1.0, %v761
    %v764 = vrot.slane %v738, 6
    %v766 = vmul.f32 %v750, %v764
    %768 = vrot.lane.b32.xlu0 %v766, 64
    %v769 = vpop.permute.xlu0 %768
    %v771 = vadd.f32 %v231, %v769
    %v772 = vtanh.pop %v771
    %v773 = vsub.f32 1.0, %v762
    %775 = vrot.lane.b32.xlu0 %v772, 96
    %v776 = vpop.permute.xlu0 %775
    %v778 = vmul.f32 %v773, %v776
    %v779 = vrot.slane %v522, 6
    %v781 = vmul.f32 %v762, %v779
    %v782 = vadd.f32 %v778, %v781
    %784 = vrot.lane.b32.xlu0 %v782, 96
    %v785 = vpop.permute.xlu0 %784
    %vm787 = vcmask 257026
    %788 = vst.msk [vmem:[#allocation2] sm:$0xc] %vm787, %v785
    %v789 = vrot.slane %v782, 2
    %790 = vrot.lane.b32.xlu0 %v789, 96
    %v791 = vpop.permute.xlu0 %790
    %v792 = vsel %vm264, %v791, 0
    %794 = vmatprep.subr.mxu0 0.0
    %795 = vmatpush1.msra.mxu0 %v239
    %796 = vmatprep.subr.mxu0 0.0
    %797 = vmatpush1.msra.mxu0 %v240
    %798 = vmatprep.subr.mxu0 0.0
    %799 = vmatpush1.msra.mxu0 %v241
    %800 = vmatprep.subr.mxu0 0.0
    %801 = vmatpush1.msra.mxu0 %v242
    %802 = vmatprep.subr.mxu0 0.0
    %803 = vmatpush1.msra.mxu0 0.0
    %804 = vmatprep.subr.mxu0 0.0
    %805 = vmatpush1.msra.mxu0 0.0
    %806 = vmatprep.subr.mxu0 0.0
    %807 = vmatpush1.msra.mxu0 0.0
    %808 = vmatprep.subr.mxu0 0.0
    %809 = vmatpush1.msra.mxu0 0.0
    %810 = vmatprep.subr.mxu0 0.0
    %811 = vmatpush1.msra.mxu0 0.0
    %812 = vmatprep.subr.mxu0 0.0
    %813 = vmatpush1.msra.mxu0 0.0
    %814 = vmatprep.subr.mxu0 0.0
    %815 = vmatpush1.msra.mxu0 0.0
    %816 = vmatprep.subr.mxu0 0.0
    %817 = vmatpush1.msra.mxu0 0.0
    %818 = vmatprep.subr.mxu0 0.0
    %819 = vmatpush1.msra.mxu0 0.0
    %820 = vmatprep.subr.mxu0 0.0
    %821 = vmatpush1.msra.mxu0 0.0
    %822 = vmatprep.subr.mxu0 0.0
    %823 = vmatpush1.msra.mxu0 0.0
    %824 = vmatprep.subr.mxu0 0.0
    %825 = vmatpush1.msra.mxu0 0.0
    %826 = vmatprep.subr.mxu0 0.0
    %827 = vmatpush1.msra.mxu0 0.0
    %828 = vmatprep.subr.mxu0 0.0
    %829 = vmatpush1.msra.mxu0 0.0
    %830 = vmatprep.subr.mxu0 0.0
    %831 = vmatpush1.msra.mxu0 0.0
    %832 = vmatprep.subr.mxu0 0.0
    %833 = vmatpush1.msra.mxu0 0.0
    %834 = vmatprep.subr.mxu0 0.0
    %835 = vmatpush1.msra.mxu0 0.0
    %836 = vmatprep.subr.mxu0 0.0
    %837 = vmatpush1.msra.mxu0 0.0
    %838 = vmatprep.subr.mxu0 0.0
    %839 = vmatpush1.msra.mxu0 0.0
    %840 = vmatprep.subr.mxu0 0.0
    %841 = vmatpush1.msra.mxu0 0.0
    %842 = vmatprep.subr.mxu0 0.0
    %843 = vmatpush1.msra.mxu0 0.0
    %844 = vmatprep.subr.mxu0 0.0
    %845 = vmatpush1.msra.mxu0 0.0
    %846 = vmatprep.subr.mxu0 0.0
    %847 = vmatpush1.msra.mxu0 0.0
    %848 = vmatprep.subr.mxu0 0.0
    %849 = vmatpush1.msra.mxu0 0.0
    %850 = vmatprep.subr.mxu0 0.0
    %851 = vmatpush1.msra.mxu0 0.0
    %852 = vmatprep.subr.mxu0 0.0
    %853 = vmatpush1.msra.mxu0 0.0
    %854 = vmatprep.subr.mxu0 0.0
    %855 = vmatpush1.msra.mxu0 0.0
    %856 = vmatprep.subr.mxu0 0.0
    %857 = vmatpush1.msra.mxu0 0.0
    %858 = vmatprep.mubr.f32.mxu0 0.0
    %859 = vmatmul.mubr.f32.gmra.mrb[0].mxu0 %v792
    %v860 = vpop.f32.mrb[0].mxu0
    %v861 = vadd.f32 %v262, %v860
    %v862 = vpop.f32.mrb[0].mxu0
    %863 = vdwg.mxu0
    %864 = vmatprep.subr.mxu0 0.0
    %865 = vmatpush1.msra.mxu0 %v244
    %866 = vmatprep.subr.mxu0 0.0
    %867 = vmatpush1.msra.mxu0 %v245
    %868 = vmatprep.subr.mxu0 0.0
    %869 = vmatpush1.msra.mxu0 %v246
    %870 = vmatprep.subr.mxu0 0.0
    %871 = vmatpush1.msra.mxu0 %v247
    %872 = vmatprep.subr.mxu0 0.0
    %873 = vmatpush1.msra.mxu0 0.0
    %874 = vmatprep.subr.mxu0 0.0
    %875 = vmatpush1.msra.mxu0 0.0
    %876 = vmatprep.subr.mxu0 0.0
    %877 = vmatpush1.msra.mxu0 0.0
    %878 = vmatprep.subr.mxu0 0.0
    %879 = vmatpush1.msra.mxu0 0.0
    %880 = vmatprep.subr.mxu0 0.0
    %881 = vmatpush1.msra.mxu0 0.0
    %882 = vmatprep.subr.mxu0 0.0
    %883 = vmatpush1.msra.mxu0 0.0
    %884 = vmatprep.subr.mxu0 0.0
    %885 = vmatpush1.msra.mxu0 0.0
    %886 = vmatprep.subr.mxu0 0.0
    %887 = vmatpush1.msra.mxu0 0.0
    %888 = vmatprep.subr.mxu0 0.0
    %889 = vmatpush1.msra.mxu0 0.0
    %890 = vmatprep.subr.mxu0 0.0
    %891 = vmatpush1.msra.mxu0 0.0
    %892 = vmatprep.subr.mxu0 0.0
    %893 = vmatpush1.msra.mxu0 0.0
    %894 = vmatprep.subr.mxu0 0.0
    %895 = vmatpush1.msra.mxu0 0.0
    %896 = vmatprep.subr.mxu0 0.0
    %897 = vmatpush1.msra.mxu0 0.0
    %898 = vmatprep.subr.mxu0 0.0
    %899 = vmatpush1.msra.mxu0 0.0
    %900 = vmatprep.subr.mxu0 0.0
    %901 = vmatpush1.msra.mxu0 0.0
    %902 = vmatprep.subr.mxu0 0.0
    %903 = vmatpush1.msra.mxu0 0.0
    %904 = vmatprep.subr.mxu0 0.0
    %905 = vmatpush1.msra.mxu0 0.0
    %906 = vmatprep.subr.mxu0 0.0
    %907 = vmatpush1.msra.mxu0 0.0
    %908 = vmatprep.subr.mxu0 0.0
    %909 = vmatpush1.msra.mxu0 0.0
    %910 = vmatprep.subr.mxu0 0.0
    %911 = vmatpush1.msra.mxu0 0.0
    %912 = vmatprep.subr.mxu0 0.0
    %913 = vmatpush1.msra.mxu0 0.0
    %914 = vmatprep.subr.mxu0 0.0
    %915 = vmatpush1.msra.mxu0 0.0
    %916 = vmatprep.subr.mxu0 0.0
    %917 = vmatpush1.msra.mxu0 0.0
    %918 = vmatprep.subr.mxu0 0.0
    %919 = vmatpush1.msra.mxu0 0.0
    %920 = vmatprep.subr.mxu0 0.0
    %921 = vmatpush1.msra.mxu0 0.0
    %922 = vmatprep.subr.mxu0 0.0
    %923 = vmatpush1.msra.mxu0 0.0
    %924 = vmatprep.subr.mxu0 0.0
    %925 = vmatpush1.msra.mxu0 0.0
    %926 = vmatprep.subr.mxu0 0.0
    %927 = vmatpush1.msra.mxu0 0.0
    %928 = vmatprep.mubr.f32.mxu0 0.0
    %929 = vmatmul.mubr.f32.gmra.mrb[0].mxu0 %v792
    %v930 = vpop.f32.mrb[0].mxu0
    %v931 = vadd.f32 %v342, %v930
    %v932 = vpop.f32.mrb[0].mxu0
    %933 = vdwg.mxu0
    %934 = vmatprep.subr.mxu0 0.0
    %935 = vmatpush1.msra.mxu0 %v249
    %936 = vmatprep.subr.mxu0 0.0
    %937 = vmatpush1.msra.mxu0 %v250
    %938 = vmatprep.subr.mxu0 0.0
    %939 = vmatpush1.msra.mxu0 %v251
    %940 = vmatprep.subr.mxu0 0.0
    %941 = vmatpush1.msra.mxu0 %v252
    %942 = vmatprep.subr.mxu0 0.0
    %943 = vmatpush1.msra.mxu0 0.0
    %944 = vmatprep.subr.mxu0 0.0
    %945 = vmatpush1.msra.mxu0 0.0
    %946 = vmatprep.subr.mxu0 0.0
    %947 = vmatpush1.msra.mxu0 0.0
    %948 = vmatprep.subr.mxu0 0.0
    %949 = vmatpush1.msra.mxu0 0.0
    %950 = vmatprep.subr.mxu0 0.0
    %951 = vmatpush1.msra.mxu0 0.0
    %952 = vmatprep.subr.mxu0 0.0
    %953 = vmatpush1.msra.mxu0 0.0
    %954 = vmatprep.subr.mxu0 0.0
    %955 = vmatpush1.msra.mxu0 0.0
    %956 = vmatprep.subr.mxu0 0.0
    %957 = vmatpush1.msra.mxu0 0.0
    %958 = vmatprep.subr.mxu0 0.0
    %959 = vmatpush1.msra.mxu0 0.0
    %960 = vmatprep.subr.mxu0 0.0
    %961 = vmatpush1.msra.mxu0 0.0
    %962 = vmatprep.subr.mxu0 0.0
    %963 = vmatpush1.msra.mxu0 0.0
    %964 = vmatprep.subr.mxu0 0.0
    %965 = vmatpush1.msra.mxu0 0.0
    %966 = vmatprep.subr.mxu0 0.0
    %967 = vmatpush1.msra.mxu0 0.0
    %968 = vmatprep.subr.mxu0 0.0
    %969 = vmatpush1.msra.mxu0 0.0
    %970 = vmatprep.subr.mxu0 0.0
    %971 = vmatpush1.msra.mxu0 0.0
    %972 = vmatprep.subr.mxu0 0.0
    %973 = vmatpush1.msra.mxu0 0.0
    %974 = vmatprep.subr.mxu0 0.0
    %975 = vmatpush1.msra.mxu0 0.0
    %976 = vmatprep.subr.mxu0 0.0
    %977 = vmatpush1.msra.mxu0 0.0
    %978 = vmatprep.subr.mxu0 0.0
    %979 = vmatpush1.msra.mxu0 0.0
    %980 = vmatprep.subr.mxu0 0.0
    %981 = vmatpush1.msra.mxu0 0.0
    %982 = vmatprep.subr.mxu0 0.0
    %983 = vmatpush1.msra.mxu0 0.0
    %984 = vmatprep.subr.mxu0 0.0
    %985 = vmatpush1.msra.mxu0 0.0
    %986 = vmatprep.subr.mxu0 0.0
    %987 = vmatpush1.msra.mxu0 0.0
    %988 = vmatprep.subr.mxu0 0.0
    %989 = vmatpush1.msra.mxu0 0.0
    %990 = vmatprep.subr.mxu0 0.0
    %991 = vmatpush1.msra.mxu0 0.0
    %992 = vmatprep.subr.mxu0 0.0
    %993 = vmatpush1.msra.mxu0 0.0
    %994 = vmatprep.subr.mxu0 0.0
    %995 = vmatpush1.msra.mxu0 0.0
    %996 = vmatprep.subr.mxu0 0.0
    %997 = vmatpush1.msra.mxu0 0.0
    %998 = vmatprep.mubr.f32.mxu0 0.0
    %999 = vmatmul.mubr.f32.gmra.mrb[0].mxu0 %v792
    %v1000 = vpop.f32.mrb[0].mxu0
    %v1001 = vadd.f32 %v418, %v1000
    %v1002 = vpop.f32.mrb[0].mxu0
    %1003 = vdwg.mxu0
    %v1005 = vrot.slane %v861, 4
    %v1007 = vadd.f32 %v231, %v1005
    %v1008 = vxor.u32 %v1007, 2147483648
    %v1009 = vmul.f32 %v1008, 1.442695
    %v1010 = vpow.pop %v1009
    %v1011 = vadd.f32 %v1010, 1.0
    %v1012 = vrcp.pop %v1011
    %v1013 = vmul.f32 1.0, %v1012
    %v1015 = vrot.slane %v931, 4
    %1016 = vrot.lane.b32.xlu0 %v1015, 32
    %v1017 = vpop.permute.xlu0 %1016
    %v1019 = vadd.f32 %v231, %v1017
    %v1020 = vxor.u32 %v1019, 2147483648
    %v1021 = vmul.f32 %v1020, 1.442695
    %v1022 = vpow.pop %v1021
    %v1023 = vadd.f32 %v1022, 1.0
    %v1024 = vrcp.pop %v1023
    %v1025 = vmul.f32 1.0, %v1024
    %v1027 = vrot.slane %v1001, 4
    %v1029 = vmul.f32 %v1013, %v1027
    %1031 = vrot.lane.b32.xlu0 %v1029, 64
    %v1032 = vpop.permute.xlu0 %1031
    %v1034 = vadd.f32 %v231, %v1032
    %v1035 = vtanh.pop %v1034
    %v1036 = vsub.f32 1.0, %v1025
    %1038 = vrot.lane.b32.xlu0 %v1035, 96
    %v1039 = vpop.permute.xlu0 %1038
    %v1041 = vmul.f32 %v1036, %v1039
    %v1042 = vrot.slane %v782, 6
    %v1044 = vmul.f32 %v1025, %v1042
    %v1045 = vadd.f32 %v1041, %v1044
    %1047 = vrot.lane.b32.xlu0 %v1045, 96
    %v1048 = vpop.permute.xlu0 %1047
    %vm1050 = vcmask 259076
    %1051 = vst.msk [vmem:[#allocation2] sm:$0x30] %vm1050, %v1048
    %v1052 = vrot.slane %v1045, 4
    %1053 = vrot.lane.b32.xlu0 %v1052, 96
    %v1054 = vpop.permute.xlu0 %1053
    %v1055 = vsel %vm264, %v1054, 0
    %1057 = vmatprep.subr.mxu0 0.0
    %1058 = vmatpush1.msra.mxu0 %v239
    %1059 = vmatprep.subr.mxu0 0.0
    %1060 = vmatpush1.msra.mxu0 %v240
    %1061 = vmatprep.subr.mxu0 0.0
    %1062 = vmatpush1.msra.mxu0 %v241
    %1063 = vmatprep.subr.mxu0 0.0
    %1064 = vmatpush1.msra.mxu0 %v242
    %1065 = vmatprep.subr.mxu0 0.0
    %1066 = vmatpush1.msra.mxu0 0.0
    %1067 = vmatprep.subr.mxu0 0.0
    %1068 = vmatpush1.msra.mxu0 0.0
    %1069 = vmatprep.subr.mxu0 0.0
    %1070 = vmatpush1.msra.mxu0 0.0
    %1071 = vmatprep.subr.mxu0 0.0
    %1072 = vmatpush1.msra.mxu0 0.0
    %1073 = vmatprep.subr.mxu0 0.0
    %1074 = vmatpush1.msra.mxu0 0.0
    %1075 = vmatprep.subr.mxu0 0.0
    %1076 = vmatpush1.msra.mxu0 0.0
    %1077 = vmatprep.subr.mxu0 0.0
    %1078 = vmatpush1.msra.mxu0 0.0
    %1079 = vmatprep.subr.mxu0 0.0
    %1080 = vmatpush1.msra.mxu0 0.0
    %1081 = vmatprep.subr.mxu0 0.0
    %1082 = vmatpush1.msra.mxu0 0.0
    %1083 = vmatprep.subr.mxu0 0.0
    %1084 = vmatpush1.msra.mxu0 0.0
    %1085 = vmatprep.subr.mxu0 0.0
    %1086 = vmatpush1.msra.mxu0 0.0
    %1087 = vmatprep.subr.mxu0 0.0
    %1088 = vmatpush1.msra.mxu0 0.0
    %1089 = vmatprep.subr.mxu0 0.0
    %1090 = vmatpush1.msra.mxu0 0.0
    %1091 = vmatprep.subr.mxu0 0.0
    %1092 = vmatpush1.msra.mxu0 0.0
    %1093 = vmatprep.subr.mxu0 0.0
    %1094 = vmatpush1.msra.mxu0 0.0
    %1095 = vmatprep.subr.mxu0 0.0
    %1096 = vmatpush1.msra.mxu0 0.0
    %1097 = vmatprep.subr.mxu0 0.0
    %1098 = vmatpush1.msra.mxu0 0.0
    %1099 = vmatprep.subr.mxu0 0.0
    %1100 = vmatpush1.msra.mxu0 0.0
    %1101 = vmatprep.subr.mxu0 0.0
    %1102 = vmatpush1.msra.mxu0 0.0
    %1103 = vmatprep.subr.mxu0 0.0
    %1104 = vmatpush1.msra.mxu0 0.0
    %1105 = vmatprep.subr.mxu0 0.0
    %1106 = vmatpush1.msra.mxu0 0.0
    %1107 = vmatprep.subr.mxu0 0.0
    %1108 = vmatpush1.msra.mxu0 0.0
    %1109 = vmatprep.subr.mxu0 0.0
    %1110 = vmatpush1.msra.mxu0 0.0
    %1111 = vmatprep.subr.mxu0 0.0
    %1112 = vmatpush1.msra.mxu0 0.0
    %1113 = vmatprep.subr.mxu0 0.0
    %1114 = vmatpush1.msra.mxu0 0.0
    %1115 = vmatprep.subr.mxu0 0.0
    %1116 = vmatpush1.msra.mxu0 0.0
    %1117 = vmatprep.subr.mxu0 0.0
    %1118 = vmatpush1.msra.mxu0 0.0
    %1119 = vmatprep.subr.mxu0 0.0
    %1120 = vmatpush1.msra.mxu0 0.0
    %1121 = vmatprep.mubr.f32.mxu0 0.0
    %1122 = vmatmul.mubr.f32.gmra.mrb[0].mxu0 %v1055
    %v1123 = vpop.f32.mrb[0].mxu0
    %v1124 = vadd.f32 %v262, %v1123
    %v1125 = vpop.f32.mrb[0].mxu0
    %1126 = vdwg.mxu0
    %1127 = vmatprep.subr.mxu0 0.0
    %1128 = vmatpush1.msra.mxu0 %v244
    %1129 = vmatprep.subr.mxu0 0.0
    %1130 = vmatpush1.msra.mxu0 %v245
    %1131 = vmatprep.subr.mxu0 0.0
    %1132 = vmatpush1.msra.mxu0 %v246
    %1133 = vmatprep.subr.mxu0 0.0
    %1134 = vmatpush1.msra.mxu0 %v247
    %1135 = vmatprep.subr.mxu0 0.0
    %1136 = vmatpush1.msra.mxu0 0.0
    %1137 = vmatprep.subr.mxu0 0.0
    %1138 = vmatpush1.msra.mxu0 0.0
    %1139 = vmatprep.subr.mxu0 0.0
    %1140 = vmatpush1.msra.mxu0 0.0
    %1141 = vmatprep.subr.mxu0 0.0
    %1142 = vmatpush1.msra.mxu0 0.0
    %1143 = vmatprep.subr.mxu0 0.0
    %1144 = vmatpush1.msra.mxu0 0.0
    %1145 = vmatprep.subr.mxu0 0.0
    %1146 = vmatpush1.msra.mxu0 0.0
    %1147 = vmatprep.subr.mxu0 0.0
    %1148 = vmatpush1.msra.mxu0 0.0
    %1149 = vmatprep.subr.mxu0 0.0
    %1150 = vmatpush1.msra.mxu0 0.0
    %1151 = vmatprep.subr.mxu0 0.0
    %1152 = vmatpush1.msra.mxu0 0.0
    %1153 = vmatprep.subr.mxu0 0.0
    %1154 = vmatpush1.msra.mxu0 0.0
    %1155 = vmatprep.subr.mxu0 0.0
    %1156 = vmatpush1.msra.mxu0 0.0
    %1157 = vmatprep.subr.mxu0 0.0
    %1158 = vmatpush1.msra.mxu0 0.0
    %1159 = vmatprep.subr.mxu0 0.0
    %1160 = vmatpush1.msra.mxu0 0.0
    %1161 = vmatprep.subr.mxu0 0.0
    %1162 = vmatpush1.msra.mxu0 0.0
    %1163 = vmatprep.subr.mxu0 0.0
    %1164 = vmatpush1.msra.mxu0 0.0
    %1165 = vmatprep.subr.mxu0 0.0
    %1166 = vmatpush1.msra.mxu0 0.0
    %1167 = vmatprep.subr.mxu0 0.0
    %1168 = vmatpush1.msra.mxu0 0.0
    %1169 = vmatprep.subr.mxu0 0.0
    %1170 = vmatpush1.msra.mxu0 0.0
    %1171 = vmatprep.subr.mxu0 0.0
    %1172 = vmatpush1.msra.mxu0 0.0
    %1173 = vmatprep.subr.mxu0 0.0
    %1174 = vmatpush1.msra.mxu0 0.0
    %1175 = vmatprep.subr.mxu0 0.0
    %1176 = vmatpush1.msra.mxu0 0.0
    %1177 = vmatprep.subr.mxu0 0.0
    %1178 = vmatpush1.msra.mxu0 0.0
    %1179 = vmatprep.subr.mxu0 0.0
    %1180 = vmatpush1.msra.mxu0 0.0
    %1181 = vmatprep.subr.mxu0 0.0
    %1182 = vmatpush1.msra.mxu0 0.0
    %1183 = vmatprep.subr.mxu0 0.0
    %1184 = vmatpush1.msra.mxu0 0.0
    %1185 = vmatprep.subr.mxu0 0.0
    %1186 = vmatpush1.msra.mxu0 0.0
    %1187 = vmatprep.subr.mxu0 0.0
    %1188 = vmatpush1.msra.mxu0 0.0
    %1189 = vmatprep.subr.mxu0 0.0
    %1190 = vmatpush1.msra.mxu0 0.0
    %1191 = vmatprep.mubr.f32.mxu0 0.0
    %1192 = vmatmul.mubr.f32.gmra.mrb[0].mxu0 %v1055
    %v1193 = vpop.f32.mrb[0].mxu0
    %v1194 = vadd.f32 %v342, %v1193
    %v1195 = vpop.f32.mrb[0].mxu0
    %1196 = vdwg.mxu0
    %1197 = vmatprep.subr.mxu0 0.0
    %1198 = vmatpush1.msra.mxu0 %v249
    %1199 = vmatprep.subr.mxu0 0.0
    %1200 = vmatpush1.msra.mxu0 %v250
    %1201 = vmatprep.subr.mxu0 0.0
    %1202 = vmatpush1.msra.mxu0 %v251
    %1203 = vmatprep.subr.mxu0 0.0
    %1204 = vmatpush1.msra.mxu0 %v252
    %1205 = vmatprep.subr.mxu0 0.0
    %1206 = vmatpush1.msra.mxu0 0.0
    %1207 = vmatprep.subr.mxu0 0.0
    %1208 = vmatpush1.msra.mxu0 0.0
    %1209 = vmatprep.subr.mxu0 0.0
    %1210 = vmatpush1.msra.mxu0 0.0
    %1211 = vmatprep.subr.mxu0 0.0
    %1212 = vmatpush1.msra.mxu0 0.0
    %1213 = vmatprep.subr.mxu0 0.0
    %1214 = vmatpush1.msra.mxu0 0.0
    %1215 = vmatprep.subr.mxu0 0.0
    %1216 = vmatpush1.msra.mxu0 0.0
    %1217 = vmatprep.subr.mxu0 0.0
    %1218 = vmatpush1.msra.mxu0 0.0
    %1219 = vmatprep.subr.mxu0 0.0
    %1220 = vmatpush1.msra.mxu0 0.0
    %1221 = vmatprep.subr.mxu0 0.0
    %1222 = vmatpush1.msra.mxu0 0.0
    %1223 = vmatprep.subr.mxu0 0.0
    %1224 = vmatpush1.msra.mxu0 0.0
    %1225 = vmatprep.subr.mxu0 0.0
    %1226 = vmatpush1.msra.mxu0 0.0
    %1227 = vmatprep.subr.mxu0 0.0
    %1228 = vmatpush1.msra.mxu0 0.0
    %1229 = vmatprep.subr.mxu0 0.0
    %1230 = vmatpush1.msra.mxu0 0.0
    %1231 = vmatprep.subr.mxu0 0.0
    %1232 = vmatpush1.msra.mxu0 0.0
    %1233 = vmatprep.subr.mxu0 0.0
    %1234 = vmatpush1.msra.mxu0 0.0
    %1235 = vmatprep.subr.mxu0 0.0
    %1236 = vmatpush1.msra.mxu0 0.0
    %1237 = vmatprep.subr.mxu0 0.0
    %1238 = vmatpush1.msra.mxu0 0.0
    %1239 = vmatprep.subr.mxu0 0.0
    %1240 = vmatpush1.msra.mxu0 0.0
    %1241 = vmatprep.subr.mxu0 0.0
    %1242 = vmatpush1.msra.mxu0 0.0
    %1243 = vmatprep.subr.mxu0 0.0
    %1244 = vmatpush1.msra.mxu0 0.0
    %1245 = vmatprep.subr.mxu0 0.0
    %1246 = vmatpush1.msra.mxu0 0.0
    %1247 = vmatprep.subr.mxu0 0.0
    %1248 = vmatpush1.msra.mxu0 0.0
    %1249 = vmatprep.subr.mxu0 0.0
    %1250 = vmatpush1.msra.mxu0 0.0
    %1251 = vmatprep.subr.mxu0 0.0
    %1252 = vmatpush1.msra.mxu0 0.0
    %1253 = vmatprep.subr.mxu0 0.0
    %1254 = vmatpush1.msra.mxu0 0.0
    %1255 = vmatprep.subr.mxu0 0.0
    %1256 = vmatpush1.msra.mxu0 0.0
    %1257 = vmatprep.subr.mxu0 0.0
    %1258 = vmatpush1.msra.mxu0 0.0
    %1259 = vmatprep.subr.mxu0 0.0
    %1260 = vmatpush1.msra.mxu0 0.0
    %1261 = vmatprep.mubr.f32.mxu0 0.0
    %1262 = vmatmul.mubr.f32.gmra.mrb[0].mxu0 %v1055
    %v1263 = vpop.f32.mrb[0].mxu0
    %v1264 = vadd.f32 %v418, %v1263
    %v1265 = vpop.f32.mrb[0].mxu0
    %1266 = vdwg.mxu0
    %v1268 = vrot.slane %v1124, 2
    %v1270 = vadd.f32 %v231, %v1268
    %v1271 = vxor.u32 %v1270, 2147483648
    %v1272 = vmul.f32 %v1271, 1.442695
    %v1273 = vpow.pop %v1272
    %v1274 = vadd.f32 %v1273, 1.0
    %v1275 = vrcp.pop %v1274
    %v1276 = vmul.f32 1.0, %v1275
    %v1278 = vrot.slane %v1194, 2
    %1279 = vrot.lane.b32.xlu0 %v1278, 32
    %v1280 = vpop.permute.xlu0 %1279
    %v1282 = vadd.f32 %v231, %v1280
    %v1283 = vxor.u32 %v1282, 2147483648
    %v1284 = vmul.f32 %v1283, 1.442695
    %v1285 = vpow.pop %v1284
    %v1286 = vadd.f32 %v1285, 1.0
    %v1287 = vrcp.pop %v1286
    %v1288 = vmul.f32 1.0, %v1287
    %v1290 = vrot.slane %v1264, 2
    %v1292 = vmul.f32 %v1276, %v1290
    %1294 = vrot.lane.b32.xlu0 %v1292, 64
    %v1295 = vpop.permute.xlu0 %1294
    %v1297 = vadd.f32 %v231, %v1295
    %v1298 = vtanh.pop %v1297
    %v1299 = vsub.f32 1.0, %v1288
    %1301 = vrot.lane.b32.xlu0 %v1298, 96
    %v1302 = vpop.permute.xlu0 %1301
    %v1304 = vmul.f32 %v1299, %v1302
    %v1305 = vrot.slane %v1045, 6
    %v1307 = vmul.f32 %v1288, %v1305
    %v1308 = vadd.f32 %v1304, %v1307
    %1310 = vrot.lane.b32.xlu0 %v1308, 96
    %v1311 = vpop.permute.xlu0 %1310
    %vm1313 = vcmask 261126
    %1314 = vst.msk [vmem:[#allocation2] sm:$0xc0] %vm1313, %v1311
    %v1315 = vrot.slane %v1308, 6
    %1316 = vrot.lane.b32.xlu0 %v1315, 96
    %v1317 = vpop.permute.xlu0 %1316
    %v1318 = vsel %vm264, %v1317, 0
    %1320 = vmatprep.subr.mxu0 0.0
    %1321 = vmatpush1.msra.mxu0 %v239
    %1322 = vmatprep.subr.mxu0 0.0
    %1323 = vmatpush1.msra.mxu0 %v240
    %1324 = vmatprep.subr.mxu0 0.0
    %1325 = vmatpush1.msra.mxu0 %v241
    %1326 = vmatprep.subr.mxu0 0.0
    %1327 = vmatpush1.msra.mxu0 %v242
    %1328 = vmatprep.subr.mxu0 0.0
    %1329 = vmatpush1.msra.mxu0 0.0
    %1330 = vmatprep.subr.mxu0 0.0
    %1331 = vmatpush1.msra.mxu0 0.0
    %1332 = vmatprep.subr.mxu0 0.0
    %1333 = vmatpush1.msra.mxu0 0.0
    %1334 = vmatprep.subr.mxu0 0.0
    %1335 = vmatpush1.msra.mxu0 0.0
    %1336 = vmatprep.subr.mxu0 0.0
    %1337 = vmatpush1.msra.mxu0 0.0
    %1338 = vmatprep.subr.mxu0 0.0
    %1339 = vmatpush1.msra.mxu0 0.0
    %1340 = vmatprep.subr.mxu0 0.0
    %1341 = vmatpush1.msra.mxu0 0.0
    %1342 = vmatprep.subr.mxu0 0.0
    %1343 = vmatpush1.msra.mxu0 0.0
    %1344 = vmatprep.subr.mxu0 0.0
    %1345 = vmatpush1.msra.mxu0 0.0
    %1346 = vmatprep.subr.mxu0 0.0
    %1347 = vmatpush1.msra.mxu0 0.0
    %1348 = vmatprep.subr.mxu0 0.0
    %1349 = vmatpush1.msra.mxu0 0.0
    %1350 = vmatprep.subr.mxu0 0.0
    %1351 = vmatpush1.msra.mxu0 0.0
    %1352 = vmatprep.subr.mxu0 0.0
    %1353 = vmatpush1.msra.mxu0 0.0
    %1354 = vmatprep.subr.mxu0 0.0
    %1355 = vmatpush1.msra.mxu0 0.0
    %1356 = vmatprep.subr.mxu0 0.0
    %1357 = vmatpush1.msra.mxu0 0.0
    %1358 = vmatprep.subr.mxu0 0.0
    %1359 = vmatpush1.msra.mxu0 0.0
    %1360 = vmatprep.subr.mxu0 0.0
    %1361 = vmatpush1.msra.mxu0 0.0
    %1362 = vmatprep.subr.mxu0 0.0
    %1363 = vmatpush1.msra.mxu0 0.0
    %1364 = vmatprep.subr.mxu0 0.0
    %1365 = vmatpush1.msra.mxu0 0.0
    %1366 = vmatprep.subr.mxu0 0.0
    %1367 = vmatpush1.msra.mxu0 0.0
    %1368 = vmatprep.subr.mxu0 0.0
    %1369 = vmatpush1.msra.mxu0 0.0
    %1370 = vmatprep.subr.mxu0 0.0
    %1371 = vmatpush1.msra.mxu0 0.0
    %1372 = vmatprep.subr.mxu0 0.0
    %1373 = vmatpush1.msra.mxu0 0.0
    %1374 = vmatprep.subr.mxu0 0.0
    %1375 = vmatpush1.msra.mxu0 0.0
    %1376 = vmatprep.subr.mxu0 0.0
    %1377 = vmatpush1.msra.mxu0 0.0
    %1378 = vmatprep.subr.mxu0 0.0
    %1379 = vmatpush1.msra.mxu0 0.0
    %1380 = vmatprep.subr.mxu0 0.0
    %1381 = vmatpush1.msra.mxu0 0.0
    %1382 = vmatprep.subr.mxu0 0.0
    %1383 = vmatpush1.msra.mxu0 0.0
    %1384 = vmatprep.mubr.f32.mxu0 0.0
    %1385 = vmatmul.mubr.f32.gmra.mrb[0].mxu0 %v1318
    %v1386 = vpop.f32.mrb[0].mxu0
    %v1387 = vadd.f32 %v262, %v1386
    %v1388 = vpop.f32.mrb[0].mxu0
    %1389 = vdwg.mxu0
    %1390 = vmatprep.subr.mxu0 0.0
    %1391 = vmatpush1.msra.mxu0 %v244
    %1392 = vmatprep.subr.mxu0 0.0
    %1393 = vmatpush1.msra.mxu0 %v245
    %1394 = vmatprep.subr.mxu0 0.0
    %1395 = vmatpush1.msra.mxu0 %v246
    %1396 = vmatprep.subr.mxu0 0.0
    %1397 = vmatpush1.msra.mxu0 %v247
    %1398 = vmatprep.subr.mxu0 0.0
    %1399 = vmatpush1.msra.mxu0 0.0
    %1400 = vmatprep.subr.mxu0 0.0
    %1401 = vmatpush1.msra.mxu0 0.0
    %1402 = vmatprep.subr.mxu0 0.0
    %1403 = vmatpush1.msra.mxu0 0.0
    %1404 = vmatprep.subr.mxu0 0.0
    %1405 = vmatpush1.msra.mxu0 0.0
    %1406 = vmatprep.subr.mxu0 0.0
    %1407 = vmatpush1.msra.mxu0 0.0
    %1408 = vmatprep.subr.mxu0 0.0
    %1409 = vmatpush1.msra.mxu0 0.0
    %1410 = vmatprep.subr.mxu0 0.0
    %1411 = vmatpush1.msra.mxu0 0.0
    %1412 = vmatprep.subr.mxu0 0.0
    %1413 = vmatpush1.msra.mxu0 0.0
    %1414 = vmatprep.subr.mxu0 0.0
    %1415 = vmatpush1.msra.mxu0 0.0
    %1416 = vmatprep.subr.mxu0 0.0
    %1417 = vmatpush1.msra.mxu0 0.0
    %1418 = vmatprep.subr.mxu0 0.0
    %1419 = vmatpush1.msra.mxu0 0.0
    %1420 = vmatprep.subr.mxu0 0.0
    %1421 = vmatpush1.msra.mxu0 0.0
    %1422 = vmatprep.subr.mxu0 0.0
    %1423 = vmatpush1.msra.mxu0 0.0
    %1424 = vmatprep.subr.mxu0 0.0
    %1425 = vmatpush1.msra.mxu0 0.0
    %1426 = vmatprep.subr.mxu0 0.0
    %1427 = vmatpush1.msra.mxu0 0.0
    %1428 = vmatprep.subr.mxu0 0.0
    %1429 = vmatpush1.msra.mxu0 0.0
    %1430 = vmatprep.subr.mxu0 0.0
    %1431 = vmatpush1.msra.mxu0 0.0
    %1432 = vmatprep.subr.mxu0 0.0
    %1433 = vmatpush1.msra.mxu0 0.0
    %1434 = vmatprep.subr.mxu0 0.0
    %1435 = vmatpush1.msra.mxu0 0.0
    %1436 = vmatprep.subr.mxu0 0.0
    %1437 = vmatpush1.msra.mxu0 0.0
    %1438 = vmatprep.subr.mxu0 0.0
    %1439 = vmatpush1.msra.mxu0 0.0
    %1440 = vmatprep.subr.mxu0 0.0
    %1441 = vmatpush1.msra.mxu0 0.0
    %1442 = vmatprep.subr.mxu0 0.0
    %1443 = vmatpush1.msra.mxu0 0.0
    %1444 = vmatprep.subr.mxu0 0.0
    %1445 = vmatpush1.msra.mxu0 0.0
    %1446 = vmatprep.subr.mxu0 0.0
    %1447 = vmatpush1.msra.mxu0 0.0
    %1448 = vmatprep.subr.mxu0 0.0
    %1449 = vmatpush1.msra.mxu0 0.0
    %1450 = vmatprep.subr.mxu0 0.0
    %1451 = vmatpush1.msra.mxu0 0.0
    %1452 = vmatprep.subr.mxu0 0.0
    %1453 = vmatpush1.msra.mxu0 0.0
    %1454 = vmatprep.mubr.f32.mxu0 0.0
    %1455 = vmatmul.mubr.f32.gmra.mrb[0].mxu0 %v1318
    %v1456 = vpop.f32.mrb[0].mxu0
    %v1457 = vadd.f32 %v342, %v1456
    %v1458 = vpop.f32.mrb[0].mxu0
    %1459 = vdwg.mxu0
    %1460 = vmatprep.subr.mxu0 0.0
    %1461 = vmatpush1.msra.mxu0 %v249
    %1462 = vmatprep.subr.mxu0 0.0
    %1463 = vmatpush1.msra.mxu0 %v250
    %1464 = vmatprep.subr.mxu0 0.0
    %1465 = vmatpush1.msra.mxu0 %v251
    %1466 = vmatprep.subr.mxu0 0.0
    %1467 = vmatpush1.msra.mxu0 %v252
    %1468 = vmatprep.subr.mxu0 0.0
    %1469 = vmatpush1.msra.mxu0 0.0
    %1470 = vmatprep.subr.mxu0 0.0
    %1471 = vmatpush1.msra.mxu0 0.0
    %1472 = vmatprep.subr.mxu0 0.0
    %1473 = vmatpush1.msra.mxu0 0.0
    %1474 = vmatprep.subr.mxu0 0.0
    %1475 = vmatpush1.msra.mxu0 0.0
    %1476 = vmatprep.subr.mxu0 0.0
    %1477 = vmatpush1.msra.mxu0 0.0
    %1478 = vmatprep.subr.mxu0 0.0
    %1479 = vmatpush1.msra.mxu0 0.0
    %1480 = vmatprep.subr.mxu0 0.0
    %1481 = vmatpush1.msra.mxu0 0.0
    %1482 = vmatprep.subr.mxu0 0.0
    %1483 = vmatpush1.msra.mxu0 0.0
    %1484 = vmatprep.subr.mxu0 0.0
    %1485 = vmatpush1.msra.mxu0 0.0
    %1486 = vmatprep.subr.mxu0 0.0
    %1487 = vmatpush1.msra.mxu0 0.0
    %1488 = vmatprep.subr.mxu0 0.0
    %1489 = vmatpush1.msra.mxu0 0.0
    %1490 = vmatprep.subr.mxu0 0.0
    %1491 = vmatpush1.msra.mxu0 0.0
    %1492 = vmatprep.subr.mxu0 0.0
    %1493 = vmatpush1.msra.mxu0 0.0
    %1494 = vmatprep.subr.mxu0 0.0
    %1495 = vmatpush1.msra.mxu0 0.0
    %1496 = vmatprep.subr.mxu0 0.0
    %1497 = vmatpush1.msra.mxu0 0.0
    %1498 = vmatprep.subr.mxu0 0.0
    %1499 = vmatpush1.msra.mxu0 0.0
    %1500 = vmatprep.subr.mxu0 0.0
    %1501 = vmatpush1.msra.mxu0 0.0
    %1502 = vmatprep.subr.mxu0 0.0
    %1503 = vmatpush1.msra.mxu0 0.0
    %1504 = vmatprep.subr.mxu0 0.0
    %1505 = vmatpush1.msra.mxu0 0.0
    %1506 = vmatprep.subr.mxu0 0.0
    %1507 = vmatpush1.msra.mxu0 0.0
    %1508 = vmatprep.subr.mxu0 0.0
    %1509 = vmatpush1.msra.mxu0 0.0
    %1510 = vmatprep.subr.mxu0 0.0
    %1511 = vmatpush1.msra.mxu0 0.0
    %1512 = vmatprep.subr.mxu0 0.0
    %1513 = vmatpush1.msra.mxu0 0.0
    %1514 = vmatprep.subr.mxu0 0.0
    %1515 = vmatpush1.msra.mxu0 0.0
    %1516 = vmatprep.subr.mxu0 0.0
    %1517 = vmatpush1.msra.mxu0 0.0
    %1518 = vmatprep.subr.mxu0 0.0
    %1519 = vmatpush1.msra.mxu0 0.0
    %1520 = vmatprep.subr.mxu0 0.0
    %1521 = vmatpush1.msra.mxu0 0.0
    %1522 = vmatprep.subr.mxu0 0.0
    %1523 = vmatpush1.msra.mxu0 0.0
    %1524 = vmatprep.mubr.f32.mxu0 0.0
    %1525 = vmatmul.mubr.f32.gmra.mrb[0].mxu0 %v1318
    %v1526 = vpop.f32.mrb[0].mxu0
    %v1527 = vadd.f32 %v418, %v1526
    %v1528 = vpop.f32.mrb[0].mxu0
    %1529 = vdwg.mxu0
    %v1530 = vadd.f32 %v236, %v1387
    %v1531 = vxor.u32 %v1530, 2147483648
    %v1532 = vmul.f32 %v1531, 1.442695
    %v1533 = vpow.pop %v1532
    %v1534 = vadd.f32 %v1533, 1.0
    %v1535 = vrcp.pop %v1534
    %v1536 = vmul.f32 1.0, %v1535
    %1538 = vrot.lane.b32.xlu0 %v1457, 32
    %v1539 = vpop.permute.xlu0 %1538
    %v1541 = vadd.f32 %v236, %v1539
    %v1542 = vxor.u32 %v1541, 2147483648
    %v1543 = vmul.f32 %v1542, 1.442695
    %v1544 = vpow.pop %v1543
    %v1545 = vadd.f32 %v1544, 1.0
    %v1546 = vrcp.pop %v1545
    %v1547 = vmul.f32 1.0, %v1546
    %v1548 = vmul.f32 %v1536, %v1527
    %1550 = vrot.lane.b32.xlu0 %v1548, 64
    %v1551 = vpop.permute.xlu0 %1550
    %v1553 = vadd.f32 %v236, %v1551
    %v1554 = vtanh.pop %v1553
    %v1555 = vsub.f32 1.0, %v1547
    %1557 = vrot.lane.b32.xlu0 %v1554, 96
    %v1558 = vpop.permute.xlu0 %1557
    %v1560 = vmul.f32 %v1555, %v1558
    %v1562 = vmul.f32 %v1547, %v1315
    %v1563 = vadd.f32 %v1560, %v1562
    %1565 = vrot.lane.b32.xlu0 %v1563, 96
    %v1566 = vpop.permute.xlu0 %1565
    %1568 = vst.msk [vmem:[#allocation2 + $0x8] sm:$0x3] %vm527, %v1566
    %v1569 = vsel %vm264, %v1566, 0
    %1571 = vmatprep.subr.mxu0 0.0
    %1572 = vmatpush1.msra.mxu0 %v239
    %1573 = vmatprep.subr.mxu0 0.0
    %1574 = vmatpush1.msra.mxu0 %v240
    %1575 = vmatprep.subr.mxu0 0.0
    %1576 = vmatpush1.msra.mxu0 %v241
    %1577 = vmatprep.subr.mxu0 0.0
    %1578 = vmatpush1.msra.mxu0 %v242
    %1579 = vmatprep.subr.mxu0 0.0
    %1580 = vmatpush1.msra.mxu0 0.0
    %1581 = vmatprep.subr.mxu0 0.0
    %1582 = vmatpush1.msra.mxu0 0.0
    %1583 = vmatprep.subr.mxu0 0.0
    %1584 = vmatpush1.msra.mxu0 0.0
    %1585 = vmatprep.subr.mxu0 0.0
    %1586 = vmatpush1.msra.mxu0 0.0
    %1587 = vmatprep.subr.mxu0 0.0
    %1588 = vmatpush1.msra.mxu0 0.0
    %1589 = vmatprep.subr.mxu0 0.0
    %1590 = vmatpush1.msra.mxu0 0.0
    %1591 = vmatprep.subr.mxu0 0.0
    %1592 = vmatpush1.msra.mxu0 0.0
    %1593 = vmatprep.subr.mxu0 0.0
    %1594 = vmatpush1.msra.mxu0 0.0
    %1595 = vmatprep.subr.mxu0 0.0
    %1596 = vmatpush1.msra.mxu0 0.0
    %1597 = vmatprep.subr.mxu0 0.0
    %1598 = vmatpush1.msra.mxu0 0.0
    %1599 = vmatprep.subr.mxu0 0.0
    %1600 = vmatpush1.msra.mxu0 0.0
    %1601 = vmatprep.subr.mxu0 0.0
    %1602 = vmatpush1.msra.mxu0 0.0
    %1603 = vmatprep.subr.mxu0 0.0
    %1604 = vmatpush1.msra.mxu0 0.0
    %1605 = vmatprep.subr.mxu0 0.0
    %1606 = vmatpush1.msra.mxu0 0.0
    %1607 = vmatprep.subr.mxu0 0.0
    %1608 = vmatpush1.msra.mxu0 0.0
    %1609 = vmatprep.subr.mxu0 0.0
    %1610 = vmatpush1.msra.mxu0 0.0
    %1611 = vmatprep.subr.mxu0 0.0
    %1612 = vmatpush1.msra.mxu0 0.0
    %1613 = vmatprep.subr.mxu0 0.0
    %1614 = vmatpush1.msra.mxu0 0.0
    %1615 = vmatprep.subr.mxu0 0.0
    %1616 = vmatpush1.msra.mxu0 0.0
    %1617 = vmatprep.subr.mxu0 0.0
    %1618 = vmatpush1.msra.mxu0 0.0
    %1619 = vmatprep.subr.mxu0 0.0
    %1620 = vmatpush1.msra.mxu0 0.0
    %1621 = vmatprep.subr.mxu0 0.0
    %1622 = vmatpush1.msra.mxu0 0.0
    %1623 = vmatprep.subr.mxu0 0.0
    %1624 = vmatpush1.msra.mxu0 0.0
    %1625 = vmatprep.subr.mxu0 0.0
    %1626 = vmatpush1.msra.mxu0 0.0
    %1627 = vmatprep.subr.mxu0 0.0
    %1628 = vmatpush1.msra.mxu0 0.0
    %1629 = vmatprep.subr.mxu0 0.0
    %1630 = vmatpush1.msra.mxu0 0.0
    %1631 = vmatprep.subr.mxu0 0.0
    %1632 = vmatpush1.msra.mxu0 0.0
    %1633 = vmatprep.subr.mxu0 0.0
    %1634 = vmatpush1.msra.mxu0 0.0
    %1635 = vmatprep.mubr.f32.mxu0 0.0
    %1636 = vmatmul.mubr.f32.gmra.mrb[0].mxu0 %v1569
    %v1637 = vpop.f32.mrb[0].mxu0
    %v1638 = vadd.f32 %v262, %v1637
    %v1639 = vpop.f32.mrb[0].mxu0
    %1640 = vdwg.mxu0
    %1641 = vmatprep.subr.mxu0 0.0
    %1642 = vmatpush1.msra.mxu0 %v244
    %1643 = vmatprep.subr.mxu0 0.0
    %1644 = vmatpush1.msra.mxu0 %v245
    %1645 = vmatprep.subr.mxu0 0.0
    %1646 = vmatpush1.msra.mxu0 %v246
    %1647 = vmatprep.subr.mxu0 0.0
    %1648 = vmatpush1.msra.mxu0 %v247
    %1649 = vmatprep.subr.mxu0 0.0
    %1650 = vmatpush1.msra.mxu0 0.0
    %1651 = vmatprep.subr.mxu0 0.0
    %1652 = vmatpush1.msra.mxu0 0.0
    %1653 = vmatprep.subr.mxu0 0.0
    %1654 = vmatpush1.msra.mxu0 0.0
    %1655 = vmatprep.subr.mxu0 0.0
    %1656 = vmatpush1.msra.mxu0 0.0
    %1657 = vmatprep.subr.mxu0 0.0
    %1658 = vmatpush1.msra.mxu0 0.0
    %1659 = vmatprep.subr.mxu0 0.0
    %1660 = vmatpush1.msra.mxu0 0.0
    %1661 = vmatprep.subr.mxu0 0.0
    %1662 = vmatpush1.msra.mxu0 0.0
    %1663 = vmatprep.subr.mxu0 0.0
    %1664 = vmatpush1.msra.mxu0 0.0
    %1665 = vmatprep.subr.mxu0 0.0
    %1666 = vmatpush1.msra.mxu0 0.0
    %1667 = vmatprep.subr.mxu0 0.0
    %1668 = vmatpush1.msra.mxu0 0.0
    %1669 = vmatprep.subr.mxu0 0.0
    %1670 = vmatpush1.msra.mxu0 0.0
    %1671 = vmatprep.subr.mxu0 0.0
    %1672 = vmatpush1.msra.mxu0 0.0
    %1673 = vmatprep.subr.mxu0 0.0
    %1674 = vmatpush1.msra.mxu0 0.0
    %1675 = vmatprep.subr.mxu0 0.0
    %1676 = vmatpush1.msra.mxu0 0.0
    %1677 = vmatprep.subr.mxu0 0.0
    %1678 = vmatpush1.msra.mxu0 0.0
    %1679 = vmatprep.subr.mxu0 0.0
    %1680 = vmatpush1.msra.mxu0 0.0
    %1681 = vmatprep.subr.mxu0 0.0
    %1682 = vmatpush1.msra.mxu0 0.0
    %1683 = vmatprep.subr.mxu0 0.0
    %1684 = vmatpush1.msra.mxu0 0.0
    %1685 = vmatprep.subr.mxu0 0.0
    %1686 = vmatpush1.msra.mxu0 0.0
    %1687 = vmatprep.subr.mxu0 0.0
    %1688 = vmatpush1.msra.mxu0 0.0
    %1689 = vmatprep.subr.mxu0 0.0
    %1690 = vmatpush1.msra.mxu0 0.0
    %1691 = vmatprep.subr.mxu0 0.0
    %1692 = vmatpush1.msra.mxu0 0.0
    %1693 = vmatprep.subr.mxu0 0.0
    %1694 = vmatpush1.msra.mxu0 0.0
    %1695 = vmatprep.subr.mxu0 0.0
    %1696 = vmatpush1.msra.mxu0 0.0
    %1697 = vmatprep.subr.mxu0 0.0
    %1698 = vmatpush1.msra.mxu0 0.0
    %1699 = vmatprep.subr.mxu0 0.0
    %1700 = vmatpush1.msra.mxu0 0.0
    %1701 = vmatprep.subr.mxu0 0.0
    %1702 = vmatpush1.msra.mxu0 0.0
    %1703 = vmatprep.subr.mxu0 0.0
    %1704 = vmatpush1.msra.mxu0 0.0
    %1705 = vmatprep.mubr.f32.mxu0 0.0
    %1706 = vmatmul.mubr.f32.gmra.mrb[0].mxu0 %v1569
    %v1707 = vpop.f32.mrb[0].mxu0
    %v1708 = vadd.f32 %v342, %v1707
    %v1709 = vpop.f32.mrb[0].mxu0
    %1710 = vdwg.mxu0
    %1711 = vmatprep.subr.mxu0 0.0
    %1712 = vmatpush1.msra.mxu0 %v249
    %1713 = vmatprep.subr.mxu0 0.0
    %1714 = vmatpush1.msra.mxu0 %v250
    %1715 = vmatprep.subr.mxu0 0.0
    %1716 = vmatpush1.msra.mxu0 %v251
    %1717 = vmatprep.subr.mxu0 0.0
    %1718 = vmatpush1.msra.mxu0 %v252
    %1719 = vmatprep.subr.mxu0 0.0
    %1720 = vmatpush1.msra.mxu0 0.0
    %1721 = vmatprep.subr.mxu0 0.0
    %1722 = vmatpush1.msra.mxu0 0.0
    %1723 = vmatprep.subr.mxu0 0.0
    %1724 = vmatpush1.msra.mxu0 0.0
    %1725 = vmatprep.subr.mxu0 0.0
    %1726 = vmatpush1.msra.mxu0 0.0
    %1727 = vmatprep.subr.mxu0 0.0
    %1728 = vmatpush1.msra.mxu0 0.0
    %1729 = vmatprep.subr.mxu0 0.0
    %1730 = vmatpush1.msra.mxu0 0.0
    %1731 = vmatprep.subr.mxu0 0.0
    %1732 = vmatpush1.msra.mxu0 0.0
    %1733 = vmatprep.subr.mxu0 0.0
    %1734 = vmatpush1.msra.mxu0 0.0
    %1735 = vmatprep.subr.mxu0 0.0
    %1736 = vmatpush1.msra.mxu0 0.0
    %1737 = vmatprep.subr.mxu0 0.0
    %1738 = vmatpush1.msra.mxu0 0.0
    %1739 = vmatprep.subr.mxu0 0.0
    %1740 = vmatpush1.msra.mxu0 0.0
    %1741 = vmatprep.subr.mxu0 0.0
    %1742 = vmatpush1.msra.mxu0 0.0
    %1743 = vmatprep.subr.mxu0 0.0
    %1744 = vmatpush1.msra.mxu0 0.0
    %1745 = vmatprep.subr.mxu0 0.0
    %1746 = vmatpush1.msra.mxu0 0.0
    %1747 = vmatprep.subr.mxu0 0.0
    %1748 = vmatpush1.msra.mxu0 0.0
    %1749 = vmatprep.subr.mxu0 0.0
    %1750 = vmatpush1.msra.mxu0 0.0
    %1751 = vmatprep.subr.mxu0 0.0
    %1752 = vmatpush1.msra.mxu0 0.0
    %1753 = vmatprep.subr.mxu0 0.0
    %1754 = vmatpush1.msra.mxu0 0.0
    %1755 = vmatprep.subr.mxu0 0.0
    %1756 = vmatpush1.msra.mxu0 0.0
    %1757 = vmatprep.subr.mxu0 0.0
    %1758 = vmatpush1.msra.mxu0 0.0
    %1759 = vmatprep.subr.mxu0 0.0
    %1760 = vmatpush1.msra.mxu0 0.0
    %1761 = vmatprep.subr.mxu0 0.0
    %1762 = vmatpush1.msra.mxu0 0.0
    %1763 = vmatprep.subr.mxu0 0.0
    %1764 = vmatpush1.msra.mxu0 0.0
    %1765 = vmatprep.subr.mxu0 0.0
    %1766 = vmatpush1.msra.mxu0 0.0
    %1767 = vmatprep.subr.mxu0 0.0
    %1768 = vmatpush1.msra.mxu0 0.0
    %1769 = vmatprep.subr.mxu0 0.0
    %1770 = vmatpush1.msra.mxu0 0.0
    %1771 = vmatprep.subr.mxu0 0.0
    %1772 = vmatpush1.msra.mxu0 0.0
    %1773 = vmatprep.subr.mxu0 0.0
    %1774 = vmatpush1.msra.mxu0 0.0
    %1775 = vmatprep.mubr.f32.mxu0 0.0
    %1776 = vmatmul.mubr.f32.gmra.mrb[0].mxu0 %v1569
    %v1777 = vpop.f32.mrb[0].mxu0
    %v1778 = vadd.f32 %v418, %v1777
    %v1779 = vpop.f32.mrb[0].mxu0
    %1780 = vdwg.mxu0
    %v1782 = vrot.slane %v1638, 6
    %v1784 = vadd.f32 %v236, %v1782
    %v1785 = vxor.u32 %v1784, 2147483648
    %v1786 = vmul.f32 %v1785, 1.442695
    %v1787 = vpow.pop %v1786
    %v1788 = vadd.f32 %v1787, 1.0
    %v1789 = vrcp.pop %v1788
    %v1790 = vmul.f32 1.0, %v1789
    %v1792 = vrot.slane %v1708, 6
    %1793 = vrot.lane.b32.xlu0 %v1792, 32
    %v1794 = vpop.permute.xlu0 %1793
    %v1796 = vadd.f32 %v236, %v1794
    %v1797 = vxor.u32 %v1796, 2147483648
    %v1798 = vmul.f32 %v1797, 1.442695
    %v1799 = vpow.pop %v1798
    %v1800 = vadd.f32 %v1799, 1.0
    %v1801 = vrcp.pop %v1800
    %v1802 = vmul.f32 1.0, %v1801
    %v1804 = vrot.slane %v1778, 6
    %v1806 = vmul.f32 %v1790, %v1804
    %1808 = vrot.lane.b32.xlu0 %v1806, 64
    %v1809 = vpop.permute.xlu0 %1808
    %v1811 = vadd.f32 %v236, %v1809
    %v1812 = vtanh.pop %v1811
    %v1813 = vsub.f32 1.0, %v1802
    %1815 = vrot.lane.b32.xlu0 %v1812, 96
    %v1816 = vpop.permute.xlu0 %1815
    %v1818 = vmul.f32 %v1813, %v1816
    %v1819 = vrot.slane %v1563, 6
    %v1821 = vmul.f32 %v1802, %v1819
    %v1822 = vadd.f32 %v1818, %v1821
    %1824 = vrot.lane.b32.xlu0 %v1822, 96
    %v1825 = vpop.permute.xlu0 %1824
    %1827 = vst.msk [vmem:[#allocation2 + $0x8] sm:$0xc] %vm787, %v1825
    %v1828 = vrot.slane %v1822, 2
    %1829 = vrot.lane.b32.xlu0 %v1828, 96
    %v1830 = vpop.permute.xlu0 %1829
    %v1831 = vsel %vm264, %v1830, 0
    %1833 = vmatprep.subr.mxu0 0.0
    %1834 = vmatpush1.msra.mxu0 %v239
    %1835 = vmatprep.subr.mxu0 0.0
    %1836 = vmatpush1.msra.mxu0 %v240
    %1837 = vmatprep.subr.mxu0 0.0
    %1838 = vmatpush1.msra.mxu0 %v241
    %1839 = vmatprep.subr.mxu0 0.0
    %1840 = vmatpush1.msra.mxu0 %v242
    %1841 = vmatprep.subr.mxu0 0.0
    %1842 = vmatpush1.msra.mxu0 0.0
    %1843 = vmatprep.subr.mxu0 0.0
    %1844 = vmatpush1.msra.mxu0 0.0
    %1845 = vmatprep.subr.mxu0 0.0
    %1846 = vmatpush1.msra.mxu0 0.0
    %1847 = vmatprep.subr.mxu0 0.0
    %1848 = vmatpush1.msra.mxu0 0.0
    %1849 = vmatprep.subr.mxu0 0.0
    %1850 = vmatpush1.msra.mxu0 0.0
    %1851 = vmatprep.subr.mxu0 0.0
    %1852 = vmatpush1.msra.mxu0 0.0
    %1853 = vmatprep.subr.mxu0 0.0
    %1854 = vmatpush1.msra.mxu0 0.0
    %1855 = vmatprep.subr.mxu0 0.0
    %1856 = vmatpush1.msra.mxu0 0.0
    %1857 = vmatprep.subr.mxu0 0.0
    %1858 = vmatpush1.msra.mxu0 0.0
    %1859 = vmatprep.subr.mxu0 0.0
    %1860 = vmatpush1.msra.mxu0 0.0
    %1861 = vmatprep.subr.mxu0 0.0
    %1862 = vmatpush1.msra.mxu0 0.0
    %1863 = vmatprep.subr.mxu0 0.0
    %1864 = vmatpush1.msra.mxu0 0.0
    %1865 = vmatprep.subr.mxu0 0.0
    %1866 = vmatpush1.msra.mxu0 0.0
    %1867 = vmatprep.subr.mxu0 0.0
    %1868 = vmatpush1.msra.mxu0 0.0
    %1869 = vmatprep.subr.mxu0 0.0
    %1870 = vmatpush1.msra.mxu0 0.0
    %1871 = vmatprep.subr.mxu0 0.0
    %1872 = vmatpush1.msra.mxu0 0.0
    %1873 = vmatprep.subr.mxu0 0.0
    %1874 = vmatpush1.msra.mxu0 0.0
    %1875 = vmatprep.subr.mxu0 0.0
    %1876 = vmatpush1.msra.mxu0 0.0
    %1877 = vmatprep.subr.mxu0 0.0
    %1878 = vmatpush1.msra.mxu0 0.0
    %1879 = vmatprep.subr.mxu0 0.0
    %1880 = vmatpush1.msra.mxu0 0.0
    %1881 = vmatprep.subr.mxu0 0.0
    %1882 = vmatpush1.msra.mxu0 0.0
    %1883 = vmatprep.subr.mxu0 0.0
    %1884 = vmatpush1.msra.mxu0 0.0
    %1885 = vmatprep.subr.mxu0 0.0
    %1886 = vmatpush1.msra.mxu0 0.0
    %1887 = vmatprep.subr.mxu0 0.0
    %1888 = vmatpush1.msra.mxu0 0.0
    %1889 = vmatprep.subr.mxu0 0.0
    %1890 = vmatpush1.msra.mxu0 0.0
    %1891 = vmatprep.subr.mxu0 0.0
    %1892 = vmatpush1.msra.mxu0 0.0
    %1893 = vmatprep.subr.mxu0 0.0
    %1894 = vmatpush1.msra.mxu0 0.0
    %1895 = vmatprep.subr.mxu0 0.0
    %1896 = vmatpush1.msra.mxu0 0.0
    %1897 = vmatprep.mubr.f32.mxu0 0.0
    %1898 = vmatmul.mubr.f32.gmra.mrb[0].mxu0 %v1831
    %v1899 = vpop.f32.mrb[0].mxu0
    %v1900 = vadd.f32 %v262, %v1899
    %v1901 = vpop.f32.mrb[0].mxu0
    %1902 = vdwg.mxu0
    %1903 = vmatprep.subr.mxu0 0.0
    %1904 = vmatpush1.msra.mxu0 %v244
    %1905 = vmatprep.subr.mxu0 0.0
    %1906 = vmatpush1.msra.mxu0 %v245
    %1907 = vmatprep.subr.mxu0 0.0
    %1908 = vmatpush1.msra.mxu0 %v246
    %1909 = vmatprep.subr.mxu0 0.0
    %1910 = vmatpush1.msra.mxu0 %v247
    %1911 = vmatprep.subr.mxu0 0.0
    %1912 = vmatpush1.msra.mxu0 0.0
    %1913 = vmatprep.subr.mxu0 0.0
    %1914 = vmatpush1.msra.mxu0 0.0
    %1915 = vmatprep.subr.mxu0 0.0
    %1916 = vmatpush1.msra.mxu0 0.0
    %1917 = vmatprep.subr.mxu0 0.0
    %1918 = vmatpush1.msra.mxu0 0.0
    %1919 = vmatprep.subr.mxu0 0.0
    %1920 = vmatpush1.msra.mxu0 0.0
    %1921 = vmatprep.subr.mxu0 0.0
    %1922 = vmatpush1.msra.mxu0 0.0
    %1923 = vmatprep.subr.mxu0 0.0
    %1924 = vmatpush1.msra.mxu0 0.0
    %1925 = vmatprep.subr.mxu0 0.0
    %1926 = vmatpush1.msra.mxu0 0.0
    %1927 = vmatprep.subr.mxu0 0.0
    %1928 = vmatpush1.msra.mxu0 0.0
    %1929 = vmatprep.subr.mxu0 0.0
    %1930 = vmatpush1.msra.mxu0 0.0
    %1931 = vmatprep.subr.mxu0 0.0
    %1932 = vmatpush1.msra.mxu0 0.0
    %1933 = vmatprep.subr.mxu0 0.0
    %1934 = vmatpush1.msra.mxu0 0.0
    %1935 = vmatprep.subr.mxu0 0.0
    %1936 = vmatpush1.msra.mxu0 0.0
    %1937 = vmatprep.subr.mxu0 0.0
    %1938 = vmatpush1.msra.mxu0 0.0
    %1939 = vmatprep.subr.mxu0 0.0
    %1940 = vmatpush1.msra.mxu0 0.0
    %1941 = vmatprep.subr.mxu0 0.0
    %1942 = vmatpush1.msra.mxu0 0.0
    %1943 = vmatprep.subr.mxu0 0.0
    %1944 = vmatpush1.msra.mxu0 0.0
    %1945 = vmatprep.subr.mxu0 0.0
    %1946 = vmatpush1.msra.mxu0 0.0
    %1947 = vmatprep.subr.mxu0 0.0
    %1948 = vmatpush1.msra.mxu0 0.0
    %1949 = vmatprep.subr.mxu0 0.0
    %1950 = vmatpush1.msra.mxu0 0.0
    %1951 = vmatprep.subr.mxu0 0.0
    %1952 = vmatpush1.msra.mxu0 0.0
    %1953 = vmatprep.subr.mxu0 0.0
    %1954 = vmatpush1.msra.mxu0 0.0
    %1955 = vmatprep.subr.mxu0 0.0
    %1956 = vmatpush1.msra.mxu0 0.0
    %1957 = vmatprep.subr.mxu0 0.0
    %1958 = vmatpush1.msra.mxu0 0.0
    %1959 = vmatprep.subr.mxu0 0.0
    %1960 = vmatpush1.msra.mxu0 0.0
    %1961 = vmatprep.subr.mxu0 0.0
    %1962 = vmatpush1.msra.mxu0 0.0
    %1963 = vmatprep.subr.mxu0 0.0
    %1964 = vmatpush1.msra.mxu0 0.0
    %1965 = vmatprep.subr.mxu0 0.0
    %1966 = vmatpush1.msra.mxu0 0.0
    %1967 = vmatprep.mubr.f32.mxu0 0.0
    %1968 = vmatmul.mubr.f32.gmra.mrb[0].mxu0 %v1831
    %v1969 = vpop.f32.mrb[0].mxu0
    %v1970 = vadd.f32 %v342, %v1969
    %v1971 = vpop.f32.mrb[0].mxu0
    %1972 = vdwg.mxu0
    %1973 = vmatprep.subr.mxu0 0.0
    %1974 = vmatpush1.msra.mxu0 %v249
    %1975 = vmatprep.subr.mxu0 0.0
    %1976 = vmatpush1.msra.mxu0 %v250
    %1977 = vmatprep.subr.mxu0 0.0
    %1978 = vmatpush1.msra.mxu0 %v251
    %1979 = vmatprep.subr.mxu0 0.0
    %1980 = vmatpush1.msra.mxu0 %v252
    %1981 = vmatprep.subr.mxu0 0.0
    %1982 = vmatpush1.msra.mxu0 0.0
    %1983 = vmatprep.subr.mxu0 0.0
    %1984 = vmatpush1.msra.mxu0 0.0
    %1985 = vmatprep.subr.mxu0 0.0
    %1986 = vmatpush1.msra.mxu0 0.0
    %1987 = vmatprep.subr.mxu0 0.0
    %1988 = vmatpush1.msra.mxu0 0.0
    %1989 = vmatprep.subr.mxu0 0.0
    %1990 = vmatpush1.msra.mxu0 0.0
    %1991 = vmatprep.subr.mxu0 0.0
    %1992 = vmatpush1.msra.mxu0 0.0
    %1993 = vmatprep.subr.mxu0 0.0
    %1994 = vmatpush1.msra.mxu0 0.0
    %1995 = vmatprep.subr.mxu0 0.0
    %1996 = vmatpush1.msra.mxu0 0.0
    %1997 = vmatprep.subr.mxu0 0.0
    %1998 = vmatpush1.msra.mxu0 0.0
    %1999 = vmatprep.subr.mxu0 0.0
    %2000 = vmatpush1.msra.mxu0 0.0
    %2001 = vmatprep.subr.mxu0 0.0
    %2002 = vmatpush1.msra.mxu0 0.0
    %2003 = vmatprep.subr.mxu0 0.0
    %2004 = vmatpush1.msra.mxu0 0.0
    %2005 = vmatprep.subr.mxu0 0.0
    %2006 = vmatpush1.msra.mxu0 0.0
    %2007 = vmatprep.subr.mxu0 0.0
    %2008 = vmatpush1.msra.mxu0 0.0
    %2009 = vmatprep.subr.mxu0 0.0
    %2010 = vmatpush1.msra.mxu0 0.0
    %2011 = vmatprep.subr.mxu0 0.0
    %2012 = vmatpush1.msra.mxu0 0.0
    %2013 = vmatprep.subr.mxu0 0.0
    %2014 = vmatpush1.msra.mxu0 0.0
    %2015 = vmatprep.subr.mxu0 0.0
    %2016 = vmatpush1.msra.mxu0 0.0
    %2017 = vmatprep.subr.mxu0 0.0
    %2018 = vmatpush1.msra.mxu0 0.0
    %2019 = vmatprep.subr.mxu0 0.0
    %2020 = vmatpush1.msra.mxu0 0.0
    %2021 = vmatprep.subr.mxu0 0.0
    %2022 = vmatpush1.msra.mxu0 0.0
    %2023 = vmatprep.subr.mxu0 0.0
    %2024 = vmatpush1.msra.mxu0 0.0
    %2025 = vmatprep.subr.mxu0 0.0
    %2026 = vmatpush1.msra.mxu0 0.0
    %2027 = vmatprep.subr.mxu0 0.0
    %2028 = vmatpush1.msra.mxu0 0.0
    %2029 = vmatprep.subr.mxu0 0.0
    %2030 = vmatpush1.msra.mxu0 0.0
    %2031 = vmatprep.subr.mxu0 0.0
    %2032 = vmatpush1.msra.mxu0 0.0
    %2033 = vmatprep.subr.mxu0 0.0
    %2034 = vmatpush1.msra.mxu0 0.0
    %2035 = vmatprep.subr.mxu0 0.0
    %2036 = vmatpush1.msra.mxu0 0.0
    %2037 = vmatprep.mubr.f32.mxu0 0.0
    %2038 = vmatmul.mubr.f32.gmra.mrb[0].mxu0 %v1831
    %v2039 = vpop.f32.mrb[0].mxu0
    %v2040 = vadd.f32 %v418, %v2039
    %v2041 = vpop.f32.mrb[0].mxu0
    %2042 = vdwg.mxu0
    %v2044 = vrot.slane %v1900, 4
    %v2046 = vadd.f32 %v236, %v2044
    %v2047 = vxor.u32 %v2046, 2147483648
    %v2048 = vmul.f32 %v2047, 1.442695
    %v2049 = vpow.pop %v2048
    %v2050 = vadd.f32 %v2049, 1.0
    %v2051 = vrcp.pop %v2050
    %v2052 = vmul.f32 1.0, %v2051
    %v2054 = vrot.slane %v1970, 4
    %2055 = vrot.lane.b32.xlu0 %v2054, 32
    %v2056 = vpop.permute.xlu0 %2055
    %v2058 = vadd.f32 %v236, %v2056
    %v2059 = vxor.u32 %v2058, 2147483648
    %v2060 = vmul.f32 %v2059, 1.442695
    %v2061 = vpow.pop %v2060
    %v2062 = vadd.f32 %v2061, 1.0
    %v2063 = vrcp.pop %v2062
    %v2064 = vmul.f32 1.0, %v2063
    %v2066 = vrot.slane %v2040, 4
    %v2068 = vmul.f32 %v2052, %v2066
    %2070 = vrot.lane.b32.xlu0 %v2068, 64
    %v2071 = vpop.permute.xlu0 %2070
    %v2073 = vadd.f32 %v236, %v2071
    %v2074 = vtanh.pop %v2073
    %v2075 = vsub.f32 1.0, %v2064
    %2077 = vrot.lane.b32.xlu0 %v2074, 96
    %v2078 = vpop.permute.xlu0 %2077
    %v2080 = vmul.f32 %v2075, %v2078
    %v2081 = vrot.slane %v1822, 6
    %v2083 = vmul.f32 %v2064, %v2081
    %v2084 = vadd.f32 %v2080, %v2083
    %2086 = vrot.lane.b32.xlu0 %v2084, 96
    %v2087 = vpop.permute.xlu0 %2086
    %2089 = vst.msk [vmem:[#allocation2 + $0x8] sm:$0x30] %vm1050, %v2087
    %v2090 = vrot.slane %v2084, 4
    %2091 = vrot.lane.b32.xlu0 %v2090, 96
    %v2092 = vpop.permute.xlu0 %2091
    %v2093 = vsel %vm264, %v2092, 0
    %2095 = vmatprep.subr.mxu0 0.0
    %2096 = vmatpush1.msra.mxu0 %v239
    %2097 = vmatprep.subr.mxu0 0.0
    %2098 = vmatpush1.msra.mxu0 %v240
    %2099 = vmatprep.subr.mxu0 0.0
    %2100 = vmatpush1.msra.mxu0 %v241
    %2101 = vmatprep.subr.mxu0 0.0
    %2102 = vmatpush1.msra.mxu0 %v242
    %2103 = vmatprep.subr.mxu0 0.0
    %2104 = vmatpush1.msra.mxu0 0.0
    %2105 = vmatprep.subr.mxu0 0.0
    %2106 = vmatpush1.msra.mxu0 0.0
    %2107 = vmatprep.subr.mxu0 0.0
    %2108 = vmatpush1.msra.mxu0 0.0
    %2109 = vmatprep.subr.mxu0 0.0
    %2110 = vmatpush1.msra.mxu0 0.0
    %2111 = vmatprep.subr.mxu0 0.0
    %2112 = vmatpush1.msra.mxu0 0.0
    %2113 = vmatprep.subr.mxu0 0.0
    %2114 = vmatpush1.msra.mxu0 0.0
    %2115 = vmatprep.subr.mxu0 0.0
    %2116 = vmatpush1.msra.mxu0 0.0
    %2117 = vmatprep.subr.mxu0 0.0
    %2118 = vmatpush1.msra.mxu0 0.0
    %2119 = vmatprep.subr.mxu0 0.0
    %2120 = vmatpush1.msra.mxu0 0.0
    %2121 = vmatprep.subr.mxu0 0.0
    %2122 = vmatpush1.msra.mxu0 0.0
    %2123 = vmatprep.subr.mxu0 0.0
    %2124 = vmatpush1.msra.mxu0 0.0
    %2125 = vmatprep.subr.mxu0 0.0
    %2126 = vmatpush1.msra.mxu0 0.0
    %2127 = vmatprep.subr.mxu0 0.0
    %2128 = vmatpush1.msra.mxu0 0.0
    %2129 = vmatprep.subr.mxu0 0.0
    %2130 = vmatpush1.msra.mxu0 0.0
    %2131 = vmatprep.subr.mxu0 0.0
    %2132 = vmatpush1.msra.mxu0 0.0
    %2133 = vmatprep.subr.mxu0 0.0
    %2134 = vmatpush1.msra.mxu0 0.0
    %2135 = vmatprep.subr.mxu0 0.0
    %2136 = vmatpush1.msra.mxu0 0.0
    %2137 = vmatprep.subr.mxu0 0.0
    %2138 = vmatpush1.msra.mxu0 0.0
    %2139 = vmatprep.subr.mxu0 0.0
    %2140 = vmatpush1.msra.mxu0 0.0
    %2141 = vmatprep.subr.mxu0 0.0
    %2142 = vmatpush1.msra.mxu0 0.0
    %2143 = vmatprep.subr.mxu0 0.0
    %2144 = vmatpush1.msra.mxu0 0.0
    %2145 = vmatprep.subr.mxu0 0.0
    %2146 = vmatpush1.msra.mxu0 0.0
    %2147 = vmatprep.subr.mxu0 0.0
    %2148 = vmatpush1.msra.mxu0 0.0
    %2149 = vmatprep.subr.mxu0 0.0
    %2150 = vmatpush1.msra.mxu0 0.0
    %2151 = vmatprep.subr.mxu0 0.0
    %2152 = vmatpush1.msra.mxu0 0.0
    %2153 = vmatprep.subr.mxu0 0.0
    %2154 = vmatpush1.msra.mxu0 0.0
    %2155 = vmatprep.subr.mxu0 0.0
    %2156 = vmatpush1.msra.mxu0 0.0
    %2157 = vmatprep.subr.mxu0 0.0
    %2158 = vmatpush1.msra.mxu0 0.0
    %2159 = vmatprep.mubr.f32.mxu0 0.0
    %2160 = vmatmul.mubr.f32.gmra.mrb[0].mxu0 %v2093
    %v2161 = vpop.f32.mrb[0].mxu0
    %v2162 = vadd.f32 %v262, %v2161
    %v2163 = vpop.f32.mrb[0].mxu0
    %2164 = vdwg.mxu0
    %2165 = vmatprep.subr.mxu0 0.0
    %2166 = vmatpush1.msra.mxu0 %v244
    %2167 = vmatprep.subr.mxu0 0.0
    %2168 = vmatpush1.msra.mxu0 %v245
    %2169 = vmatprep.subr.mxu0 0.0
    %2170 = vmatpush1.msra.mxu0 %v246
    %2171 = vmatprep.subr.mxu0 0.0
    %2172 = vmatpush1.msra.mxu0 %v247
    %2173 = vmatprep.subr.mxu0 0.0
    %2174 = vmatpush1.msra.mxu0 0.0
    %2175 = vmatprep.subr.mxu0 0.0
    %2176 = vmatpush1.msra.mxu0 0.0
    %2177 = vmatprep.subr.mxu0 0.0
    %2178 = vmatpush1.msra.mxu0 0.0
    %2179 = vmatprep.subr.mxu0 0.0
    %2180 = vmatpush1.msra.mxu0 0.0
    %2181 = vmatprep.subr.mxu0 0.0
    %2182 = vmatpush1.msra.mxu0 0.0
    %2183 = vmatprep.subr.mxu0 0.0
    %2184 = vmatpush1.msra.mxu0 0.0
    %2185 = vmatprep.subr.mxu0 0.0
    %2186 = vmatpush1.msra.mxu0 0.0
    %2187 = vmatprep.subr.mxu0 0.0
    %2188 = vmatpush1.msra.mxu0 0.0
    %2189 = vmatprep.subr.mxu0 0.0
    %2190 = vmatpush1.msra.mxu0 0.0
    %2191 = vmatprep.subr.mxu0 0.0
    %2192 = vmatpush1.msra.mxu0 0.0
    %2193 = vmatprep.subr.mxu0 0.0
    %2194 = vmatpush1.msra.mxu0 0.0
    %2195 = vmatprep.subr.mxu0 0.0
    %2196 = vmatpush1.msra.mxu0 0.0
    %2197 = vmatprep.subr.mxu0 0.0
    %2198 = vmatpush1.msra.mxu0 0.0
    %2199 = vmatprep.subr.mxu0 0.0
    %2200 = vmatpush1.msra.mxu0 0.0
    %2201 = vmatprep.subr.mxu0 0.0
    %2202 = vmatpush1.msra.mxu0 0.0
    %2203 = vmatprep.subr.mxu0 0.0
    %2204 = vmatpush1.msra.mxu0 0.0
    %2205 = vmatprep.subr.mxu0 0.0
    %2206 = vmatpush1.msra.mxu0 0.0
    %2207 = vmatprep.subr.mxu0 0.0
    %2208 = vmatpush1.msra.mxu0 0.0
    %2209 = vmatprep.subr.mxu0 0.0
    %2210 = vmatpush1.msra.mxu0 0.0
    %2211 = vmatprep.subr.mxu0 0.0
    %2212 = vmatpush1.msra.mxu0 0.0
    %2213 = vmatprep.subr.mxu0 0.0
    %2214 = vmatpush1.msra.mxu0 0.0
    %2215 = vmatprep.subr.mxu0 0.0
    %2216 = vmatpush1.msra.mxu0 0.0
    %2217 = vmatprep.subr.mxu0 0.0
    %2218 = vmatpush1.msra.mxu0 0.0
    %2219 = vmatprep.subr.mxu0 0.0
    %2220 = vmatpush1.msra.mxu0 0.0
    %2221 = vmatprep.subr.mxu0 0.0
    %2222 = vmatpush1.msra.mxu0 0.0
    %2223 = vmatprep.subr.mxu0 0.0
    %2224 = vmatpush1.msra.mxu0 0.0
    %2225 = vmatprep.subr.mxu0 0.0
    %2226 = vmatpush1.msra.mxu0 0.0
    %2227 = vmatprep.subr.mxu0 0.0
    %2228 = vmatpush1.msra.mxu0 0.0
    %2229 = vmatprep.mubr.f32.mxu0 0.0
    %2230 = vmatmul.mubr.f32.gmra.mrb[0].mxu0 %v2093
    %v2231 = vpop.f32.mrb[0].mxu0
    %v2232 = vadd.f32 %v342, %v2231
    %v2233 = vpop.f32.mrb[0].mxu0
    %2234 = vdwg.mxu0
    %2235 = vmatprep.subr.mxu0 0.0
    %2236 = vmatpush1.msra.mxu0 %v249
    %2237 = vmatprep.subr.mxu0 0.0
    %2238 = vmatpush1.msra.mxu0 %v250
    %2239 = vmatprep.subr.mxu0 0.0
    %2240 = vmatpush1.msra.mxu0 %v251
    %2241 = vmatprep.subr.mxu0 0.0
    %2242 = vmatpush1.msra.mxu0 %v252
    %2243 = vmatprep.subr.mxu0 0.0
    %2244 = vmatpush1.msra.mxu0 0.0
    %2245 = vmatprep.subr.mxu0 0.0
    %2246 = vmatpush1.msra.mxu0 0.0
    %2247 = vmatprep.subr.mxu0 0.0
    %2248 = vmatpush1.msra.mxu0 0.0
    %2249 = vmatprep.subr.mxu0 0.0
    %2250 = vmatpush1.msra.mxu0 0.0
    %2251 = vmatprep.subr.mxu0 0.0
    %2252 = vmatpush1.msra.mxu0 0.0
    %2253 = vmatprep.subr.mxu0 0.0
    %2254 = vmatpush1.msra.mxu0 0.0
    %2255 = vmatprep.subr.mxu0 0.0
    %2256 = vmatpush1.msra.mxu0 0.0
    %2257 = vmatprep.subr.mxu0 0.0
    %2258 = vmatpush1.msra.mxu0 0.0
    %2259 = vmatprep.subr.mxu0 0.0
    %2260 = vmatpush1.msra.mxu0 0.0
    %2261 = vmatprep.subr.mxu0 0.0
    %2262 = vmatpush1.msra.mxu0 0.0
    %2263 = vmatprep.subr.mxu0 0.0
    %2264 = vmatpush1.msra.mxu0 0.0
    %2265 = vmatprep.subr.mxu0 0.0
    %2266 = vmatpush1.msra.mxu0 0.0
    %2267 = vmatprep.subr.mxu0 0.0
    %2268 = vmatpush1.msra.mxu0 0.0
    %2269 = vmatprep.subr.mxu0 0.0
    %2270 = vmatpush1.msra.mxu0 0.0
    %2271 = vmatprep.subr.mxu0 0.0
    %2272 = vmatpush1.msra.mxu0 0.0
    %2273 = vmatprep.subr.mxu0 0.0
    %2274 = vmatpush1.msra.mxu0 0.0
    %2275 = vmatprep.subr.mxu0 0.0
    %2276 = vmatpush1.msra.mxu0 0.0
    %2277 = vmatprep.subr.mxu0 0.0
    %2278 = vmatpush1.msra.mxu0 0.0
    %2279 = vmatprep.subr.mxu0 0.0
    %2280 = vmatpush1.msra.mxu0 0.0
    %2281 = vmatprep.subr.mxu0 0.0
    %2282 = vmatpush1.msra.mxu0 0.0
    %2283 = vmatprep.subr.mxu0 0.0
    %2284 = vmatpush1.msra.mxu0 0.0
    %2285 = vmatprep.subr.mxu0 0.0
    %2286 = vmatpush1.msra.mxu0 0.0
    %2287 = vmatprep.subr.mxu0 0.0
    %2288 = vmatpush1.msra.mxu0 0.0
    %2289 = vmatprep.subr.mxu0 0.0
    %2290 = vmatpush1.msra.mxu0 0.0
    %2291 = vmatprep.subr.mxu0 0.0
    %2292 = vmatpush1.msra.mxu0 0.0
    %2293 = vmatprep.subr.mxu0 0.0
    %2294 = vmatpush1.msra.mxu0 0.0
    %2295 = vmatprep.subr.mxu0 0.0
    %2296 = vmatpush1.msra.mxu0 0.0
    %2297 = vmatprep.subr.mxu0 0.0
    %2298 = vmatpush1.msra.mxu0 0.0
    %2299 = vmatprep.mubr.f32.mxu0 0.0
    %2300 = vmatmul.mubr.f32.gmra.mrb[0].mxu0 %v2093
    %v2301 = vpop.f32.mrb[0].mxu0
    %v2302 = vadd.f32 %v418, %v2301
    %v2303 = vpop.f32.mrb[0].mxu0
    %2304 = vdwg.mxu0
    %v2306 = vrot.slane %v2162, 2
    %v2308 = vadd.f32 %v236, %v2306
    %v2309 = vxor.u32 %v2308, 2147483648
    %v2310 = vmul.f32 %v2309, 1.442695
    %v2311 = vpow.pop %v2310
    %v2312 = vadd.f32 %v2311, 1.0
    %v2313 = vrcp.pop %v2312
    %v2314 = vmul.f32 1.0, %v2313
    %v2316 = vrot.slane %v2232, 2
    %2317 = vrot.lane.b32.xlu0 %v2316, 32
    %v2318 = vpop.permute.xlu0 %2317
    %v2320 = vadd.f32 %v236, %v2318
    %v2321 = vxor.u32 %v2320, 2147483648
    %v2322 = vmul.f32 %v2321, 1.442695
    %v2323 = vpow.pop %v2322
    %v2324 = vadd.f32 %v2323, 1.0
    %v2325 = vrcp.pop %v2324
    %v2326 = vmul.f32 1.0, %v2325
    %v2328 = vrot.slane %v2302, 2
    %v2330 = vmul.f32 %v2314, %v2328
    %2332 = vrot.lane.b32.xlu0 %v2330, 64
    %v2333 = vpop.permute.xlu0 %2332
    %v2335 = vadd.f32 %v236, %v2333
    %v2336 = vtanh.pop %v2335
    %v2337 = vsub.f32 1.0, %v2326
    %2339 = vrot.lane.b32.xlu0 %v2336, 96
    %v2340 = vpop.permute.xlu0 %2339
    %v2342 = vmul.f32 %v2337, %v2340
    %v2343 = vrot.slane %v2084, 6
    %v2345 = vmul.f32 %v2326, %v2343
    %v2346 = vadd.f32 %v2342, %v2345
    %2348 = vrot.lane.b32.xlu0 %v2346, 96
    %v2349 = vpop.permute.xlu0 %2348
    %2351 = vst.msk [vmem:[#allocation2 + $0x8] sm:$0xc0] %vm1313, %v2349
    %v2352 = vld [vmem:[#allocation2] sm:$0xff]
    %v2353 = vld [vmem:[#allocation2 + $0x8] sm:$0xff]
    %v2354 = vld [vmem:[%s5] sm:$0xff]
    %v2355 = vld [vmem:[%s5 + $0x8] sm:$0xff]
    %v2356 = vld [vmem:[%s5 + $0x10] sm:$0xff]
    %v2357 = vld [vmem:[%s5 + $0x18] sm:$0xff]
    %v2358 = vld [vmem:[%s7] sm:$0x1]
    %v2360 = vlaneseq
    %v2361 = vshrl.u32 %v2360, 7
    %v2362 = vsub.s32 0, %v2361
    %v2363 = vrot.slane %v2358, %v2362
    %v2366 = vsel %vm264, %v2352, 0
    %v2369 = vsel %vm264, %v2353, 0
    %2371 = vmatprep.subr.mxu0 0.0
    %2372 = vmatpush1.msra.mxu0 %v2354
    %2373 = vmatprep.subr.mxu0 0.0
    %2374 = vmatpush1.msra.mxu0 %v2355
    %2375 = vmatprep.subr.mxu0 0.0
    %2376 = vmatpush1.msra.mxu0 %v2356
    %2377 = vmatprep.subr.mxu0 0.0
    %2378 = vmatpush1.msra.mxu0 %v2357
    %2379 = vmatprep.subr.mxu0 0.0
    %2380 = vmatpush1.msra.mxu0 0.0
    %2381 = vmatprep.subr.mxu0 0.0
    %2382 = vmatpush1.msra.mxu0 0.0
    %2383 = vmatprep.subr.mxu0 0.0
    %2384 = vmatpush1.msra.mxu0 0.0
    %2385 = vmatprep.subr.mxu0 0.0
    %2386 = vmatpush1.msra.mxu0 0.0
    %2387 = vmatprep.subr.mxu0 0.0
    %2388 = vmatpush1.msra.mxu0 0.0
    %2389 = vmatprep.subr.mxu0 0.0
    %2390 = vmatpush1.msra.mxu0 0.0
    %2391 = vmatprep.subr.mxu0 0.0
    %2392 = vmatpush1.msra.mxu0 0.0
    %2393 = vmatprep.subr.mxu0 0.0
    %2394 = vmatpush1.msra.mxu0 0.0
    %2395 = vmatprep.subr.mxu0 0.0
    %2396 = vmatpush1.msra.mxu0 0.0
    %2397 = vmatprep.subr.mxu0 0.0
    %2398 = vmatpush1.msra.mxu0 0.0
    %2399 = vmatprep.subr.mxu0 0.0
    %2400 = vmatpush1.msra.mxu0 0.0
    %2401 = vmatprep.subr.mxu0 0.0
    %2402 = vmatpush1.msra.mxu0 0.0
    %2403 = vmatprep.subr.mxu0 0.0
    %2404 = vmatpush1.msra.mxu0 0.0
    %2405 = vmatprep.subr.mxu0 0.0
    %2406 = vmatpush1.msra.mxu0 0.0
    %2407 = vmatprep.subr.mxu0 0.0
    %2408 = vmatpush1.msra.mxu0 0.0
    %2409 = vmatprep.subr.mxu0 0.0
    %2410 = vmatpush1.msra.mxu0 0.0
    %2411 = vmatprep.subr.mxu0 0.0
    %2412 = vmatpush1.msra.mxu0 0.0
    %2413 = vmatprep.subr.mxu0 0.0
    %2414 = vmatpush1.msra.mxu0 0.0
    %2415 = vmatprep.subr.mxu0 0.0
    %2416 = vmatpush1.msra.mxu0 0.0
    %2417 = vmatprep.subr.mxu0 0.0
    %2418 = vmatpush1.msra.mxu0 0.0
    %2419 = vmatprep.subr.mxu0 0.0
    %2420 = vmatpush1.msra.mxu0 0.0
    %2421 = vmatprep.subr.mxu0 0.0
    %2422 = vmatpush1.msra.mxu0 0.0
    %2423 = vmatprep.subr.mxu0 0.0
    %2424 = vmatpush1.msra.mxu0 0.0
    %2425 = vmatprep.subr.mxu0 0.0
    %2426 = vmatpush1.msra.mxu0 0.0
    %2427 = vmatprep.subr.mxu0 0.0
    %2428 = vmatpush1.msra.mxu0 0.0
    %2429 = vmatprep.subr.mxu0 0.0
    %2430 = vmatpush1.msra.mxu0 0.0
    %2431 = vmatprep.subr.mxu0 0.0
    %2432 = vmatpush1.msra.mxu0 0.0
    %2433 = vmatprep.subr.mxu0 0.0
    %2434 = vmatpush1.msra.mxu0 0.0
    %2435 = vmatprep.mubr.f32.mxu0 0.0
    %2436 = vmatmul.mubr.f32.gmra.mrb[0].mxu0 %v2366
    %v2437 = vpop.f32.mrb[0].mxu0
    %v2438 = vadd.f32 %v2363, %v2437
    %v2439 = vpop.f32.mrb[0].mxu0
    %2440 = vmatprep.mubr.f32.mxu0 0.0
    %2441 = vmatmul.mubr.f32.gmra.mrb[0].mxu0 %v2369
    %v2442 = vpop.f32.mrb[0].mxu0
    %v2443 = vadd.f32 %v2363, %v2442
    %v2444 = vpop.f32.mrb[0].mxu0
    %2445 = vdwg.mxu0
    %v2446 = vld [vmem:[#allocation11] sm:$0xff]
    %v2447 = vld [vmem:[#allocation11 + $0x8] sm:$0xff]
    %v2448 = vld [vmem:[#allocation11 + $0x10] sm:$0xff]
    %v2449 = vld [vmem:[#allocation11 + $0x18] sm:$0xff]
    %s2450 = scalar_lea.vmem [#allocation11], 32
    %v2451 = vld [vmem:[%s2450] sm:$0xff]
    %v2452 = vld [vmem:[%s2450 + $0x8] sm:$0xff]
    %v2453 = vld [vmem:[%s2450 + $0x10] sm:$0xff]
    %v2454 = vld [vmem:[%s2450 + $0x18] sm:$0xff]
    %s2455 = scalar_lea.vmem [#allocation11], 64
    %v2456 = vld [vmem:[%s2455] sm:$0xff]
    %v2457 = vld [vmem:[%s2455 + $0x8] sm:$0xff]
    %v2458 = vld [vmem:[%s2455 + $0x10] sm:$0xff]
    %v2459 = vld [vmem:[%s2455 + $0x18] sm:$0xff]
    %v2460 = vld [vmem:[#allocation12] sm:$0x1]
    %s2461 = scalar_lea.vmem [#allocation12], 1
    %v2462 = vld [vmem:[%s2461] sm:$0x1]
    %s2463 = scalar_lea.vmem [#allocation12], 2
    %v2464 = vld [vmem:[%s2463] sm:$0x1]
    %v2466 = vlaneseq
    %v2467 = vshrl.u32 %v2466, 7
    %v2468 = vsub.s32 0, %v2467
    %v2469 = vrot.slane %v2460, %v2468
    %2471 = vmatprep.subr.mxu0 0.0
    %2472 = vmatpush1.msra.mxu0 %v2446
    %2473 = vmatprep.subr.mxu0 0.0
    %2474 = vmatpush1.msra.mxu0 %v2447
    %2475 = vmatprep.subr.mxu0 0.0
    %2476 = vmatpush1.msra.mxu0 %v2448
    %2477 = vmatprep.subr.mxu0 0.0
    %2478 = vmatpush1.msra.mxu0 %v2449
    %2479 = vmatprep.subr.mxu0 0.0
    %2480 = vmatpush1.msra.mxu0 0.0
    %2481 = vmatprep.subr.mxu0 0.0
    %2482 = vmatpush1.msra.mxu0 0.0
    %2483 = vmatprep.subr.mxu0 0.0
    %2484 = vmatpush1.msra.mxu0 0.0
    %2485 = vmatprep.subr.mxu0 0.0
    %2486 = vmatpush1.msra.mxu0 0.0
    %2487 = vmatprep.subr.mxu0 0.0
    %2488 = vmatpush1.msra.mxu0 0.0
    %2489 = vmatprep.subr.mxu0 0.0
    %2490 = vmatpush1.msra.mxu0 0.0
    %2491 = vmatprep.subr.mxu0 0.0
    %2492 = vmatpush1.msra.mxu0 0.0
    %2493 = vmatprep.subr.mxu0 0.0
    %2494 = vmatpush1.msra.mxu0 0.0
    %2495 = vmatprep.subr.mxu0 0.0
    %2496 = vmatpush1.msra.mxu0 0.0
    %2497 = vmatprep.subr.mxu0 0.0
    %2498 = vmatpush1.msra.mxu0 0.0
    %2499 = vmatprep.subr.mxu0 0.0
    %2500 = vmatpush1.msra.mxu0 0.0
    %2501 = vmatprep.subr.mxu0 0.0
    %2502 = vmatpush1.msra.mxu0 0.0
    %2503 = vmatprep.subr.mxu0 0.0
    %2504 = vmatpush1.msra.mxu0 0.0
    %2505 = vmatprep.subr.mxu0 0.0
    %2506 = vmatpush1.msra.mxu0 0.0
    %2507 = vmatprep.subr.mxu0 0.0
    %2508 = vmatpush1.msra.mxu0 0.0
    %2509 = vmatprep.subr.mxu0 0.0
    %2510 = vmatpush1.msra.mxu0 0.0
    %2511 = vmatprep.subr.mxu0 0.0
    %2512 = vmatpush1.msra.mxu0 0.0
    %2513 = vmatprep.subr.mxu0 0.0
    %2514 = vmatpush1.msra.mxu0 0.0
    %2515 = vmatprep.subr.mxu0 0.0
    %2516 = vmatpush1.msra.mxu0 0.0
    %2517 = vmatprep.subr.mxu0 0.0
    %2518 = vmatpush1.msra.mxu0 0.0
    %2519 = vmatprep.subr.mxu0 0.0
    %2520 = vmatpush1.msra.mxu0 0.0
    %2521 = vmatprep.subr.mxu0 0.0
    %2522 = vmatpush1.msra.mxu0 0.0
    %2523 = vmatprep.subr.mxu0 0.0
    %2524 = vmatpush1.msra.mxu0 0.0
    %2525 = vmatprep.subr.mxu0 0.0
    %2526 = vmatpush1.msra.mxu0 0.0
    %2527 = vmatprep.subr.mxu0 0.0
    %2528 = vmatpush1.msra.mxu0 0.0
    %2529 = vmatprep.subr.mxu0 0.0
    %2530 = vmatpush1.msra.mxu0 0.0
    %2531 = vmatprep.subr.mxu0 0.0
    %2532 = vmatpush1.msra.mxu0 0.0
    %2533 = vmatprep.subr.mxu0 0.0
    %2534 = vmatpush1.msra.mxu0 0.0
    %2535 = vmatprep.mubr.f32.mxu0 0.0
    %2536 = vmatmul.mubr.f32.gmra.mrb[0].mxu0 %v266
    %v2537 = vpop.f32.mrb[0].mxu0
    %v2538 = vadd.f32 %v2469, %v2537
    %v2539 = vpop.f32.mrb[0].mxu0
    %2540 = vdwg.mxu0
    %v2542 = vlaneseq
    %v2543 = vshrl.u32 %v2542, 7
    %v2544 = vsub.s32 0, %v2543
    %v2545 = vrot.slane %v2462, %v2544
    %2547 = vmatprep.subr.mxu0 0.0
    %2548 = vmatpush1.msra.mxu0 %v2451
    %2549 = vmatprep.subr.mxu0 0.0
    %2550 = vmatpush1.msra.mxu0 %v2452
    %2551 = vmatprep.subr.mxu0 0.0
    %2552 = vmatpush1.msra.mxu0 %v2453
    %2553 = vmatprep.subr.mxu0 0.0
    %2554 = vmatpush1.msra.mxu0 %v2454
    %2555 = vmatprep.subr.mxu0 0.0
    %2556 = vmatpush1.msra.mxu0 0.0
    %2557 = vmatprep.subr.mxu0 0.0
    %2558 = vmatpush1.msra.mxu0 0.0
    %2559 = vmatprep.subr.mxu0 0.0
    %2560 = vmatpush1.msra.mxu0 0.0
    %2561 = vmatprep.subr.mxu0 0.0
    %2562 = vmatpush1.msra.mxu0 0.0
    %2563 = vmatprep.subr.mxu0 0.0
    %2564 = vmatpush1.msra.mxu0 0.0
    %2565 = vmatprep.subr.mxu0 0.0
    %2566 = vmatpush1.msra.mxu0 0.0
    %2567 = vmatprep.subr.mxu0 0.0
    %2568 = vmatpush1.msra.mxu0 0.0
    %2569 = vmatprep.subr.mxu0 0.0
    %2570 = vmatpush1.msra.mxu0 0.0
    %2571 = vmatprep.subr.mxu0 0.0
    %2572 = vmatpush1.msra.mxu0 0.0
    %2573 = vmatprep.subr.mxu0 0.0
    %2574 = vmatpush1.msra.mxu0 0.0
    %2575 = vmatprep.subr.mxu0 0.0
    %2576 = vmatpush1.msra.mxu0 0.0
    %2577 = vmatprep.subr.mxu0 0.0
    %2578 = vmatpush1.msra.mxu0 0.0
    %2579 = vmatprep.subr.mxu0 0.0
    %2580 = vmatpush1.msra.mxu0 0.0
    %2581 = vmatprep.subr.mxu0 0.0
    %2582 = vmatpush1.msra.mxu0 0.0
    %2583 = vmatprep.subr.mxu0 0.0
    %2584 = vmatpush1.msra.mxu0 0.0
    %2585 = vmatprep.subr.mxu0 0.0
    %2586 = vmatpush1.msra.mxu0 0.0
    %2587 = vmatprep.subr.mxu0 0.0
    %2588 = vmatpush1.msra.mxu0 0.0
    %2589 = vmatprep.subr.mxu0 0.0
    %2590 = vmatpush1.msra.mxu0 0.0
    %2591 = vmatprep.subr.mxu0 0.0
    %2592 = vmatpush1.msra.mxu0 0.0
    %2593 = vmatprep.subr.mxu0 0.0
    %2594 = vmatpush1.msra.mxu0 0.0
    %2595 = vmatprep.subr.mxu0 0.0
    %2596 = vmatpush1.msra.mxu0 0.0
    %2597 = vmatprep.subr.mxu0 0.0
    %2598 = vmatpush1.msra.mxu0 0.0
    %2599 = vmatprep.subr.mxu0 0.0
    %2600 = vmatpush1.msra.mxu0 0.0
    %2601 = vmatprep.subr.mxu0 0.0
    %2602 = vmatpush1.msra.mxu0 0.0
    %2603 = vmatprep.subr.mxu0 0.0
    %2604 = vmatpush1.msra.mxu0 0.0
    %2605 = vmatprep.subr.mxu0 0.0
    %2606 = vmatpush1.msra.mxu0 0.0
    %2607 = vmatprep.subr.mxu0 0.0
    %2608 = vmatpush1.msra.mxu0 0.0
    %2609 = vmatprep.subr.mxu0 0.0
    %2610 = vmatpush1.msra.mxu0 0.0
    %2611 = vmatprep.mubr.f32.mxu0 0.0
    %2612 = vmatmul.mubr.f32.gmra.mrb[0].mxu0 %v266
    %v2613 = vpop.f32.mrb[0].mxu0
    %v2614 = vadd.f32 %v2545, %v2613
    %v2615 = vpop.f32.mrb[0].mxu0
    %2616 = vdwg.mxu0
    %v2618 = vlaneseq
    %v2619 = vshrl.u32 %v2618, 7
    %v2620 = vsub.s32 0, %v2619
    %v2621 = vrot.slane %v2464, %v2620
    %2623 = vmatprep.subr.mxu0 0.0
    %2624 = vmatpush1.msra.mxu0 %v2456
    %2625 = vmatprep.subr.mxu0 0.0
    %2626 = vmatpush1.msra.mxu0 %v2457
    %2627 = vmatprep.subr.mxu0 0.0
    %2628 = vmatpush1.msra.mxu0 %v2458
    %2629 = vmatprep.subr.mxu0 0.0
    %2630 = vmatpush1.msra.mxu0 %v2459
    %2631 = vmatprep.subr.mxu0 0.0
    %2632 = vmatpush1.msra.mxu0 0.0
    %2633 = vmatprep.subr.mxu0 0.0
    %2634 = vmatpush1.msra.mxu0 0.0
    %2635 = vmatprep.subr.mxu0 0.0
    %2636 = vmatpush1.msra.mxu0 0.0
    %2637 = vmatprep.subr.mxu0 0.0
    %2638 = vmatpush1.msra.mxu0 0.0
    %2639 = vmatprep.subr.mxu0 0.0
    %2640 = vmatpush1.msra.mxu0 0.0
    %2641 = vmatprep.subr.mxu0 0.0
    %2642 = vmatpush1.msra.mxu0 0.0
    %2643 = vmatprep.subr.mxu0 0.0
    %2644 = vmatpush1.msra.mxu0 0.0
    %2645 = vmatprep.subr.mxu0 0.0
    %2646 = vmatpush1.msra.mxu0 0.0
    %2647 = vmatprep.subr.mxu0 0.0
    %2648 = vmatpush1.msra.mxu0 0.0
    %2649 = vmatprep.subr.mxu0 0.0
    %2650 = vmatpush1.msra.mxu0 0.0
    %2651 = vmatprep.subr.mxu0 0.0
    %2652 = vmatpush1.msra.mxu0 0.0
    %2653 = vmatprep.subr.mxu0 0.0
    %2654 = vmatpush1.msra.mxu0 0.0
    %2655 = vmatprep.subr.mxu0 0.0
    %2656 = vmatpush1.msra.mxu0 0.0
    %2657 = vmatprep.subr.mxu0 0.0
    %2658 = vmatpush1.msra.mxu0 0.0
    %2659 = vmatprep.subr.mxu0 0.0
    %2660 = vmatpush1.msra.mxu0 0.0
    %2661 = vmatprep.subr.mxu0 0.0
    %2662 = vmatpush1.msra.mxu0 0.0
    %2663 = vmatprep.subr.mxu0 0.0
    %2664 = vmatpush1.msra.mxu0 0.0
    %2665 = vmatprep.subr.mxu0 0.0
    %2666 = vmatpush1.msra.mxu0 0.0
    %2667 = vmatprep.subr.mxu0 0.0
    %2668 = vmatpush1.msra.mxu0 0.0
    %2669 = vmatprep.subr.mxu0 0.0
    %2670 = vmatpush1.msra.mxu0 0.0
    %2671 = vmatprep.subr.mxu0 0.0
    %2672 = vmatpush1.msra.mxu0 0.0
    %2673 = vmatprep.subr.mxu0 0.0
    %2674 = vmatpush1.msra.mxu0 0.0
    %2675 = vmatprep.subr.mxu0 0.0
    %2676 = vmatpush1.msra.mxu0 0.0
    %2677 = vmatprep.subr.mxu0 0.0
    %2678 = vmatpush1.msra.mxu0 0.0
    %2679 = vmatprep.subr.mxu0 0.0
    %2680 = vmatpush1.msra.mxu0 0.0
    %2681 = vmatprep.subr.mxu0 0.0
    %2682 = vmatpush1.msra.mxu0 0.0
    %2683 = vmatprep.subr.mxu0 0.0
    %2684 = vmatpush1.msra.mxu0 0.0
    %2685 = vmatprep.subr.mxu0 0.0
    %2686 = vmatpush1.msra.mxu0 0.0
    %2687 = vmatprep.mubr.f32.mxu0 0.0
    %2688 = vmatmul.mubr.f32.gmra.mrb[0].mxu0 %v266
    %v2689 = vpop.f32.mrb[0].mxu0
    %v2690 = vadd.f32 %v2621, %v2689
    %v2691 = vpop.f32.mrb[0].mxu0
    %2692 = vdwg.mxu0
    %v2693 = vadd.f32 %v2438, %v2538
    %v2694 = vxor.u32 %v2693, 2147483648
    %v2695 = vmul.f32 %v2694, 1.442695
    %v2696 = vpow.pop %v2695
    %v2697 = vadd.f32 %v2696, 1.0
    %v2698 = vrcp.pop %v2697
    %v2699 = vmul.f32 1.0, %v2698
    %2701 = vrot.lane.b32.xlu0 %v2614, 32
    %v2702 = vpop.permute.xlu0 %2701
    %v2704 = vadd.f32 %v2438, %v2702
    %v2705 = vxor.u32 %v2704, 2147483648
    %v2706 = vmul.f32 %v2705, 1.442695
    %v2707 = vpow.pop %v2706
    %v2708 = vadd.f32 %v2707, 1.0
    %v2709 = vrcp.pop %v2708
    %v2710 = vmul.f32 1.0, %v2709
    %v2711 = vmul.f32 %v2699, %v2690
    %2713 = vrot.lane.b32.xlu0 %v2711, 64
    %v2714 = vpop.permute.xlu0 %2713
    %v2716 = vadd.f32 %v2438, %v2714
    %v2717 = vtanh.pop %v2716
    %v2718 = vsub.f32 1.0, %v2710
    %2720 = vrot.lane.b32.xlu0 %v2717, 96
    %v2721 = vpop.permute.xlu0 %2720
    %v2723 = vmul.f32 %v2718, %v2721
    %v2724 = vmul.f32 %v2710, 0.0
    %v2725 = vadd.f32 %v2723, %v2724
    %2727 = vrot.lane.b32.xlu0 %v2725, 96
    %v2728 = vpop.permute.xlu0 %2727
    %2730 = vst.msk [vmem:[#allocation2] sm:$0x3] %vm527, %v2728
    %v2731 = vsel %vm264, %v2728, 0
    %2733 = vmatprep.subr.mxu0 0.0
    %2734 = vmatpush1.msra.mxu0 %v2446
    %2735 = vmatprep.subr.mxu0 0.0
    %2736 = vmatpush1.msra.mxu0 %v2447
    %2737 = vmatprep.subr.mxu0 0.0
    %2738 = vmatpush1.msra.mxu0 %v2448
    %2739 = vmatprep.subr.mxu0 0.0
    %2740 = vmatpush1.msra.mxu0 %v2449
    %2741 = vmatprep.subr.mxu0 0.0
    %2742 = vmatpush1.msra.mxu0 0.0
    %2743 = vmatprep.subr.mxu0 0.0
    %2744 = vmatpush1.msra.mxu0 0.0
    %2745 = vmatprep.subr.mxu0 0.0
    %2746 = vmatpush1.msra.mxu0 0.0
    %2747 = vmatprep.subr.mxu0 0.0
    %2748 = vmatpush1.msra.mxu0 0.0
    %2749 = vmatprep.subr.mxu0 0.0
    %2750 = vmatpush1.msra.mxu0 0.0
    %2751 = vmatprep.subr.mxu0 0.0
    %2752 = vmatpush1.msra.mxu0 0.0
    %2753 = vmatprep.subr.mxu0 0.0
    %2754 = vmatpush1.msra.mxu0 0.0
    %2755 = vmatprep.subr.mxu0 0.0
    %2756 = vmatpush1.msra.mxu0 0.0
    %2757 = vmatprep.subr.mxu0 0.0
    %2758 = vmatpush1.msra.mxu0 0.0
    %2759 = vmatprep.subr.mxu0 0.0
    %2760 = vmatpush1.msra.mxu0 0.0
    %2761 = vmatprep.subr.mxu0 0.0
    %2762 = vmatpush1.msra.mxu0 0.0
    %2763 = vmatprep.subr.mxu0 0.0
    %2764 = vmatpush1.msra.mxu0 0.0
    %2765 = vmatprep.subr.mxu0 0.0
    %2766 = vmatpush1.msra.mxu0 0.0
    %2767 = vmatprep.subr.mxu0 0.0
    %2768 = vmatpush1.msra.mxu0 0.0
    %2769 = vmatprep.subr.mxu0 0.0
    %2770 = vmatpush1.msra.mxu0 0.0
    %2771 = vmatprep.subr.mxu0 0.0
    %2772 = vmatpush1.msra.mxu0 0.0
    %2773 = vmatprep.subr.mxu0 0.0
    %2774 = vmatpush1.msra.mxu0 0.0
    %2775 = vmatprep.subr.mxu0 0.0
    %2776 = vmatpush1.msra.mxu0 0.0
    %2777 = vmatprep.subr.mxu0 0.0
    %2778 = vmatpush1.msra.mxu0 0.0
    %2779 = vmatprep.subr.mxu0 0.0
    %2780 = vmatpush1.msra.mxu0 0.0
    %2781 = vmatprep.subr.mxu0 0.0
    %2782 = vmatpush1.msra.mxu0 0.0
    %2783 = vmatprep.subr.mxu0 0.0
    %2784 = vmatpush1.msra.mxu0 0.0
    %2785 = vmatprep.subr.mxu0 0.0
    %2786 = vmatpush1.msra.mxu0 0.0
    %2787 = vmatprep.subr.mxu0 0.0
    %2788 = vmatpush1.msra.mxu0 0.0
    %2789 = vmatprep.subr.mxu0 0.0
    %2790 = vmatpush1.msra.mxu0 0.0
    %2791 = vmatprep.subr.mxu0 0.0
    %2792 = vmatpush1.msra.mxu0 0.0
    %2793 = vmatprep.subr.mxu0 0.0
    %2794 = vmatpush1.msra.mxu0 0.0
    %2795 = vmatprep.subr.mxu0 0.0
    %2796 = vmatpush1.msra.mxu0 0.0
    %2797 = vmatprep.mubr.f32.mxu0 0.0
    %2798 = vmatmul.mubr.f32.gmra.mrb[0].mxu0 %v2731
    %v2799 = vpop.f32.mrb[0].mxu0
    %v2800 = vadd.f32 %v2469, %v2799
    %v2801 = vpop.f32.mrb[0].mxu0
    %2802 = vdwg.mxu0
    %2803 = vmatprep.subr.mxu0 0.0
    %2804 = vmatpush1.msra.mxu0 %v2451
    %2805 = vmatprep.subr.mxu0 0.0
    %2806 = vmatpush1.msra.mxu0 %v2452
    %2807 = vmatprep.subr.mxu0 0.0
    %2808 = vmatpush1.msra.mxu0 %v2453
    %2809 = vmatprep.subr.mxu0 0.0
    %2810 = vmatpush1.msra.mxu0 %v2454
    %2811 = vmatprep.subr.mxu0 0.0
    %2812 = vmatpush1.msra.mxu0 0.0
    %2813 = vmatprep.subr.mxu0 0.0
    %2814 = vmatpush1.msra.mxu0 0.0
    %2815 = vmatprep.subr.mxu0 0.0
    %2816 = vmatpush1.msra.mxu0 0.0
    %2817 = vmatprep.subr.mxu0 0.0
    %2818 = vmatpush1.msra.mxu0 0.0
    %2819 = vmatprep.subr.mxu0 0.0
    %2820 = vmatpush1.msra.mxu0 0.0
    %2821 = vmatprep.subr.mxu0 0.0
    %2822 = vmatpush1.msra.mxu0 0.0
    %2823 = vmatprep.subr.mxu0 0.0
    %2824 = vmatpush1.msra.mxu0 0.0
    %2825 = vmatprep.subr.mxu0 0.0
    %2826 = vmatpush1.msra.mxu0 0.0
    %2827 = vmatprep.subr.mxu0 0.0
    %2828 = vmatpush1.msra.mxu0 0.0
    %2829 = vmatprep.subr.mxu0 0.0
    %2830 = vmatpush1.msra.mxu0 0.0
    %2831 = vmatprep.subr.mxu0 0.0
    %2832 = vmatpush1.msra.mxu0 0.0
    %2833 = vmatprep.subr.mxu0 0.0
    %2834 = vmatpush1.msra.mxu0 0.0
    %2835 = vmatprep.subr.mxu0 0.0
    %2836 = vmatpush1.msra.mxu0 0.0
    %2837 = vmatprep.subr.mxu0 0.0
    %2838 = vmatpush1.msra.mxu0 0.0
    %2839 = vmatprep.subr.mxu0 0.0
    %2840 = vmatpush1.msra.mxu0 0.0
    %2841 = vmatprep.subr.mxu0 0.0
    %2842 = vmatpush1.msra.mxu0 0.0
    %2843 = vmatprep.subr.mxu0 0.0
    %2844 = vmatpush1.msra.mxu0 0.0
    %2845 = vmatprep.subr.mxu0 0.0
    %2846 = vmatpush1.msra.mxu0 0.0
    %2847 = vmatprep.subr.mxu0 0.0
    %2848 = vmatpush1.msra.mxu0 0.0
    %2849 = vmatprep.subr.mxu0 0.0
    %2850 = vmatpush1.msra.mxu0 0.0
    %2851 = vmatprep.subr.mxu0 0.0
    %2852 = vmatpush1.msra.mxu0 0.0
    %2853 = vmatprep.subr.mxu0 0.0
    %2854 = vmatpush1.msra.mxu0 0.0
    %2855 = vmatprep.subr.mxu0 0.0
    %2856 = vmatpush1.msra.mxu0 0.0
    %2857 = vmatprep.subr.mxu0 0.0
    %2858 = vmatpush1.msra.mxu0 0.0
    %2859 = vmatprep.subr.mxu0 0.0
    %2860 = vmatpush1.msra.mxu0 0.0
    %2861 = vmatprep.subr.mxu0 0.0
    %2862 = vmatpush1.msra.mxu0 0.0
    %2863 = vmatprep.subr.mxu0 0.0
    %2864 = vmatpush1.msra.mxu0 0.0
    %2865 = vmatprep.subr.mxu0 0.0
    %2866 = vmatpush1.msra.mxu0 0.0
    %2867 = vmatprep.mubr.f32.mxu0 0.0
    %2868 = vmatmul.mubr.f32.gmra.mrb[0].mxu0 %v2731
    %v2869 = vpop.f32.mrb[0].mxu0
    %v2870 = vadd.f32 %v2545, %v2869
    %v2871 = vpop.f32.mrb[0].mxu0
    %2872 = vdwg.mxu0
    %2873 = vmatprep.subr.mxu0 0.0
    %2874 = vmatpush1.msra.mxu0 %v2456
    %2875 = vmatprep.subr.mxu0 0.0
    %2876 = vmatpush1.msra.mxu0 %v2457
    %2877 = vmatprep.subr.mxu0 0.0
    %2878 = vmatpush1.msra.mxu0 %v2458
    %2879 = vmatprep.subr.mxu0 0.0
    %2880 = vmatpush1.msra.mxu0 %v2459
    %2881 = vmatprep.subr.mxu0 0.0
    %2882 = vmatpush1.msra.mxu0 0.0
    %2883 = vmatprep.subr.mxu0 0.0
    %2884 = vmatpush1.msra.mxu0 0.0
    %2885 = vmatprep.subr.mxu0 0.0
    %2886 = vmatpush1.msra.mxu0 0.0
    %2887 = vmatprep.subr.mxu0 0.0
    %2888 = vmatpush1.msra.mxu0 0.0
    %2889 = vmatprep.subr.mxu0 0.0
    %2890 = vmatpush1.msra.mxu0 0.0
    %2891 = vmatprep.subr.mxu0 0.0
    %2892 = vmatpush1.msra.mxu0 0.0
    %2893 = vmatprep.subr.mxu0 0.0
    %2894 = vmatpush1.msra.mxu0 0.0
    %2895 = vmatprep.subr.mxu0 0.0
    %2896 = vmatpush1.msra.mxu0 0.0
    %2897 = vmatprep.subr.mxu0 0.0
    %2898 = vmatpush1.msra.mxu0 0.0
    %2899 = vmatprep.subr.mxu0 0.0
    %2900 = vmatpush1.msra.mxu0 0.0
    %2901 = vmatprep.subr.mxu0 0.0
    %2902 = vmatpush1.msra.mxu0 0.0
    %2903 = vmatprep.subr.mxu0 0.0
    %2904 = vmatpush1.msra.mxu0 0.0
    %2905 = vmatprep.subr.mxu0 0.0
    %2906 = vmatpush1.msra.mxu0 0.0
    %2907 = vmatprep.subr.mxu0 0.0
    %2908 = vmatpush1.msra.mxu0 0.0
    %2909 = vmatprep.subr.mxu0 0.0
    %2910 = vmatpush1.msra.mxu0 0.0
    %2911 = vmatprep.subr.mxu0 0.0
    %2912 = vmatpush1.msra.mxu0 0.0
    %2913 = vmatprep.subr.mxu0 0.0
    %2914 = vmatpush1.msra.mxu0 0.0
    %2915 = vmatprep.subr.mxu0 0.0
    %2916 = vmatpush1.msra.mxu0 0.0
    %2917 = vmatprep.subr.mxu0 0.0
    %2918 = vmatpush1.msra.mxu0 0.0
    %2919 = vmatprep.subr.mxu0 0.0
    %2920 = vmatpush1.msra.mxu0 0.0
    %2921 = vmatprep.subr.mxu0 0.0
    %2922 = vmatpush1.msra.mxu0 0.0
    %2923 = vmatprep.subr.mxu0 0.0
    %2924 = vmatpush1.msra.mxu0 0.0
    %2925 = vmatprep.subr.mxu0 0.0
    %2926 = vmatpush1.msra.mxu0 0.0
    %2927 = vmatprep.subr.mxu0 0.0
    %2928 = vmatpush1.msra.mxu0 0.0
    %2929 = vmatprep.subr.mxu0 0.0
    %2930 = vmatpush1.msra.mxu0 0.0
    %2931 = vmatprep.subr.mxu0 0.0
    %2932 = vmatpush1.msra.mxu0 0.0
    %2933 = vmatprep.subr.mxu0 0.0
    %2934 = vmatpush1.msra.mxu0 0.0
    %2935 = vmatprep.subr.mxu0 0.0
    %2936 = vmatpush1.msra.mxu0 0.0
    %2937 = vmatprep.mubr.f32.mxu0 0.0
    %2938 = vmatmul.mubr.f32.gmra.mrb[0].mxu0 %v2731
    %v2939 = vpop.f32.mrb[0].mxu0
    %v2940 = vadd.f32 %v2621, %v2939
    %v2941 = vpop.f32.mrb[0].mxu0
    %2942 = vdwg.mxu0
    %v2944 = vrot.slane %v2800, 6
    %v2946 = vadd.f32 %v2438, %v2944
    %v2947 = vxor.u32 %v2946, 2147483648
    %v2948 = vmul.f32 %v2947, 1.442695
    %v2949 = vpow.pop %v2948
    %v2950 = vadd.f32 %v2949, 1.0
    %v2951 = vrcp.pop %v2950
    %v2952 = vmul.f32 1.0, %v2951
    %v2954 = vrot.slane %v2870, 6
    %2955 = vrot.lane.b32.xlu0 %v2954, 32
    %v2956 = vpop.permute.xlu0 %2955
    %v2958 = vadd.f32 %v2438, %v2956
    %v2959 = vxor.u32 %v2958, 2147483648
    %v2960 = vmul.f32 %v2959, 1.442695
    %v2961 = vpow.pop %v2960
    %v2962 = vadd.f32 %v2961, 1.0
    %v2963 = vrcp.pop %v2962
    %v2964 = vmul.f32 1.0, %v2963
    %v2966 = vrot.slane %v2940, 6
    %v2968 = vmul.f32 %v2952, %v2966
    %2970 = vrot.lane.b32.xlu0 %v2968, 64
    %v2971 = vpop.permute.xlu0 %2970
    %v2973 = vadd.f32 %v2438, %v2971
    %v2974 = vtanh.pop %v2973
    %v2975 = vsub.f32 1.0, %v2964
    %2977 = vrot.lane.b32.xlu0 %v2974, 96
    %v2978 = vpop.permute.xlu0 %2977
    %v2980 = vmul.f32 %v2975, %v2978
    %v2981 = vrot.slane %v2725, 6
    %v2983 = vmul.f32 %v2964, %v2981
    %v2984 = vadd.f32 %v2980, %v2983
    %2986 = vrot.lane.b32.xlu0 %v2984, 96
    %v2987 = vpop.permute.xlu0 %2986
    %2989 = vst.msk [vmem:[#allocation2] sm:$0xc] %vm787, %v2987
    %v2990 = vrot.slane %v2984, 2
    %2991 = vrot.lane.b32.xlu0 %v2990, 96
    %v2992 = vpop.permute.xlu0 %2991
    %v2993 = vsel %vm264, %v2992, 0
    %2995 = vmatprep.subr.mxu0 0.0
    %2996 = vmatpush1.msra.mxu0 %v2446
    %2997 = vmatprep.subr.mxu0 0.0
    %2998 = vmatpush1.msra.mxu0 %v2447
    %2999 = vmatprep.subr.mxu0 0.0
    %3000 = vmatpush1.msra.mxu0 %v2448
    %3001 = vmatprep.subr.mxu0 0.0
    %3002 = vmatpush1.msra.mxu0 %v2449
    %3003 = vmatprep.subr.mxu0 0.0
    %3004 = vmatpush1.msra.mxu0 0.0
    %3005 = vmatprep.subr.mxu0 0.0
    %3006 = vmatpush1.msra.mxu0 0.0
    %3007 = vmatprep.subr.mxu0 0.0
    %3008 = vmatpush1.msra.mxu0 0.0
    %3009 = vmatprep.subr.mxu0 0.0
    %3010 = vmatpush1.msra.mxu0 0.0
    %3011 = vmatprep.subr.mxu0 0.0
    %3012 = vmatpush1.msra.mxu0 0.0
    %3013 = vmatprep.subr.mxu0 0.0
    %3014 = vmatpush1.msra.mxu0 0.0
    %3015 = vmatprep.subr.mxu0 0.0
    %3016 = vmatpush1.msra.mxu0 0.0
    %3017 = vmatprep.subr.mxu0 0.0
    %3018 = vmatpush1.msra.mxu0 0.0
    %3019 = vmatprep.subr.mxu0 0.0
    %3020 = vmatpush1.msra.mxu0 0.0
    %3021 = vmatprep.subr.mxu0 0.0
    %3022 = vmatpush1.msra.mxu0 0.0
    %3023 = vmatprep.subr.mxu0 0.0
    %3024 = vmatpush1.msra.mxu0 0.0
    %3025 = vmatprep.subr.mxu0 0.0
    %3026 = vmatpush1.msra.mxu0 0.0
    %3027 = vmatprep.subr.mxu0 0.0
    %3028 = vmatpush1.msra.mxu0 0.0
    %3029 = vmatprep.subr.mxu0 0.0
    %3030 = vmatpush1.msra.mxu0 0.0
    %3031 = vmatprep.subr.mxu0 0.0
    %3032 = vmatpush1.msra.mxu0 0.0
    %3033 = vmatprep.subr.mxu0 0.0
    %3034 = vmatpush1.msra.mxu0 0.0
    %3035 = vmatprep.subr.mxu0 0.0
    %3036 = vmatpush1.msra.mxu0 0.0
    %3037 = vmatprep.subr.mxu0 0.0
    %3038 = vmatpush1.msra.mxu0 0.0
    %3039 = vmatprep.subr.mxu0 0.0
    %3040 = vmatpush1.msra.mxu0 0.0
    %3041 = vmatprep.subr.mxu0 0.0
    %3042 = vmatpush1.msra.mxu0 0.0
    %3043 = vmatprep.subr.mxu0 0.0
    %3044 = vmatpush1.msra.mxu0 0.0
    %3045 = vmatprep.subr.mxu0 0.0
    %3046 = vmatpush1.msra.mxu0 0.0
    %3047 = vmatprep.subr.mxu0 0.0
    %3048 = vmatpush1.msra.mxu0 0.0
    %3049 = vmatprep.subr.mxu0 0.0
    %3050 = vmatpush1.msra.mxu0 0.0
    %3051 = vmatprep.subr.mxu0 0.0
    %3052 = vmatpush1.msra.mxu0 0.0
    %3053 = vmatprep.subr.mxu0 0.0
    %3054 = vmatpush1.msra.mxu0 0.0
    %3055 = vmatprep.subr.mxu0 0.0
    %3056 = vmatpush1.msra.mxu0 0.0
    %3057 = vmatprep.subr.mxu0 0.0
    %3058 = vmatpush1.msra.mxu0 0.0
    %3059 = vmatprep.mubr.f32.mxu0 0.0
    %3060 = vmatmul.mubr.f32.gmra.mrb[0].mxu0 %v2993
    %v3061 = vpop.f32.mrb[0].mxu0
    %v3062 = vadd.f32 %v2469, %v3061
    %v3063 = vpop.f32.mrb[0].mxu0
    %3064 = vdwg.mxu0
    %3065 = vmatprep.subr.mxu0 0.0
    %3066 = vmatpush1.msra.mxu0 %v2451
    %3067 = vmatprep.subr.mxu0 0.0
    %3068 = vmatpush1.msra.mxu0 %v2452
    %3069 = vmatprep.subr.mxu0 0.0
    %3070 = vmatpush1.msra.mxu0 %v2453
    %3071 = vmatprep.subr.mxu0 0.0
    %3072 = vmatpush1.msra.mxu0 %v2454
    %3073 = vmatprep.subr.mxu0 0.0
    %3074 = vmatpush1.msra.mxu0 0.0
    %3075 = vmatprep.subr.mxu0 0.0
    %3076 = vmatpush1.msra.mxu0 0.0
    %3077 = vmatprep.subr.mxu0 0.0
    %3078 = vmatpush1.msra.mxu0 0.0
    %3079 = vmatprep.subr.mxu0 0.0
    %3080 = vmatpush1.msra.mxu0 0.0
    %3081 = vmatprep.subr.mxu0 0.0
    %3082 = vmatpush1.msra.mxu0 0.0
    %3083 = vmatprep.subr.mxu0 0.0
    %3084 = vmatpush1.msra.mxu0 0.0
    %3085 = vmatprep.subr.mxu0 0.0
    %3086 = vmatpush1.msra.mxu0 0.0
    %3087 = vmatprep.subr.mxu0 0.0
    %3088 = vmatpush1.msra.mxu0 0.0
    %3089 = vmatprep.subr.mxu0 0.0
    %3090 = vmatpush1.msra.mxu0 0.0
    %3091 = vmatprep.subr.mxu0 0.0
    %3092 = vmatpush1.msra.mxu0 0.0
    %3093 = vmatprep.subr.mxu0 0.0
    %3094 = vmatpush1.msra.mxu0 0.0
    %3095 = vmatprep.subr.mxu0 0.0
    %3096 = vmatpush1.msra.mxu0 0.0
    %3097 = vmatprep.subr.mxu0 0.0
    %3098 = vmatpush1.msra.mxu0 0.0
    %3099 = vmatprep.subr.mxu0 0.0
    %3100 = vmatpush1.msra.mxu0 0.0
    %3101 = vmatprep.subr.mxu0 0.0
    %3102 = vmatpush1.msra.mxu0 0.0
    %3103 = vmatprep.subr.mxu0 0.0
    %3104 = vmatpush1.msra.mxu0 0.0
    %3105 = vmatprep.subr.mxu0 0.0
    %3106 = vmatpush1.msra.mxu0 0.0
    %3107 = vmatprep.subr.mxu0 0.0
    %3108 = vmatpush1.msra.mxu0 0.0
    %3109 = vmatprep.subr.mxu0 0.0
    %3110 = vmatpush1.msra.mxu0 0.0
    %3111 = vmatprep.subr.mxu0 0.0
    %3112 = vmatpush1.msra.mxu0 0.0
    %3113 = vmatprep.subr.mxu0 0.0
    %3114 = vmatpush1.msra.mxu0 0.0
    %3115 = vmatprep.subr.mxu0 0.0
    %3116 = vmatpush1.msra.mxu0 0.0
    %3117 = vmatprep.subr.mxu0 0.0
    %3118 = vmatpush1.msra.mxu0 0.0
    %3119 = vmatprep.subr.mxu0 0.0
    %3120 = vmatpush1.msra.mxu0 0.0
    %3121 = vmatprep.subr.mxu0 0.0
    %3122 = vmatpush1.msra.mxu0 0.0
    %3123 = vmatprep.subr.mxu0 0.0
    %3124 = vmatpush1.msra.mxu0 0.0
    %3125 = vmatprep.subr.mxu0 0.0
    %3126 = vmatpush1.msra.mxu0 0.0
    %3127 = vmatprep.subr.mxu0 0.0
    %3128 = vmatpush1.msra.mxu0 0.0
    %3129 = vmatprep.mubr.f32.mxu0 0.0
    %3130 = vmatmul.mubr.f32.gmra.mrb[0].mxu0 %v2993
    %v3131 = vpop.f32.mrb[0].mxu0
    %v3132 = vadd.f32 %v2545, %v3131
    %v3133 = vpop.f32.mrb[0].mxu0
    %3134 = vdwg.mxu0
    %3135 = vmatprep.subr.mxu0 0.0
    %3136 = vmatpush1.msra.mxu0 %v2456
    %3137 = vmatprep.subr.mxu0 0.0
    %3138 = vmatpush1.msra.mxu0 %v2457
    %3139 = vmatprep.subr.mxu0 0.0
    %3140 = vmatpush1.msra.mxu0 %v2458
    %3141 = vmatprep.subr.mxu0 0.0
    %3142 = vmatpush1.msra.mxu0 %v2459
    %3143 = vmatprep.subr.mxu0 0.0
    %3144 = vmatpush1.msra.mxu0 0.0
    %3145 = vmatprep.subr.mxu0 0.0
    %3146 = vmatpush1.msra.mxu0 0.0
    %3147 = vmatprep.subr.mxu0 0.0
    %3148 = vmatpush1.msra.mxu0 0.0
    %3149 = vmatprep.subr.mxu0 0.0
    %3150 = vmatpush1.msra.mxu0 0.0
    %3151 = vmatprep.subr.mxu0 0.0
    %3152 = vmatpush1.msra.mxu0 0.0
    %3153 = vmatprep.subr.mxu0 0.0
    %3154 = vmatpush1.msra.mxu0 0.0
    %3155 = vmatprep.subr.mxu0 0.0
    %3156 = vmatpush1.msra.mxu0 0.0
    %3157 = vmatprep.subr.mxu0 0.0
    %3158 = vmatpush1.msra.mxu0 0.0
    %3159 = vmatprep.subr.mxu0 0.0
    %3160 = vmatpush1.msra.mxu0 0.0
    %3161 = vmatprep.subr.mxu0 0.0
    %3162 = vmatpush1.msra.mxu0 0.0
    %3163 = vmatprep.subr.mxu0 0.0
    %3164 = vmatpush1.msra.mxu0 0.0
    %3165 = vmatprep.subr.mxu0 0.0
    %3166 = vmatpush1.msra.mxu0 0.0
    %3167 = vmatprep.subr.mxu0 0.0
    %3168 = vmatpush1.msra.mxu0 0.0
    %3169 = vmatprep.subr.mxu0 0.0
    %3170 = vmatpush1.msra.mxu0 0.0
    %3171 = vmatprep.subr.mxu0 0.0
    %3172 = vmatpush1.msra.mxu0 0.0
    %3173 = vmatprep.subr.mxu0 0.0
    %3174 = vmatpush1.msra.mxu0 0.0
    %3175 = vmatprep.subr.mxu0 0.0
    %3176 = vmatpush1.msra.mxu0 0.0
    %3177 = vmatprep.subr.mxu0 0.0
    %3178 = vmatpush1.msra.mxu0 0.0
    %3179 = vmatprep.subr.mxu0 0.0
    %3180 = vmatpush1.msra.mxu0 0.0
    %3181 = vmatprep.subr.mxu0 0.0
    %3182 = vmatpush1.msra.mxu0 0.0
    %3183 = vmatprep.subr.mxu0 0.0
    %3184 = vmatpush1.msra.mxu0 0.0
    %3185 = vmatprep.subr.mxu0 0.0
    %3186 = vmatpush1.msra.mxu0 0.0
    %3187 = vmatprep.subr.mxu0 0.0
    %3188 = vmatpush1.msra.mxu0 0.0
    %3189 = vmatprep.subr.mxu0 0.0
    %3190 = vmatpush1.msra.mxu0 0.0
    %3191 = vmatprep.subr.mxu0 0.0
    %3192 = vmatpush1.msra.mxu0 0.0
    %3193 = vmatprep.subr.mxu0 0.0
    %3194 = vmatpush1.msra.mxu0 0.0
    %3195 = vmatprep.subr.mxu0 0.0
    %3196 = vmatpush1.msra.mxu0 0.0
    %3197 = vmatprep.subr.mxu0 0.0
    %3198 = vmatpush1.msra.mxu0 0.0
    %3199 = vmatprep.mubr.f32.mxu0 0.0
    %3200 = vmatmul.mubr.f32.gmra.mrb[0].mxu0 %v2993
    %v3201 = vpop.f32.mrb[0].mxu0
    %v3202 = vadd.f32 %v2621, %v3201
    %v3203 = vpop.f32.mrb[0].mxu0
    %3204 = vdwg.mxu0
    %v3206 = vrot.slane %v3062, 4
    %v3208 = vadd.f32 %v2438, %v3206
    %v3209 = vxor.u32 %v3208, 2147483648
    %v3210 = vmul.f32 %v3209, 1.442695
    %v3211 = vpow.pop %v3210
    %v3212 = vadd.f32 %v3211, 1.0
    %v3213 = vrcp.pop %v3212
    %v3214 = vmul.f32 1.0, %v3213
    %v3216 = vrot.slane %v3132, 4
    %3217 = vrot.lane.b32.xlu0 %v3216, 32
    %v3218 = vpop.permute.xlu0 %3217
    %v3220 = vadd.f32 %v2438, %v3218
    %v3221 = vxor.u32 %v3220, 2147483648
    %v3222 = vmul.f32 %v3221, 1.442695
    %v3223 = vpow.pop %v3222
    %v3224 = vadd.f32 %v3223, 1.0
    %v3225 = vrcp.pop %v3224
    %v3226 = vmul.f32 1.0, %v3225
    %v3228 = vrot.slane %v3202, 4
    %v3230 = vmul.f32 %v3214, %v3228
    %3232 = vrot.lane.b32.xlu0 %v3230, 64
    %v3233 = vpop.permute.xlu0 %3232
    %v3235 = vadd.f32 %v2438, %v3233
    %v3236 = vtanh.pop %v3235
    %v3237 = vsub.f32 1.0, %v3226
    %3239 = vrot.lane.b32.xlu0 %v3236, 96
    %v3240 = vpop.permute.xlu0 %3239
    %v3242 = vmul.f32 %v3237, %v3240
    %v3243 = vrot.slane %v2984, 6
    %v3245 = vmul.f32 %v3226, %v3243
    %v3246 = vadd.f32 %v3242, %v3245
    %3248 = vrot.lane.b32.xlu0 %v3246, 96
    %v3249 = vpop.permute.xlu0 %3248
    %3251 = vst.msk [vmem:[#allocation2] sm:$0x30] %vm1050, %v3249
    %v3252 = vrot.slane %v3246, 4
    %3253 = vrot.lane.b32.xlu0 %v3252, 96
    %v3254 = vpop.permute.xlu0 %3253
    %v3255 = vsel %vm264, %v3254, 0
    %3257 = vmatprep.subr.mxu0 0.0
    %3258 = vmatpush1.msra.mxu0 %v2446
    %3259 = vmatprep.subr.mxu0 0.0
    %3260 = vmatpush1.msra.mxu0 %v2447
    %3261 = vmatprep.subr.mxu0 0.0
    %3262 = vmatpush1.msra.mxu0 %v2448
    %3263 = vmatprep.subr.mxu0 0.0
    %3264 = vmatpush1.msra.mxu0 %v2449
    %3265 = vmatprep.subr.mxu0 0.0
    %3266 = vmatpush1.msra.mxu0 0.0
    %3267 = vmatprep.subr.mxu0 0.0
    %3268 = vmatpush1.msra.mxu0 0.0
    %3269 = vmatprep.subr.mxu0 0.0
    %3270 = vmatpush1.msra.mxu0 0.0
    %3271 = vmatprep.subr.mxu0 0.0
    %3272 = vmatpush1.msra.mxu0 0.0
    %3273 = vmatprep.subr.mxu0 0.0
    %3274 = vmatpush1.msra.mxu0 0.0
    %3275 = vmatprep.subr.mxu0 0.0
    %3276 = vmatpush1.msra.mxu0 0.0
    %3277 = vmatprep.subr.mxu0 0.0
    %3278 = vmatpush1.msra.mxu0 0.0
    %3279 = vmatprep.subr.mxu0 0.0
    %3280 = vmatpush1.msra.mxu0 0.0
    %3281 = vmatprep.subr.mxu0 0.0
    %3282 = vmatpush1.msra.mxu0 0.0
    %3283 = vmatprep.subr.mxu0 0.0
    %3284 = vmatpush1.msra.mxu0 0.0
    %3285 = vmatprep.subr.mxu0 0.0
    %3286 = vmatpush1.msra.mxu0 0.0
    %3287 = vmatprep.subr.mxu0 0.0
    %3288 = vmatpush1.msra.mxu0 0.0
    %3289 = vmatprep.subr.mxu0 0.0
    %3290 = vmatpush1.msra.mxu0 0.0
    %3291 = vmatprep.subr.mxu0 0.0
    %3292 = vmatpush1.msra.mxu0 0.0
    %3293 = vmatprep.subr.mxu0 0.0
    %3294 = vmatpush1.msra.mxu0 0.0
    %3295 = vmatprep.subr.mxu0 0.0
    %3296 = vmatpush1.msra.mxu0 0.0
    %3297 = vmatprep.subr.mxu0 0.0
    %3298 = vmatpush1.msra.mxu0 0.0
    %3299 = vmatprep.subr.mxu0 0.0
    %3300 = vmatpush1.msra.mxu0 0.0
    %3301 = vmatprep.subr.mxu0 0.0
    %3302 = vmatpush1.msra.mxu0 0.0
    %3303 = vmatprep.subr.mxu0 0.0
    %3304 = vmatpush1.msra.mxu0 0.0
    %3305 = vmatprep.subr.mxu0 0.0
    %3306 = vmatpush1.msra.mxu0 0.0
    %3307 = vmatprep.subr.mxu0 0.0
    %3308 = vmatpush1.msra.mxu0 0.0
    %3309 = vmatprep.subr.mxu0 0.0
    %3310 = vmatpush1.msra.mxu0 0.0
    %3311 = vmatprep.subr.mxu0 0.0
    %3312 = vmatpush1.msra.mxu0 0.0
    %3313 = vmatprep.subr.mxu0 0.0
    %3314 = vmatpush1.msra.mxu0 0.0
    %3315 = vmatprep.subr.mxu0 0.0
    %3316 = vmatpush1.msra.mxu0 0.0
    %3317 = vmatprep.subr.mxu0 0.0
    %3318 = vmatpush1.msra.mxu0 0.0
    %3319 = vmatprep.subr.mxu0 0.0
    %3320 = vmatpush1.msra.mxu0 0.0
    %3321 = vmatprep.mubr.f32.mxu0 0.0
    %3322 = vmatmul.mubr.f32.gmra.mrb[0].mxu0 %v3255
    %v3323 = vpop.f32.mrb[0].mxu0
    %v3324 = vadd.f32 %v2469, %v3323
    %v3325 = vpop.f32.mrb[0].mxu0
    %3326 = vdwg.mxu0
    %3327 = vmatprep.subr.mxu0 0.0
    %3328 = vmatpush1.msra.mxu0 %v2451
    %3329 = vmatprep.subr.mxu0 0.0
    %3330 = vmatpush1.msra.mxu0 %v2452
    %3331 = vmatprep.subr.mxu0 0.0
    %3332 = vmatpush1.msra.mxu0 %v2453
    %3333 = vmatprep.subr.mxu0 0.0
    %3334 = vmatpush1.msra.mxu0 %v2454
    %3335 = vmatprep.subr.mxu0 0.0
    %3336 = vmatpush1.msra.mxu0 0.0
    %3337 = vmatprep.subr.mxu0 0.0
    %3338 = vmatpush1.msra.mxu0 0.0
    %3339 = vmatprep.subr.mxu0 0.0
    %3340 = vmatpush1.msra.mxu0 0.0
    %3341 = vmatprep.subr.mxu0 0.0
    %3342 = vmatpush1.msra.mxu0 0.0
    %3343 = vmatprep.subr.mxu0 0.0
    %3344 = vmatpush1.msra.mxu0 0.0
    %3345 = vmatprep.subr.mxu0 0.0
    %3346 = vmatpush1.msra.mxu0 0.0
    %3347 = vmatprep.subr.mxu0 0.0
    %3348 = vmatpush1.msra.mxu0 0.0
    %3349 = vmatprep.subr.mxu0 0.0
    %3350 = vmatpush1.msra.mxu0 0.0
    %3351 = vmatprep.subr.mxu0 0.0
    %3352 = vmatpush1.msra.mxu0 0.0
    %3353 = vmatprep.subr.mxu0 0.0
    %3354 = vmatpush1.msra.mxu0 0.0
    %3355 = vmatprep.subr.mxu0 0.0
    %3356 = vmatpush1.msra.mxu0 0.0
    %3357 = vmatprep.subr.mxu0 0.0
    %3358 = vmatpush1.msra.mxu0 0.0
    %3359 = vmatprep.subr.mxu0 0.0
    %3360 = vmatpush1.msra.mxu0 0.0
    %3361 = vmatprep.subr.mxu0 0.0
    %3362 = vmatpush1.msra.mxu0 0.0
    %3363 = vmatprep.subr.mxu0 0.0
    %3364 = vmatpush1.msra.mxu0 0.0
    %3365 = vmatprep.subr.mxu0 0.0
    %3366 = vmatpush1.msra.mxu0 0.0
    %3367 = vmatprep.subr.mxu0 0.0
    %3368 = vmatpush1.msra.mxu0 0.0
    %3369 = vmatprep.subr.mxu0 0.0
    %3370 = vmatpush1.msra.mxu0 0.0
    %3371 = vmatprep.subr.mxu0 0.0
    %3372 = vmatpush1.msra.mxu0 0.0
    %3373 = vmatprep.subr.mxu0 0.0
    %3374 = vmatpush1.msra.mxu0 0.0
    %3375 = vmatprep.subr.mxu0 0.0
    %3376 = vmatpush1.msra.mxu0 0.0
    %3377 = vmatprep.subr.mxu0 0.0
    %3378 = vmatpush1.msra.mxu0 0.0
    %3379 = vmatprep.subr.mxu0 0.0
    %3380 = vmatpush1.msra.mxu0 0.0
    %3381 = vmatprep.subr.mxu0 0.0
    %3382 = vmatpush1.msra.mxu0 0.0
    %3383 = vmatprep.subr.mxu0 0.0
    %3384 = vmatpush1.msra.mxu0 0.0
    %3385 = vmatprep.subr.mxu0 0.0
    %3386 = vmatpush1.msra.mxu0 0.0
    %3387 = vmatprep.subr.mxu0 0.0
    %3388 = vmatpush1.msra.mxu0 0.0
    %3389 = vmatprep.subr.mxu0 0.0
    %3390 = vmatpush1.msra.mxu0 0.0
    %3391 = vmatprep.mubr.f32.mxu0 0.0
    %3392 = vmatmul.mubr.f32.gmra.mrb[0].mxu0 %v3255
    %v3393 = vpop.f32.mrb[0].mxu0
    %v3394 = vadd.f32 %v2545, %v3393
    %v3395 = vpop.f32.mrb[0].mxu0
    %3396 = vdwg.mxu0
    %3397 = vmatprep.subr.mxu0 0.0
    %3398 = vmatpush1.msra.mxu0 %v2456
    %3399 = vmatprep.subr.mxu0 0.0
    %3400 = vmatpush1.msra.mxu0 %v2457
    %3401 = vmatprep.subr.mxu0 0.0
    %3402 = vmatpush1.msra.mxu0 %v2458
    %3403 = vmatprep.subr.mxu0 0.0
    %3404 = vmatpush1.msra.mxu0 %v2459
    %3405 = vmatprep.subr.mxu0 0.0
    %3406 = vmatpush1.msra.mxu0 0.0
    %3407 = vmatprep.subr.mxu0 0.0
    %3408 = vmatpush1.msra.mxu0 0.0
    %3409 = vmatprep.subr.mxu0 0.0
    %3410 = vmatpush1.msra.mxu0 0.0
    %3411 = vmatprep.subr.mxu0 0.0
    %3412 = vmatpush1.msra.mxu0 0.0
    %3413 = vmatprep.subr.mxu0 0.0
    %3414 = vmatpush1.msra.mxu0 0.0
    %3415 = vmatprep.subr.mxu0 0.0
    %3416 = vmatpush1.msra.mxu0 0.0
    %3417 = vmatprep.subr.mxu0 0.0
    %3418 = vmatpush1.msra.mxu0 0.0
    %3419 = vmatprep.subr.mxu0 0.0
    %3420 = vmatpush1.msra.mxu0 0.0
    %3421 = vmatprep.subr.mxu0 0.0
    %3422 = vmatpush1.msra.mxu0 0.0
    %3423 = vmatprep.subr.mxu0 0.0
    %3424 = vmatpush1.msra.mxu0 0.0
    %3425 = vmatprep.subr.mxu0 0.0
    %3426 = vmatpush1.msra.mxu0 0.0
    %3427 = vmatprep.subr.mxu0 0.0
    %3428 = vmatpush1.msra.mxu0 0.0
    %3429 = vmatprep.subr.mxu0 0.0
    %3430 = vmatpush1.msra.mxu0 0.0
    %3431 = vmatprep.subr.mxu0 0.0
    %3432 = vmatpush1.msra.mxu0 0.0
    %3433 = vmatprep.subr.mxu0 0.0
    %3434 = vmatpush1.msra.mxu0 0.0
    %3435 = vmatprep.subr.mxu0 0.0
    %3436 = vmatpush1.msra.mxu0 0.0
    %3437 = vmatprep.subr.mxu0 0.0
    %3438 = vmatpush1.msra.mxu0 0.0
    %3439 = vmatprep.subr.mxu0 0.0
    %3440 = vmatpush1.msra.mxu0 0.0
    %3441 = vmatprep.subr.mxu0 0.0
    %3442 = vmatpush1.msra.mxu0 0.0
    %3443 = vmatprep.subr.mxu0 0.0
    %3444 = vmatpush1.msra.mxu0 0.0
    %3445 = vmatprep.subr.mxu0 0.0
    %3446 = vmatpush1.msra.mxu0 0.0
    %3447 = vmatprep.subr.mxu0 0.0
    %3448 = vmatpush1.msra.mxu0 0.0
    %3449 = vmatprep.subr.mxu0 0.0
    %3450 = vmatpush1.msra.mxu0 0.0
    %3451 = vmatprep.subr.mxu0 0.0
    %3452 = vmatpush1.msra.mxu0 0.0
    %3453 = vmatprep.subr.mxu0 0.0
    %3454 = vmatpush1.msra.mxu0 0.0
    %3455 = vmatprep.subr.mxu0 0.0
    %3456 = vmatpush1.msra.mxu0 0.0
    %3457 = vmatprep.subr.mxu0 0.0
    %3458 = vmatpush1.msra.mxu0 0.0
    %3459 = vmatprep.subr.mxu0 0.0
    %3460 = vmatpush1.msra.mxu0 0.0
    %3461 = vmatprep.mubr.f32.mxu0 0.0
    %3462 = vmatmul.mubr.f32.gmra.mrb[0].mxu0 %v3255
    %v3463 = vpop.f32.mrb[0].mxu0
    %v3464 = vadd.f32 %v2621, %v3463
    %v3465 = vpop.f32.mrb[0].mxu0
    %3466 = vdwg.mxu0
    %v3468 = vrot.slane %v3324, 2
    %v3470 = vadd.f32 %v2438, %v3468
    %v3471 = vxor.u32 %v3470, 2147483648
    %v3472 = vmul.f32 %v3471, 1.442695
    %v3473 = vpow.pop %v3472
    %v3474 = vadd.f32 %v3473, 1.0
    %v3475 = vrcp.pop %v3474
    %v3476 = vmul.f32 1.0, %v3475
    %v3478 = vrot.slane %v3394, 2
    %3479 = vrot.lane.b32.xlu0 %v3478, 32
    %v3480 = vpop.permute.xlu0 %3479
    %v3482 = vadd.f32 %v2438, %v3480
    %v3483 = vxor.u32 %v3482, 2147483648
    %v3484 = vmul.f32 %v3483, 1.442695
    %v3485 = vpow.pop %v3484
    %v3486 = vadd.f32 %v3485, 1.0
    %v3487 = vrcp.pop %v3486
    %v3488 = vmul.f32 1.0, %v3487
    %v3490 = vrot.slane %v3464, 2
    %v3492 = vmul.f32 %v3476, %v3490
    %3494 = vrot.lane.b32.xlu0 %v3492, 64
    %v3495 = vpop.permute.xlu0 %3494
    %v3497 = vadd.f32 %v2438, %v3495
    %v3498 = vtanh.pop %v3497
    %v3499 = vsub.f32 1.0, %v3488
    %3501 = vrot.lane.b32.xlu0 %v3498, 96
    %v3502 = vpop.permute.xlu0 %3501
    %v3504 = vmul.f32 %v3499, %v3502
    %v3505 = vrot.slane %v3246, 6
    %v3507 = vmul.f32 %v3488, %v3505
    %v3508 = vadd.f32 %v3504, %v3507
    %3510 = vrot.lane.b32.xlu0 %v3508, 96
    %v3511 = vpop.permute.xlu0 %3510
    %3513 = vst.msk [vmem:[#allocation2] sm:$0xc0] %vm1313, %v3511
    %v3514 = vrot.slane %v3508, 6
    %3515 = vrot.lane.b32.xlu0 %v3514, 96
    %v3516 = vpop.permute.xlu0 %3515
    %v3517 = vsel %vm264, %v3516, 0
    %3519 = vmatprep.subr.mxu0 0.0
    %3520 = vmatpush1.msra.mxu0 %v2446
    %3521 = vmatprep.subr.mxu0 0.0
    %3522 = vmatpush1.msra.mxu0 %v2447
    %3523 = vmatprep.subr.mxu0 0.0
    %3524 = vmatpush1.msra.mxu0 %v2448
    %3525 = vmatprep.subr.mxu0 0.0
    %3526 = vmatpush1.msra.mxu0 %v2449
    %3527 = vmatprep.subr.mxu0 0.0
    %3528 = vmatpush1.msra.mxu0 0.0
    %3529 = vmatprep.subr.mxu0 0.0
    %3530 = vmatpush1.msra.mxu0 0.0
    %3531 = vmatprep.subr.mxu0 0.0
    %3532 = vmatpush1.msra.mxu0 0.0
    %3533 = vmatprep.subr.mxu0 0.0
    %3534 = vmatpush1.msra.mxu0 0.0
    %3535 = vmatprep.subr.mxu0 0.0
    %3536 = vmatpush1.msra.mxu0 0.0
    %3537 = vmatprep.subr.mxu0 0.0
    %3538 = vmatpush1.msra.mxu0 0.0
    %3539 = vmatprep.subr.mxu0 0.0
    %3540 = vmatpush1.msra.mxu0 0.0
    %3541 = vmatprep.subr.mxu0 0.0
    %3542 = vmatpush1.msra.mxu0 0.0
    %3543 = vmatprep.subr.mxu0 0.0
    %3544 = vmatpush1.msra.mxu0 0.0
    %3545 = vmatprep.subr.mxu0 0.0
    %3546 = vmatpush1.msra.mxu0 0.0
    %3547 = vmatprep.subr.mxu0 0.0
    %3548 = vmatpush1.msra.mxu0 0.0
    %3549 = vmatprep.subr.mxu0 0.0
    %3550 = vmatpush1.msra.mxu0 0.0
    %3551 = vmatprep.subr.mxu0 0.0
    %3552 = vmatpush1.msra.mxu0 0.0
    %3553 = vmatprep.subr.mxu0 0.0
    %3554 = vmatpush1.msra.mxu0 0.0
    %3555 = vmatprep.subr.mxu0 0.0
    %3556 = vmatpush1.msra.mxu0 0.0
    %3557 = vmatprep.subr.mxu0 0.0
    %3558 = vmatpush1.msra.mxu0 0.0
    %3559 = vmatprep.subr.mxu0 0.0
    %3560 = vmatpush1.msra.mxu0 0.0
    %3561 = vmatprep.subr.mxu0 0.0
    %3562 = vmatpush1.msra.mxu0 0.0
    %3563 = vmatprep.subr.mxu0 0.0
    %3564 = vmatpush1.msra.mxu0 0.0
    %3565 = vmatprep.subr.mxu0 0.0
    %3566 = vmatpush1.msra.mxu0 0.0
    %3567 = vmatprep.subr.mxu0 0.0
    %3568 = vmatpush1.msra.mxu0 0.0
    %3569 = vmatprep.subr.mxu0 0.0
    %3570 = vmatpush1.msra.mxu0 0.0
    %3571 = vmatprep.subr.mxu0 0.0
    %3572 = vmatpush1.msra.mxu0 0.0
    %3573 = vmatprep.subr.mxu0 0.0
    %3574 = vmatpush1.msra.mxu0 0.0
    %3575 = vmatprep.subr.mxu0 0.0
    %3576 = vmatpush1.msra.mxu0 0.0
    %3577 = vmatprep.subr.mxu0 0.0
    %3578 = vmatpush1.msra.mxu0 0.0
    %3579 = vmatprep.subr.mxu0 0.0
    %3580 = vmatpush1.msra.mxu0 0.0
    %3581 = vmatprep.subr.mxu0 0.0
    %3582 = vmatpush1.msra.mxu0 0.0
    %3583 = vmatprep.mubr.f32.mxu0 0.0
    %3584 = vmatmul.mubr.f32.gmra.mrb[0].mxu0 %v3517
    %v3585 = vpop.f32.mrb[0].mxu0
    %v3586 = vadd.f32 %v2469, %v3585
    %v3587 = vpop.f32.mrb[0].mxu0
    %3588 = vdwg.mxu0
    %3589 = vmatprep.subr.mxu0 0.0
    %3590 = vmatpush1.msra.mxu0 %v2451
    %3591 = vmatprep.subr.mxu0 0.0
    %3592 = vmatpush1.msra.mxu0 %v2452
    %3593 = vmatprep.subr.mxu0 0.0
    %3594 = vmatpush1.msra.mxu0 %v2453
    %3595 = vmatprep.subr.mxu0 0.0
    %3596 = vmatpush1.msra.mxu0 %v2454
    %3597 = vmatprep.subr.mxu0 0.0
    %3598 = vmatpush1.msra.mxu0 0.0
    %3599 = vmatprep.subr.mxu0 0.0
    %3600 = vmatpush1.msra.mxu0 0.0
    %3601 = vmatprep.subr.mxu0 0.0
    %3602 = vmatpush1.msra.mxu0 0.0
    %3603 = vmatprep.subr.mxu0 0.0
    %3604 = vmatpush1.msra.mxu0 0.0
    %3605 = vmatprep.subr.mxu0 0.0
    %3606 = vmatpush1.msra.mxu0 0.0
    %3607 = vmatprep.subr.mxu0 0.0
    %3608 = vmatpush1.msra.mxu0 0.0
    %3609 = vmatprep.subr.mxu0 0.0
    %3610 = vmatpush1.msra.mxu0 0.0
    %3611 = vmatprep.subr.mxu0 0.0
    %3612 = vmatpush1.msra.mxu0 0.0
    %3613 = vmatprep.subr.mxu0 0.0
    %3614 = vmatpush1.msra.mxu0 0.0
    %3615 = vmatprep.subr.mxu0 0.0
    %3616 = vmatpush1.msra.mxu0 0.0
    %3617 = vmatprep.subr.mxu0 0.0
    %3618 = vmatpush1.msra.mxu0 0.0
    %3619 = vmatprep.subr.mxu0 0.0
    %3620 = vmatpush1.msra.mxu0 0.0
    %3621 = vmatprep.subr.mxu0 0.0
    %3622 = vmatpush1.msra.mxu0 0.0
    %3623 = vmatprep.subr.mxu0 0.0
    %3624 = vmatpush1.msra.mxu0 0.0
    %3625 = vmatprep.subr.mxu0 0.0
    %3626 = vmatpush1.msra.mxu0 0.0
    %3627 = vmatprep.subr.mxu0 0.0
    %3628 = vmatpush1.msra.mxu0 0.0
    %3629 = vmatprep.subr.mxu0 0.0
    %3630 = vmatpush1.msra.mxu0 0.0
    %3631 = vmatprep.subr.mxu0 0.0
    %3632 = vmatpush1.msra.mxu0 0.0
    %3633 = vmatprep.subr.mxu0 0.0
    %3634 = vmatpush1.msra.mxu0 0.0
    %3635 = vmatprep.subr.mxu0 0.0
    %3636 = vmatpush1.msra.mxu0 0.0
    %3637 = vmatprep.subr.mxu0 0.0
    %3638 = vmatpush1.msra.mxu0 0.0
    %3639 = vmatprep.subr.mxu0 0.0
    %3640 = vmatpush1.msra.mxu0 0.0
    %3641 = vmatprep.subr.mxu0 0.0
    %3642 = vmatpush1.msra.mxu0 0.0
    %3643 = vmatprep.subr.mxu0 0.0
    %3644 = vmatpush1.msra.mxu0 0.0
    %3645 = vmatprep.subr.mxu0 0.0
    %3646 = vmatpush1.msra.mxu0 0.0
    %3647 = vmatprep.subr.mxu0 0.0
    %3648 = vmatpush1.msra.mxu0 0.0
    %3649 = vmatprep.subr.mxu0 0.0
    %3650 = vmatpush1.msra.mxu0 0.0
    %3651 = vmatprep.subr.mxu0 0.0
    %3652 = vmatpush1.msra.mxu0 0.0
    %3653 = vmatprep.mubr.f32.mxu0 0.0
    %3654 = vmatmul.mubr.f32.gmra.mrb[0].mxu0 %v3517
    %v3655 = vpop.f32.mrb[0].mxu0
    %v3656 = vadd.f32 %v2545, %v3655
    %v3657 = vpop.f32.mrb[0].mxu0
    %3658 = vdwg.mxu0
    %3659 = vmatprep.subr.mxu0 0.0
    %3660 = vmatpush1.msra.mxu0 %v2456
    %3661 = vmatprep.subr.mxu0 0.0
    %3662 = vmatpush1.msra.mxu0 %v2457
    %3663 = vmatprep.subr.mxu0 0.0
    %3664 = vmatpush1.msra.mxu0 %v2458
    %3665 = vmatprep.subr.mxu0 0.0
    %3666 = vmatpush1.msra.mxu0 %v2459
    %3667 = vmatprep.subr.mxu0 0.0
    %3668 = vmatpush1.msra.mxu0 0.0
    %3669 = vmatprep.subr.mxu0 0.0
    %3670 = vmatpush1.msra.mxu0 0.0
    %3671 = vmatprep.subr.mxu0 0.0
    %3672 = vmatpush1.msra.mxu0 0.0
    %3673 = vmatprep.subr.mxu0 0.0
    %3674 = vmatpush1.msra.mxu0 0.0
    %3675 = vmatprep.subr.mxu0 0.0
    %3676 = vmatpush1.msra.mxu0 0.0
    %3677 = vmatprep.subr.mxu0 0.0
    %3678 = vmatpush1.msra.mxu0 0.0
    %3679 = vmatprep.subr.mxu0 0.0
    %3680 = vmatpush1.msra.mxu0 0.0
    %3681 = vmatprep.subr.mxu0 0.0
    %3682 = vmatpush1.msra.mxu0 0.0
    %3683 = vmatprep.subr.mxu0 0.0
    %3684 = vmatpush1.msra.mxu0 0.0
    %3685 = vmatprep.subr.mxu0 0.0
    %3686 = vmatpush1.msra.mxu0 0.0
    %3687 = vmatprep.subr.mxu0 0.0
    %3688 = vmatpush1.msra.mxu0 0.0
    %3689 = vmatprep.subr.mxu0 0.0
    %3690 = vmatpush1.msra.mxu0 0.0
    %3691 = vmatprep.subr.mxu0 0.0
    %3692 = vmatpush1.msra.mxu0 0.0
    %3693 = vmatprep.subr.mxu0 0.0
    %3694 = vmatpush1.msra.mxu0 0.0
    %3695 = vmatprep.subr.mxu0 0.0
    %3696 = vmatpush1.msra.mxu0 0.0
    %3697 = vmatprep.subr.mxu0 0.0
    %3698 = vmatpush1.msra.mxu0 0.0
    %3699 = vmatprep.subr.mxu0 0.0
    %3700 = vmatpush1.msra.mxu0 0.0
    %3701 = vmatprep.subr.mxu0 0.0
    %3702 = vmatpush1.msra.mxu0 0.0
    %3703 = vmatprep.subr.mxu0 0.0
    %3704 = vmatpush1.msra.mxu0 0.0
    %3705 = vmatprep.subr.mxu0 0.0
    %3706 = vmatpush1.msra.mxu0 0.0
    %3707 = vmatprep.subr.mxu0 0.0
    %3708 = vmatpush1.msra.mxu0 0.0
    %3709 = vmatprep.subr.mxu0 0.0
    %3710 = vmatpush1.msra.mxu0 0.0
    %3711 = vmatprep.subr.mxu0 0.0
    %3712 = vmatpush1.msra.mxu0 0.0
    %3713 = vmatprep.subr.mxu0 0.0
    %3714 = vmatpush1.msra.mxu0 0.0
    %3715 = vmatprep.subr.mxu0 0.0
    %3716 = vmatpush1.msra.mxu0 0.0
    %3717 = vmatprep.subr.mxu0 0.0
    %3718 = vmatpush1.msra.mxu0 0.0
    %3719 = vmatprep.subr.mxu0 0.0
    %3720 = vmatpush1.msra.mxu0 0.0
    %3721 = vmatprep.subr.mxu0 0.0
    %3722 = vmatpush1.msra.mxu0 0.0
    %3723 = vmatprep.mubr.f32.mxu0 0.0
    %3724 = vmatmul.mubr.f32.gmra.mrb[0].mxu0 %v3517
    %v3725 = vpop.f32.mrb[0].mxu0
    %v3726 = vadd.f32 %v2621, %v3725
    %v3727 = vpop.f32.mrb[0].mxu0
    %3728 = vdwg.mxu0
    %v3729 = vadd.f32 %v2443, %v3586
    %v3730 = vxor.u32 %v3729, 2147483648
    %v3731 = vmul.f32 %v3730, 1.442695
    %v3732 = vpow.pop %v3731
    %v3733 = vadd.f32 %v3732, 1.0
    %v3734 = vrcp.pop %v3733
    %v3735 = vmul.f32 1.0, %v3734
    %3737 = vrot.lane.b32.xlu0 %v3656, 32
    %v3738 = vpop.permute.xlu0 %3737
    %v3740 = vadd.f32 %v2443, %v3738
    %v3741 = vxor.u32 %v3740, 2147483648
    %v3742 = vmul.f32 %v3741, 1.442695
    %v3743 = vpow.pop %v3742
    %v3744 = vadd.f32 %v3743, 1.0
    %v3745 = vrcp.pop %v3744
    %v3746 = vmul.f32 1.0, %v3745
    %v3747 = vmul.f32 %v3735, %v3726
    %3749 = vrot.lane.b32.xlu0 %v3747, 64
    %v3750 = vpop.permute.xlu0 %3749
    %v3752 = vadd.f32 %v2443, %v3750
    %v3753 = vtanh.pop %v3752
    %v3754 = vsub.f32 1.0, %v3746
    %3756 = vrot.lane.b32.xlu0 %v3753, 96
    %v3757 = vpop.permute.xlu0 %3756
    %v3759 = vmul.f32 %v3754, %v3757
    %v3761 = vmul.f32 %v3746, %v3514
    %v3762 = vadd.f32 %v3759, %v3761
    %3764 = vrot.lane.b32.xlu0 %v3762, 96
    %v3765 = vpop.permute.xlu0 %3764
    %3767 = vst.msk [vmem:[#allocation2 + $0x8] sm:$0x3] %vm527, %v3765
    %v3768 = vsel %vm264, %v3765, 0
    %3770 = vmatprep.subr.mxu0 0.0
    %3771 = vmatpush1.msra.mxu0 %v2446
    %3772 = vmatprep.subr.mxu0 0.0
    %3773 = vmatpush1.msra.mxu0 %v2447
    %3774 = vmatprep.subr.mxu0 0.0
    %3775 = vmatpush1.msra.mxu0 %v2448
    %3776 = vmatprep.subr.mxu0 0.0
    %3777 = vmatpush1.msra.mxu0 %v2449
    %3778 = vmatprep.subr.mxu0 0.0
    %3779 = vmatpush1.msra.mxu0 0.0
    %3780 = vmatprep.subr.mxu0 0.0
    %3781 = vmatpush1.msra.mxu0 0.0
    %3782 = vmatprep.subr.mxu0 0.0
    %3783 = vmatpush1.msra.mxu0 0.0
    %3784 = vmatprep.subr.mxu0 0.0
    %3785 = vmatpush1.msra.mxu0 0.0
    %3786 = vmatprep.subr.mxu0 0.0
    %3787 = vmatpush1.msra.mxu0 0.0
    %3788 = vmatprep.subr.mxu0 0.0
    %3789 = vmatpush1.msra.mxu0 0.0
    %3790 = vmatprep.subr.mxu0 0.0
    %3791 = vmatpush1.msra.mxu0 0.0
    %3792 = vmatprep.subr.mxu0 0.0
    %3793 = vmatpush1.msra.mxu0 0.0
    %3794 = vmatprep.subr.mxu0 0.0
    %3795 = vmatpush1.msra.mxu0 0.0
    %3796 = vmatprep.subr.mxu0 0.0
    %3797 = vmatpush1.msra.mxu0 0.0
    %3798 = vmatprep.subr.mxu0 0.0
    %3799 = vmatpush1.msra.mxu0 0.0
    %3800 = vmatprep.subr.mxu0 0.0
    %3801 = vmatpush1.msra.mxu0 0.0
    %3802 = vmatprep.subr.mxu0 0.0
    %3803 = vmatpush1.msra.mxu0 0.0
    %3804 = vmatprep.subr.mxu0 0.0
    %3805 = vmatpush1.msra.mxu0 0.0
    %3806 = vmatprep.subr.mxu0 0.0
    %3807 = vmatpush1.msra.mxu0 0.0
    %3808 = vmatprep.subr.mxu0 0.0
    %3809 = vmatpush1.msra.mxu0 0.0
    %3810 = vmatprep.subr.mxu0 0.0
    %3811 = vmatpush1.msra.mxu0 0.0
    %3812 = vmatprep.subr.mxu0 0.0
    %3813 = vmatpush1.msra.mxu0 0.0
    %3814 = vmatprep.subr.mxu0 0.0
    %3815 = vmatpush1.msra.mxu0 0.0
    %3816 = vmatprep.subr.mxu0 0.0
    %3817 = vmatpush1.msra.mxu0 0.0
    %3818 = vmatprep.subr.mxu0 0.0
    %3819 = vmatpush1.msra.mxu0 0.0
    %3820 = vmatprep.subr.mxu0 0.0
    %3821 = vmatpush1.msra.mxu0 0.0
    %3822 = vmatprep.subr.mxu0 0.0
    %3823 = vmatpush1.msra.mxu0 0.0
    %3824 = vmatprep.subr.mxu0 0.0
    %3825 = vmatpush1.msra.mxu0 0.0
    %3826 = vmatprep.subr.mxu0 0.0
    %3827 = vmatpush1.msra.mxu0 0.0
    %3828 = vmatprep.subr.mxu0 0.0
    %3829 = vmatpush1.msra.mxu0 0.0
    %3830 = vmatprep.subr.mxu0 0.0
    %3831 = vmatpush1.msra.mxu0 0.0
    %3832 = vmatprep.subr.mxu0 0.0
    %3833 = vmatpush1.msra.mxu0 0.0
    %3834 = vmatprep.mubr.f32.mxu0 0.0
    %3835 = vmatmul.mubr.f32.gmra.mrb[0].mxu0 %v3768
    %v3836 = vpop.f32.mrb[0].mxu0
    %v3837 = vadd.f32 %v2469, %v3836
    %v3838 = vpop.f32.mrb[0].mxu0
    %3839 = vdwg.mxu0
    %3840 = vmatprep.subr.mxu0 0.0
    %3841 = vmatpush1.msra.mxu0 %v2451
    %3842 = vmatprep.subr.mxu0 0.0
    %3843 = vmatpush1.msra.mxu0 %v2452
    %3844 = vmatprep.subr.mxu0 0.0
    %3845 = vmatpush1.msra.mxu0 %v2453
    %3846 = vmatprep.subr.mxu0 0.0
    %3847 = vmatpush1.msra.mxu0 %v2454
    %3848 = vmatprep.subr.mxu0 0.0
    %3849 = vmatpush1.msra.mxu0 0.0
    %3850 = vmatprep.subr.mxu0 0.0
    %3851 = vmatpush1.msra.mxu0 0.0
    %3852 = vmatprep.subr.mxu0 0.0
    %3853 = vmatpush1.msra.mxu0 0.0
    %3854 = vmatprep.subr.mxu0 0.0
    %3855 = vmatpush1.msra.mxu0 0.0
    %3856 = vmatprep.subr.mxu0 0.0
    %3857 = vmatpush1.msra.mxu0 0.0
    %3858 = vmatprep.subr.mxu0 0.0
    %3859 = vmatpush1.msra.mxu0 0.0
    %3860 = vmatprep.subr.mxu0 0.0
    %3861 = vmatpush1.msra.mxu0 0.0
    %3862 = vmatprep.subr.mxu0 0.0
    %3863 = vmatpush1.msra.mxu0 0.0
    %3864 = vmatprep.subr.mxu0 0.0
    %3865 = vmatpush1.msra.mxu0 0.0
    %3866 = vmatprep.subr.mxu0 0.0
    %3867 = vmatpush1.msra.mxu0 0.0
    %3868 = vmatprep.subr.mxu0 0.0
    %3869 = vmatpush1.msra.mxu0 0.0
    %3870 = vmatprep.subr.mxu0 0.0
    %3871 = vmatpush1.msra.mxu0 0.0
    %3872 = vmatprep.subr.mxu0 0.0
    %3873 = vmatpush1.msra.mxu0 0.0
    %3874 = vmatprep.subr.mxu0 0.0
    %3875 = vmatpush1.msra.mxu0 0.0
    %3876 = vmatprep.subr.mxu0 0.0
    %3877 = vmatpush1.msra.mxu0 0.0
    %3878 = vmatprep.subr.mxu0 0.0
    %3879 = vmatpush1.msra.mxu0 0.0
    %3880 = vmatprep.subr.mxu0 0.0
    %3881 = vmatpush1.msra.mxu0 0.0
    %3882 = vmatprep.subr.mxu0 0.0
    %3883 = vmatpush1.msra.mxu0 0.0
    %3884 = vmatprep.subr.mxu0 0.0
    %3885 = vmatpush1.msra.mxu0 0.0
    %3886 = vmatprep.subr.mxu0 0.0
    %3887 = vmatpush1.msra.mxu0 0.0
    %3888 = vmatprep.subr.mxu0 0.0
    %3889 = vmatpush1.msra.mxu0 0.0
    %3890 = vmatprep.subr.mxu0 0.0
    %3891 = vmatpush1.msra.mxu0 0.0
    %3892 = vmatprep.subr.mxu0 0.0
    %3893 = vmatpush1.msra.mxu0 0.0
    %3894 = vmatprep.subr.mxu0 0.0
    %3895 = vmatpush1.msra.mxu0 0.0
    %3896 = vmatprep.subr.mxu0 0.0
    %3897 = vmatpush1.msra.mxu0 0.0
    %3898 = vmatprep.subr.mxu0 0.0
    %3899 = vmatpush1.msra.mxu0 0.0
    %3900 = vmatprep.subr.mxu0 0.0
    %3901 = vmatpush1.msra.mxu0 0.0
    %3902 = vmatprep.subr.mxu0 0.0
    %3903 = vmatpush1.msra.mxu0 0.0
    %3904 = vmatprep.mubr.f32.mxu0 0.0
    %3905 = vmatmul.mubr.f32.gmra.mrb[0].mxu0 %v3768
    %v3906 = vpop.f32.mrb[0].mxu0
    %v3907 = vadd.f32 %v2545, %v3906
    %v3908 = vpop.f32.mrb[0].mxu0
    %3909 = vdwg.mxu0
    %3910 = vmatprep.subr.mxu0 0.0
    %3911 = vmatpush1.msra.mxu0 %v2456
    %3912 = vmatprep.subr.mxu0 0.0
    %3913 = vmatpush1.msra.mxu0 %v2457
    %3914 = vmatprep.subr.mxu0 0.0
    %3915 = vmatpush1.msra.mxu0 %v2458
    %3916 = vmatprep.subr.mxu0 0.0
    %3917 = vmatpush1.msra.mxu0 %v2459
    %3918 = vmatprep.subr.mxu0 0.0
    %3919 = vmatpush1.msra.mxu0 0.0
    %3920 = vmatprep.subr.mxu0 0.0
    %3921 = vmatpush1.msra.mxu0 0.0
    %3922 = vmatprep.subr.mxu0 0.0
    %3923 = vmatpush1.msra.mxu0 0.0
    %3924 = vmatprep.subr.mxu0 0.0
    %3925 = vmatpush1.msra.mxu0 0.0
    %3926 = vmatprep.subr.mxu0 0.0
    %3927 = vmatpush1.msra.mxu0 0.0
    %3928 = vmatprep.subr.mxu0 0.0
    %3929 = vmatpush1.msra.mxu0 0.0
    %3930 = vmatprep.subr.mxu0 0.0
    %3931 = vmatpush1.msra.mxu0 0.0
    %3932 = vmatprep.subr.mxu0 0.0
    %3933 = vmatpush1.msra.mxu0 0.0
    %3934 = vmatprep.subr.mxu0 0.0
    %3935 = vmatpush1.msra.mxu0 0.0
    %3936 = vmatprep.subr.mxu0 0.0
    %3937 = vmatpush1.msra.mxu0 0.0
    %3938 = vmatprep.subr.mxu0 0.0
    %3939 = vmatpush1.msra.mxu0 0.0
    %3940 = vmatprep.subr.mxu0 0.0
    %3941 = vmatpush1.msra.mxu0 0.0
    %3942 = vmatprep.subr.mxu0 0.0
    %3943 = vmatpush1.msra.mxu0 0.0
    %3944 = vmatprep.subr.mxu0 0.0
    %3945 = vmatpush1.msra.mxu0 0.0
    %3946 = vmatprep.subr.mxu0 0.0
    %3947 = vmatpush1.msra.mxu0 0.0
    %3948 = vmatprep.subr.mxu0 0.0
    %3949 = vmatpush1.msra.mxu0 0.0
    %3950 = vmatprep.subr.mxu0 0.0
    %3951 = vmatpush1.msra.mxu0 0.0
    %3952 = vmatprep.subr.mxu0 0.0
    %3953 = vmatpush1.msra.mxu0 0.0
    %3954 = vmatprep.subr.mxu0 0.0
    %3955 = vmatpush1.msra.mxu0 0.0
    %3956 = vmatprep.subr.mxu0 0.0
    %3957 = vmatpush1.msra.mxu0 0.0
    %3958 = vmatprep.subr.mxu0 0.0
    %3959 = vmatpush1.msra.mxu0 0.0
    %3960 = vmatprep.subr.mxu0 0.0
    %3961 = vmatpush1.msra.mxu0 0.0
    %3962 = vmatprep.subr.mxu0 0.0
    %3963 = vmatpush1.msra.mxu0 0.0
    %3964 = vmatprep.subr.mxu0 0.0
    %3965 = vmatpush1.msra.mxu0 0.0
    %3966 = vmatprep.subr.mxu0 0.0
    %3967 = vmatpush1.msra.mxu0 0.0
    %3968 = vmatprep.subr.mxu0 0.0
    %3969 = vmatpush1.msra.mxu0 0.0
    %3970 = vmatprep.subr.mxu0 0.0
    %3971 = vmatpush1.msra.mxu0 0.0
    %3972 = vmatprep.subr.mxu0 0.0
    %3973 = vmatpush1.msra.mxu0 0.0
    %3974 = vmatprep.mubr.f32.mxu0 0.0
    %3975 = vmatmul.mubr.f32.gmra.mrb[0].mxu0 %v3768
    %v3976 = vpop.f32.mrb[0].mxu0
    %v3977 = vadd.f32 %v2621, %v3976
    %v3978 = vpop.f32.mrb[0].mxu0
    %3979 = vdwg.mxu0
    %v3981 = vrot.slane %v3837, 6
    %v3983 = vadd.f32 %v2443, %v3981
    %v3984 = vxor.u32 %v3983, 2147483648
    %v3985 = vmul.f32 %v3984, 1.442695
    %v3986 = vpow.pop %v3985
    %v3987 = vadd.f32 %v3986, 1.0
    %v3988 = vrcp.pop %v3987
    %v3989 = vmul.f32 1.0, %v3988
    %v3991 = vrot.slane %v3907, 6
    %3992 = vrot.lane.b32.xlu0 %v3991, 32
    %v3993 = vpop.permute.xlu0 %3992
    %v3995 = vadd.f32 %v2443, %v3993
    %v3996 = vxor.u32 %v3995, 2147483648
    %v3997 = vmul.f32 %v3996, 1.442695
    %v3998 = vpow.pop %v3997
    %v3999 = vadd.f32 %v3998, 1.0
    %v4000 = vrcp.pop %v3999
    %v4001 = vmul.f32 1.0, %v4000
    %v4003 = vrot.slane %v3977, 6
    %v4005 = vmul.f32 %v3989, %v4003
    %4007 = vrot.lane.b32.xlu0 %v4005, 64
    %v4008 = vpop.permute.xlu0 %4007
    %v4010 = vadd.f32 %v2443, %v4008
    %v4011 = vtanh.pop %v4010
    %v4012 = vsub.f32 1.0, %v4001
    %4014 = vrot.lane.b32.xlu0 %v4011, 96
    %v4015 = vpop.permute.xlu0 %4014
    %v4017 = vmul.f32 %v4012, %v4015
    %v4018 = vrot.slane %v3762, 6
    %v4020 = vmul.f32 %v4001, %v4018
    %v4021 = vadd.f32 %v4017, %v4020
    %4023 = vrot.lane.b32.xlu0 %v4021, 96
    %v4024 = vpop.permute.xlu0 %4023
    %4026 = vst.msk [vmem:[#allocation2 + $0x8] sm:$0xc] %vm787, %v4024
    %v4027 = vrot.slane %v4021, 2
    %4028 = vrot.lane.b32.xlu0 %v4027, 96
    %v4029 = vpop.permute.xlu0 %4028
    %v4030 = vsel %vm264, %v4029, 0
    %4032 = vmatprep.subr.mxu0 0.0
    %4033 = vmatpush1.msra.mxu0 %v2446
    %4034 = vmatprep.subr.mxu0 0.0
    %4035 = vmatpush1.msra.mxu0 %v2447
    %4036 = vmatprep.subr.mxu0 0.0
    %4037 = vmatpush1.msra.mxu0 %v2448
    %4038 = vmatprep.subr.mxu0 0.0
    %4039 = vmatpush1.msra.mxu0 %v2449
    %4040 = vmatprep.subr.mxu0 0.0
    %4041 = vmatpush1.msra.mxu0 0.0
    %4042 = vmatprep.subr.mxu0 0.0
    %4043 = vmatpush1.msra.mxu0 0.0
    %4044 = vmatprep.subr.mxu0 0.0
    %4045 = vmatpush1.msra.mxu0 0.0
    %4046 = vmatprep.subr.mxu0 0.0
    %4047 = vmatpush1.msra.mxu0 0.0
    %4048 = vmatprep.subr.mxu0 0.0
    %4049 = vmatpush1.msra.mxu0 0.0
    %4050 = vmatprep.subr.mxu0 0.0
    %4051 = vmatpush1.msra.mxu0 0.0
    %4052 = vmatprep.subr.mxu0 0.0
    %4053 = vmatpush1.msra.mxu0 0.0
    %4054 = vmatprep.subr.mxu0 0.0
    %4055 = vmatpush1.msra.mxu0 0.0
    %4056 = vmatprep.subr.mxu0 0.0
    %4057 = vmatpush1.msra.mxu0 0.0
    %4058 = vmatprep.subr.mxu0 0.0
    %4059 = vmatpush1.msra.mxu0 0.0
    %4060 = vmatprep.subr.mxu0 0.0
    %4061 = vmatpush1.msra.mxu0 0.0
    %4062 = vmatprep.subr.mxu0 0.0
    %4063 = vmatpush1.msra.mxu0 0.0
    %4064 = vmatprep.subr.mxu0 0.0
    %4065 = vmatpush1.msra.mxu0 0.0
    %4066 = vmatprep.subr.mxu0 0.0
    %4067 = vmatpush1.msra.mxu0 0.0
    %4068 = vmatprep.subr.mxu0 0.0
    %4069 = vmatpush1.msra.mxu0 0.0
    %4070 = vmatprep.subr.mxu0 0.0
    %4071 = vmatpush1.msra.mxu0 0.0
    %4072 = vmatprep.subr.mxu0 0.0
    %4073 = vmatpush1.msra.mxu0 0.0
    %4074 = vmatprep.subr.mxu0 0.0
    %4075 = vmatpush1.msra.mxu0 0.0
    %4076 = vmatprep.subr.mxu0 0.0
    %4077 = vmatpush1.msra.mxu0 0.0
    %4078 = vmatprep.subr.mxu0 0.0
    %4079 = vmatpush1.msra.mxu0 0.0
    %4080 = vmatprep.subr.mxu0 0.0
    %4081 = vmatpush1.msra.mxu0 0.0
    %4082 = vmatprep.subr.mxu0 0.0
    %4083 = vmatpush1.msra.mxu0 0.0
    %4084 = vmatprep.subr.mxu0 0.0
    %4085 = vmatpush1.msra.mxu0 0.0
    %4086 = vmatprep.subr.mxu0 0.0
    %4087 = vmatpush1.msra.mxu0 0.0
    %4088 = vmatprep.subr.mxu0 0.0
    %4089 = vmatpush1.msra.mxu0 0.0
    %4090 = vmatprep.subr.mxu0 0.0
    %4091 = vmatpush1.msra.mxu0 0.0
    %4092 = vmatprep.subr.mxu0 0.0
    %4093 = vmatpush1.msra.mxu0 0.0
    %4094 = vmatprep.subr.mxu0 0.0
    %4095 = vmatpush1.msra.mxu0 0.0
    %4096 = vmatprep.mubr.f32.mxu0 0.0
    %4097 = vmatmul.mubr.f32.gmra.mrb[0].mxu0 %v4030
    %v4098 = vpop.f32.mrb[0].mxu0
    %v4099 = vadd.f32 %v2469, %v4098
    %v4100 = vpop.f32.mrb[0].mxu0
    %4101 = vdwg.mxu0
    %4102 = vmatprep.subr.mxu0 0.0
    %4103 = vmatpush1.msra.mxu0 %v2451
    %4104 = vmatprep.subr.mxu0 0.0
    %4105 = vmatpush1.msra.mxu0 %v2452
    %4106 = vmatprep.subr.mxu0 0.0
    %4107 = vmatpush1.msra.mxu0 %v2453
    %4108 = vmatprep.subr.mxu0 0.0
    %4109 = vmatpush1.msra.mxu0 %v2454
    %4110 = vmatprep.subr.mxu0 0.0
    %4111 = vmatpush1.msra.mxu0 0.0
    %4112 = vmatprep.subr.mxu0 0.0
    %4113 = vmatpush1.msra.mxu0 0.0
    %4114 = vmatprep.subr.mxu0 0.0
    %4115 = vmatpush1.msra.mxu0 0.0
    %4116 = vmatprep.subr.mxu0 0.0
    %4117 = vmatpush1.msra.mxu0 0.0
    %4118 = vmatprep.subr.mxu0 0.0
    %4119 = vmatpush1.msra.mxu0 0.0
    %4120 = vmatprep.subr.mxu0 0.0
    %4121 = vmatpush1.msra.mxu0 0.0
    %4122 = vmatprep.subr.mxu0 0.0
    %4123 = vmatpush1.msra.mxu0 0.0
    %4124 = vmatprep.subr.mxu0 0.0
    %4125 = vmatpush1.msra.mxu0 0.0
    %4126 = vmatprep.subr.mxu0 0.0
    %4127 = vmatpush1.msra.mxu0 0.0
    %4128 = vmatprep.subr.mxu0 0.0
    %4129 = vmatpush1.msra.mxu0 0.0
    %4130 = vmatprep.subr.mxu0 0.0
    %4131 = vmatpush1.msra.mxu0 0.0
    %4132 = vmatprep.subr.mxu0 0.0
    %4133 = vmatpush1.msra.mxu0 0.0
    %4134 = vmatprep.subr.mxu0 0.0
    %4135 = vmatpush1.msra.mxu0 0.0
    %4136 = vmatprep.subr.mxu0 0.0
    %4137 = vmatpush1.msra.mxu0 0.0
    %4138 = vmatprep.subr.mxu0 0.0
    %4139 = vmatpush1.msra.mxu0 0.0
    %4140 = vmatprep.subr.mxu0 0.0
    %4141 = vmatpush1.msra.mxu0 0.0
    %4142 = vmatprep.subr.mxu0 0.0
    %4143 = vmatpush1.msra.mxu0 0.0
    %4144 = vmatprep.subr.mxu0 0.0
    %4145 = vmatpush1.msra.mxu0 0.0
    %4146 = vmatprep.subr.mxu0 0.0
    %4147 = vmatpush1.msra.mxu0 0.0
    %4148 = vmatprep.subr.mxu0 0.0
    %4149 = vmatpush1.msra.mxu0 0.0
    %4150 = vmatprep.subr.mxu0 0.0
    %4151 = vmatpush1.msra.mxu0 0.0
    %4152 = vmatprep.subr.mxu0 0.0
    %4153 = vmatpush1.msra.mxu0 0.0
    %4154 = vmatprep.subr.mxu0 0.0
    %4155 = vmatpush1.msra.mxu0 0.0
    %4156 = vmatprep.subr.mxu0 0.0
    %4157 = vmatpush1.msra.mxu0 0.0
    %4158 = vmatprep.subr.mxu0 0.0
    %4159 = vmatpush1.msra.mxu0 0.0
    %4160 = vmatprep.subr.mxu0 0.0
    %4161 = vmatpush1.msra.mxu0 0.0
    %4162 = vmatprep.subr.mxu0 0.0
    %4163 = vmatpush1.msra.mxu0 0.0
    %4164 = vmatprep.subr.mxu0 0.0
    %4165 = vmatpush1.msra.mxu0 0.0
    %4166 = vmatprep.mubr.f32.mxu0 0.0
    %4167 = vmatmul.mubr.f32.gmra.mrb[0].mxu0 %v4030
    %v4168 = vpop.f32.mrb[0].mxu0
    %v4169 = vadd.f32 %v2545, %v4168
    %v4170 = vpop.f32.mrb[0].mxu0
    %4171 = vdwg.mxu0
    %4172 = vmatprep.subr.mxu0 0.0
    %4173 = vmatpush1.msra.mxu0 %v2456
    %4174 = vmatprep.subr.mxu0 0.0
    %4175 = vmatpush1.msra.mxu0 %v2457
    %4176 = vmatprep.subr.mxu0 0.0
    %4177 = vmatpush1.msra.mxu0 %v2458
    %4178 = vmatprep.subr.mxu0 0.0
    %4179 = vmatpush1.msra.mxu0 %v2459
    %4180 = vmatprep.subr.mxu0 0.0
    %4181 = vmatpush1.msra.mxu0 0.0
    %4182 = vmatprep.subr.mxu0 0.0
    %4183 = vmatpush1.msra.mxu0 0.0
    %4184 = vmatprep.subr.mxu0 0.0
    %4185 = vmatpush1.msra.mxu0 0.0
    %4186 = vmatprep.subr.mxu0 0.0
    %4187 = vmatpush1.msra.mxu0 0.0
    %4188 = vmatprep.subr.mxu0 0.0
    %4189 = vmatpush1.msra.mxu0 0.0
    %4190 = vmatprep.subr.mxu0 0.0
    %4191 = vmatpush1.msra.mxu0 0.0
    %4192 = vmatprep.subr.mxu0 0.0
    %4193 = vmatpush1.msra.mxu0 0.0
    %4194 = vmatprep.subr.mxu0 0.0
    %4195 = vmatpush1.msra.mxu0 0.0
    %4196 = vmatprep.subr.mxu0 0.0
    %4197 = vmatpush1.msra.mxu0 0.0
    %4198 = vmatprep.subr.mxu0 0.0
    %4199 = vmatpush1.msra.mxu0 0.0
    %4200 = vmatprep.subr.mxu0 0.0
    %4201 = vmatpush1.msra.mxu0 0.0
    %4202 = vmatprep.subr.mxu0 0.0
    %4203 = vmatpush1.msra.mxu0 0.0
    %4204 = vmatprep.subr.mxu0 0.0
    %4205 = vmatpush1.msra.mxu0 0.0
    %4206 = vmatprep.subr.mxu0 0.0
    %4207 = vmatpush1.msra.mxu0 0.0
    %4208 = vmatprep.subr.mxu0 0.0
    %4209 = vmatpush1.msra.mxu0 0.0
    %4210 = vmatprep.subr.mxu0 0.0
    %4211 = vmatpush1.msra.mxu0 0.0
    %4212 = vmatprep.subr.mxu0 0.0
    %4213 = vmatpush1.msra.mxu0 0.0
    %4214 = vmatprep.subr.mxu0 0.0
    %4215 = vmatpush1.msra.mxu0 0.0
    %4216 = vmatprep.subr.mxu0 0.0
    %4217 = vmatpush1.msra.mxu0 0.0
    %4218 = vmatprep.subr.mxu0 0.0
    %4219 = vmatpush1.msra.mxu0 0.0
    %4220 = vmatprep.subr.mxu0 0.0
    %4221 = vmatpush1.msra.mxu0 0.0
    %4222 = vmatprep.subr.mxu0 0.0
    %4223 = vmatpush1.msra.mxu0 0.0
    %4224 = vmatprep.subr.mxu0 0.0
    %4225 = vmatpush1.msra.mxu0 0.0
    %4226 = vmatprep.subr.mxu0 0.0
    %4227 = vmatpush1.msra.mxu0 0.0
    %4228 = vmatprep.subr.mxu0 0.0
    %4229 = vmatpush1.msra.mxu0 0.0
    %4230 = vmatprep.subr.mxu0 0.0
    %4231 = vmatpush1.msra.mxu0 0.0
    %4232 = vmatprep.subr.mxu0 0.0
    %4233 = vmatpush1.msra.mxu0 0.0
    %4234 = vmatprep.subr.mxu0 0.0
    %4235 = vmatpush1.msra.mxu0 0.0
    %4236 = vmatprep.mubr.f32.mxu0 0.0
    %4237 = vmatmul.mubr.f32.gmra.mrb[0].mxu0 %v4030
    %v4238 = vpop.f32.mrb[0].mxu0
    %v4239 = vadd.f32 %v2621, %v4238
    %v4240 = vpop.f32.mrb[0].mxu0
    %4241 = vdwg.mxu0
    %v4243 = vrot.slane %v4099, 4
    %v4245 = vadd.f32 %v2443, %v4243
    %v4246 = vxor.u32 %v4245, 2147483648
    %v4247 = vmul.f32 %v4246, 1.442695
    %v4248 = vpow.pop %v4247
    %v4249 = vadd.f32 %v4248, 1.0
    %v4250 = vrcp.pop %v4249
    %v4251 = vmul.f32 1.0, %v4250
    %v4253 = vrot.slane %v4169, 4
    %4254 = vrot.lane.b32.xlu0 %v4253, 32
    %v4255 = vpop.permute.xlu0 %4254
    %v4257 = vadd.f32 %v2443, %v4255
    %v4258 = vxor.u32 %v4257, 2147483648
    %v4259 = vmul.f32 %v4258, 1.442695
    %v4260 = vpow.pop %v4259
    %v4261 = vadd.f32 %v4260, 1.0
    %v4262 = vrcp.pop %v4261
    %v4263 = vmul.f32 1.0, %v4262
    %v4265 = vrot.slane %v4239, 4
    %v4267 = vmul.f32 %v4251, %v4265
    %4269 = vrot.lane.b32.xlu0 %v4267, 64
    %v4270 = vpop.permute.xlu0 %4269
    %v4272 = vadd.f32 %v2443, %v4270
    %v4273 = vtanh.pop %v4272
    %v4274 = vsub.f32 1.0, %v4263
    %4276 = vrot.lane.b32.xlu0 %v4273, 96
    %v4277 = vpop.permute.xlu0 %4276
    %v4279 = vmul.f32 %v4274, %v4277
    %v4280 = vrot.slane %v4021, 6
    %v4282 = vmul.f32 %v4263, %v4280
    %v4283 = vadd.f32 %v4279, %v4282
    %4285 = vrot.lane.b32.xlu0 %v4283, 96
    %v4286 = vpop.permute.xlu0 %4285
    %4288 = vst.msk [vmem:[#allocation2 + $0x8] sm:$0x30] %vm1050, %v4286
    %v4289 = vrot.slane %v4283, 4
    %4290 = vrot.lane.b32.xlu0 %v4289, 96
    %v4291 = vpop.permute.xlu0 %4290
    %v4292 = vsel %vm264, %v4291, 0
    %4294 = vmatprep.subr.mxu0 0.0
    %4295 = vmatpush1.msra.mxu0 %v2446
    %4296 = vmatprep.subr.mxu0 0.0
    %4297 = vmatpush1.msra.mxu0 %v2447
    %4298 = vmatprep.subr.mxu0 0.0
    %4299 = vmatpush1.msra.mxu0 %v2448
    %4300 = vmatprep.subr.mxu0 0.0
    %4301 = vmatpush1.msra.mxu0 %v2449
    %4302 = vmatprep.subr.mxu0 0.0
    %4303 = vmatpush1.msra.mxu0 0.0
    %4304 = vmatprep.subr.mxu0 0.0
    %4305 = vmatpush1.msra.mxu0 0.0
    %4306 = vmatprep.subr.mxu0 0.0
    %4307 = vmatpush1.msra.mxu0 0.0
    %4308 = vmatprep.subr.mxu0 0.0
    %4309 = vmatpush1.msra.mxu0 0.0
    %4310 = vmatprep.subr.mxu0 0.0
    %4311 = vmatpush1.msra.mxu0 0.0
    %4312 = vmatprep.subr.mxu0 0.0
    %4313 = vmatpush1.msra.mxu0 0.0
    %4314 = vmatprep.subr.mxu0 0.0
    %4315 = vmatpush1.msra.mxu0 0.0
    %4316 = vmatprep.subr.mxu0 0.0
    %4317 = vmatpush1.msra.mxu0 0.0
    %4318 = vmatprep.subr.mxu0 0.0
    %4319 = vmatpush1.msra.mxu0 0.0
    %4320 = vmatprep.subr.mxu0 0.0
    %4321 = vmatpush1.msra.mxu0 0.0
    %4322 = vmatprep.subr.mxu0 0.0
    %4323 = vmatpush1.msra.mxu0 0.0
    %4324 = vmatprep.subr.mxu0 0.0
    %4325 = vmatpush1.msra.mxu0 0.0
    %4326 = vmatprep.subr.mxu0 0.0
    %4327 = vmatpush1.msra.mxu0 0.0
    %4328 = vmatprep.subr.mxu0 0.0
    %4329 = vmatpush1.msra.mxu0 0.0
    %4330 = vmatprep.subr.mxu0 0.0
    %4331 = vmatpush1.msra.mxu0 0.0
    %4332 = vmatprep.subr.mxu0 0.0
    %4333 = vmatpush1.msra.mxu0 0.0
    %4334 = vmatprep.subr.mxu0 0.0
    %4335 = vmatpush1.msra.mxu0 0.0
    %4336 = vmatprep.subr.mxu0 0.0
    %4337 = vmatpush1.msra.mxu0 0.0
    %4338 = vmatprep.subr.mxu0 0.0
    %4339 = vmatpush1.msra.mxu0 0.0
    %4340 = vmatprep.subr.mxu0 0.0
    %4341 = vmatpush1.msra.mxu0 0.0
    %4342 = vmatprep.subr.mxu0 0.0
    %4343 = vmatpush1.msra.mxu0 0.0
    %4344 = vmatprep.subr.mxu0 0.0
    %4345 = vmatpush1.msra.mxu0 0.0
    %4346 = vmatprep.subr.mxu0 0.0
    %4347 = vmatpush1.msra.mxu0 0.0
    %4348 = vmatprep.subr.mxu0 0.0
    %4349 = vmatpush1.msra.mxu0 0.0
    %4350 = vmatprep.subr.mxu0 0.0
    %4351 = vmatpush1.msra.mxu0 0.0
    %4352 = vmatprep.subr.mxu0 0.0
    %4353 = vmatpush1.msra.mxu0 0.0
    %4354 = vmatprep.subr.mxu0 0.0
    %4355 = vmatpush1.msra.mxu0 0.0
    %4356 = vmatprep.subr.mxu0 0.0
    %4357 = vmatpush1.msra.mxu0 0.0
    %4358 = vmatprep.mubr.f32.mxu0 0.0
    %4359 = vmatmul.mubr.f32.gmra.mrb[0].mxu0 %v4292
    %v4360 = vpop.f32.mrb[0].mxu0
    %v4361 = vadd.f32 %v2469, %v4360
    %v4362 = vpop.f32.mrb[0].mxu0
    %4363 = vdwg.mxu0
    %4364 = vmatprep.subr.mxu0 0.0
    %4365 = vmatpush1.msra.mxu0 %v2451
    %4366 = vmatprep.subr.mxu0 0.0
    %4367 = vmatpush1.msra.mxu0 %v2452
    %4368 = vmatprep.subr.mxu0 0.0
    %4369 = vmatpush1.msra.mxu0 %v2453
    %4370 = vmatprep.subr.mxu0 0.0
    %4371 = vmatpush1.msra.mxu0 %v2454
    %4372 = vmatprep.subr.mxu0 0.0
    %4373 = vmatpush1.msra.mxu0 0.0
    %4374 = vmatprep.subr.mxu0 0.0
    %4375 = vmatpush1.msra.mxu0 0.0
    %4376 = vmatprep.subr.mxu0 0.0
    %4377 = vmatpush1.msra.mxu0 0.0
    %4378 = vmatprep.subr.mxu0 0.0
    %4379 = vmatpush1.msra.mxu0 0.0
    %4380 = vmatprep.subr.mxu0 0.0
    %4381 = vmatpush1.msra.mxu0 0.0
    %4382 = vmatprep.subr.mxu0 0.0
    %4383 = vmatpush1.msra.mxu0 0.0
    %4384 = vmatprep.subr.mxu0 0.0
    %4385 = vmatpush1.msra.mxu0 0.0
    %4386 = vmatprep.subr.mxu0 0.0
    %4387 = vmatpush1.msra.mxu0 0.0
    %4388 = vmatprep.subr.mxu0 0.0
    %4389 = vmatpush1.msra.mxu0 0.0
    %4390 = vmatprep.subr.mxu0 0.0
    %4391 = vmatpush1.msra.mxu0 0.0
    %4392 = vmatprep.subr.mxu0 0.0
    %4393 = vmatpush1.msra.mxu0 0.0
    %4394 = vmatprep.subr.mxu0 0.0
    %4395 = vmatpush1.msra.mxu0 0.0
    %4396 = vmatprep.subr.mxu0 0.0
    %4397 = vmatpush1.msra.mxu0 0.0
    %4398 = vmatprep.subr.mxu0 0.0
    %4399 = vmatpush1.msra.mxu0 0.0
    %4400 = vmatprep.subr.mxu0 0.0
    %4401 = vmatpush1.msra.mxu0 0.0
    %4402 = vmatprep.subr.mxu0 0.0
    %4403 = vmatpush1.msra.mxu0 0.0
    %4404 = vmatprep.subr.mxu0 0.0
    %4405 = vmatpush1.msra.mxu0 0.0
    %4406 = vmatprep.subr.mxu0 0.0
    %4407 = vmatpush1.msra.mxu0 0.0
    %4408 = vmatprep.subr.mxu0 0.0
    %4409 = vmatpush1.msra.mxu0 0.0
    %4410 = vmatprep.subr.mxu0 0.0
    %4411 = vmatpush1.msra.mxu0 0.0
    %4412 = vmatprep.subr.mxu0 0.0
    %4413 = vmatpush1.msra.mxu0 0.0
    %4414 = vmatprep.subr.mxu0 0.0
    %4415 = vmatpush1.msra.mxu0 0.0
    %4416 = vmatprep.subr.mxu0 0.0
    %4417 = vmatpush1.msra.mxu0 0.0
    %4418 = vmatprep.subr.mxu0 0.0
    %4419 = vmatpush1.msra.mxu0 0.0
    %4420 = vmatprep.subr.mxu0 0.0
    %4421 = vmatpush1.msra.mxu0 0.0
    %4422 = vmatprep.subr.mxu0 0.0
    %4423 = vmatpush1.msra.mxu0 0.0
    %4424 = vmatprep.subr.mxu0 0.0
    %4425 = vmatpush1.msra.mxu0 0.0
    %4426 = vmatprep.subr.mxu0 0.0
    %4427 = vmatpush1.msra.mxu0 0.0
    %4428 = vmatprep.mubr.f32.mxu0 0.0
    %4429 = vmatmul.mubr.f32.gmra.mrb[0].mxu0 %v4292
    %v4430 = vpop.f32.mrb[0].mxu0
    %v4431 = vadd.f32 %v2545, %v4430
    %v4432 = vpop.f32.mrb[0].mxu0
    %4433 = vdwg.mxu0
    %4434 = vmatprep.subr.mxu0 0.0
    %4435 = vmatpush1.msra.mxu0 %v2456
    %4436 = vmatprep.subr.mxu0 0.0
    %4437 = vmatpush1.msra.mxu0 %v2457
    %4438 = vmatprep.subr.mxu0 0.0
    %4439 = vmatpush1.msra.mxu0 %v2458
    %4440 = vmatprep.subr.mxu0 0.0
    %4441 = vmatpush1.msra.mxu0 %v2459
    %4442 = vmatprep.subr.mxu0 0.0
    %4443 = vmatpush1.msra.mxu0 0.0
    %4444 = vmatprep.subr.mxu0 0.0
    %4445 = vmatpush1.msra.mxu0 0.0
    %4446 = vmatprep.subr.mxu0 0.0
    %4447 = vmatpush1.msra.mxu0 0.0
    %4448 = vmatprep.subr.mxu0 0.0
    %4449 = vmatpush1.msra.mxu0 0.0
    %4450 = vmatprep.subr.mxu0 0.0
    %4451 = vmatpush1.msra.mxu0 0.0
    %4452 = vmatprep.subr.mxu0 0.0
    %4453 = vmatpush1.msra.mxu0 0.0
    %4454 = vmatprep.subr.mxu0 0.0
    %4455 = vmatpush1.msra.mxu0 0.0
    %4456 = vmatprep.subr.mxu0 0.0
    %4457 = vmatpush1.msra.mxu0 0.0
    %4458 = vmatprep.subr.mxu0 0.0
    %4459 = vmatpush1.msra.mxu0 0.0
    %4460 = vmatprep.subr.mxu0 0.0
    %4461 = vmatpush1.msra.mxu0 0.0
    %4462 = vmatprep.subr.mxu0 0.0
    %4463 = vmatpush1.msra.mxu0 0.0
    %4464 = vmatprep.subr.mxu0 0.0
    %4465 = vmatpush1.msra.mxu0 0.0
    %4466 = vmatprep.subr.mxu0 0.0
    %4467 = vmatpush1.msra.mxu0 0.0
    %4468 = vmatprep.subr.mxu0 0.0
    %4469 = vmatpush1.msra.mxu0 0.0
    %4470 = vmatprep.subr.mxu0 0.0
    %4471 = vmatpush1.msra.mxu0 0.0
    %4472 = vmatprep.subr.mxu0 0.0
    %4473 = vmatpush1.msra.mxu0 0.0
    %4474 = vmatprep.subr.mxu0 0.0
    %4475 = vmatpush1.msra.mxu0 0.0
    %4476 = vmatprep.subr.mxu0 0.0
    %4477 = vmatpush1.msra.mxu0 0.0
    %4478 = vmatprep.subr.mxu0 0.0
    %4479 = vmatpush1.msra.mxu0 0.0
    %4480 = vmatprep.subr.mxu0 0.0
    %4481 = vmatpush1.msra.mxu0 0.0
    %4482 = vmatprep.subr.mxu0 0.0
    %4483 = vmatpush1.msra.mxu0 0.0
    %4484 = vmatprep.subr.mxu0 0.0
    %4485 = vmatpush1.msra.mxu0 0.0
    %4486 = vmatprep.subr.mxu0 0.0
    %4487 = vmatpush1.msra.mxu0 0.0
    %4488 = vmatprep.subr.mxu0 0.0
    %4489 = vmatpush1.msra.mxu0 0.0
    %4490 = vmatprep.subr.mxu0 0.0
    %4491 = vmatpush1.msra.mxu0 0.0
    %4492 = vmatprep.subr.mxu0 0.0
    %4493 = vmatpush1.msra.mxu0 0.0
    %4494 = vmatprep.subr.mxu0 0.0
    %4495 = vmatpush1.msra.mxu0 0.0
    %4496 = vmatprep.subr.mxu0 0.0
    %4497 = vmatpush1.msra.mxu0 0.0
    %4498 = vmatprep.mubr.f32.mxu0 0.0
    %4499 = vmatmul.mubr.f32.gmra.mrb[0].mxu0 %v4292
    %v4500 = vpop.f32.mrb[0].mxu0
    %v4501 = vadd.f32 %v2621, %v4500
    %v4502 = vpop.f32.mrb[0].mxu0
    %4503 = vdwg.mxu0
    %v4505 = vrot.slane %v4361, 2
    %v4507 = vadd.f32 %v2443, %v4505
    %v4508 = vxor.u32 %v4507, 2147483648
    %v4509 = vmul.f32 %v4508, 1.442695
    %v4510 = vpow.pop %v4509
    %v4511 = vadd.f32 %v4510, 1.0
    %v4512 = vrcp.pop %v4511
    %v4513 = vmul.f32 1.0, %v4512
    %v4515 = vrot.slane %v4431, 2
    %4516 = vrot.lane.b32.xlu0 %v4515, 32
    %v4517 = vpop.permute.xlu0 %4516
    %v4519 = vadd.f32 %v2443, %v4517
    %v4520 = vxor.u32 %v4519, 2147483648
    %v4521 = vmul.f32 %v4520, 1.442695
    %v4522 = vpow.pop %v4521
    %v4523 = vadd.f32 %v4522, 1.0
    %v4524 = vrcp.pop %v4523
    %v4525 = vmul.f32 1.0, %v4524
    %v4527 = vrot.slane %v4501, 2
    %v4529 = vmul.f32 %v4513, %v4527
    %4531 = vrot.lane.b32.xlu0 %v4529, 64
    %v4532 = vpop.permute.xlu0 %4531
    %v4534 = vadd.f32 %v2443, %v4532
    %v4535 = vtanh.pop %v4534
    %v4536 = vsub.f32 1.0, %v4525
    %4538 = vrot.lane.b32.xlu0 %v4535, 96
    %v4539 = vpop.permute.xlu0 %4538
    %v4541 = vmul.f32 %v4536, %v4539
    %v4542 = vrot.slane %v4283, 6
    %v4544 = vmul.f32 %v4525, %v4542
    %v4545 = vadd.f32 %v4541, %v4544
    %4547 = vrot.lane.b32.xlu0 %v4545, 96
    %v4548 = vpop.permute.xlu0 %4547
    %4550 = vst.msk [vmem:[#allocation2 + $0x8] sm:$0xc0] %vm1313, %v4548
    %v4551 = vld [vmem:[#allocation2] sm:$0xff]
    %v4552 = vld [vmem:[#allocation2 + $0x8] sm:$0xff]
    %v4553 = vld [vmem:[%s9] sm:$0xff]
    %v4554 = vld [vmem:[%s9 + $0x8] sm:$0xff]
    %v4555 = vld [vmem:[%s9 + $0x10] sm:$0xff]
    %v4556 = vld [vmem:[%s9 + $0x18] sm:$0xff]
    %v4557 = vld [vmem:[%s11] sm:$0x1]
    %v4559 = vlaneseq
    %v4560 = vshrl.u32 %v4559, 7
    %v4561 = vsub.s32 0, %v4560
    %v4562 = vrot.slane %v4557, %v4561
    %v4565 = vsel %vm264, %v4551, 0
    %v4568 = vsel %vm264, %v4552, 0
    %4570 = vmatprep.subr.mxu0 0.0
    %4571 = vmatpush1.msra.mxu0 %v4553
    %4572 = vmatprep.subr.mxu0 0.0
    %4573 = vmatpush1.msra.mxu0 %v4554
    %4574 = vmatprep.subr.mxu0 0.0
    %4575 = vmatpush1.msra.mxu0 %v4555
    %4576 = vmatprep.subr.mxu0 0.0
    %4577 = vmatpush1.msra.mxu0 %v4556
    %4578 = vmatprep.subr.mxu0 0.0
    %4579 = vmatpush1.msra.mxu0 0.0
    %4580 = vmatprep.subr.mxu0 0.0
    %4581 = vmatpush1.msra.mxu0 0.0
    %4582 = vmatprep.subr.mxu0 0.0
    %4583 = vmatpush1.msra.mxu0 0.0
    %4584 = vmatprep.subr.mxu0 0.0
    %4585 = vmatpush1.msra.mxu0 0.0
    %4586 = vmatprep.subr.mxu0 0.0
    %4587 = vmatpush1.msra.mxu0 0.0
    %4588 = vmatprep.subr.mxu0 0.0
    %4589 = vmatpush1.msra.mxu0 0.0
    %4590 = vmatprep.subr.mxu0 0.0
    %4591 = vmatpush1.msra.mxu0 0.0
    %4592 = vmatprep.subr.mxu0 0.0
    %4593 = vmatpush1.msra.mxu0 0.0
    %4594 = vmatprep.subr.mxu0 0.0
    %4595 = vmatpush1.msra.mxu0 0.0
    %4596 = vmatprep.subr.mxu0 0.0
    %4597 = vmatpush1.msra.mxu0 0.0
    %4598 = vmatprep.subr.mxu0 0.0
    %4599 = vmatpush1.msra.mxu0 0.0
    %4600 = vmatprep.subr.mxu0 0.0
    %4601 = vmatpush1.msra.mxu0 0.0
    %4602 = vmatprep.subr.mxu0 0.0
    %4603 = vmatpush1.msra.mxu0 0.0
    %4604 = vmatprep.subr.mxu0 0.0
    %4605 = vmatpush1.msra.mxu0 0.0
    %4606 = vmatprep.subr.mxu0 0.0
    %4607 = vmatpush1.msra.mxu0 0.0
    %4608 = vmatprep.subr.mxu0 0.0
    %4609 = vmatpush1.msra.mxu0 0.0
    %4610 = vmatprep.subr.mxu0 0.0
    %4611 = vmatpush1.msra.mxu0 0.0
    %4612 = vmatprep.subr.mxu0 0.0
    %4613 = vmatpush1.msra.mxu0 0.0
    %4614 = vmatprep.subr.mxu0 0.0
    %4615 = vmatpush1.msra.mxu0 0.0
    %4616 = vmatprep.subr.mxu0 0.0
    %4617 = vmatpush1.msra.mxu0 0.0
    %4618 = vmatprep.subr.mxu0 0.0
    %4619 = vmatpush1.msra.mxu0 0.0
    %4620 = vmatprep.subr.mxu0 0.0
    %4621 = vmatpush1.msra.mxu0 0.0
    %4622 = vmatprep.subr.mxu0 0.0
    %4623 = vmatpush1.msra.mxu0 0.0
    %4624 = vmatprep.subr.mxu0 0.0
    %4625 = vmatpush1.msra.mxu0 0.0
    %4626 = vmatprep.subr.mxu0 0.0
    %4627 = vmatpush1.msra.mxu0 0.0
    %4628 = vmatprep.subr.mxu0 0.0
    %4629 = vmatpush1.msra.mxu0 0.0
    %4630 = vmatprep.subr.mxu0 0.0
    %4631 = vmatpush1.msra.mxu0 0.0
    %4632 = vmatprep.subr.mxu0 0.0
    %4633 = vmatpush1.msra.mxu0 0.0
    %4634 = vmatprep.mubr.f32.mxu0 0.0
    %4635 = vmatmul.mubr.f32.gmra.mrb[0].mxu0 %v4565
    %v4636 = vpop.f32.mrb[0].mxu0
    %v4637 = vadd.f32 %v4562, %v4636
    %v4638 = vpop.f32.mrb[0].mxu0
    %4639 = vmatprep.mubr.f32.mxu0 0.0
    %4640 = vmatmul.mubr.f32.gmra.mrb[0].mxu0 %v4568
    %v4641 = vpop.f32.mrb[0].mxu0
    %v4642 = vadd.f32 %v4562, %v4641
    %v4643 = vpop.f32.mrb[0].mxu0
    %4644 = vdwg.mxu0
    %v4645 = vld [vmem:[#allocation14] sm:$0xff]
    %v4646 = vld [vmem:[#allocation14 + $0x8] sm:$0xff]
    %v4647 = vld [vmem:[#allocation14 + $0x10] sm:$0xff]
    %v4648 = vld [vmem:[#allocation14 + $0x18] sm:$0xff]
    %s4649 = scalar_lea.vmem [#allocation14], 32
    %v4650 = vld [vmem:[%s4649] sm:$0xff]
    %v4651 = vld [vmem:[%s4649 + $0x8] sm:$0xff]
    %v4652 = vld [vmem:[%s4649 + $0x10] sm:$0xff]
    %v4653 = vld [vmem:[%s4649 + $0x18] sm:$0xff]
    %s4654 = scalar_lea.vmem [#allocation14], 64
    %v4655 = vld [vmem:[%s4654] sm:$0xff]
    %v4656 = vld [vmem:[%s4654 + $0x8] sm:$0xff]
    %v4657 = vld [vmem:[%s4654 + $0x10] sm:$0xff]
    %v4658 = vld [vmem:[%s4654 + $0x18] sm:$0xff]
    %v4659 = vld [vmem:[%s12] sm:$0x1]
    %s4660 = scalar_lea.vmem %s12, 1
    %v4661 = vld [vmem:[%s4660] sm:$0x1]
    %s4662 = scalar_lea.vmem %s12, 2
    %v4663 = vld [vmem:[%s4662] sm:$0x1]
    %v4665 = vlaneseq
    %v4666 = vshrl.u32 %v4665, 7
    %v4667 = vsub.s32 0, %v4666
    %v4668 = vrot.slane %v4659, %v4667
    %4670 = vmatprep.subr.mxu0 0.0
    %4671 = vmatpush1.msra.mxu0 %v4645
    %4672 = vmatprep.subr.mxu0 0.0
    %4673 = vmatpush1.msra.mxu0 %v4646
    %4674 = vmatprep.subr.mxu0 0.0
    %4675 = vmatpush1.msra.mxu0 %v4647
    %4676 = vmatprep.subr.mxu0 0.0
    %4677 = vmatpush1.msra.mxu0 %v4648
    %4678 = vmatprep.subr.mxu0 0.0
    %4679 = vmatpush1.msra.mxu0 0.0
    %4680 = vmatprep.subr.mxu0 0.0
    %4681 = vmatpush1.msra.mxu0 0.0
    %4682 = vmatprep.subr.mxu0 0.0
    %4683 = vmatpush1.msra.mxu0 0.0
    %4684 = vmatprep.subr.mxu0 0.0
    %4685 = vmatpush1.msra.mxu0 0.0
    %4686 = vmatprep.subr.mxu0 0.0
    %4687 = vmatpush1.msra.mxu0 0.0
    %4688 = vmatprep.subr.mxu0 0.0
    %4689 = vmatpush1.msra.mxu0 0.0
    %4690 = vmatprep.subr.mxu0 0.0
    %4691 = vmatpush1.msra.mxu0 0.0
    %4692 = vmatprep.subr.mxu0 0.0
    %4693 = vmatpush1.msra.mxu0 0.0
    %4694 = vmatprep.subr.mxu0 0.0
    %4695 = vmatpush1.msra.mxu0 0.0
    %4696 = vmatprep.subr.mxu0 0.0
    %4697 = vmatpush1.msra.mxu0 0.0
    %4698 = vmatprep.subr.mxu0 0.0
    %4699 = vmatpush1.msra.mxu0 0.0
    %4700 = vmatprep.subr.mxu0 0.0
    %4701 = vmatpush1.msra.mxu0 0.0
    %4702 = vmatprep.subr.mxu0 0.0
    %4703 = vmatpush1.msra.mxu0 0.0
    %4704 = vmatprep.subr.mxu0 0.0
    %4705 = vmatpush1.msra.mxu0 0.0
    %4706 = vmatprep.subr.mxu0 0.0
    %4707 = vmatpush1.msra.mxu0 0.0
    %4708 = vmatprep.subr.mxu0 0.0
    %4709 = vmatpush1.msra.mxu0 0.0
    %4710 = vmatprep.subr.mxu0 0.0
    %4711 = vmatpush1.msra.mxu0 0.0
    %4712 = vmatprep.subr.mxu0 0.0
    %4713 = vmatpush1.msra.mxu0 0.0
    %4714 = vmatprep.subr.mxu0 0.0
    %4715 = vmatpush1.msra.mxu0 0.0
    %4716 = vmatprep.subr.mxu0 0.0
    %4717 = vmatpush1.msra.mxu0 0.0
    %4718 = vmatprep.subr.mxu0 0.0
    %4719 = vmatpush1.msra.mxu0 0.0
    %4720 = vmatprep.subr.mxu0 0.0
    %4721 = vmatpush1.msra.mxu0 0.0
    %4722 = vmatprep.subr.mxu0 0.0
    %4723 = vmatpush1.msra.mxu0 0.0
    %4724 = vmatprep.subr.mxu0 0.0
    %4725 = vmatpush1.msra.mxu0 0.0
    %4726 = vmatprep.subr.mxu0 0.0
    %4727 = vmatpush1.msra.mxu0 0.0
    %4728 = vmatprep.subr.mxu0 0.0
    %4729 = vmatpush1.msra.mxu0 0.0
    %4730 = vmatprep.subr.mxu0 0.0
    %4731 = vmatpush1.msra.mxu0 0.0
    %4732 = vmatprep.subr.mxu0 0.0
    %4733 = vmatpush1.msra.mxu0 0.0
    %4734 = vmatprep.mubr.f32.mxu0 0.0
    %4735 = vmatmul.mubr.f32.gmra.mrb[0].mxu0 %v266
    %v4736 = vpop.f32.mrb[0].mxu0
    %v4737 = vadd.f32 %v4668, %v4736
    %v4738 = vpop.f32.mrb[0].mxu0
    %4739 = vdwg.mxu0
    %v4741 = vlaneseq
    %v4742 = vshrl.u32 %v4741, 7
    %v4743 = vsub.s32 0, %v4742
    %v4744 = vrot.slane %v4661, %v4743
    %4746 = vmatprep.subr.mxu0 0.0
    %4747 = vmatpush1.msra.mxu0 %v4650
    %4748 = vmatprep.subr.mxu0 0.0
    %4749 = vmatpush1.msra.mxu0 %v4651
    %4750 = vmatprep.subr.mxu0 0.0
    %4751 = vmatpush1.msra.mxu0 %v4652
    %4752 = vmatprep.subr.mxu0 0.0
    %4753 = vmatpush1.msra.mxu0 %v4653
    %4754 = vmatprep.subr.mxu0 0.0
    %4755 = vmatpush1.msra.mxu0 0.0
    %4756 = vmatprep.subr.mxu0 0.0
    %4757 = vmatpush1.msra.mxu0 0.0
    %4758 = vmatprep.subr.mxu0 0.0
    %4759 = vmatpush1.msra.mxu0 0.0
    %4760 = vmatprep.subr.mxu0 0.0
    %4761 = vmatpush1.msra.mxu0 0.0
    %4762 = vmatprep.subr.mxu0 0.0
    %4763 = vmatpush1.msra.mxu0 0.0
    %4764 = vmatprep.subr.mxu0 0.0
    %4765 = vmatpush1.msra.mxu0 0.0
    %4766 = vmatprep.subr.mxu0 0.0
    %4767 = vmatpush1.msra.mxu0 0.0
    %4768 = vmatprep.subr.mxu0 0.0
    %4769 = vmatpush1.msra.mxu0 0.0
    %4770 = vmatprep.subr.mxu0 0.0
    %4771 = vmatpush1.msra.mxu0 0.0
    %4772 = vmatprep.subr.mxu0 0.0
    %4773 = vmatpush1.msra.mxu0 0.0
    %4774 = vmatprep.subr.mxu0 0.0
    %4775 = vmatpush1.msra.mxu0 0.0
    %4776 = vmatprep.subr.mxu0 0.0
    %4777 = vmatpush1.msra.mxu0 0.0
    %4778 = vmatprep.subr.mxu0 0.0
    %4779 = vmatpush1.msra.mxu0 0.0
    %4780 = vmatprep.subr.mxu0 0.0
    %4781 = vmatpush1.msra.mxu0 0.0
    %4782 = vmatprep.subr.mxu0 0.0
    %4783 = vmatpush1.msra.mxu0 0.0
    %4784 = vmatprep.subr.mxu0 0.0
    %4785 = vmatpush1.msra.mxu0 0.0
    %4786 = vmatprep.subr.mxu0 0.0
    %4787 = vmatpush1.msra.mxu0 0.0
    %4788 = vmatprep.subr.mxu0 0.0
    %4789 = vmatpush1.msra.mxu0 0.0
    %4790 = vmatprep.subr.mxu0 0.0
    %4791 = vmatpush1.msra.mxu0 0.0
    %4792 = vmatprep.subr.mxu0 0.0
    %4793 = vmatpush1.msra.mxu0 0.0
    %4794 = vmatprep.subr.mxu0 0.0
    %4795 = vmatpush1.msra.mxu0 0.0
    %4796 = vmatprep.subr.mxu0 0.0
    %4797 = vmatpush1.msra.mxu0 0.0
    %4798 = vmatprep.subr.mxu0 0.0
    %4799 = vmatpush1.msra.mxu0 0.0
    %4800 = vmatprep.subr.mxu0 0.0
    %4801 = vmatpush1.msra.mxu0 0.0
    %4802 = vmatprep.subr.mxu0 0.0
    %4803 = vmatpush1.msra.mxu0 0.0
    %4804 = vmatprep.subr.mxu0 0.0
    %4805 = vmatpush1.msra.mxu0 0.0
    %4806 = vmatprep.subr.mxu0 0.0
    %4807 = vmatpush1.msra.mxu0 0.0
    %4808 = vmatprep.subr.mxu0 0.0
    %4809 = vmatpush1.msra.mxu0 0.0
    %4810 = vmatprep.mubr.f32.mxu0 0.0
    %4811 = vmatmul.mubr.f32.gmra.mrb[0].mxu0 %v266
    %v4812 = vpop.f32.mrb[0].mxu0
    %v4813 = vadd.f32 %v4744, %v4812
    %v4814 = vpop.f32.mrb[0].mxu0
    %4815 = vdwg.mxu0
    %v4817 = vlaneseq
    %v4818 = vshrl.u32 %v4817, 7
    %v4819 = vsub.s32 0, %v4818
    %v4820 = vrot.slane %v4663, %v4819
    %4822 = vmatprep.subr.mxu0 0.0
    %4823 = vmatpush1.msra.mxu0 %v4655
    %4824 = vmatprep.subr.mxu0 0.0
    %4825 = vmatpush1.msra.mxu0 %v4656
    %4826 = vmatprep.subr.mxu0 0.0
    %4827 = vmatpush1.msra.mxu0 %v4657
    %4828 = vmatprep.subr.mxu0 0.0
    %4829 = vmatpush1.msra.mxu0 %v4658
    %4830 = vmatprep.subr.mxu0 0.0
    %4831 = vmatpush1.msra.mxu0 0.0
    %4832 = vmatprep.subr.mxu0 0.0
    %4833 = vmatpush1.msra.mxu0 0.0
    %4834 = vmatprep.subr.mxu0 0.0
    %4835 = vmatpush1.msra.mxu0 0.0
    %4836 = vmatprep.subr.mxu0 0.0
    %4837 = vmatpush1.msra.mxu0 0.0
    %4838 = vmatprep.subr.mxu0 0.0
    %4839 = vmatpush1.msra.mxu0 0.0
    %4840 = vmatprep.subr.mxu0 0.0
    %4841 = vmatpush1.msra.mxu0 0.0
    %4842 = vmatprep.subr.mxu0 0.0
    %4843 = vmatpush1.msra.mxu0 0.0
    %4844 = vmatprep.subr.mxu0 0.0
    %4845 = vmatpush1.msra.mxu0 0.0
    %4846 = vmatprep.subr.mxu0 0.0
    %4847 = vmatpush1.msra.mxu0 0.0
    %4848 = vmatprep.subr.mxu0 0.0
    %4849 = vmatpush1.msra.mxu0 0.0
    %4850 = vmatprep.subr.mxu0 0.0
    %4851 = vmatpush1.msra.mxu0 0.0
    %4852 = vmatprep.subr.mxu0 0.0
    %4853 = vmatpush1.msra.mxu0 0.0
    %4854 = vmatprep.subr.mxu0 0.0
    %4855 = vmatpush1.msra.mxu0 0.0
    %4856 = vmatprep.subr.mxu0 0.0
    %4857 = vmatpush1.msra.mxu0 0.0
    %4858 = vmatprep.subr.mxu0 0.0
    %4859 = vmatpush1.msra.mxu0 0.0
    %4860 = vmatprep.subr.mxu0 0.0
    %4861 = vmatpush1.msra.mxu0 0.0
    %4862 = vmatprep.subr.mxu0 0.0
    %4863 = vmatpush1.msra.mxu0 0.0
    %4864 = vmatprep.subr.mxu0 0.0
    %4865 = vmatpush1.msra.mxu0 0.0
    %4866 = vmatprep.subr.mxu0 0.0
    %4867 = vmatpush1.msra.mxu0 0.0
    %4868 = vmatprep.subr.mxu0 0.0
    %4869 = vmatpush1.msra.mxu0 0.0
    %4870 = vmatprep.subr.mxu0 0.0
    %4871 = vmatpush1.msra.mxu0 0.0
    %4872 = vmatprep.subr.mxu0 0.0
    %4873 = vmatpush1.msra.mxu0 0.0
    %4874 = vmatprep.subr.mxu0 0.0
    %4875 = vmatpush1.msra.mxu0 0.0
    %4876 = vmatprep.subr.mxu0 0.0
    %4877 = vmatpush1.msra.mxu0 0.0
    %4878 = vmatprep.subr.mxu0 0.0
    %4879 = vmatpush1.msra.mxu0 0.0
    %4880 = vmatprep.subr.mxu0 0.0
    %4881 = vmatpush1.msra.mxu0 0.0
    %4882 = vmatprep.subr.mxu0 0.0
    %4883 = vmatpush1.msra.mxu0 0.0
    %4884 = vmatprep.subr.mxu0 0.0
    %4885 = vmatpush1.msra.mxu0 0.0
    %4886 = vmatprep.mubr.f32.mxu0 0.0
    %4887 = vmatmul.mubr.f32.gmra.mrb[0].mxu0 %v266
    %v4888 = vpop.f32.mrb[0].mxu0
    %v4889 = vadd.f32 %v4820, %v4888
    %v4890 = vpop.f32.mrb[0].mxu0
    %4891 = vdwg.mxu0
    %v4892 = vadd.f32 %v4637, %v4737
    %v4893 = vxor.u32 %v4892, 2147483648
    %v4894 = vmul.f32 %v4893, 1.442695
    %v4895 = vpow.pop %v4894
    %v4896 = vadd.f32 %v4895, 1.0
    %v4897 = vrcp.pop %v4896
    %v4898 = vmul.f32 1.0, %v4897
    %4900 = vrot.lane.b32.xlu0 %v4813, 32
    %v4901 = vpop.permute.xlu0 %4900
    %v4903 = vadd.f32 %v4637, %v4901
    %v4904 = vxor.u32 %v4903, 2147483648
    %v4905 = vmul.f32 %v4904, 1.442695
    %v4906 = vpow.pop %v4905
    %v4907 = vadd.f32 %v4906, 1.0
    %v4908 = vrcp.pop %v4907
    %v4909 = vmul.f32 1.0, %v4908
    %v4910 = vmul.f32 %v4898, %v4889
    %4912 = vrot.lane.b32.xlu0 %v4910, 64
    %v4913 = vpop.permute.xlu0 %4912
    %v4915 = vadd.f32 %v4637, %v4913
    %v4916 = vtanh.pop %v4915
    %v4917 = vsub.f32 1.0, %v4909
    %4919 = vrot.lane.b32.xlu0 %v4916, 96
    %v4920 = vpop.permute.xlu0 %4919
    %v4922 = vmul.f32 %v4917, %v4920
    %v4923 = vmul.f32 %v4909, 0.0
    %v4924 = vadd.f32 %v4922, %v4923
    %4926 = vrot.lane.b32.xlu0 %v4924, 96
    %v4927 = vpop.permute.xlu0 %4926
    %v4928 = vsel %vm264, %v4927, 0
    %4930 = vmatprep.subr.mxu0 0.0
    %4931 = vmatpush1.msra.mxu0 %v4645
    %4932 = vmatprep.subr.mxu0 0.0
    %4933 = vmatpush1.msra.mxu0 %v4646
    %4934 = vmatprep.subr.mxu0 0.0
    %4935 = vmatpush1.msra.mxu0 %v4647
    %4936 = vmatprep.subr.mxu0 0.0
    %4937 = vmatpush1.msra.mxu0 %v4648
    %4938 = vmatprep.subr.mxu0 0.0
    %4939 = vmatpush1.msra.mxu0 0.0
    %4940 = vmatprep.subr.mxu0 0.0
    %4941 = vmatpush1.msra.mxu0 0.0
    %4942 = vmatprep.subr.mxu0 0.0
    %4943 = vmatpush1.msra.mxu0 0.0
    %4944 = vmatprep.subr.mxu0 0.0
    %4945 = vmatpush1.msra.mxu0 0.0
    %4946 = vmatprep.subr.mxu0 0.0
    %4947 = vmatpush1.msra.mxu0 0.0
    %4948 = vmatprep.subr.mxu0 0.0
    %4949 = vmatpush1.msra.mxu0 0.0
    %4950 = vmatprep.subr.mxu0 0.0
    %4951 = vmatpush1.msra.mxu0 0.0
    %4952 = vmatprep.subr.mxu0 0.0
    %4953 = vmatpush1.msra.mxu0 0.0
    %4954 = vmatprep.subr.mxu0 0.0
    %4955 = vmatpush1.msra.mxu0 0.0
    %4956 = vmatprep.subr.mxu0 0.0
    %4957 = vmatpush1.msra.mxu0 0.0
    %4958 = vmatprep.subr.mxu0 0.0
    %4959 = vmatpush1.msra.mxu0 0.0
    %4960 = vmatprep.subr.mxu0 0.0
    %4961 = vmatpush1.msra.mxu0 0.0
    %4962 = vmatprep.subr.mxu0 0.0
    %4963 = vmatpush1.msra.mxu0 0.0
    %4964 = vmatprep.subr.mxu0 0.0
    %4965 = vmatpush1.msra.mxu0 0.0
    %4966 = vmatprep.subr.mxu0 0.0
    %4967 = vmatpush1.msra.mxu0 0.0
    %4968 = vmatprep.subr.mxu0 0.0
    %4969 = vmatpush1.msra.mxu0 0.0
    %4970 = vmatprep.subr.mxu0 0.0
    %4971 = vmatpush1.msra.mxu0 0.0
    %4972 = vmatprep.subr.mxu0 0.0
    %4973 = vmatpush1.msra.mxu0 0.0
    %4974 = vmatprep.subr.mxu0 0.0
    %4975 = vmatpush1.msra.mxu0 0.0
    %4976 = vmatprep.subr.mxu0 0.0
    %4977 = vmatpush1.msra.mxu0 0.0
    %4978 = vmatprep.subr.mxu0 0.0
    %4979 = vmatpush1.msra.mxu0 0.0
    %4980 = vmatprep.subr.mxu0 0.0
    %4981 = vmatpush1.msra.mxu0 0.0
    %4982 = vmatprep.subr.mxu0 0.0
    %4983 = vmatpush1.msra.mxu0 0.0
    %4984 = vmatprep.subr.mxu0 0.0
    %4985 = vmatpush1.msra.mxu0 0.0
    %4986 = vmatprep.subr.mxu0 0.0
    %4987 = vmatpush1.msra.mxu0 0.0
    %4988 = vmatprep.subr.mxu0 0.0
    %4989 = vmatpush1.msra.mxu0 0.0
    %4990 = vmatprep.subr.mxu0 0.0
    %4991 = vmatpush1.msra.mxu0 0.0
    %4992 = vmatprep.subr.mxu0 0.0
    %4993 = vmatpush1.msra.mxu0 0.0
    %4994 = vmatprep.mubr.f32.mxu0 0.0
    %4995 = vmatmul.mubr.f32.gmra.mrb[0].mxu0 %v4928
    %v4996 = vpop.f32.mrb[0].mxu0
    %v4997 = vadd.f32 %v4668, %v4996
    %v4998 = vpop.f32.mrb[0].mxu0
    %4999 = vdwg.mxu0
    %5000 = vmatprep.subr.mxu0 0.0
    %5001 = vmatpush1.msra.mxu0 %v4650
    %5002 = vmatprep.subr.mxu0 0.0
    %5003 = vmatpush1.msra.mxu0 %v4651
    %5004 = vmatprep.subr.mxu0 0.0
    %5005 = vmatpush1.msra.mxu0 %v4652
    %5006 = vmatprep.subr.mxu0 0.0
    %5007 = vmatpush1.msra.mxu0 %v4653
    %5008 = vmatprep.subr.mxu0 0.0
    %5009 = vmatpush1.msra.mxu0 0.0
    %5010 = vmatprep.subr.mxu0 0.0
    %5011 = vmatpush1.msra.mxu0 0.0
    %5012 = vmatprep.subr.mxu0 0.0
    %5013 = vmatpush1.msra.mxu0 0.0
    %5014 = vmatprep.subr.mxu0 0.0
    %5015 = vmatpush1.msra.mxu0 0.0
    %5016 = vmatprep.subr.mxu0 0.0
    %5017 = vmatpush1.msra.mxu0 0.0
    %5018 = vmatprep.subr.mxu0 0.0
    %5019 = vmatpush1.msra.mxu0 0.0
    %5020 = vmatprep.subr.mxu0 0.0
    %5021 = vmatpush1.msra.mxu0 0.0
    %5022 = vmatprep.subr.mxu0 0.0
    %5023 = vmatpush1.msra.mxu0 0.0
    %5024 = vmatprep.subr.mxu0 0.0
    %5025 = vmatpush1.msra.mxu0 0.0
    %5026 = vmatprep.subr.mxu0 0.0
    %5027 = vmatpush1.msra.mxu0 0.0
    %5028 = vmatprep.subr.mxu0 0.0
    %5029 = vmatpush1.msra.mxu0 0.0
    %5030 = vmatprep.subr.mxu0 0.0
    %5031 = vmatpush1.msra.mxu0 0.0
    %5032 = vmatprep.subr.mxu0 0.0
    %5033 = vmatpush1.msra.mxu0 0.0
    %5034 = vmatprep.subr.mxu0 0.0
    %5035 = vmatpush1.msra.mxu0 0.0
    %5036 = vmatprep.subr.mxu0 0.0
    %5037 = vmatpush1.msra.mxu0 0.0
    %5038 = vmatprep.subr.mxu0 0.0
    %5039 = vmatpush1.msra.mxu0 0.0
    %5040 = vmatprep.subr.mxu0 0.0
    %5041 = vmatpush1.msra.mxu0 0.0
    %5042 = vmatprep.subr.mxu0 0.0
    %5043 = vmatpush1.msra.mxu0 0.0
    %5044 = vmatprep.subr.mxu0 0.0
    %5045 = vmatpush1.msra.mxu0 0.0
    %5046 = vmatprep.subr.mxu0 0.0
    %5047 = vmatpush1.msra.mxu0 0.0
    %5048 = vmatprep.subr.mxu0 0.0
    %5049 = vmatpush1.msra.mxu0 0.0
    %5050 = vmatprep.subr.mxu0 0.0
    %5051 = vmatpush1.msra.mxu0 0.0
    %5052 = vmatprep.subr.mxu0 0.0
    %5053 = vmatpush1.msra.mxu0 0.0
    %5054 = vmatprep.subr.mxu0 0.0
    %5055 = vmatpush1.msra.mxu0 0.0
    %5056 = vmatprep.subr.mxu0 0.0
    %5057 = vmatpush1.msra.mxu0 0.0
    %5058 = vmatprep.subr.mxu0 0.0
    %5059 = vmatpush1.msra.mxu0 0.0
    %5060 = vmatprep.subr.mxu0 0.0
    %5061 = vmatpush1.msra.mxu0 0.0
    %5062 = vmatprep.subr.mxu0 0.0
    %5063 = vmatpush1.msra.mxu0 0.0
    %5064 = vmatprep.mubr.f32.mxu0 0.0
    %5065 = vmatmul.mubr.f32.gmra.mrb[0].mxu0 %v4928
    %v5066 = vpop.f32.mrb[0].mxu0
    %v5067 = vadd.f32 %v4744, %v5066
    %v5068 = vpop.f32.mrb[0].mxu0
    %5069 = vdwg.mxu0
    %5070 = vmatprep.subr.mxu0 0.0
    %5071 = vmatpush1.msra.mxu0 %v4655
    %5072 = vmatprep.subr.mxu0 0.0
    %5073 = vmatpush1.msra.mxu0 %v4656
    %5074 = vmatprep.subr.mxu0 0.0
    %5075 = vmatpush1.msra.mxu0 %v4657
    %5076 = vmatprep.subr.mxu0 0.0
    %5077 = vmatpush1.msra.mxu0 %v4658
    %5078 = vmatprep.subr.mxu0 0.0
    %5079 = vmatpush1.msra.mxu0 0.0
    %5080 = vmatprep.subr.mxu0 0.0
    %5081 = vmatpush1.msra.mxu0 0.0
    %5082 = vmatprep.subr.mxu0 0.0
    %5083 = vmatpush1.msra.mxu0 0.0
    %5084 = vmatprep.subr.mxu0 0.0
    %5085 = vmatpush1.msra.mxu0 0.0
    %5086 = vmatprep.subr.mxu0 0.0
    %5087 = vmatpush1.msra.mxu0 0.0
    %5088 = vmatprep.subr.mxu0 0.0
    %5089 = vmatpush1.msra.mxu0 0.0
    %5090 = vmatprep.subr.mxu0 0.0
    %5091 = vmatpush1.msra.mxu0 0.0
    %5092 = vmatprep.subr.mxu0 0.0
    %5093 = vmatpush1.msra.mxu0 0.0
    %5094 = vmatprep.subr.mxu0 0.0
    %5095 = vmatpush1.msra.mxu0 0.0
    %5096 = vmatprep.subr.mxu0 0.0
    %5097 = vmatpush1.msra.mxu0 0.0
    %5098 = vmatprep.subr.mxu0 0.0
    %5099 = vmatpush1.msra.mxu0 0.0
    %5100 = vmatprep.subr.mxu0 0.0
    %5101 = vmatpush1.msra.mxu0 0.0
    %5102 = vmatprep.subr.mxu0 0.0
    %5103 = vmatpush1.msra.mxu0 0.0
    %5104 = vmatprep.subr.mxu0 0.0
    %5105 = vmatpush1.msra.mxu0 0.0
    %5106 = vmatprep.subr.mxu0 0.0
    %5107 = vmatpush1.msra.mxu0 0.0
    %5108 = vmatprep.subr.mxu0 0.0
    %5109 = vmatpush1.msra.mxu0 0.0
    %5110 = vmatprep.subr.mxu0 0.0
    %5111 = vmatpush1.msra.mxu0 0.0
    %5112 = vmatprep.subr.mxu0 0.0
    %5113 = vmatpush1.msra.mxu0 0.0
    %5114 = vmatprep.subr.mxu0 0.0
    %5115 = vmatpush1.msra.mxu0 0.0
    %5116 = vmatprep.subr.mxu0 0.0
    %5117 = vmatpush1.msra.mxu0 0.0
    %5118 = vmatprep.subr.mxu0 0.0
    %5119 = vmatpush1.msra.mxu0 0.0
    %5120 = vmatprep.subr.mxu0 0.0
    %5121 = vmatpush1.msra.mxu0 0.0
    %5122 = vmatprep.subr.mxu0 0.0
    %5123 = vmatpush1.msra.mxu0 0.0
    %5124 = vmatprep.subr.mxu0 0.0
    %5125 = vmatpush1.msra.mxu0 0.0
    %5126 = vmatprep.subr.mxu0 0.0
    %5127 = vmatpush1.msra.mxu0 0.0
    %5128 = vmatprep.subr.mxu0 0.0
    %5129 = vmatpush1.msra.mxu0 0.0
    %5130 = vmatprep.subr.mxu0 0.0
    %5131 = vmatpush1.msra.mxu0 0.0
    %5132 = vmatprep.subr.mxu0 0.0
    %5133 = vmatpush1.msra.mxu0 0.0
    %5134 = vmatprep.mubr.f32.mxu0 0.0
    %5135 = vmatmul.mubr.f32.gmra.mrb[0].mxu0 %v4928
    %v5136 = vpop.f32.mrb[0].mxu0
    %v5137 = vadd.f32 %v4820, %v5136
    %v5138 = vpop.f32.mrb[0].mxu0
    %5139 = vdwg.mxu0
    %v5141 = vrot.slane %v4997, 6
    %v5143 = vadd.f32 %v4637, %v5141
    %v5144 = vxor.u32 %v5143, 2147483648
    %v5145 = vmul.f32 %v5144, 1.442695
    %v5146 = vpow.pop %v5145
    %v5147 = vadd.f32 %v5146, 1.0
    %v5148 = vrcp.pop %v5147
    %v5149 = vmul.f32 1.0, %v5148
    %v5151 = vrot.slane %v5067, 6
    %5152 = vrot.lane.b32.xlu0 %v5151, 32
    %v5153 = vpop.permute.xlu0 %5152
    %v5155 = vadd.f32 %v4637, %v5153
    %v5156 = vxor.u32 %v5155, 2147483648
    %v5157 = vmul.f32 %v5156, 1.442695
    %v5158 = vpow.pop %v5157
    %v5159 = vadd.f32 %v5158, 1.0
    %v5160 = vrcp.pop %v5159
    %v5161 = vmul.f32 1.0, %v5160
    %v5163 = vrot.slane %v5137, 6
    %v5165 = vmul.f32 %v5149, %v5163
    %5167 = vrot.lane.b32.xlu0 %v5165, 64
    %v5168 = vpop.permute.xlu0 %5167
    %v5170 = vadd.f32 %v4637, %v5168
    %v5171 = vtanh.pop %v5170
    %v5172 = vsub.f32 1.0, %v5161
    %5174 = vrot.lane.b32.xlu0 %v5171, 96
    %v5175 = vpop.permute.xlu0 %5174
    %v5177 = vmul.f32 %v5172, %v5175
    %v5178 = vrot.slane %v4924, 6
    %v5180 = vmul.f32 %v5161, %v5178
    %v5181 = vadd.f32 %v5177, %v5180
    %v5183 = vrot.slane %v5181, 2
    %5184 = vrot.lane.b32.xlu0 %v5183, 96
    %v5185 = vpop.permute.xlu0 %5184
    %v5186 = vsel %vm264, %v5185, 0
    %5188 = vmatprep.subr.mxu0 0.0
    %5189 = vmatpush1.msra.mxu0 %v4645
    %5190 = vmatprep.subr.mxu0 0.0
    %5191 = vmatpush1.msra.mxu0 %v4646
    %5192 = vmatprep.subr.mxu0 0.0
    %5193 = vmatpush1.msra.mxu0 %v4647
    %5194 = vmatprep.subr.mxu0 0.0
    %5195 = vmatpush1.msra.mxu0 %v4648
    %5196 = vmatprep.subr.mxu0 0.0
    %5197 = vmatpush1.msra.mxu0 0.0
    %5198 = vmatprep.subr.mxu0 0.0
    %5199 = vmatpush1.msra.mxu0 0.0
    %5200 = vmatprep.subr.mxu0 0.0
    %5201 = vmatpush1.msra.mxu0 0.0
    %5202 = vmatprep.subr.mxu0 0.0
    %5203 = vmatpush1.msra.mxu0 0.0
    %5204 = vmatprep.subr.mxu0 0.0
    %5205 = vmatpush1.msra.mxu0 0.0
    %5206 = vmatprep.subr.mxu0 0.0
    %5207 = vmatpush1.msra.mxu0 0.0
    %5208 = vmatprep.subr.mxu0 0.0
    %5209 = vmatpush1.msra.mxu0 0.0
    %5210 = vmatprep.subr.mxu0 0.0
    %5211 = vmatpush1.msra.mxu0 0.0
    %5212 = vmatprep.subr.mxu0 0.0
    %5213 = vmatpush1.msra.mxu0 0.0
    %5214 = vmatprep.subr.mxu0 0.0
    %5215 = vmatpush1.msra.mxu0 0.0
    %5216 = vmatprep.subr.mxu0 0.0
    %5217 = vmatpush1.msra.mxu0 0.0
    %5218 = vmatprep.subr.mxu0 0.0
    %5219 = vmatpush1.msra.mxu0 0.0
    %5220 = vmatprep.subr.mxu0 0.0
    %5221 = vmatpush1.msra.mxu0 0.0
    %5222 = vmatprep.subr.mxu0 0.0
    %5223 = vmatpush1.msra.mxu0 0.0
    %5224 = vmatprep.subr.mxu0 0.0
    %5225 = vmatpush1.msra.mxu0 0.0
    %5226 = vmatprep.subr.mxu0 0.0
    %5227 = vmatpush1.msra.mxu0 0.0
    %5228 = vmatprep.subr.mxu0 0.0
    %5229 = vmatpush1.msra.mxu0 0.0
    %5230 = vmatprep.subr.mxu0 0.0
    %5231 = vmatpush1.msra.mxu0 0.0
    %5232 = vmatprep.subr.mxu0 0.0
    %5233 = vmatpush1.msra.mxu0 0.0
    %5234 = vmatprep.subr.mxu0 0.0
    %5235 = vmatpush1.msra.mxu0 0.0
    %5236 = vmatprep.subr.mxu0 0.0
    %5237 = vmatpush1.msra.mxu0 0.0
    %5238 = vmatprep.subr.mxu0 0.0
    %5239 = vmatpush1.msra.mxu0 0.0
    %5240 = vmatprep.subr.mxu0 0.0
    %5241 = vmatpush1.msra.mxu0 0.0
    %5242 = vmatprep.subr.mxu0 0.0
    %5243 = vmatpush1.msra.mxu0 0.0
    %5244 = vmatprep.subr.mxu0 0.0
    %5245 = vmatpush1.msra.mxu0 0.0
    %5246 = vmatprep.subr.mxu0 0.0
    %5247 = vmatpush1.msra.mxu0 0.0
    %5248 = vmatprep.subr.mxu0 0.0
    %5249 = vmatpush1.msra.mxu0 0.0
    %5250 = vmatprep.subr.mxu0 0.0
    %5251 = vmatpush1.msra.mxu0 0.0
    %5252 = vmatprep.mubr.f32.mxu0 0.0
    %5253 = vmatmul.mubr.f32.gmra.mrb[0].mxu0 %v5186
    %v5254 = vpop.f32.mrb[0].mxu0
    %v5255 = vadd.f32 %v4668, %v5254
    %v5256 = vpop.f32.mrb[0].mxu0
    %5257 = vdwg.mxu0
    %5258 = vmatprep.subr.mxu0 0.0
    %5259 = vmatpush1.msra.mxu0 %v4650
    %5260 = vmatprep.subr.mxu0 0.0
    %5261 = vmatpush1.msra.mxu0 %v4651
    %5262 = vmatprep.subr.mxu0 0.0
    %5263 = vmatpush1.msra.mxu0 %v4652
    %5264 = vmatprep.subr.mxu0 0.0
    %5265 = vmatpush1.msra.mxu0 %v4653
    %5266 = vmatprep.subr.mxu0 0.0
    %5267 = vmatpush1.msra.mxu0 0.0
    %5268 = vmatprep.subr.mxu0 0.0
    %5269 = vmatpush1.msra.mxu0 0.0
    %5270 = vmatprep.subr.mxu0 0.0
    %5271 = vmatpush1.msra.mxu0 0.0
    %5272 = vmatprep.subr.mxu0 0.0
    %5273 = vmatpush1.msra.mxu0 0.0
    %5274 = vmatprep.subr.mxu0 0.0
    %5275 = vmatpush1.msra.mxu0 0.0
    %5276 = vmatprep.subr.mxu0 0.0
    %5277 = vmatpush1.msra.mxu0 0.0
    %5278 = vmatprep.subr.mxu0 0.0
    %5279 = vmatpush1.msra.mxu0 0.0
    %5280 = vmatprep.subr.mxu0 0.0
    %5281 = vmatpush1.msra.mxu0 0.0
    %5282 = vmatprep.subr.mxu0 0.0
    %5283 = vmatpush1.msra.mxu0 0.0
    %5284 = vmatprep.subr.mxu0 0.0
    %5285 = vmatpush1.msra.mxu0 0.0
    %5286 = vmatprep.subr.mxu0 0.0
    %5287 = vmatpush1.msra.mxu0 0.0
    %5288 = vmatprep.subr.mxu0 0.0
    %5289 = vmatpush1.msra.mxu0 0.0
    %5290 = vmatprep.subr.mxu0 0.0
    %5291 = vmatpush1.msra.mxu0 0.0
    %5292 = vmatprep.subr.mxu0 0.0
    %5293 = vmatpush1.msra.mxu0 0.0
    %5294 = vmatprep.subr.mxu0 0.0
    %5295 = vmatpush1.msra.mxu0 0.0
    %5296 = vmatprep.subr.mxu0 0.0
    %5297 = vmatpush1.msra.mxu0 0.0
    %5298 = vmatprep.subr.mxu0 0.0
    %5299 = vmatpush1.msra.mxu0 0.0
    %5300 = vmatprep.subr.mxu0 0.0
    %5301 = vmatpush1.msra.mxu0 0.0
    %5302 = vmatprep.subr.mxu0 0.0
    %5303 = vmatpush1.msra.mxu0 0.0
    %5304 = vmatprep.subr.mxu0 0.0
    %5305 = vmatpush1.msra.mxu0 0.0
    %5306 = vmatprep.subr.mxu0 0.0
    %5307 = vmatpush1.msra.mxu0 0.0
    %5308 = vmatprep.subr.mxu0 0.0
    %5309 = vmatpush1.msra.mxu0 0.0
    %5310 = vmatprep.subr.mxu0 0.0
    %5311 = vmatpush1.msra.mxu0 0.0
    %5312 = vmatprep.subr.mxu0 0.0
    %5313 = vmatpush1.msra.mxu0 0.0
    %5314 = vmatprep.subr.mxu0 0.0
    %5315 = vmatpush1.msra.mxu0 0.0
    %5316 = vmatprep.subr.mxu0 0.0
    %5317 = vmatpush1.msra.mxu0 0.0
    %5318 = vmatprep.subr.mxu0 0.0
    %5319 = vmatpush1.msra.mxu0 0.0
    %5320 = vmatprep.subr.mxu0 0.0
    %5321 = vmatpush1.msra.mxu0 0.0
    %5322 = vmatprep.mubr.f32.mxu0 0.0
    %5323 = vmatmul.mubr.f32.gmra.mrb[0].mxu0 %v5186
    %v5324 = vpop.f32.mrb[0].mxu0
    %v5325 = vadd.f32 %v4744, %v5324
    %v5326 = vpop.f32.mrb[0].mxu0
    %5327 = vdwg.mxu0
    %5328 = vmatprep.subr.mxu0 0.0
    %5329 = vmatpush1.msra.mxu0 %v4655
    %5330 = vmatprep.subr.mxu0 0.0
    %5331 = vmatpush1.msra.mxu0 %v4656
    %5332 = vmatprep.subr.mxu0 0.0
    %5333 = vmatpush1.msra.mxu0 %v4657
    %5334 = vmatprep.subr.mxu0 0.0
    %5335 = vmatpush1.msra.mxu0 %v4658
    %5336 = vmatprep.subr.mxu0 0.0
    %5337 = vmatpush1.msra.mxu0 0.0
    %5338 = vmatprep.subr.mxu0 0.0
    %5339 = vmatpush1.msra.mxu0 0.0
    %5340 = vmatprep.subr.mxu0 0.0
    %5341 = vmatpush1.msra.mxu0 0.0
    %5342 = vmatprep.subr.mxu0 0.0
    %5343 = vmatpush1.msra.mxu0 0.0
    %5344 = vmatprep.subr.mxu0 0.0
    %5345 = vmatpush1.msra.mxu0 0.0
    %5346 = vmatprep.subr.mxu0 0.0
    %5347 = vmatpush1.msra.mxu0 0.0
    %5348 = vmatprep.subr.mxu0 0.0
    %5349 = vmatpush1.msra.mxu0 0.0
    %5350 = vmatprep.subr.mxu0 0.0
    %5351 = vmatpush1.msra.mxu0 0.0
    %5352 = vmatprep.subr.mxu0 0.0
    %5353 = vmatpush1.msra.mxu0 0.0
    %5354 = vmatprep.subr.mxu0 0.0
    %5355 = vmatpush1.msra.mxu0 0.0
    %5356 = vmatprep.subr.mxu0 0.0
    %5357 = vmatpush1.msra.mxu0 0.0
    %5358 = vmatprep.subr.mxu0 0.0
    %5359 = vmatpush1.msra.mxu0 0.0
    %5360 = vmatprep.subr.mxu0 0.0
    %5361 = vmatpush1.msra.mxu0 0.0
    %5362 = vmatprep.subr.mxu0 0.0
    %5363 = vmatpush1.msra.mxu0 0.0
    %5364 = vmatprep.subr.mxu0 0.0
    %5365 = vmatpush1.msra.mxu0 0.0
    %5366 = vmatprep.subr.mxu0 0.0
    %5367 = vmatpush1.msra.mxu0 0.0
    %5368 = vmatprep.subr.mxu0 0.0
    %5369 = vmatpush1.msra.mxu0 0.0
    %5370 = vmatprep.subr.mxu0 0.0
    %5371 = vmatpush1.msra.mxu0 0.0
    %5372 = vmatprep.subr.mxu0 0.0
    %5373 = vmatpush1.msra.mxu0 0.0
    %5374 = vmatprep.subr.mxu0 0.0
    %5375 = vmatpush1.msra.mxu0 0.0
    %5376 = vmatprep.subr.mxu0 0.0
    %5377 = vmatpush1.msra.mxu0 0.0
    %5378 = vmatprep.subr.mxu0 0.0
    %5379 = vmatpush1.msra.mxu0 0.0
    %5380 = vmatprep.subr.mxu0 0.0
    %5381 = vmatpush1.msra.mxu0 0.0
    %5382 = vmatprep.subr.mxu0 0.0
    %5383 = vmatpush1.msra.mxu0 0.0
    %5384 = vmatprep.subr.mxu0 0.0
    %5385 = vmatpush1.msra.mxu0 0.0
    %5386 = vmatprep.subr.mxu0 0.0
    %5387 = vmatpush1.msra.mxu0 0.0
    %5388 = vmatprep.subr.mxu0 0.0
    %5389 = vmatpush1.msra.mxu0 0.0
    %5390 = vmatprep.subr.mxu0 0.0
    %5391 = vmatpush1.msra.mxu0 0.0
    %5392 = vmatprep.mubr.f32.mxu0 0.0
    %5393 = vmatmul.mubr.f32.gmra.mrb[0].mxu0 %v5186
    %v5394 = vpop.f32.mrb[0].mxu0
    %v5395 = vadd.f32 %v4820, %v5394
    %v5396 = vpop.f32.mrb[0].mxu0
    %5397 = vdwg.mxu0
    %v5399 = vrot.slane %v5255, 4
    %v5401 = vadd.f32 %v4637, %v5399
    %v5402 = vxor.u32 %v5401, 2147483648
    %v5403 = vmul.f32 %v5402, 1.442695
    %v5404 = vpow.pop %v5403
    %v5405 = vadd.f32 %v5404, 1.0
    %v5406 = vrcp.pop %v5405
    %v5407 = vmul.f32 1.0, %v5406
    %v5409 = vrot.slane %v5325, 4
    %5410 = vrot.lane.b32.xlu0 %v5409, 32
    %v5411 = vpop.permute.xlu0 %5410
    %v5413 = vadd.f32 %v4637, %v5411
    %v5414 = vxor.u32 %v5413, 2147483648
    %v5415 = vmul.f32 %v5414, 1.442695
    %v5416 = vpow.pop %v5415
    %v5417 = vadd.f32 %v5416, 1.0
    %v5418 = vrcp.pop %v5417
    %v5419 = vmul.f32 1.0, %v5418
    %v5421 = vrot.slane %v5395, 4
    %v5423 = vmul.f32 %v5407, %v5421
    %5425 = vrot.lane.b32.xlu0 %v5423, 64
    %v5426 = vpop.permute.xlu0 %5425
    %v5428 = vadd.f32 %v4637, %v5426
    %v5429 = vtanh.pop %v5428
    %v5430 = vsub.f32 1.0, %v5419
    %5432 = vrot.lane.b32.xlu0 %v5429, 96
    %v5433 = vpop.permute.xlu0 %5432
    %v5435 = vmul.f32 %v5430, %v5433
    %v5436 = vrot.slane %v5181, 6
    %v5438 = vmul.f32 %v5419, %v5436
    %v5439 = vadd.f32 %v5435, %v5438
    %v5441 = vrot.slane %v5439, 4
    %5442 = vrot.lane.b32.xlu0 %v5441, 96
    %v5443 = vpop.permute.xlu0 %5442
    %v5444 = vsel %vm264, %v5443, 0
    %5446 = vmatprep.subr.mxu0 0.0
    %5447 = vmatpush1.msra.mxu0 %v4645
    %5448 = vmatprep.subr.mxu0 0.0
    %5449 = vmatpush1.msra.mxu0 %v4646
    %5450 = vmatprep.subr.mxu0 0.0
    %5451 = vmatpush1.msra.mxu0 %v4647
    %5452 = vmatprep.subr.mxu0 0.0
    %5453 = vmatpush1.msra.mxu0 %v4648
    %5454 = vmatprep.subr.mxu0 0.0
    %5455 = vmatpush1.msra.mxu0 0.0
    %5456 = vmatprep.subr.mxu0 0.0
    %5457 = vmatpush1.msra.mxu0 0.0
    %5458 = vmatprep.subr.mxu0 0.0
    %5459 = vmatpush1.msra.mxu0 0.0
    %5460 = vmatprep.subr.mxu0 0.0
    %5461 = vmatpush1.msra.mxu0 0.0
    %5462 = vmatprep.subr.mxu0 0.0
    %5463 = vmatpush1.msra.mxu0 0.0
    %5464 = vmatprep.subr.mxu0 0.0
    %5465 = vmatpush1.msra.mxu0 0.0
    %5466 = vmatprep.subr.mxu0 0.0
    %5467 = vmatpush1.msra.mxu0 0.0
    %5468 = vmatprep.subr.mxu0 0.0
    %5469 = vmatpush1.msra.mxu0 0.0
    %5470 = vmatprep.subr.mxu0 0.0
    %5471 = vmatpush1.msra.mxu0 0.0
    %5472 = vmatprep.subr.mxu0 0.0
    %5473 = vmatpush1.msra.mxu0 0.0
    %5474 = vmatprep.subr.mxu0 0.0
    %5475 = vmatpush1.msra.mxu0 0.0
    %5476 = vmatprep.subr.mxu0 0.0
    %5477 = vmatpush1.msra.mxu0 0.0
    %5478 = vmatprep.subr.mxu0 0.0
    %5479 = vmatpush1.msra.mxu0 0.0
    %5480 = vmatprep.subr.mxu0 0.0
    %5481 = vmatpush1.msra.mxu0 0.0
    %5482 = vmatprep.subr.mxu0 0.0
    %5483 = vmatpush1.msra.mxu0 0.0
    %5484 = vmatprep.subr.mxu0 0.0
    %5485 = vmatpush1.msra.mxu0 0.0
    %5486 = vmatprep.subr.mxu0 0.0
    %5487 = vmatpush1.msra.mxu0 0.0
    %5488 = vmatprep.subr.mxu0 0.0
    %5489 = vmatpush1.msra.mxu0 0.0
    %5490 = vmatprep.subr.mxu0 0.0
    %5491 = vmatpush1.msra.mxu0 0.0
    %5492 = vmatprep.subr.mxu0 0.0
    %5493 = vmatpush1.msra.mxu0 0.0
    %5494 = vmatprep.subr.mxu0 0.0
    %5495 = vmatpush1.msra.mxu0 0.0
    %5496 = vmatprep.subr.mxu0 0.0
    %5497 = vmatpush1.msra.mxu0 0.0
    %5498 = vmatprep.subr.mxu0 0.0
    %5499 = vmatpush1.msra.mxu0 0.0
    %5500 = vmatprep.subr.mxu0 0.0
    %5501 = vmatpush1.msra.mxu0 0.0
    %5502 = vmatprep.subr.mxu0 0.0
    %5503 = vmatpush1.msra.mxu0 0.0
    %5504 = vmatprep.subr.mxu0 0.0
    %5505 = vmatpush1.msra.mxu0 0.0
    %5506 = vmatprep.subr.mxu0 0.0
    %5507 = vmatpush1.msra.mxu0 0.0
    %5508 = vmatprep.subr.mxu0 0.0
    %5509 = vmatpush1.msra.mxu0 0.0
    %5510 = vmatprep.mubr.f32.mxu0 0.0
    %5511 = vmatmul.mubr.f32.gmra.mrb[0].mxu0 %v5444
    %v5512 = vpop.f32.mrb[0].mxu0
    %v5513 = vadd.f32 %v4668, %v5512
    %v5514 = vpop.f32.mrb[0].mxu0
    %5515 = vdwg.mxu0
    %5516 = vmatprep.subr.mxu0 0.0
    %5517 = vmatpush1.msra.mxu0 %v4650
    %5518 = vmatprep.subr.mxu0 0.0
    %5519 = vmatpush1.msra.mxu0 %v4651
    %5520 = vmatprep.subr.mxu0 0.0
    %5521 = vmatpush1.msra.mxu0 %v4652
    %5522 = vmatprep.subr.mxu0 0.0
    %5523 = vmatpush1.msra.mxu0 %v4653
    %5524 = vmatprep.subr.mxu0 0.0
    %5525 = vmatpush1.msra.mxu0 0.0
    %5526 = vmatprep.subr.mxu0 0.0
    %5527 = vmatpush1.msra.mxu0 0.0
    %5528 = vmatprep.subr.mxu0 0.0
    %5529 = vmatpush1.msra.mxu0 0.0
    %5530 = vmatprep.subr.mxu0 0.0
    %5531 = vmatpush1.msra.mxu0 0.0
    %5532 = vmatprep.subr.mxu0 0.0
    %5533 = vmatpush1.msra.mxu0 0.0
    %5534 = vmatprep.subr.mxu0 0.0
    %5535 = vmatpush1.msra.mxu0 0.0
    %5536 = vmatprep.subr.mxu0 0.0
    %5537 = vmatpush1.msra.mxu0 0.0
    %5538 = vmatprep.subr.mxu0 0.0
    %5539 = vmatpush1.msra.mxu0 0.0
    %5540 = vmatprep.subr.mxu0 0.0
    %5541 = vmatpush1.msra.mxu0 0.0
    %5542 = vmatprep.subr.mxu0 0.0
    %5543 = vmatpush1.msra.mxu0 0.0
    %5544 = vmatprep.subr.mxu0 0.0
    %5545 = vmatpush1.msra.mxu0 0.0
    %5546 = vmatprep.subr.mxu0 0.0
    %5547 = vmatpush1.msra.mxu0 0.0
    %5548 = vmatprep.subr.mxu0 0.0
    %5549 = vmatpush1.msra.mxu0 0.0
    %5550 = vmatprep.subr.mxu0 0.0
    %5551 = vmatpush1.msra.mxu0 0.0
    %5552 = vmatprep.subr.mxu0 0.0
    %5553 = vmatpush1.msra.mxu0 0.0
    %5554 = vmatprep.subr.mxu0 0.0
    %5555 = vmatpush1.msra.mxu0 0.0
    %5556 = vmatprep.subr.mxu0 0.0
    %5557 = vmatpush1.msra.mxu0 0.0
    %5558 = vmatprep.subr.mxu0 0.0
    %5559 = vmatpush1.msra.mxu0 0.0
    %5560 = vmatprep.subr.mxu0 0.0
    %5561 = vmatpush1.msra.mxu0 0.0
    %5562 = vmatprep.subr.mxu0 0.0
    %5563 = vmatpush1.msra.mxu0 0.0
    %5564 = vmatprep.subr.mxu0 0.0
    %5565 = vmatpush1.msra.mxu0 0.0
    %5566 = vmatprep.subr.mxu0 0.0
    %5567 = vmatpush1.msra.mxu0 0.0
    %5568 = vmatprep.subr.mxu0 0.0
    %5569 = vmatpush1.msra.mxu0 0.0
    %5570 = vmatprep.subr.mxu0 0.0
    %5571 = vmatpush1.msra.mxu0 0.0
    %5572 = vmatprep.subr.mxu0 0.0
    %5573 = vmatpush1.msra.mxu0 0.0
    %5574 = vmatprep.subr.mxu0 0.0
    %5575 = vmatpush1.msra.mxu0 0.0
    %5576 = vmatprep.subr.mxu0 0.0
    %5577 = vmatpush1.msra.mxu0 0.0
    %5578 = vmatprep.subr.mxu0 0.0
    %5579 = vmatpush1.msra.mxu0 0.0
    %5580 = vmatprep.mubr.f32.mxu0 0.0
    %5581 = vmatmul.mubr.f32.gmra.mrb[0].mxu0 %v5444
    %v5582 = vpop.f32.mrb[0].mxu0
    %v5583 = vadd.f32 %v4744, %v5582
    %v5584 = vpop.f32.mrb[0].mxu0
    %5585 = vdwg.mxu0
    %5586 = vmatprep.subr.mxu0 0.0
    %5587 = vmatpush1.msra.mxu0 %v4655
    %5588 = vmatprep.subr.mxu0 0.0
    %5589 = vmatpush1.msra.mxu0 %v4656
    %5590 = vmatprep.subr.mxu0 0.0
    %5591 = vmatpush1.msra.mxu0 %v4657
    %5592 = vmatprep.subr.mxu0 0.0
    %5593 = vmatpush1.msra.mxu0 %v4658
    %5594 = vmatprep.subr.mxu0 0.0
    %5595 = vmatpush1.msra.mxu0 0.0
    %5596 = vmatprep.subr.mxu0 0.0
    %5597 = vmatpush1.msra.mxu0 0.0
    %5598 = vmatprep.subr.mxu0 0.0
    %5599 = vmatpush1.msra.mxu0 0.0
    %5600 = vmatprep.subr.mxu0 0.0
    %5601 = vmatpush1.msra.mxu0 0.0
    %5602 = vmatprep.subr.mxu0 0.0
    %5603 = vmatpush1.msra.mxu0 0.0
    %5604 = vmatprep.subr.mxu0 0.0
    %5605 = vmatpush1.msra.mxu0 0.0
    %5606 = vmatprep.subr.mxu0 0.0
    %5607 = vmatpush1.msra.mxu0 0.0
    %5608 = vmatprep.subr.mxu0 0.0
    %5609 = vmatpush1.msra.mxu0 0.0
    %5610 = vmatprep.subr.mxu0 0.0
    %5611 = vmatpush1.msra.mxu0 0.0
    %5612 = vmatprep.subr.mxu0 0.0
    %5613 = vmatpush1.msra.mxu0 0.0
    %5614 = vmatprep.subr.mxu0 0.0
    %5615 = vmatpush1.msra.mxu0 0.0
    %5616 = vmatprep.subr.mxu0 0.0
    %5617 = vmatpush1.msra.mxu0 0.0
    %5618 = vmatprep.subr.mxu0 0.0
    %5619 = vmatpush1.msra.mxu0 0.0
    %5620 = vmatprep.subr.mxu0 0.0
    %5621 = vmatpush1.msra.mxu0 0.0
    %5622 = vmatprep.subr.mxu0 0.0
    %5623 = vmatpush1.msra.mxu0 0.0
    %5624 = vmatprep.subr.mxu0 0.0
    %5625 = vmatpush1.msra.mxu0 0.0
    %5626 = vmatprep.subr.mxu0 0.0
    %5627 = vmatpush1.msra.mxu0 0.0
    %5628 = vmatprep.subr.mxu0 0.0
    %5629 = vmatpush1.msra.mxu0 0.0
    %5630 = vmatprep.subr.mxu0 0.0
    %5631 = vmatpush1.msra.mxu0 0.0
    %5632 = vmatprep.subr.mxu0 0.0
    %5633 = vmatpush1.msra.mxu0 0.0
    %5634 = vmatprep.subr.mxu0 0.0
    %5635 = vmatpush1.msra.mxu0 0.0
    %5636 = vmatprep.subr.mxu0 0.0
    %5637 = vmatpush1.msra.mxu0 0.0
    %5638 = vmatprep.subr.mxu0 0.0
    %5639 = vmatpush1.msra.mxu0 0.0
    %5640 = vmatprep.subr.mxu0 0.0
    %5641 = vmatpush1.msra.mxu0 0.0
    %5642 = vmatprep.subr.mxu0 0.0
    %5643 = vmatpush1.msra.mxu0 0.0
    %5644 = vmatprep.subr.mxu0 0.0
    %5645 = vmatpush1.msra.mxu0 0.0
    %5646 = vmatprep.subr.mxu0 0.0
    %5647 = vmatpush1.msra.mxu0 0.0
    %5648 = vmatprep.subr.mxu0 0.0
    %5649 = vmatpush1.msra.mxu0 0.0
    %5650 = vmatprep.mubr.f32.mxu0 0.0
    %5651 = vmatmul.mubr.f32.gmra.mrb[0].mxu0 %v5444
    %v5652 = vpop.f32.mrb[0].mxu0
    %v5653 = vadd.f32 %v4820, %v5652
    %v5654 = vpop.f32.mrb[0].mxu0
    %5655 = vdwg.mxu0
    %v5657 = vrot.slane %v5513, 2
    %v5659 = vadd.f32 %v4637, %v5657
    %v5660 = vxor.u32 %v5659, 2147483648
    %v5661 = vmul.f32 %v5660, 1.442695
    %v5662 = vpow.pop %v5661
    %v5663 = vadd.f32 %v5662, 1.0
    %v5664 = vrcp.pop %v5663
    %v5665 = vmul.f32 1.0, %v5664
    %v5667 = vrot.slane %v5583, 2
    %5668 = vrot.lane.b32.xlu0 %v5667, 32
    %v5669 = vpop.permute.xlu0 %5668
    %v5671 = vadd.f32 %v4637, %v5669
    %v5672 = vxor.u32 %v5671, 2147483648
    %v5673 = vmul.f32 %v5672, 1.442695
    %v5674 = vpow.pop %v5673
    %v5675 = vadd.f32 %v5674, 1.0
    %v5676 = vrcp.pop %v5675
    %v5677 = vmul.f32 1.0, %v5676
    %v5679 = vrot.slane %v5653, 2
    %v5681 = vmul.f32 %v5665, %v5679
    %5683 = vrot.lane.b32.xlu0 %v5681, 64
    %v5684 = vpop.permute.xlu0 %5683
    %v5686 = vadd.f32 %v4637, %v5684
    %v5687 = vtanh.pop %v5686
    %v5688 = vsub.f32 1.0, %v5677
    %5690 = vrot.lane.b32.xlu0 %v5687, 96
    %v5691 = vpop.permute.xlu0 %5690
    %v5693 = vmul.f32 %v5688, %v5691
    %v5694 = vrot.slane %v5439, 6
    %v5696 = vmul.f32 %v5677, %v5694
    %v5697 = vadd.f32 %v5693, %v5696
    %v5699 = vrot.slane %v5697, 6
    %5700 = vrot.lane.b32.xlu0 %v5699, 96
    %v5701 = vpop.permute.xlu0 %5700
    %v5702 = vsel %vm264, %v5701, 0
    %5704 = vmatprep.subr.mxu0 0.0
    %5705 = vmatpush1.msra.mxu0 %v4645
    %5706 = vmatprep.subr.mxu0 0.0
    %5707 = vmatpush1.msra.mxu0 %v4646
    %5708 = vmatprep.subr.mxu0 0.0
    %5709 = vmatpush1.msra.mxu0 %v4647
    %5710 = vmatprep.subr.mxu0 0.0
    %5711 = vmatpush1.msra.mxu0 %v4648
    %5712 = vmatprep.subr.mxu0 0.0
    %5713 = vmatpush1.msra.mxu0 0.0
    %5714 = vmatprep.subr.mxu0 0.0
    %5715 = vmatpush1.msra.mxu0 0.0
    %5716 = vmatprep.subr.mxu0 0.0
    %5717 = vmatpush1.msra.mxu0 0.0
    %5718 = vmatprep.subr.mxu0 0.0
    %5719 = vmatpush1.msra.mxu0 0.0
    %5720 = vmatprep.subr.mxu0 0.0
    %5721 = vmatpush1.msra.mxu0 0.0
    %5722 = vmatprep.subr.mxu0 0.0
    %5723 = vmatpush1.msra.mxu0 0.0
    %5724 = vmatprep.subr.mxu0 0.0
    %5725 = vmatpush1.msra.mxu0 0.0
    %5726 = vmatprep.subr.mxu0 0.0
    %5727 = vmatpush1.msra.mxu0 0.0
    %5728 = vmatprep.subr.mxu0 0.0
    %5729 = vmatpush1.msra.mxu0 0.0
    %5730 = vmatprep.subr.mxu0 0.0
    %5731 = vmatpush1.msra.mxu0 0.0
    %5732 = vmatprep.subr.mxu0 0.0
    %5733 = vmatpush1.msra.mxu0 0.0
    %5734 = vmatprep.subr.mxu0 0.0
    %5735 = vmatpush1.msra.mxu0 0.0
    %5736 = vmatprep.subr.mxu0 0.0
    %5737 = vmatpush1.msra.mxu0 0.0
    %5738 = vmatprep.subr.mxu0 0.0
    %5739 = vmatpush1.msra.mxu0 0.0
    %5740 = vmatprep.subr.mxu0 0.0
    %5741 = vmatpush1.msra.mxu0 0.0
    %5742 = vmatprep.subr.mxu0 0.0
    %5743 = vmatpush1.msra.mxu0 0.0
    %5744 = vmatprep.subr.mxu0 0.0
    %5745 = vmatpush1.msra.mxu0 0.0
    %5746 = vmatprep.subr.mxu0 0.0
    %5747 = vmatpush1.msra.mxu0 0.0
    %5748 = vmatprep.subr.mxu0 0.0
    %5749 = vmatpush1.msra.mxu0 0.0
    %5750 = vmatprep.subr.mxu0 0.0
    %5751 = vmatpush1.msra.mxu0 0.0
    %5752 = vmatprep.subr.mxu0 0.0
    %5753 = vmatpush1.msra.mxu0 0.0
    %5754 = vmatprep.subr.mxu0 0.0
    %5755 = vmatpush1.msra.mxu0 0.0
    %5756 = vmatprep.subr.mxu0 0.0
    %5757 = vmatpush1.msra.mxu0 0.0
    %5758 = vmatprep.subr.mxu0 0.0
    %5759 = vmatpush1.msra.mxu0 0.0
    %5760 = vmatprep.subr.mxu0 0.0
    %5761 = vmatpush1.msra.mxu0 0.0
    %5762 = vmatprep.subr.mxu0 0.0
    %5763 = vmatpush1.msra.mxu0 0.0
    %5764 = vmatprep.subr.mxu0 0.0
    %5765 = vmatpush1.msra.mxu0 0.0
    %5766 = vmatprep.subr.mxu0 0.0
    %5767 = vmatpush1.msra.mxu0 0.0
    %5768 = vmatprep.mubr.f32.mxu0 0.0
    %5769 = vmatmul.mubr.f32.gmra.mrb[0].mxu0 %v5702
    %v5770 = vpop.f32.mrb[0].mxu0
    %v5771 = vadd.f32 %v4668, %v5770
    %v5772 = vpop.f32.mrb[0].mxu0
    %5773 = vdwg.mxu0
    %5774 = vmatprep.subr.mxu0 0.0
    %5775 = vmatpush1.msra.mxu0 %v4650
    %5776 = vmatprep.subr.mxu0 0.0
    %5777 = vmatpush1.msra.mxu0 %v4651
    %5778 = vmatprep.subr.mxu0 0.0
    %5779 = vmatpush1.msra.mxu0 %v4652
    %5780 = vmatprep.subr.mxu0 0.0
    %5781 = vmatpush1.msra.mxu0 %v4653
    %5782 = vmatprep.subr.mxu0 0.0
    %5783 = vmatpush1.msra.mxu0 0.0
    %5784 = vmatprep.subr.mxu0 0.0
    %5785 = vmatpush1.msra.mxu0 0.0
    %5786 = vmatprep.subr.mxu0 0.0
    %5787 = vmatpush1.msra.mxu0 0.0
    %5788 = vmatprep.subr.mxu0 0.0
    %5789 = vmatpush1.msra.mxu0 0.0
    %5790 = vmatprep.subr.mxu0 0.0
    %5791 = vmatpush1.msra.mxu0 0.0
    %5792 = vmatprep.subr.mxu0 0.0
    %5793 = vmatpush1.msra.mxu0 0.0
    %5794 = vmatprep.subr.mxu0 0.0
    %5795 = vmatpush1.msra.mxu0 0.0
    %5796 = vmatprep.subr.mxu0 0.0
    %5797 = vmatpush1.msra.mxu0 0.0
    %5798 = vmatprep.subr.mxu0 0.0
    %5799 = vmatpush1.msra.mxu0 0.0
    %5800 = vmatprep.subr.mxu0 0.0
    %5801 = vmatpush1.msra.mxu0 0.0
    %5802 = vmatprep.subr.mxu0 0.0
    %5803 = vmatpush1.msra.mxu0 0.0
    %5804 = vmatprep.subr.mxu0 0.0
    %5805 = vmatpush1.msra.mxu0 0.0
    %5806 = vmatprep.subr.mxu0 0.0
    %5807 = vmatpush1.msra.mxu0 0.0
    %5808 = vmatprep.subr.mxu0 0.0
    %5809 = vmatpush1.msra.mxu0 0.0
    %5810 = vmatprep.subr.mxu0 0.0
    %5811 = vmatpush1.msra.mxu0 0.0
    %5812 = vmatprep.subr.mxu0 0.0
    %5813 = vmatpush1.msra.mxu0 0.0
    %5814 = vmatprep.subr.mxu0 0.0
    %5815 = vmatpush1.msra.mxu0 0.0
    %5816 = vmatprep.subr.mxu0 0.0
    %5817 = vmatpush1.msra.mxu0 0.0
    %5818 = vmatprep.subr.mxu0 0.0
    %5819 = vmatpush1.msra.mxu0 0.0
    %5820 = vmatprep.subr.mxu0 0.0
    %5821 = vmatpush1.msra.mxu0 0.0
    %5822 = vmatprep.subr.mxu0 0.0
    %5823 = vmatpush1.msra.mxu0 0.0
    %5824 = vmatprep.subr.mxu0 0.0
    %5825 = vmatpush1.msra.mxu0 0.0
    %5826 = vmatprep.subr.mxu0 0.0
    %5827 = vmatpush1.msra.mxu0 0.0
    %5828 = vmatprep.subr.mxu0 0.0
    %5829 = vmatpush1.msra.mxu0 0.0
    %5830 = vmatprep.subr.mxu0 0.0
    %5831 = vmatpush1.msra.mxu0 0.0
    %5832 = vmatprep.subr.mxu0 0.0
    %5833 = vmatpush1.msra.mxu0 0.0
    %5834 = vmatprep.subr.mxu0 0.0
    %5835 = vmatpush1.msra.mxu0 0.0
    %5836 = vmatprep.subr.mxu0 0.0
    %5837 = vmatpush1.msra.mxu0 0.0
    %5838 = vmatprep.mubr.f32.mxu0 0.0
    %5839 = vmatmul.mubr.f32.gmra.mrb[0].mxu0 %v5702
    %v5840 = vpop.f32.mrb[0].mxu0
    %v5841 = vadd.f32 %v4744, %v5840
    %v5842 = vpop.f32.mrb[0].mxu0
    %5843 = vdwg.mxu0
    %5844 = vmatprep.subr.mxu0 0.0
    %5845 = vmatpush1.msra.mxu0 %v4655
    %5846 = vmatprep.subr.mxu0 0.0
    %5847 = vmatpush1.msra.mxu0 %v4656
    %5848 = vmatprep.subr.mxu0 0.0
    %5849 = vmatpush1.msra.mxu0 %v4657
    %5850 = vmatprep.subr.mxu0 0.0
    %5851 = vmatpush1.msra.mxu0 %v4658
    %5852 = vmatprep.subr.mxu0 0.0
    %5853 = vmatpush1.msra.mxu0 0.0
    %5854 = vmatprep.subr.mxu0 0.0
    %5855 = vmatpush1.msra.mxu0 0.0
    %5856 = vmatprep.subr.mxu0 0.0
    %5857 = vmatpush1.msra.mxu0 0.0
    %5858 = vmatprep.subr.mxu0 0.0
    %5859 = vmatpush1.msra.mxu0 0.0
    %5860 = vmatprep.subr.mxu0 0.0
    %5861 = vmatpush1.msra.mxu0 0.0
    %5862 = vmatprep.subr.mxu0 0.0
    %5863 = vmatpush1.msra.mxu0 0.0
    %5864 = vmatprep.subr.mxu0 0.0
    %5865 = vmatpush1.msra.mxu0 0.0
    %5866 = vmatprep.subr.mxu0 0.0
    %5867 = vmatpush1.msra.mxu0 0.0
    %5868 = vmatprep.subr.mxu0 0.0
    %5869 = vmatpush1.msra.mxu0 0.0
    %5870 = vmatprep.subr.mxu0 0.0
    %5871 = vmatpush1.msra.mxu0 0.0
    %5872 = vmatprep.subr.mxu0 0.0
    %5873 = vmatpush1.msra.mxu0 0.0
    %5874 = vmatprep.subr.mxu0 0.0
    %5875 = vmatpush1.msra.mxu0 0.0
    %5876 = vmatprep.subr.mxu0 0.0
    %5877 = vmatpush1.msra.mxu0 0.0
    %5878 = vmatprep.subr.mxu0 0.0
    %5879 = vmatpush1.msra.mxu0 0.0
    %5880 = vmatprep.subr.mxu0 0.0
    %5881 = vmatpush1.msra.mxu0 0.0
    %5882 = vmatprep.subr.mxu0 0.0
    %5883 = vmatpush1.msra.mxu0 0.0
    %5884 = vmatprep.subr.mxu0 0.0
    %5885 = vmatpush1.msra.mxu0 0.0
    %5886 = vmatprep.subr.mxu0 0.0
    %5887 = vmatpush1.msra.mxu0 0.0
    %5888 = vmatprep.subr.mxu0 0.0
    %5889 = vmatpush1.msra.mxu0 0.0
    %5890 = vmatprep.subr.mxu0 0.0
    %5891 = vmatpush1.msra.mxu0 0.0
    %5892 = vmatprep.subr.mxu0 0.0
    %5893 = vmatpush1.msra.mxu0 0.0
    %5894 = vmatprep.subr.mxu0 0.0
    %5895 = vmatpush1.msra.mxu0 0.0
    %5896 = vmatprep.subr.mxu0 0.0
    %5897 = vmatpush1.msra.mxu0 0.0
    %5898 = vmatprep.subr.mxu0 0.0
    %5899 = vmatpush1.msra.mxu0 0.0
    %5900 = vmatprep.subr.mxu0 0.0
    %5901 = vmatpush1.msra.mxu0 0.0
    %5902 = vmatprep.subr.mxu0 0.0
    %5903 = vmatpush1.msra.mxu0 0.0
    %5904 = vmatprep.subr.mxu0 0.0
    %5905 = vmatpush1.msra.mxu0 0.0
    %5906 = vmatprep.subr.mxu0 0.0
    %5907 = vmatpush1.msra.mxu0 0.0
    %5908 = vmatprep.mubr.f32.mxu0 0.0
    %5909 = vmatmul.mubr.f32.gmra.mrb[0].mxu0 %v5702
    %v5910 = vpop.f32.mrb[0].mxu0
    %v5911 = vadd.f32 %v4820, %v5910
    %v5912 = vpop.f32.mrb[0].mxu0
    %5913 = vdwg.mxu0
    %v5914 = vadd.f32 %v4642, %v5771
    %v5915 = vxor.u32 %v5914, 2147483648
    %v5916 = vmul.f32 %v5915, 1.442695
    %v5917 = vpow.pop %v5916
    %v5918 = vadd.f32 %v5917, 1.0
    %v5919 = vrcp.pop %v5918
    %v5920 = vmul.f32 1.0, %v5919
    %5922 = vrot.lane.b32.xlu0 %v5841, 32
    %v5923 = vpop.permute.xlu0 %5922
    %v5925 = vadd.f32 %v4642, %v5923
    %v5926 = vxor.u32 %v5925, 2147483648
    %v5927 = vmul.f32 %v5926, 1.442695
    %v5928 = vpow.pop %v5927
    %v5929 = vadd.f32 %v5928, 1.0
    %v5930 = vrcp.pop %v5929
    %v5931 = vmul.f32 1.0, %v5930
    %v5932 = vmul.f32 %v5920, %v5911
    %5934 = vrot.lane.b32.xlu0 %v5932, 64
    %v5935 = vpop.permute.xlu0 %5934
    %v5937 = vadd.f32 %v4642, %v5935
    %v5938 = vtanh.pop %v5937
    %v5939 = vsub.f32 1.0, %v5931
    %5941 = vrot.lane.b32.xlu0 %v5938, 96
    %v5942 = vpop.permute.xlu0 %5941
    %v5944 = vmul.f32 %v5939, %v5942
    %v5946 = vmul.f32 %v5931, %v5699
    %v5947 = vadd.f32 %v5944, %v5946
    %5949 = vrot.lane.b32.xlu0 %v5947, 96
    %v5950 = vpop.permute.xlu0 %5949
    %v5951 = vsel %vm264, %v5950, 0
    %5953 = vmatprep.subr.mxu0 0.0
    %5954 = vmatpush1.msra.mxu0 %v4645
    %5955 = vmatprep.subr.mxu0 0.0
    %5956 = vmatpush1.msra.mxu0 %v4646
    %5957 = vmatprep.subr.mxu0 0.0
    %5958 = vmatpush1.msra.mxu0 %v4647
    %5959 = vmatprep.subr.mxu0 0.0
    %5960 = vmatpush1.msra.mxu0 %v4648
    %5961 = vmatprep.subr.mxu0 0.0
    %5962 = vmatpush1.msra.mxu0 0.0
    %5963 = vmatprep.subr.mxu0 0.0
    %5964 = vmatpush1.msra.mxu0 0.0
    %5965 = vmatprep.subr.mxu0 0.0
    %5966 = vmatpush1.msra.mxu0 0.0
    %5967 = vmatprep.subr.mxu0 0.0
    %5968 = vmatpush1.msra.mxu0 0.0
    %5969 = vmatprep.subr.mxu0 0.0
    %5970 = vmatpush1.msra.mxu0 0.0
    %5971 = vmatprep.subr.mxu0 0.0
    %5972 = vmatpush1.msra.mxu0 0.0
    %5973 = vmatprep.subr.mxu0 0.0
    %5974 = vmatpush1.msra.mxu0 0.0
    %5975 = vmatprep.subr.mxu0 0.0
    %5976 = vmatpush1.msra.mxu0 0.0
    %5977 = vmatprep.subr.mxu0 0.0
    %5978 = vmatpush1.msra.mxu0 0.0
    %5979 = vmatprep.subr.mxu0 0.0
    %5980 = vmatpush1.msra.mxu0 0.0
    %5981 = vmatprep.subr.mxu0 0.0
    %5982 = vmatpush1.msra.mxu0 0.0
    %5983 = vmatprep.subr.mxu0 0.0
    %5984 = vmatpush1.msra.mxu0 0.0
    %5985 = vmatprep.subr.mxu0 0.0
    %5986 = vmatpush1.msra.mxu0 0.0
    %5987 = vmatprep.subr.mxu0 0.0
    %5988 = vmatpush1.msra.mxu0 0.0
    %5989 = vmatprep.subr.mxu0 0.0
    %5990 = vmatpush1.msra.mxu0 0.0
    %5991 = vmatprep.subr.mxu0 0.0
    %5992 = vmatpush1.msra.mxu0 0.0
    %5993 = vmatprep.subr.mxu0 0.0
    %5994 = vmatpush1.msra.mxu0 0.0
    %5995 = vmatprep.subr.mxu0 0.0
    %5996 = vmatpush1.msra.mxu0 0.0
    %5997 = vmatprep.subr.mxu0 0.0
    %5998 = vmatpush1.msra.mxu0 0.0
    %5999 = vmatprep.subr.mxu0 0.0
    %6000 = vmatpush1.msra.mxu0 0.0
    %6001 = vmatprep.subr.mxu0 0.0
    %6002 = vmatpush1.msra.mxu0 0.0
    %6003 = vmatprep.subr.mxu0 0.0
    %6004 = vmatpush1.msra.mxu0 0.0
    %6005 = vmatprep.subr.mxu0 0.0
    %6006 = vmatpush1.msra.mxu0 0.0
    %6007 = vmatprep.subr.mxu0 0.0
    %6008 = vmatpush1.msra.mxu0 0.0
    %6009 = vmatprep.subr.mxu0 0.0
    %6010 = vmatpush1.msra.mxu0 0.0
    %6011 = vmatprep.subr.mxu0 0.0
    %6012 = vmatpush1.msra.mxu0 0.0
    %6013 = vmatprep.subr.mxu0 0.0
    %6014 = vmatpush1.msra.mxu0 0.0
    %6015 = vmatprep.subr.mxu0 0.0
    %6016 = vmatpush1.msra.mxu0 0.0
    %6017 = vmatprep.mubr.f32.mxu0 0.0
    %6018 = vmatmul.mubr.f32.gmra.mrb[0].mxu0 %v5951
    %v6019 = vpop.f32.mrb[0].mxu0
    %v6020 = vadd.f32 %v4668, %v6019
    %v6021 = vpop.f32.mrb[0].mxu0
    %6022 = vdwg.mxu0
    %6023 = vmatprep.subr.mxu0 0.0
    %6024 = vmatpush1.msra.mxu0 %v4650
    %6025 = vmatprep.subr.mxu0 0.0
    %6026 = vmatpush1.msra.mxu0 %v4651
    %6027 = vmatprep.subr.mxu0 0.0
    %6028 = vmatpush1.msra.mxu0 %v4652
    %6029 = vmatprep.subr.mxu0 0.0
    %6030 = vmatpush1.msra.mxu0 %v4653
    %6031 = vmatprep.subr.mxu0 0.0
    %6032 = vmatpush1.msra.mxu0 0.0
    %6033 = vmatprep.subr.mxu0 0.0
    %6034 = vmatpush1.msra.mxu0 0.0
    %6035 = vmatprep.subr.mxu0 0.0
    %6036 = vmatpush1.msra.mxu0 0.0
    %6037 = vmatprep.subr.mxu0 0.0
    %6038 = vmatpush1.msra.mxu0 0.0
    %6039 = vmatprep.subr.mxu0 0.0
    %6040 = vmatpush1.msra.mxu0 0.0
    %6041 = vmatprep.subr.mxu0 0.0
    %6042 = vmatpush1.msra.mxu0 0.0
    %6043 = vmatprep.subr.mxu0 0.0
    %6044 = vmatpush1.msra.mxu0 0.0
    %6045 = vmatprep.subr.mxu0 0.0
    %6046 = vmatpush1.msra.mxu0 0.0
    %6047 = vmatprep.subr.mxu0 0.0
    %6048 = vmatpush1.msra.mxu0 0.0
    %6049 = vmatprep.subr.mxu0 0.0
    %6050 = vmatpush1.msra.mxu0 0.0
    %6051 = vmatprep.subr.mxu0 0.0
    %6052 = vmatpush1.msra.mxu0 0.0
    %6053 = vmatprep.subr.mxu0 0.0
    %6054 = vmatpush1.msra.mxu0 0.0
    %6055 = vmatprep.subr.mxu0 0.0
    %6056 = vmatpush1.msra.mxu0 0.0
    %6057 = vmatprep.subr.mxu0 0.0
    %6058 = vmatpush1.msra.mxu0 0.0
    %6059 = vmatprep.subr.mxu0 0.0
    %6060 = vmatpush1.msra.mxu0 0.0
    %6061 = vmatprep.subr.mxu0 0.0
    %6062 = vmatpush1.msra.mxu0 0.0
    %6063 = vmatprep.subr.mxu0 0.0
    %6064 = vmatpush1.msra.mxu0 0.0
    %6065 = vmatprep.subr.mxu0 0.0
    %6066 = vmatpush1.msra.mxu0 0.0
    %6067 = vmatprep.subr.mxu0 0.0
    %6068 = vmatpush1.msra.mxu0 0.0
    %6069 = vmatprep.subr.mxu0 0.0
    %6070 = vmatpush1.msra.mxu0 0.0
    %6071 = vmatprep.subr.mxu0 0.0
    %6072 = vmatpush1.msra.mxu0 0.0
    %6073 = vmatprep.subr.mxu0 0.0
    %6074 = vmatpush1.msra.mxu0 0.0
    %6075 = vmatprep.subr.mxu0 0.0
    %6076 = vmatpush1.msra.mxu0 0.0
    %6077 = vmatprep.subr.mxu0 0.0
    %6078 = vmatpush1.msra.mxu0 0.0
    %6079 = vmatprep.subr.mxu0 0.0
    %6080 = vmatpush1.msra.mxu0 0.0
    %6081 = vmatprep.subr.mxu0 0.0
    %6082 = vmatpush1.msra.mxu0 0.0
    %6083 = vmatprep.subr.mxu0 0.0
    %6084 = vmatpush1.msra.mxu0 0.0
    %6085 = vmatprep.subr.mxu0 0.0
    %6086 = vmatpush1.msra.mxu0 0.0
    %6087 = vmatprep.mubr.f32.mxu0 0.0
    %6088 = vmatmul.mubr.f32.gmra.mrb[0].mxu0 %v5951
    %v6089 = vpop.f32.mrb[0].mxu0
    %v6090 = vadd.f32 %v4744, %v6089
    %v6091 = vpop.f32.mrb[0].mxu0
    %6092 = vdwg.mxu0
    %6093 = vmatprep.subr.mxu0 0.0
    %6094 = vmatpush1.msra.mxu0 %v4655
    %6095 = vmatprep.subr.mxu0 0.0
    %6096 = vmatpush1.msra.mxu0 %v4656
    %6097 = vmatprep.subr.mxu0 0.0
    %6098 = vmatpush1.msra.mxu0 %v4657
    %6099 = vmatprep.subr.mxu0 0.0
    %6100 = vmatpush1.msra.mxu0 %v4658
    %6101 = vmatprep.subr.mxu0 0.0
    %6102 = vmatpush1.msra.mxu0 0.0
    %6103 = vmatprep.subr.mxu0 0.0
    %6104 = vmatpush1.msra.mxu0 0.0
    %6105 = vmatprep.subr.mxu0 0.0
    %6106 = vmatpush1.msra.mxu0 0.0
    %6107 = vmatprep.subr.mxu0 0.0
    %6108 = vmatpush1.msra.mxu0 0.0
    %6109 = vmatprep.subr.mxu0 0.0
    %6110 = vmatpush1.msra.mxu0 0.0
    %6111 = vmatprep.subr.mxu0 0.0
    %6112 = vmatpush1.msra.mxu0 0.0
    %6113 = vmatprep.subr.mxu0 0.0
    %6114 = vmatpush1.msra.mxu0 0.0
    %6115 = vmatprep.subr.mxu0 0.0
    %6116 = vmatpush1.msra.mxu0 0.0
    %6117 = vmatprep.subr.mxu0 0.0
    %6118 = vmatpush1.msra.mxu0 0.0
    %6119 = vmatprep.subr.mxu0 0.0
    %6120 = vmatpush1.msra.mxu0 0.0
    %6121 = vmatprep.subr.mxu0 0.0
    %6122 = vmatpush1.msra.mxu0 0.0
    %6123 = vmatprep.subr.mxu0 0.0
    %6124 = vmatpush1.msra.mxu0 0.0
    %6125 = vmatprep.subr.mxu0 0.0
    %6126 = vmatpush1.msra.mxu0 0.0
    %6127 = vmatprep.subr.mxu0 0.0
    %6128 = vmatpush1.msra.mxu0 0.0
    %6129 = vmatprep.subr.mxu0 0.0
    %6130 = vmatpush1.msra.mxu0 0.0
    %6131 = vmatprep.subr.mxu0 0.0
    %6132 = vmatpush1.msra.mxu0 0.0
    %6133 = vmatprep.subr.mxu0 0.0
    %6134 = vmatpush1.msra.mxu0 0.0
    %6135 = vmatprep.subr.mxu0 0.0
    %6136 = vmatpush1.msra.mxu0 0.0
    %6137 = vmatprep.subr.mxu0 0.0
    %6138 = vmatpush1.msra.mxu0 0.0
    %6139 = vmatprep.subr.mxu0 0.0
    %6140 = vmatpush1.msra.mxu0 0.0
    %6141 = vmatprep.subr.mxu0 0.0
    %6142 = vmatpush1.msra.mxu0 0.0
    %6143 = vmatprep.subr.mxu0 0.0
    %6144 = vmatpush1.msra.mxu0 0.0
    %6145 = vmatprep.subr.mxu0 0.0
    %6146 = vmatpush1.msra.mxu0 0.0
    %6147 = vmatprep.subr.mxu0 0.0
    %6148 = vmatpush1.msra.mxu0 0.0
    %6149 = vmatprep.subr.mxu0 0.0
    %6150 = vmatpush1.msra.mxu0 0.0
    %6151 = vmatprep.subr.mxu0 0.0
    %6152 = vmatpush1.msra.mxu0 0.0
    %6153 = vmatprep.subr.mxu0 0.0
    %6154 = vmatpush1.msra.mxu0 0.0
    %6155 = vmatprep.subr.mxu0 0.0
    %6156 = vmatpush1.msra.mxu0 0.0
    %6157 = vmatprep.mubr.f32.mxu0 0.0
    %6158 = vmatmul.mubr.f32.gmra.mrb[0].mxu0 %v5951
    %v6159 = vpop.f32.mrb[0].mxu0
    %v6160 = vadd.f32 %v4820, %v6159
    %v6161 = vpop.f32.mrb[0].mxu0
    %6162 = vdwg.mxu0
    %v6164 = vrot.slane %v6020, 6
    %v6166 = vadd.f32 %v4642, %v6164
    %v6167 = vxor.u32 %v6166, 2147483648
    %v6168 = vmul.f32 %v6167, 1.442695
    %v6169 = vpow.pop %v6168
    %v6170 = vadd.f32 %v6169, 1.0
    %v6171 = vrcp.pop %v6170
    %v6172 = vmul.f32 1.0, %v6171
    %v6174 = vrot.slane %v6090, 6
    %6175 = vrot.lane.b32.xlu0 %v6174, 32
    %v6176 = vpop.permute.xlu0 %6175
    %v6178 = vadd.f32 %v4642, %v6176
    %v6179 = vxor.u32 %v6178, 2147483648
    %v6180 = vmul.f32 %v6179, 1.442695
    %v6181 = vpow.pop %v6180
    %v6182 = vadd.f32 %v6181, 1.0
    %v6183 = vrcp.pop %v6182
    %v6184 = vmul.f32 1.0, %v6183
    %v6186 = vrot.slane %v6160, 6
    %v6188 = vmul.f32 %v6172, %v6186
    %6190 = vrot.lane.b32.xlu0 %v6188, 64
    %v6191 = vpop.permute.xlu0 %6190
    %v6193 = vadd.f32 %v4642, %v6191
    %v6194 = vtanh.pop %v6193
    %v6195 = vsub.f32 1.0, %v6184
    %6197 = vrot.lane.b32.xlu0 %v6194, 96
    %v6198 = vpop.permute.xlu0 %6197
    %v6200 = vmul.f32 %v6195, %v6198
    %v6201 = vrot.slane %v5947, 6
    %v6203 = vmul.f32 %v6184, %v6201
    %v6204 = vadd.f32 %v6200, %v6203
    %v6206 = vrot.slane %v6204, 2
    %6207 = vrot.lane.b32.xlu0 %v6206, 96
    %v6208 = vpop.permute.xlu0 %6207
    %v6209 = vsel %vm264, %v6208, 0
    %6211 = vmatprep.subr.mxu0 0.0
    %6212 = vmatpush1.msra.mxu0 %v4645
    %6213 = vmatprep.subr.mxu0 0.0
    %6214 = vmatpush1.msra.mxu0 %v4646
    %6215 = vmatprep.subr.mxu0 0.0
    %6216 = vmatpush1.msra.mxu0 %v4647
    %6217 = vmatprep.subr.mxu0 0.0
    %6218 = vmatpush1.msra.mxu0 %v4648
    %6219 = vmatprep.subr.mxu0 0.0
    %6220 = vmatpush1.msra.mxu0 0.0
    %6221 = vmatprep.subr.mxu0 0.0
    %6222 = vmatpush1.msra.mxu0 0.0
    %6223 = vmatprep.subr.mxu0 0.0
    %6224 = vmatpush1.msra.mxu0 0.0
    %6225 = vmatprep.subr.mxu0 0.0
    %6226 = vmatpush1.msra.mxu0 0.0
    %6227 = vmatprep.subr.mxu0 0.0
    %6228 = vmatpush1.msra.mxu0 0.0
    %6229 = vmatprep.subr.mxu0 0.0
    %6230 = vmatpush1.msra.mxu0 0.0
    %6231 = vmatprep.subr.mxu0 0.0
    %6232 = vmatpush1.msra.mxu0 0.0
    %6233 = vmatprep.subr.mxu0 0.0
    %6234 = vmatpush1.msra.mxu0 0.0
    %6235 = vmatprep.subr.mxu0 0.0
    %6236 = vmatpush1.msra.mxu0 0.0
    %6237 = vmatprep.subr.mxu0 0.0
    %6238 = vmatpush1.msra.mxu0 0.0
    %6239 = vmatprep.subr.mxu0 0.0
    %6240 = vmatpush1.msra.mxu0 0.0
    %6241 = vmatprep.subr.mxu0 0.0
    %6242 = vmatpush1.msra.mxu0 0.0
    %6243 = vmatprep.subr.mxu0 0.0
    %6244 = vmatpush1.msra.mxu0 0.0
    %6245 = vmatprep.subr.mxu0 0.0
    %6246 = vmatpush1.msra.mxu0 0.0
    %6247 = vmatprep.subr.mxu0 0.0
    %6248 = vmatpush1.msra.mxu0 0.0
    %6249 = vmatprep.subr.mxu0 0.0
    %6250 = vmatpush1.msra.mxu0 0.0
    %6251 = vmatprep.subr.mxu0 0.0
    %6252 = vmatpush1.msra.mxu0 0.0
    %6253 = vmatprep.subr.mxu0 0.0
    %6254 = vmatpush1.msra.mxu0 0.0
    %6255 = vmatprep.subr.mxu0 0.0
    %6256 = vmatpush1.msra.mxu0 0.0
    %6257 = vmatprep.subr.mxu0 0.0
    %6258 = vmatpush1.msra.mxu0 0.0
    %6259 = vmatprep.subr.mxu0 0.0
    %6260 = vmatpush1.msra.mxu0 0.0
    %6261 = vmatprep.subr.mxu0 0.0
    %6262 = vmatpush1.msra.mxu0 0.0
    %6263 = vmatprep.subr.mxu0 0.0
    %6264 = vmatpush1.msra.mxu0 0.0
    %6265 = vmatprep.subr.mxu0 0.0
    %6266 = vmatpush1.msra.mxu0 0.0
    %6267 = vmatprep.subr.mxu0 0.0
    %6268 = vmatpush1.msra.mxu0 0.0
    %6269 = vmatprep.subr.mxu0 0.0
    %6270 = vmatpush1.msra.mxu0 0.0
    %6271 = vmatprep.subr.mxu0 0.0
    %6272 = vmatpush1.msra.mxu0 0.0
    %6273 = vmatprep.subr.mxu0 0.0
    %6274 = vmatpush1.msra.mxu0 0.0
    %6275 = vmatprep.mubr.f32.mxu0 0.0
    %6276 = vmatmul.mubr.f32.gmra.mrb[0].mxu0 %v6209
    %v6277 = vpop.f32.mrb[0].mxu0
    %v6278 = vadd.f32 %v4668, %v6277
    %v6279 = vpop.f32.mrb[0].mxu0
    %6280 = vdwg.mxu0
    %6281 = vmatprep.subr.mxu0 0.0
    %6282 = vmatpush1.msra.mxu0 %v4650
    %6283 = vmatprep.subr.mxu0 0.0
    %6284 = vmatpush1.msra.mxu0 %v4651
    %6285 = vmatprep.subr.mxu0 0.0
    %6286 = vmatpush1.msra.mxu0 %v4652
    %6287 = vmatprep.subr.mxu0 0.0
    %6288 = vmatpush1.msra.mxu0 %v4653
    %6289 = vmatprep.subr.mxu0 0.0
    %6290 = vmatpush1.msra.mxu0 0.0
    %6291 = vmatprep.subr.mxu0 0.0
    %6292 = vmatpush1.msra.mxu0 0.0
    %6293 = vmatprep.subr.mxu0 0.0
    %6294 = vmatpush1.msra.mxu0 0.0
    %6295 = vmatprep.subr.mxu0 0.0
    %6296 = vmatpush1.msra.mxu0 0.0
    %6297 = vmatprep.subr.mxu0 0.0
    %6298 = vmatpush1.msra.mxu0 0.0
    %6299 = vmatprep.subr.mxu0 0.0
    %6300 = vmatpush1.msra.mxu0 0.0
    %6301 = vmatprep.subr.mxu0 0.0
    %6302 = vmatpush1.msra.mxu0 0.0
    %6303 = vmatprep.subr.mxu0 0.0
    %6304 = vmatpush1.msra.mxu0 0.0
    %6305 = vmatprep.subr.mxu0 0.0
    %6306 = vmatpush1.msra.mxu0 0.0
    %6307 = vmatprep.subr.mxu0 0.0
    %6308 = vmatpush1.msra.mxu0 0.0
    %6309 = vmatprep.subr.mxu0 0.0
    %6310 = vmatpush1.msra.mxu0 0.0
    %6311 = vmatprep.subr.mxu0 0.0
    %6312 = vmatpush1.msra.mxu0 0.0
    %6313 = vmatprep.subr.mxu0 0.0
    %6314 = vmatpush1.msra.mxu0 0.0
    %6315 = vmatprep.subr.mxu0 0.0
    %6316 = vmatpush1.msra.mxu0 0.0
    %6317 = vmatprep.subr.mxu0 0.0
    %6318 = vmatpush1.msra.mxu0 0.0
    %6319 = vmatprep.subr.mxu0 0.0
    %6320 = vmatpush1.msra.mxu0 0.0
    %6321 = vmatprep.subr.mxu0 0.0
    %6322 = vmatpush1.msra.mxu0 0.0
    %6323 = vmatprep.subr.mxu0 0.0
    %6324 = vmatpush1.msra.mxu0 0.0
    %6325 = vmatprep.subr.mxu0 0.0
    %6326 = vmatpush1.msra.mxu0 0.0
    %6327 = vmatprep.subr.mxu0 0.0
    %6328 = vmatpush1.msra.mxu0 0.0
    %6329 = vmatprep.subr.mxu0 0.0
    %6330 = vmatpush1.msra.mxu0 0.0
    %6331 = vmatprep.subr.mxu0 0.0
    %6332 = vmatpush1.msra.mxu0 0.0
    %6333 = vmatprep.subr.mxu0 0.0
    %6334 = vmatpush1.msra.mxu0 0.0
    %6335 = vmatprep.subr.mxu0 0.0
    %6336 = vmatpush1.msra.mxu0 0.0
    %6337 = vmatprep.subr.mxu0 0.0
    %6338 = vmatpush1.msra.mxu0 0.0
    %6339 = vmatprep.subr.mxu0 0.0
    %6340 = vmatpush1.msra.mxu0 0.0
    %6341 = vmatprep.subr.mxu0 0.0
    %6342 = vmatpush1.msra.mxu0 0.0
    %6343 = vmatprep.subr.mxu0 0.0
    %6344 = vmatpush1.msra.mxu0 0.0
    %6345 = vmatprep.mubr.f32.mxu0 0.0
    %6346 = vmatmul.mubr.f32.gmra.mrb[0].mxu0 %v6209
    %v6347 = vpop.f32.mrb[0].mxu0
    %v6348 = vadd.f32 %v4744, %v6347
    %v6349 = vpop.f32.mrb[0].mxu0
    %6350 = vdwg.mxu0
    %6351 = vmatprep.subr.mxu0 0.0
    %6352 = vmatpush1.msra.mxu0 %v4655
    %6353 = vmatprep.subr.mxu0 0.0
    %6354 = vmatpush1.msra.mxu0 %v4656
    %6355 = vmatprep.subr.mxu0 0.0
    %6356 = vmatpush1.msra.mxu0 %v4657
    %6357 = vmatprep.subr.mxu0 0.0
    %6358 = vmatpush1.msra.mxu0 %v4658
    %6359 = vmatprep.subr.mxu0 0.0
    %6360 = vmatpush1.msra.mxu0 0.0
    %6361 = vmatprep.subr.mxu0 0.0
    %6362 = vmatpush1.msra.mxu0 0.0
    %6363 = vmatprep.subr.mxu0 0.0
    %6364 = vmatpush1.msra.mxu0 0.0
    %6365 = vmatprep.subr.mxu0 0.0
    %6366 = vmatpush1.msra.mxu0 0.0
    %6367 = vmatprep.subr.mxu0 0.0
    %6368 = vmatpush1.msra.mxu0 0.0
    %6369 = vmatprep.subr.mxu0 0.0
    %6370 = vmatpush1.msra.mxu0 0.0
    %6371 = vmatprep.subr.mxu0 0.0
    %6372 = vmatpush1.msra.mxu0 0.0
    %6373 = vmatprep.subr.mxu0 0.0
    %6374 = vmatpush1.msra.mxu0 0.0
    %6375 = vmatprep.subr.mxu0 0.0
    %6376 = vmatpush1.msra.mxu0 0.0
    %6377 = vmatprep.subr.mxu0 0.0
    %6378 = vmatpush1.msra.mxu0 0.0
    %6379 = vmatprep.subr.mxu0 0.0
    %6380 = vmatpush1.msra.mxu0 0.0
    %6381 = vmatprep.subr.mxu0 0.0
    %6382 = vmatpush1.msra.mxu0 0.0
    %6383 = vmatprep.subr.mxu0 0.0
    %6384 = vmatpush1.msra.mxu0 0.0
    %6385 = vmatprep.subr.mxu0 0.0
    %6386 = vmatpush1.msra.mxu0 0.0
    %6387 = vmatprep.subr.mxu0 0.0
    %6388 = vmatpush1.msra.mxu0 0.0
    %6389 = vmatprep.subr.mxu0 0.0
    %6390 = vmatpush1.msra.mxu0 0.0
    %6391 = vmatprep.subr.mxu0 0.0
    %6392 = vmatpush1.msra.mxu0 0.0
    %6393 = vmatprep.subr.mxu0 0.0
    %6394 = vmatpush1.msra.mxu0 0.0
    %6395 = vmatprep.subr.mxu0 0.0
    %6396 = vmatpush1.msra.mxu0 0.0
    %6397 = vmatprep.subr.mxu0 0.0
    %6398 = vmatpush1.msra.mxu0 0.0
    %6399 = vmatprep.subr.mxu0 0.0
    %6400 = vmatpush1.msra.mxu0 0.0
    %6401 = vmatprep.subr.mxu0 0.0
    %6402 = vmatpush1.msra.mxu0 0.0
    %6403 = vmatprep.subr.mxu0 0.0
    %6404 = vmatpush1.msra.mxu0 0.0
    %6405 = vmatprep.subr.mxu0 0.0
    %6406 = vmatpush1.msra.mxu0 0.0
    %6407 = vmatprep.subr.mxu0 0.0
    %6408 = vmatpush1.msra.mxu0 0.0
    %6409 = vmatprep.subr.mxu0 0.0
    %6410 = vmatpush1.msra.mxu0 0.0
    %6411 = vmatprep.subr.mxu0 0.0
    %6412 = vmatpush1.msra.mxu0 0.0
    %6413 = vmatprep.subr.mxu0 0.0
    %6414 = vmatpush1.msra.mxu0 0.0
    %6415 = vmatprep.mubr.f32.mxu0 0.0
    %6416 = vmatmul.mubr.f32.gmra.mrb[0].mxu0 %v6209
    %v6417 = vpop.f32.mrb[0].mxu0
    %v6418 = vadd.f32 %v4820, %v6417
    %v6419 = vpop.f32.mrb[0].mxu0
    %6420 = vdwg.mxu0
    %v6422 = vrot.slane %v6278, 4
    %v6424 = vadd.f32 %v4642, %v6422
    %v6425 = vxor.u32 %v6424, 2147483648
    %v6426 = vmul.f32 %v6425, 1.442695
    %v6427 = vpow.pop %v6426
    %v6428 = vadd.f32 %v6427, 1.0
    %v6429 = vrcp.pop %v6428
    %v6430 = vmul.f32 1.0, %v6429
    %v6432 = vrot.slane %v6348, 4
    %6433 = vrot.lane.b32.xlu0 %v6432, 32
    %v6434 = vpop.permute.xlu0 %6433
    %v6436 = vadd.f32 %v4642, %v6434
    %v6437 = vxor.u32 %v6436, 2147483648
    %v6438 = vmul.f32 %v6437, 1.442695
    %v6439 = vpow.pop %v6438
    %v6440 = vadd.f32 %v6439, 1.0
    %v6441 = vrcp.pop %v6440
    %v6442 = vmul.f32 1.0, %v6441
    %v6444 = vrot.slane %v6418, 4
    %v6446 = vmul.f32 %v6430, %v6444
    %6448 = vrot.lane.b32.xlu0 %v6446, 64
    %v6449 = vpop.permute.xlu0 %6448
    %v6451 = vadd.f32 %v4642, %v6449
    %v6452 = vtanh.pop %v6451
    %v6453 = vsub.f32 1.0, %v6442
    %6455 = vrot.lane.b32.xlu0 %v6452, 96
    %v6456 = vpop.permute.xlu0 %6455
    %v6458 = vmul.f32 %v6453, %v6456
    %v6459 = vrot.slane %v6204, 6
    %v6461 = vmul.f32 %v6442, %v6459
    %v6462 = vadd.f32 %v6458, %v6461
    %v6464 = vrot.slane %v6462, 4
    %6465 = vrot.lane.b32.xlu0 %v6464, 96
    %v6466 = vpop.permute.xlu0 %6465
    %v6467 = vsel %vm264, %v6466, 0
    %6469 = vmatprep.subr.mxu0 0.0
    %6470 = vmatpush1.msra.mxu0 %v4645
    %6471 = vmatprep.subr.mxu0 0.0
    %6472 = vmatpush1.msra.mxu0 %v4646
    %6473 = vmatprep.subr.mxu0 0.0
    %6474 = vmatpush1.msra.mxu0 %v4647
    %6475 = vmatprep.subr.mxu0 0.0
    %6476 = vmatpush1.msra.mxu0 %v4648
    %6477 = vmatprep.subr.mxu0 0.0
    %6478 = vmatpush1.msra.mxu0 0.0
    %6479 = vmatprep.subr.mxu0 0.0
    %6480 = vmatpush1.msra.mxu0 0.0
    %6481 = vmatprep.subr.mxu0 0.0
    %6482 = vmatpush1.msra.mxu0 0.0
    %6483 = vmatprep.subr.mxu0 0.0
    %6484 = vmatpush1.msra.mxu0 0.0
    %6485 = vmatprep.subr.mxu0 0.0
    %6486 = vmatpush1.msra.mxu0 0.0
    %6487 = vmatprep.subr.mxu0 0.0
    %6488 = vmatpush1.msra.mxu0 0.0
    %6489 = vmatprep.subr.mxu0 0.0
    %6490 = vmatpush1.msra.mxu0 0.0
    %6491 = vmatprep.subr.mxu0 0.0
    %6492 = vmatpush1.msra.mxu0 0.0
    %6493 = vmatprep.subr.mxu0 0.0
    %6494 = vmatpush1.msra.mxu0 0.0
    %6495 = vmatprep.subr.mxu0 0.0
    %6496 = vmatpush1.msra.mxu0 0.0
    %6497 = vmatprep.subr.mxu0 0.0
    %6498 = vmatpush1.msra.mxu0 0.0
    %6499 = vmatprep.subr.mxu0 0.0
    %6500 = vmatpush1.msra.mxu0 0.0
    %6501 = vmatprep.subr.mxu0 0.0
    %6502 = vmatpush1.msra.mxu0 0.0
    %6503 = vmatprep.subr.mxu0 0.0
    %6504 = vmatpush1.msra.mxu0 0.0
    %6505 = vmatprep.subr.mxu0 0.0
    %6506 = vmatpush1.msra.mxu0 0.0
    %6507 = vmatprep.subr.mxu0 0.0
    %6508 = vmatpush1.msra.mxu0 0.0
    %6509 = vmatprep.subr.mxu0 0.0
    %6510 = vmatpush1.msra.mxu0 0.0
    %6511 = vmatprep.subr.mxu0 0.0
    %6512 = vmatpush1.msra.mxu0 0.0
    %6513 = vmatprep.subr.mxu0 0.0
    %6514 = vmatpush1.msra.mxu0 0.0
    %6515 = vmatprep.subr.mxu0 0.0
    %6516 = vmatpush1.msra.mxu0 0.0
    %6517 = vmatprep.subr.mxu0 0.0
    %6518 = vmatpush1.msra.mxu0 0.0
    %6519 = vmatprep.subr.mxu0 0.0
    %6520 = vmatpush1.msra.mxu0 0.0
    %6521 = vmatprep.subr.mxu0 0.0
    %6522 = vmatpush1.msra.mxu0 0.0
    %6523 = vmatprep.subr.mxu0 0.0
    %6524 = vmatpush1.msra.mxu0 0.0
    %6525 = vmatprep.subr.mxu0 0.0
    %6526 = vmatpush1.msra.mxu0 0.0
    %6527 = vmatprep.subr.mxu0 0.0
    %6528 = vmatpush1.msra.mxu0 0.0
    %6529 = vmatprep.subr.mxu0 0.0
    %6530 = vmatpush1.msra.mxu0 0.0
    %6531 = vmatprep.subr.mxu0 0.0
    %6532 = vmatpush1.msra.mxu0 0.0
    %6533 = vmatprep.mubr.f32.mxu0 0.0
    %6534 = vmatmul.mubr.f32.gmra.mrb[0].mxu0 %v6467
    %v6535 = vpop.f32.mrb[0].mxu0
    %v6536 = vadd.f32 %v4668, %v6535
    %v6537 = vpop.f32.mrb[0].mxu0
    %6538 = vdwg.mxu0
    %6539 = vmatprep.subr.mxu0 0.0
    %6540 = vmatpush1.msra.mxu0 %v4650
    %6541 = vmatprep.subr.mxu0 0.0
    %6542 = vmatpush1.msra.mxu0 %v4651
    %6543 = vmatprep.subr.mxu0 0.0
    %6544 = vmatpush1.msra.mxu0 %v4652
    %6545 = vmatprep.subr.mxu0 0.0
    %6546 = vmatpush1.msra.mxu0 %v4653
    %6547 = vmatprep.subr.mxu0 0.0
    %6548 = vmatpush1.msra.mxu0 0.0
    %6549 = vmatprep.subr.mxu0 0.0
    %6550 = vmatpush1.msra.mxu0 0.0
    %6551 = vmatprep.subr.mxu0 0.0
    %6552 = vmatpush1.msra.mxu0 0.0
    %6553 = vmatprep.subr.mxu0 0.0
    %6554 = vmatpush1.msra.mxu0 0.0
    %6555 = vmatprep.subr.mxu0 0.0
    %6556 = vmatpush1.msra.mxu0 0.0
    %6557 = vmatprep.subr.mxu0 0.0
    %6558 = vmatpush1.msra.mxu0 0.0
    %6559 = vmatprep.subr.mxu0 0.0
    %6560 = vmatpush1.msra.mxu0 0.0
    %6561 = vmatprep.subr.mxu0 0.0
    %6562 = vmatpush1.msra.mxu0 0.0
    %6563 = vmatprep.subr.mxu0 0.0
    %6564 = vmatpush1.msra.mxu0 0.0
    %6565 = vmatprep.subr.mxu0 0.0
    %6566 = vmatpush1.msra.mxu0 0.0
    %6567 = vmatprep.subr.mxu0 0.0
    %6568 = vmatpush1.msra.mxu0 0.0
    %6569 = vmatprep.subr.mxu0 0.0
    %6570 = vmatpush1.msra.mxu0 0.0
    %6571 = vmatprep.subr.mxu0 0.0
    %6572 = vmatpush1.msra.mxu0 0.0
    %6573 = vmatprep.subr.mxu0 0.0
    %6574 = vmatpush1.msra.mxu0 0.0
    %6575 = vmatprep.subr.mxu0 0.0
    %6576 = vmatpush1.msra.mxu0 0.0
    %6577 = vmatprep.subr.mxu0 0.0
    %6578 = vmatpush1.msra.mxu0 0.0
    %6579 = vmatprep.subr.mxu0 0.0
    %6580 = vmatpush1.msra.mxu0 0.0
    %6581 = vmatprep.subr.mxu0 0.0
    %6582 = vmatpush1.msra.mxu0 0.0
    %6583 = vmatprep.subr.mxu0 0.0
    %6584 = vmatpush1.msra.mxu0 0.0
    %6585 = vmatprep.subr.mxu0 0.0
    %6586 = vmatpush1.msra.mxu0 0.0
    %6587 = vmatprep.subr.mxu0 0.0
    %6588 = vmatpush1.msra.mxu0 0.0
    %6589 = vmatprep.subr.mxu0 0.0
    %6590 = vmatpush1.msra.mxu0 0.0
    %6591 = vmatprep.subr.mxu0 0.0
    %6592 = vmatpush1.msra.mxu0 0.0
    %6593 = vmatprep.subr.mxu0 0.0
    %6594 = vmatpush1.msra.mxu0 0.0
    %6595 = vmatprep.subr.mxu0 0.0
    %6596 = vmatpush1.msra.mxu0 0.0
    %6597 = vmatprep.subr.mxu0 0.0
    %6598 = vmatpush1.msra.mxu0 0.0
    %6599 = vmatprep.subr.mxu0 0.0
    %6600 = vmatpush1.msra.mxu0 0.0
    %6601 = vmatprep.subr.mxu0 0.0
    %6602 = vmatpush1.msra.mxu0 0.0
    %6603 = vmatprep.mubr.f32.mxu0 0.0
    %6604 = vmatmul.mubr.f32.gmra.mrb[0].mxu0 %v6467
    %v6605 = vpop.f32.mrb[0].mxu0
    %v6606 = vadd.f32 %v4744, %v6605
    %v6607 = vpop.f32.mrb[0].mxu0
    %6608 = vdwg.mxu0
    %6609 = vmatprep.subr.mxu0 0.0
    %6610 = vmatpush1.msra.mxu0 %v4655
    %6611 = vmatprep.subr.mxu0 0.0
    %6612 = vmatpush1.msra.mxu0 %v4656
    %6613 = vmatprep.subr.mxu0 0.0
    %6614 = vmatpush1.msra.mxu0 %v4657
    %6615 = vmatprep.subr.mxu0 0.0
    %6616 = vmatpush1.msra.mxu0 %v4658
    %6617 = vmatprep.subr.mxu0 0.0
    %6618 = vmatpush1.msra.mxu0 0.0
    %6619 = vmatprep.subr.mxu0 0.0
    %6620 = vmatpush1.msra.mxu0 0.0
    %6621 = vmatprep.subr.mxu0 0.0
    %6622 = vmatpush1.msra.mxu0 0.0
    %6623 = vmatprep.subr.mxu0 0.0
    %6624 = vmatpush1.msra.mxu0 0.0
    %6625 = vmatprep.subr.mxu0 0.0
    %6626 = vmatpush1.msra.mxu0 0.0
    %6627 = vmatprep.subr.mxu0 0.0
    %6628 = vmatpush1.msra.mxu0 0.0
    %6629 = vmatprep.subr.mxu0 0.0
    %6630 = vmatpush1.msra.mxu0 0.0
    %6631 = vmatprep.subr.mxu0 0.0
    %6632 = vmatpush1.msra.mxu0 0.0
    %6633 = vmatprep.subr.mxu0 0.0
    %6634 = vmatpush1.msra.mxu0 0.0
    %6635 = vmatprep.subr.mxu0 0.0
    %6636 = vmatpush1.msra.mxu0 0.0
    %6637 = vmatprep.subr.mxu0 0.0
    %6638 = vmatpush1.msra.mxu0 0.0
    %6639 = vmatprep.subr.mxu0 0.0
    %6640 = vmatpush1.msra.mxu0 0.0
    %6641 = vmatprep.subr.mxu0 0.0
    %6642 = vmatpush1.msra.mxu0 0.0
    %6643 = vmatprep.subr.mxu0 0.0
    %6644 = vmatpush1.msra.mxu0 0.0
    %6645 = vmatprep.subr.mxu0 0.0
    %6646 = vmatpush1.msra.mxu0 0.0
    %6647 = vmatprep.subr.mxu0 0.0
    %6648 = vmatpush1.msra.mxu0 0.0
    %6649 = vmatprep.subr.mxu0 0.0
    %6650 = vmatpush1.msra.mxu0 0.0
    %6651 = vmatprep.subr.mxu0 0.0
    %6652 = vmatpush1.msra.mxu0 0.0
    %6653 = vmatprep.subr.mxu0 0.0
    %6654 = vmatpush1.msra.mxu0 0.0
    %6655 = vmatprep.subr.mxu0 0.0
    %6656 = vmatpush1.msra.mxu0 0.0
    %6657 = vmatprep.subr.mxu0 0.0
    %6658 = vmatpush1.msra.mxu0 0.0
    %6659 = vmatprep.subr.mxu0 0.0
    %6660 = vmatpush1.msra.mxu0 0.0
    %6661 = vmatprep.subr.mxu0 0.0
    %6662 = vmatpush1.msra.mxu0 0.0
    %6663 = vmatprep.subr.mxu0 0.0
    %6664 = vmatpush1.msra.mxu0 0.0
    %6665 = vmatprep.subr.mxu0 0.0
    %6666 = vmatpush1.msra.mxu0 0.0
    %6667 = vmatprep.subr.mxu0 0.0
    %6668 = vmatpush1.msra.mxu0 0.0
    %6669 = vmatprep.subr.mxu0 0.0
    %6670 = vmatpush1.msra.mxu0 0.0
    %6671 = vmatprep.subr.mxu0 0.0
    %6672 = vmatpush1.msra.mxu0 0.0
    %6673 = vmatprep.mubr.f32.mxu0 0.0
    %6674 = vmatmul.mubr.f32.gmra.mrb[0].mxu0 %v6467
    %v6675 = vpop.f32.mrb[0].mxu0
    %v6676 = vadd.f32 %v4820, %v6675
    %v6677 = vpop.f32.mrb[0].mxu0
    %6678 = vdwg.mxu0
    %v6680 = vrot.slane %v6536, 2
    %v6682 = vadd.f32 %v4642, %v6680
    %v6683 = vxor.u32 %v6682, 2147483648
    %v6684 = vmul.f32 %v6683, 1.442695
    %v6685 = vpow.pop %v6684
    %v6686 = vadd.f32 %v6685, 1.0
    %v6687 = vrcp.pop %v6686
    %v6688 = vmul.f32 1.0, %v6687
    %v6690 = vrot.slane %v6606, 2
    %6691 = vrot.lane.b32.xlu0 %v6690, 32
    %v6692 = vpop.permute.xlu0 %6691
    %v6694 = vadd.f32 %v4642, %v6692
    %v6695 = vxor.u32 %v6694, 2147483648
    %v6696 = vmul.f32 %v6695, 1.442695
    %v6697 = vpow.pop %v6696
    %v6698 = vadd.f32 %v6697, 1.0
    %v6699 = vrcp.pop %v6698
    %v6700 = vmul.f32 1.0, %v6699
    %v6702 = vrot.slane %v6676, 2
    %v6704 = vmul.f32 %v6688, %v6702
    %6706 = vrot.lane.b32.xlu0 %v6704, 64
    %v6707 = vpop.permute.xlu0 %6706
    %v6709 = vadd.f32 %v4642, %v6707
    %v6710 = vtanh.pop %v6709
    %v6711 = vsub.f32 1.0, %v6700
    %6713 = vrot.lane.b32.xlu0 %v6710, 96
    %v6714 = vpop.permute.xlu0 %6713
    %v6716 = vmul.f32 %v6711, %v6714
    %v6717 = vrot.slane %v6462, 6
    %v6719 = vmul.f32 %v6700, %v6717
    %v6720 = vadd.f32 %v6716, %v6719
    %v6721 = vld [vmem:[%s13] sm:$0xff]
    %v6722 = vld [vmem:[%s13 + $0x8] sm:$0xff]
    %v6723 = vld [vmem:[%s13 + $0x10] sm:$0xff]
    %v6724 = vld [vmem:[%s13 + $0x18] sm:$0xff]
    %v6725 = vld [vmem:[%s14] sm:$0x1]
    %v6727 = vlaneseq
    %v6728 = vshrl.u32 %v6727, 7
    %v6729 = vsub.s32 0, %v6728
    %v6730 = vrot.slane %v6725, %v6729
    %v6733 = vrot.slane %v6720, 6
    %6734 = vrot.lane.b32.xlu0 %v6733, 96
    %v6735 = vpop.permute.xlu0 %6734
    %v6736 = vsel %vm264, %v6735, 0
    %6738 = vmatprep.subr.mxu0 0.0
    %6739 = vmatpush1.msra.mxu0 %v6721
    %6740 = vmatprep.subr.mxu0 0.0
    %6741 = vmatpush1.msra.mxu0 %v6722
    %6742 = vmatprep.subr.mxu0 0.0
    %6743 = vmatpush1.msra.mxu0 %v6723
    %6744 = vmatprep.subr.mxu0 0.0
    %6745 = vmatpush1.msra.mxu0 %v6724
    %6746 = vmatprep.subr.mxu0 0.0
    %6747 = vmatpush1.msra.mxu0 0.0
    %6748 = vmatprep.subr.mxu0 0.0
    %6749 = vmatpush1.msra.mxu0 0.0
    %6750 = vmatprep.subr.mxu0 0.0
    %6751 = vmatpush1.msra.mxu0 0.0
    %6752 = vmatprep.subr.mxu0 0.0
    %6753 = vmatpush1.msra.mxu0 0.0
    %6754 = vmatprep.subr.mxu0 0.0
    %6755 = vmatpush1.msra.mxu0 0.0
    %6756 = vmatprep.subr.mxu0 0.0
    %6757 = vmatpush1.msra.mxu0 0.0
    %6758 = vmatprep.subr.mxu0 0.0
    %6759 = vmatpush1.msra.mxu0 0.0
    %6760 = vmatprep.subr.mxu0 0.0
    %6761 = vmatpush1.msra.mxu0 0.0
    %6762 = vmatprep.subr.mxu0 0.0
    %6763 = vmatpush1.msra.mxu0 0.0
    %6764 = vmatprep.subr.mxu0 0.0
    %6765 = vmatpush1.msra.mxu0 0.0
    %6766 = vmatprep.subr.mxu0 0.0
    %6767 = vmatpush1.msra.mxu0 0.0
    %6768 = vmatprep.subr.mxu0 0.0
    %6769 = vmatpush1.msra.mxu0 0.0
    %6770 = vmatprep.subr.mxu0 0.0
    %6771 = vmatpush1.msra.mxu0 0.0
    %6772 = vmatprep.subr.mxu0 0.0
    %6773 = vmatpush1.msra.mxu0 0.0
    %6774 = vmatprep.subr.mxu0 0.0
    %6775 = vmatpush1.msra.mxu0 0.0
    %6776 = vmatprep.subr.mxu0 0.0
    %6777 = vmatpush1.msra.mxu0 0.0
    %6778 = vmatprep.subr.mxu0 0.0
    %6779 = vmatpush1.msra.mxu0 0.0
    %6780 = vmatprep.subr.mxu0 0.0
    %6781 = vmatpush1.msra.mxu0 0.0
    %6782 = vmatprep.subr.mxu0 0.0
    %6783 = vmatpush1.msra.mxu0 0.0
    %6784 = vmatprep.subr.mxu0 0.0
    %6785 = vmatpush1.msra.mxu0 0.0
    %6786 = vmatprep.subr.mxu0 0.0
    %6787 = vmatpush1.msra.mxu0 0.0
    %6788 = vmatprep.subr.mxu0 0.0
    %6789 = vmatpush1.msra.mxu0 0.0
    %6790 = vmatprep.subr.mxu0 0.0
    %6791 = vmatpush1.msra.mxu0 0.0
    %6792 = vmatprep.subr.mxu0 0.0
    %6793 = vmatpush1.msra.mxu0 0.0
    %6794 = vmatprep.subr.mxu0 0.0
    %6795 = vmatpush1.msra.mxu0 0.0
    %6796 = vmatprep.subr.mxu0 0.0
    %6797 = vmatpush1.msra.mxu0 0.0
    %6798 = vmatprep.subr.mxu0 0.0
    %6799 = vmatpush1.msra.mxu0 0.0
    %6800 = vmatprep.subr.mxu0 0.0
    %6801 = vmatpush1.msra.mxu0 0.0
    %6802 = vmatprep.mubr.f32.mxu0 0.0
    %6803 = vmatmul.mubr.f32.gmra.mrb[0].mxu0 %v6736
    %v6804 = vpop.f32.mrb[0].mxu0
    %v6805 = vadd.f32 %v6730, %v6804
    %v6806 = vpop.f32.mrb[0].mxu0
    %6807 = vdwg.mxu0
    %vm6808 = vcmask 25600
    %6809 = vst.msk [vmem:[#allocation15] sm:$0x3] %vm6808, %v6805
    // Predicated region
    $region90: #{tpu_custom_call.1} parent=1 // pred_check
      _
    $region91: #{tpu_custom_call.1} parent=1 // pred_check_branch
      %6811 = sbr.rel (0) target = $region93
    $region92: #{tpu_custom_call.1} parent=1 // pred_region
      %s6813 = ssub.s32 32, 32
      %6814 = vsyncadd [#allocation5], %s6813
      %s6816 = sshll.u32 [#allocation15], 4
      %s6817 = int_to_ptr.vmem [resolvable:$true] %s6816
      %6819 = dma.vmem_to_hbm [thread:$0]  %s6817, 32, %s15, [#allocation5]
    $region93: #{tpu_custom_call.1} parent=1 // pred_fallthru
      _
    // Predicated region
    $region94: #{tpu_custom_call.1} parent=1 // pred_check
      _
    $region95: #{tpu_custom_call.1} parent=1 // pred_check_branch
      %6821 = sbr.rel (0) target = $region97
    $region96: #{tpu_custom_call.1} parent=1 // pred_region
      %6822 = dma.done [#allocation5], 32
    $region97: #{tpu_custom_call.1} parent=1 // pred_fallthru
      _
    %6823 = vsyncpa [#allocation4], 1
    %6824 = vsyncpa [#allocation7], 1
    %6825 = vsyncpa [#allocation10], 1
    %6826 = vsyncpa [#allocation13], 1
    %6827 = vsyncpa [#allocation5], 1

</llo_original>
